<compile_context>
chip_gen: v7x
topology: tpu7x:2x2x1
jax: 0.10.0
libtpu: 0.0.40
codegen_flags: <defaults>
</compile_context>

<pallas_src>
import jax
import jax.numpy as jnp
from jax.experimental import pallas as pl
from jax.experimental.pallas import tpu as pltpu


# ---------------------------------------------------------------------------
# In-kernel helpers
# ---------------------------------------------------------------------------

def _row_shift(y, s):
    """Return z with z[p] = y[p + s]; rows shifted in from outside are zero."""
    if s == 0:
        return y
    pad = jnp.zeros((abs(s), y.shape[1]), y.dtype)
    if s > 0:
        return jnp.concatenate([y[s:], pad], axis=0)
    return jnp.concatenate([pad, y[:s]], axis=0)


def _make_net_kernel(batch, t_steps, ow, taps):
    """Builds the single fused forward kernel (closure over static sizes)."""

    def kernel(patches_ref, w0_ref, b0_ref, w1_ref, b1_ref, vmask_ref, pool_ref,
               wih_ref, bih_ref, whh_ref, bhh_ref, wc_ref, bc_ref, mask_ref,
               out_ref):
        f32 = jnp.float32

        # ---- conv0 + folded BN + ReLU: (M, 25) @ (25, C0) on the MXU --------
        h0 = jnp.maximum(
            jnp.dot(patches_ref[...], w0_ref[...], preferred_element_type=f32)
            + b0_ref[...], 0.0)                                    # (M, C0)

        # ---- conv1 (3x3, pad 1) + folded BN + ReLU: 9 shifted tap matmuls ---
        vmask = vmask_ref[...]                                     # (M, 9)
        acc = None
        for k, (di, dj) in enumerate(taps):
            y = jnp.dot(h0, w1_ref[k], preferred_element_type=f32)  # (M, C1)
            y = _row_shift(y, di * ow + dj)
            if di or dj:          # interior tap needs no boundary mask
                y = y * vmask[:, k:k + 1]
            acc = y if acc is None else acc + y
        h1 = jnp.maximum(acc + b1_ref[...], 0.0)                   # (M, C1)

        # ---- 2x2/2 maxpool (ceil) via shifted max, then GAP via pool matrix -
        m = jnp.maximum(jnp.maximum(h1, _row_shift(h1, 1)),
                        jnp.maximum(_row_shift(h1, ow), _row_shift(h1, ow + 1)))
        feat = jnp.dot(pool_ref[...], m, preferred_element_type=f32)  # (T*B, C1)
        # Dropout(0.2): identity in eval mode.

        # ---- GRU input projection, hoisted out of the recurrence (gates r/z/n)
        gi = [jnp.dot(feat, wih_ref[g], preferred_element_type=f32) + bih_ref[g]
              for g in range(3)]                                   # 3 x (T*B, H)

        # ---- GRU recurrence: fully unrolled in-kernel loop, h lives in vregs
        hidden = whh_ref.shape[-1]
        h = jnp.zeros((batch, hidden), f32)
        for t in range(t_steps):
            lo = t * batch
            x_r = gi[0][lo:lo + batch]
            x_z = gi[1][lo:lo + batch]
            x_n = gi[2][lo:lo + batch]
            g_r = jnp.dot(h, whh_ref[0], preferred_element_type=f32) + bhh_ref[0]
            g_z = jnp.dot(h, whh_ref[1], preferred_element_type=f32) + bhh_ref[1]
            g_n = jnp.dot(h, whh_ref[2], preferred_element_type=f32) + bhh_ref[2]
            r = jax.nn.sigmoid(x_r + g_r)
            z = jax.nn.sigmoid(x_z + g_z)
            n = jnp.tanh(x_n + r * g_n)
            h_new = (1.0 - z) * n + z * h
            # pack_padded_sequence semantics: freeze h once t >= seq_len[b].
            h = jnp.where(mask_ref[t] > 0.5, h_new, h)

        # ---- classifier + numerically stable log-softmax, fused -------------
        logits = jnp.dot(h, wc_ref[...], preferred_element_type=f32) + bc_ref[...]
        mx = jnp.max(logits, axis=-1, keepdims=True)
        lse = jnp.log(jnp.sum(jnp.exp(logits - mx), axis=-1, keepdims=True)) + mx
        out_ref[...] = logits - lse

    return kernel


# ---------------------------------------------------------------------------
# JAX glue (im2col of the raw input, weight folding, constant matrices)
# ---------------------------------------------------------------------------

def _im2col(x_nchw, kh, kw, stride, pad):
    n, c, h, w = x_nchw.shape
    xp = jnp.pad(x_nchw, ((0, 0), (0, 0), (pad, pad), (pad, pad)))
    oh = (h + 2 * pad - kh) // stride + 1
    ow = (w + 2 * pad - kw) // stride + 1
    cols = []
    for i in range(kh):
        for j in range(kw):
            cols.append(xp[:, :, i:i + stride * oh:stride, j:j + stride * ow:stride])
    pat = jnp.stack(cols, axis=2)                 # (N, C, kh*kw, OH, OW)
    pat = jnp.transpose(pat, (0, 3, 4, 1, 2))     # (N, OH, OW, C, kh*kw)
    return pat.reshape(n * oh * ow, c * kh * kw), oh, ow


def net_forward(params, x, seq_len, eps=1e-5):
    """x: (B, T, 1, H, W) float32; seq_len: (B,) int32 (descending, as
    pack_padded_sequence requires). Returns (B, num_classes) log-probs."""
    batch, t_steps = x.shape[0], x.shape[1]

    w0, g0, be0, m0, v0 = params['conv0']
    w1, g1, be1, m1, v1 = params['conv1']
    w_ih, w_hh, b_ih, b_hh = params['gru']
    wc, bc = params['cls']
    c0, c1 = w0.shape[0], w1.shape[0]
    hidden = w_hh.shape[1]
    num_classes = wc.shape[0]

    # Frames in (t, b) order: x.transpose(0, 1); conv is applied to every frame.
    xt = jnp.transpose(x, (1, 0, 2, 3, 4)).reshape(t_steps * batch, *x.shape[2:])
    patches, oh, ow = _im2col(xt, 5, 5, 2, 2)           # (T*B*OH*OW, 25)
    m_rows = patches.shape[0]
    assert oh % 2 == 0 and ow % 2 == 0  # TODO(synk): odd dims need ceil-pool padding

    # Fold eval-mode BatchNorm into the conv weights / biases.
    s0 = g0 / jnp.sqrt(v0 + eps)
    w0f = w0.reshape(c0, -1).T * s0[None, :]            # (25, C0)
    b0f = (be0 - m0 * s0).reshape(1, c0)
    s1 = g1 / jnp.sqrt(v1 + eps)
    taps = [(ki - 1, kj - 1) for ki in range(3) for kj in range(3)]
    w1f = jnp.stack([w1[:, :, di + 1, dj + 1].T * s1[None, :] for di, dj in taps],
                    axis=0)                              # (9, C0, C1)
    b1f = (be1 - m1 * s1).reshape(1, c1)

    # Per-row conv1 tap validity (zero padding at the spatial borders) and the
    # fused maxpool(2x2)+GAP pooling matrix.
    rows = jnp.arange(m_rows)
    r_oh = (rows // ow) % oh
    r_ow = rows % ow
    vmask = jnp.stack(
        [((r_oh + di) >= 0) & ((r_oh + di) < oh) & ((r_ow + dj) >= 0) & ((r_ow + dj) < ow)
         for di, dj in taps], axis=1).astype(jnp.float32)            # (M, 9)
    samp = rows // (oh * ow)
    sel = ((r_oh % 2) == 0) & ((r_ow % 2) == 0)
    pool = ((samp[None, :] == jnp.arange(t_steps * batch)[:, None]) & sel[None, :])
    pool = pool.astype(jnp.float32) / float((oh // 2) * (ow // 2))   # (T*B, M)

    # GRU weights: split per gate (r, z, n) and pre-transpose for x @ W.
    wih_g = jnp.stack([w_ih[g * hidden:(g + 1) * hidden].T for g in range(3)], 0)  # (3, I, H)
    whh_g = jnp.stack([w_hh[g * hidden:(g + 1) * hidden].T for g in range(3)], 0)  # (3, H, H)
    bih_g = b_ih.reshape(3, 1, hidden)
    bhh_g = b_hh.reshape(3, 1, hidden)

    wct = wc.T                                          # (H, num_classes)
    bcr = bc.reshape(1, num_classes)

    # packed-sequence mask: 1.0 while t < seq_len[b]
    mask = (jnp.arange(t_steps)[:, None] < seq_len[None, :]).astype(jnp.float32)[:, :, None]

    kernel = _make_net_kernel(batch, t_steps, ow, taps)
    return pl.pallas_call(
        kernel,
        out_shape=jax.ShapeDtypeStruct((batch, num_classes), jnp.float32),
        compiler_params=pltpu.CompilerParams(vmem_limit_bytes=32 * 1024 * 1024),
    )(patches, w0f, b0f, w1f, b1f, vmask, pool,
      wih_g, bih_g, whh_g, bhh_g, wct, bcr, mask)


# ---------------------------------------------------------------------------
# Pure-JAX reference forward (used only as a numerical self-check)
# ---------------------------------------------------------------------------

def net_reference(params, x, seq_len, eps=1e-5):
    w0, g0, be0, m0, v0 = params['conv0']
    w1, g1, be1, m1, v1 = params['conv1']
    w_ih, w_hh, b_ih, b_hh = params['gru']
    wc, bc = params['cls']
    batch, t_steps = x.shape[0], x.shape[1]
    hidden = w_hh.shape[1]

    xt = jnp.transpose(x, (1, 0, 2, 3, 4)).reshape(t_steps * batch, *x.shape[2:])

    def conv_bn_relu(h, w, g, be, mu, var, stride, pad):
        out = jax.lax.conv_general_dilated(
            h, w, window_strides=(stride, stride),
            padding=[(pad, pad), (pad, pad)],
            dimension_numbers=('NCHW', 'OIHW', 'NCHW'))
        s = (g / jnp.sqrt(var + eps)).reshape(1, -1, 1, 1)
        sh = (be - mu * g / jnp.sqrt(var + eps)).reshape(1, -1, 1, 1)
        return jnp.maximum(out * s + sh, 0.0)

    h = conv_bn_relu(xt, w0, g0, be0, m0, v0, 2, 2)
    h = conv_bn_relu(h, w1, g1, be1, m1, v1, 1, 1)
    h = jax.lax.reduce_window(h, -jnp.inf, jax.lax.max,
                              (1, 1, 2, 2), (1, 1, 2, 2), 'VALID')
    feat = h.mean(axis=(2, 3)).reshape(t_steps, batch, -1)

    hs = jnp.zeros((batch, hidden), jnp.float32)
    for t in range(t_steps):
        gi = feat[t] @ w_ih.T + b_ih
        gh = hs @ w_hh.T + b_hh
        r = jax.nn.sigmoid(gi[:, :hidden] + gh[:, :hidden])
        z = jax.nn.sigmoid(gi[:, hidden:2 * hidden] + gh[:, hidden:2 * hidden])
        n = jnp.tanh(gi[:, 2 * hidden:] + r * gh[:, 2 * hidden:])
        h_new = (1.0 - z) * n + z * hs
        msk = (t < seq_len).astype(jnp.float32)[:, None]
        hs = msk * h_new + (1.0 - msk) * hs
    logits = hs @ wc.T + bc
    return jax.nn.log_softmax(logits, axis=-1)


# ---------------------------------------------------------------------------
# Deterministic parameter init (shapes from Net.__init__ with
# layers=[8, 'M', 'GAP'], in_channels=4, gru_input=8, gru_hidden=16, classes=5)
# ---------------------------------------------------------------------------

def init_params(key, in_channels=4, mid_channels=8, gru_input=8,
                gru_hidden=16, num_classes=5):
    ks = jax.random.split(key, 8)

    def conv_p(k, cout, cin, kh, kw):
        k1, k2, k3, k4, k5 = jax.random.split(k, 5)
        w = 0.1 * jax.random.normal(k1, (cout, cin, kh, kw), jnp.float32)
        gamma = 1.0 + 0.1 * jax.random.normal(k2, (cout,), jnp.float32)
        beta = 0.1 * jax.random.normal(k3, (cout,), jnp.float32)
        rmean = 0.1 * jax.random.normal(k4, (cout,), jnp.float32)
        rvar = 1.0 + 0.1 * jax.random.uniform(k5, (cout,), jnp.float32)
        return (w, gamma, beta, rmean, rvar)

    H = gru_hidden
    return {
        'conv0': conv_p(ks[0], in_channels, 1, 5, 5),
        'conv1': conv_p(ks[1], mid_channels, in_channels, 3, 3),
        'gru': (
            0.1 * jax.random.normal(ks[2], (3 * H, gru_input), jnp.float32),   # W_ih
            0.1 * jax.random.normal(ks[3], (3 * H, H), jnp.float32),           # W_hh
            0.1 * jax.random.normal(ks[4], (3 * H,), jnp.float32),             # b_ih
            0.1 * jax.random.normal(ks[5], (3 * H,), jnp.float32),             # b_hh
        ),
        'cls': (
            0.1 * jax.random.normal(ks[6], (num_classes, H), jnp.float32),
            0.1 * jax.random.normal(ks[7], (num_classes,), jnp.float32),
        ),
    }


if __name__ == "__main__":
    key = jax.random.PRNGKey(0)
    kp, kx = jax.random.split(key)
    params = init_params(kp)

    B, T, Him, Wim = 2, 4, 16, 16
    x = jax.random.normal(kx, (B, T, 1, Him, Wim), jnp.float32)
    seq_len = jnp.array([4, 3], dtype=jnp.int32)   # descending, as pack_padded_sequence requires

    out = jax.jit(net_forward)(params, x, seq_len)
    jax.block_until_ready(out)
    assert out.shape == (B, 5), out.shape

    # numerical self-check against the pure-JAX reference forward pass
    ref = net_reference(params, x, seq_len)
    assert bool(jnp.all(jnp.isfinite(out))), "non-finite output"
    max_err = float(jnp.max(jnp.abs(out - ref)))
    assert max_err < 2e-3, max_err

    print("KERNEL_OK")
</pallas_src>

<mosaic_0001>
module attributes {stable_mosaic.version = 11 : i64} {
  func.func @kernel(%arg0: memref<512x25xf32, #tpu.memory_space<vmem>>, %arg1: memref<25x4xf32, #tpu.memory_space<vmem>>, %arg2: memref<1x4xf32, #tpu.memory_space<vmem>>, %arg3: memref<9x4x8xf32, #tpu.memory_space<vmem>>, %arg4: memref<1x8xf32, #tpu.memory_space<vmem>>, %arg5: memref<512x9xf32, #tpu.memory_space<vmem>>, %arg6: memref<8x512xf32, #tpu.memory_space<vmem>>, %arg7: memref<3x8x16xf32, #tpu.memory_space<vmem>>, %arg8: memref<3x1x16xf32, #tpu.memory_space<vmem>>, %arg9: memref<3x16x16xf32, #tpu.memory_space<vmem>>, %arg10: memref<3x1x16xf32, #tpu.memory_space<vmem>>, %arg11: memref<16x5xf32, #tpu.memory_space<vmem>>, %arg12: memref<1x5xf32, #tpu.memory_space<vmem>>, %arg13: memref<4x2x1xf32, #tpu.memory_space<vmem>>, %arg14: memref<2x5xf32, #tpu.memory_space<vmem>>) attributes {dimension_semantics = [], scalar_prefetch = 0 : i64, scratch_operands = 0 : i64, tpu.core_type = #tpu.core_type<tc>} {
    %c0 = arith.constant 0 : index
    %c0_0 = arith.constant 0 : index
    %0 = vector.load %arg0[%c0, %c0_0] : memref<512x25xf32, #tpu.memory_space<vmem>>, vector<512x25xf32>
    %c0_1 = arith.constant 0 : index
    %c0_2 = arith.constant 0 : index
    %1 = vector.load %arg1[%c0_1, %c0_2] : memref<25x4xf32, #tpu.memory_space<vmem>>, vector<25x4xf32>
    %cst = arith.constant dense<0.000000e+00> : vector<512x4xf32>
    %2 = tpu.matmul %0, %1, %cst {dimension_numbers = #tpu.dot_dimension_numbers<[1], [0], [0], [1], [0, 0, 1, 1], [], []>} : vector<512x25xf32>, vector<25x4xf32>, vector<512x4xf32> -> vector<512x4xf32>
    %c0_3 = arith.constant 0 : index
    %c0_4 = arith.constant 0 : index
    %3 = vector.load %arg2[%c0_3, %c0_4] : memref<1x4xf32, #tpu.memory_space<vmem>>, vector<1x4xf32>
    %4 = vector.broadcast %3 : vector<1x4xf32> to vector<512x4xf32>
    %5 = arith.addf %2, %4 : vector<512x4xf32>
    %cst_5 = arith.constant 0.000000e+00 : f32
    %6 = vector.broadcast %cst_5 : f32 to vector<512x4xf32>
    %7 = arith.maximumf %5, %6 : vector<512x4xf32>
    %c0_6 = arith.constant 0 : index
    %c0_7 = arith.constant 0 : index
    %8 = vector.load %arg5[%c0_6, %c0_7] : memref<512x9xf32, #tpu.memory_space<vmem>>, vector<512x9xf32>
    %c0_8 = arith.constant 0 : index
    %c0_9 = arith.constant 0 : index
    %c0_10 = arith.constant 0 : index
    %9 = vector.load %arg3[%c0_8, %c0_9, %c0_10] : memref<9x4x8xf32, #tpu.memory_space<vmem>>, vector<1x4x8xf32>
    %10 = vector.shape_cast %9 : vector<1x4x8xf32> to vector<4x8xf32>
    %cst_11 = arith.constant dense<0.000000e+00> : vector<512x8xf32>
    %11 = tpu.matmul %7, %10, %cst_11 {dimension_numbers = #tpu.dot_dimension_numbers<[1], [0], [0], [1], [0, 0, 1, 1], [], []>} : vector<512x4xf32>, vector<4x8xf32>, vector<512x8xf32> -> vector<512x8xf32>
    %cst_12 = arith.constant 0.000000e+00 : f32
    %12 = vector.broadcast %cst_12 : f32 to vector<9x8xf32>
    %13 = vector.extract_strided_slice %11 {offsets = [0, 0], sizes = [503, 8], strides = [1, 1]} : vector<512x8xf32> to vector<503x8xf32>
    %14 = tpu.concatenate %12, %13 in 0 : vector<9x8xf32>, vector<503x8xf32> -> vector<512x8xf32>
    %15 = vector.extract_strided_slice %8 {offsets = [0, 0], sizes = [512, 1], strides = [1, 1]} : vector<512x9xf32> to vector<512x1xf32>
    %16 = vector.broadcast %15 : vector<512x1xf32> to vector<512x8xf32>
    %17 = arith.mulf %14, %16 : vector<512x8xf32>
    %c1 = arith.constant 1 : index
    %c0_13 = arith.constant 0 : index
    %c0_14 = arith.constant 0 : index
    %18 = vector.load %arg3[%c1, %c0_13, %c0_14] : memref<9x4x8xf32, #tpu.memory_space<vmem>>, vector<1x4x8xf32>
    %19 = vector.shape_cast %18 : vector<1x4x8xf32> to vector<4x8xf32>
    %cst_15 = arith.constant dense<0.000000e+00> : vector<512x8xf32>
    %20 = tpu.matmul %7, %19, %cst_15 {dimension_numbers = #tpu.dot_dimension_numbers<[1], [0], [0], [1], [0, 0, 1, 1], [], []>} : vector<512x4xf32>, vector<4x8xf32>, vector<512x8xf32> -> vector<512x8xf32>
    %cst_16 = arith.constant 0.000000e+00 : f32
    %21 = vector.broadcast %cst_16 : f32 to vector<8x8xf32>
    %22 = vector.extract_strided_slice %20 {offsets = [0, 0], sizes = [504, 8], strides = [1, 1]} : vector<512x8xf32> to vector<504x8xf32>
    %23 = tpu.concatenate %21, %22 in 0 : vector<8x8xf32>, vector<504x8xf32> -> vector<512x8xf32>
    %24 = vector.extract_strided_slice %8 {offsets = [0, 1], sizes = [512, 1], strides = [1, 1]} : vector<512x9xf32> to vector<512x1xf32>
    %25 = vector.broadcast %24 : vector<512x1xf32> to vector<512x8xf32>
    %26 = arith.mulf %23, %25 : vector<512x8xf32>
    %27 = arith.addf %17, %26 : vector<512x8xf32>
    %c2 = arith.constant 2 : index
    %c0_17 = arith.constant 0 : index
    %c0_18 = arith.constant 0 : index
    %28 = vector.load %arg3[%c2, %c0_17, %c0_18] : memref<9x4x8xf32, #tpu.memory_space<vmem>>, vector<1x4x8xf32>
    %29 = vector.shape_cast %28 : vector<1x4x8xf32> to vector<4x8xf32>
    %cst_19 = arith.constant dense<0.000000e+00> : vector<512x8xf32>
    %30 = tpu.matmul %7, %29, %cst_19 {dimension_numbers = #tpu.dot_dimension_numbers<[1], [0], [0], [1], [0, 0, 1, 1], [], []>} : vector<512x4xf32>, vector<4x8xf32>, vector<512x8xf32> -> vector<512x8xf32>
    %cst_20 = arith.constant 0.000000e+00 : f32
    %31 = vector.broadcast %cst_20 : f32 to vector<7x8xf32>
    %32 = vector.extract_strided_slice %30 {offsets = [0, 0], sizes = [505, 8], strides = [1, 1]} : vector<512x8xf32> to vector<505x8xf32>
    %33 = tpu.concatenate %31, %32 in 0 : vector<7x8xf32>, vector<505x8xf32> -> vector<512x8xf32>
    %34 = vector.extract_strided_slice %8 {offsets = [0, 2], sizes = [512, 1], strides = [1, 1]} : vector<512x9xf32> to vector<512x1xf32>
    %35 = vector.broadcast %34 : vector<512x1xf32> to vector<512x8xf32>
    %36 = arith.mulf %33, %35 : vector<512x8xf32>
    %37 = arith.addf %27, %36 : vector<512x8xf32>
    %c3 = arith.constant 3 : index
    %c0_21 = arith.constant 0 : index
    %c0_22 = arith.constant 0 : index
    %38 = vector.load %arg3[%c3, %c0_21, %c0_22] : memref<9x4x8xf32, #tpu.memory_space<vmem>>, vector<1x4x8xf32>
    %39 = vector.shape_cast %38 : vector<1x4x8xf32> to vector<4x8xf32>
    %cst_23 = arith.constant dense<0.000000e+00> : vector<512x8xf32>
    %40 = tpu.matmul %7, %39, %cst_23 {dimension_numbers = #tpu.dot_dimension_numbers<[1], [0], [0], [1], [0, 0, 1, 1], [], []>} : vector<512x4xf32>, vector<4x8xf32>, vector<512x8xf32> -> vector<512x8xf32>
    %cst_24 = arith.constant 0.000000e+00 : f32
    %41 = vector.broadcast %cst_24 : f32 to vector<1x8xf32>
    %42 = vector.extract_strided_slice %40 {offsets = [0, 0], sizes = [511, 8], strides = [1, 1]} : vector<512x8xf32> to vector<511x8xf32>
    %43 = tpu.concatenate %41, %42 in 0 : vector<1x8xf32>, vector<511x8xf32> -> vector<512x8xf32>
    %44 = vector.extract_strided_slice %8 {offsets = [0, 3], sizes = [512, 1], strides = [1, 1]} : vector<512x9xf32> to vector<512x1xf32>
    %45 = vector.broadcast %44 : vector<512x1xf32> to vector<512x8xf32>
    %46 = arith.mulf %43, %45 : vector<512x8xf32>
    %47 = arith.addf %37, %46 : vector<512x8xf32>
    %c4 = arith.constant 4 : index
    %c0_25 = arith.constant 0 : index
    %c0_26 = arith.constant 0 : index
    %48 = vector.load %arg3[%c4, %c0_25, %c0_26] : memref<9x4x8xf32, #tpu.memory_space<vmem>>, vector<1x4x8xf32>
    %49 = vector.shape_cast %48 : vector<1x4x8xf32> to vector<4x8xf32>
    %cst_27 = arith.constant dense<0.000000e+00> : vector<512x8xf32>
    %50 = tpu.matmul %7, %49, %cst_27 {dimension_numbers = #tpu.dot_dimension_numbers<[1], [0], [0], [1], [0, 0, 1, 1], [], []>} : vector<512x4xf32>, vector<4x8xf32>, vector<512x8xf32> -> vector<512x8xf32>
    %51 = arith.addf %47, %50 : vector<512x8xf32>
    %c5 = arith.constant 5 : index
    %c0_28 = arith.constant 0 : index
    %c0_29 = arith.constant 0 : index
    %52 = vector.load %arg3[%c5, %c0_28, %c0_29] : memref<9x4x8xf32, #tpu.memory_space<vmem>>, vector<1x4x8xf32>
    %53 = vector.shape_cast %52 : vector<1x4x8xf32> to vector<4x8xf32>
    %cst_30 = arith.constant dense<0.000000e+00> : vector<512x8xf32>
    %54 = tpu.matmul %7, %53, %cst_30 {dimension_numbers = #tpu.dot_dimension_numbers<[1], [0], [0], [1], [0, 0, 1, 1], [], []>} : vector<512x4xf32>, vector<4x8xf32>, vector<512x8xf32> -> vector<512x8xf32>
    %cst_31 = arith.constant 0.000000e+00 : f32
    %55 = vector.broadcast %cst_31 : f32 to vector<1x8xf32>
    %56 = vector.extract_strided_slice %54 {offsets = [1, 0], sizes = [511, 8], strides = [1, 1]} : vector<512x8xf32> to vector<511x8xf32>
    %57 = tpu.concatenate %56, %55 in 0 : vector<511x8xf32>, vector<1x8xf32> -> vector<512x8xf32>
    %58 = vector.extract_strided_slice %8 {offsets = [0, 5], sizes = [512, 1], strides = [1, 1]} : vector<512x9xf32> to vector<512x1xf32>
    %59 = vector.broadcast %58 : vector<512x1xf32> to vector<512x8xf32>
    %60 = arith.mulf %57, %59 : vector<512x8xf32>
    %61 = arith.addf %51, %60 : vector<512x8xf32>
    %c6 = arith.constant 6 : index
    %c0_32 = arith.constant 0 : index
    %c0_33 = arith.constant 0 : index
    %62 = vector.load %arg3[%c6, %c0_32, %c0_33] : memref<9x4x8xf32, #tpu.memory_space<vmem>>, vector<1x4x8xf32>
    %63 = vector.shape_cast %62 : vector<1x4x8xf32> to vector<4x8xf32>
    %cst_34 = arith.constant dense<0.000000e+00> : vector<512x8xf32>
    %64 = tpu.matmul %7, %63, %cst_34 {dimension_numbers = #tpu.dot_dimension_numbers<[1], [0], [0], [1], [0, 0, 1, 1], [], []>} : vector<512x4xf32>, vector<4x8xf32>, vector<512x8xf32> -> vector<512x8xf32>
    %cst_35 = arith.constant 0.000000e+00 : f32
    %65 = vector.broadcast %cst_35 : f32 to vector<7x8xf32>
    %66 = vector.extract_strided_slice %64 {offsets = [7, 0], sizes = [505, 8], strides = [1, 1]} : vector<512x8xf32> to vector<505x8xf32>
    %67 = tpu.concatenate %66, %65 in 0 : vector<505x8xf32>, vector<7x8xf32> -> vector<512x8xf32>
    %68 = vector.extract_strided_slice %8 {offsets = [0, 6], sizes = [512, 1], strides = [1, 1]} : vector<512x9xf32> to vector<512x1xf32>
    %69 = vector.broadcast %68 : vector<512x1xf32> to vector<512x8xf32>
    %70 = arith.mulf %67, %69 : vector<512x8xf32>
    %71 = arith.addf %61, %70 : vector<512x8xf32>
    %c7 = arith.constant 7 : index
    %c0_36 = arith.constant 0 : index
    %c0_37 = arith.constant 0 : index
    %72 = vector.load %arg3[%c7, %c0_36, %c0_37] : memref<9x4x8xf32, #tpu.memory_space<vmem>>, vector<1x4x8xf32>
    %73 = vector.shape_cast %72 : vector<1x4x8xf32> to vector<4x8xf32>
    %cst_38 = arith.constant dense<0.000000e+00> : vector<512x8xf32>
    %74 = tpu.matmul %7, %73, %cst_38 {dimension_numbers = #tpu.dot_dimension_numbers<[1], [0], [0], [1], [0, 0, 1, 1], [], []>} : vector<512x4xf32>, vector<4x8xf32>, vector<512x8xf32> -> vector<512x8xf32>
    %cst_39 = arith.constant 0.000000e+00 : f32
    %75 = vector.broadcast %cst_39 : f32 to vector<8x8xf32>
    %76 = vector.extract_strided_slice %74 {offsets = [8, 0], sizes = [504, 8], strides = [1, 1]} : vector<512x8xf32> to vector<504x8xf32>
    %77 = tpu.concatenate %76, %75 in 0 : vector<504x8xf32>, vector<8x8xf32> -> vector<512x8xf32>
    %78 = vector.extract_strided_slice %8 {offsets = [0, 7], sizes = [512, 1], strides = [1, 1]} : vector<512x9xf32> to vector<512x1xf32>
    %79 = vector.broadcast %78 : vector<512x1xf32> to vector<512x8xf32>
    %80 = arith.mulf %77, %79 : vector<512x8xf32>
    %81 = arith.addf %71, %80 : vector<512x8xf32>
    %c8 = arith.constant 8 : index
    %c0_40 = arith.constant 0 : index
    %c0_41 = arith.constant 0 : index
    %82 = vector.load %arg3[%c8, %c0_40, %c0_41] : memref<9x4x8xf32, #tpu.memory_space<vmem>>, vector<1x4x8xf32>
    %83 = vector.shape_cast %82 : vector<1x4x8xf32> to vector<4x8xf32>
    %cst_42 = arith.constant dense<0.000000e+00> : vector<512x8xf32>
    %84 = tpu.matmul %7, %83, %cst_42 {dimension_numbers = #tpu.dot_dimension_numbers<[1], [0], [0], [1], [0, 0, 1, 1], [], []>} : vector<512x4xf32>, vector<4x8xf32>, vector<512x8xf32> -> vector<512x8xf32>
    %cst_43 = arith.constant 0.000000e+00 : f32
    %85 = vector.broadcast %cst_43 : f32 to vector<9x8xf32>
    %86 = vector.extract_strided_slice %84 {offsets = [9, 0], sizes = [503, 8], strides = [1, 1]} : vector<512x8xf32> to vector<503x8xf32>
    %87 = tpu.concatenate %86, %85 in 0 : vector<503x8xf32>, vector<9x8xf32> -> vector<512x8xf32>
    %88 = vector.extract_strided_slice %8 {offsets = [0, 8], sizes = [512, 1], strides = [1, 1]} : vector<512x9xf32> to vector<512x1xf32>
    %89 = vector.broadcast %88 : vector<512x1xf32> to vector<512x8xf32>
    %90 = arith.mulf %87, %89 : vector<512x8xf32>
    %91 = arith.addf %81, %90 : vector<512x8xf32>
    %c0_44 = arith.constant 0 : index
    %c0_45 = arith.constant 0 : index
    %92 = vector.load %arg4[%c0_44, %c0_45] : memref<1x8xf32, #tpu.memory_space<vmem>>, vector<1x8xf32>
    %93 = vector.broadcast %92 : vector<1x8xf32> to vector<512x8xf32>
    %94 = arith.addf %91, %93 : vector<512x8xf32>
    %cst_46 = arith.constant 0.000000e+00 : f32
    %95 = vector.broadcast %cst_46 : f32 to vector<512x8xf32>
    %96 = arith.maximumf %94, %95 : vector<512x8xf32>
    %cst_47 = arith.constant 0.000000e+00 : f32
    %97 = vector.broadcast %cst_47 : f32 to vector<1x8xf32>
    %98 = vector.extract_strided_slice %96 {offsets = [1, 0], sizes = [511, 8], strides = [1, 1]} : vector<512x8xf32> to vector<511x8xf32>
    %99 = tpu.concatenate %98, %97 in 0 : vector<511x8xf32>, vector<1x8xf32> -> vector<512x8xf32>
    %100 = arith.maximumf %96, %99 : vector<512x8xf32>
    %cst_48 = arith.constant 0.000000e+00 : f32
    %101 = vector.broadcast %cst_48 : f32 to vector<8x8xf32>
    %102 = vector.extract_strided_slice %96 {offsets = [8, 0], sizes = [504, 8], strides = [1, 1]} : vector<512x8xf32> to vector<504x8xf32>
    %103 = tpu.concatenate %102, %101 in 0 : vector<504x8xf32>, vector<8x8xf32> -> vector<512x8xf32>
    %cst_49 = arith.constant 0.000000e+00 : f32
    %104 = vector.broadcast %cst_49 : f32 to vector<9x8xf32>
    %105 = vector.extract_strided_slice %96 {offsets = [9, 0], sizes = [503, 8], strides = [1, 1]} : vector<512x8xf32> to vector<503x8xf32>
    %106 = tpu.concatenate %105, %104 in 0 : vector<503x8xf32>, vector<9x8xf32> -> vector<512x8xf32>
    %107 = arith.maximumf %103, %106 : vector<512x8xf32>
    %108 = arith.maximumf %100, %107 : vector<512x8xf32>
    %c0_50 = arith.constant 0 : index
    %c0_51 = arith.constant 0 : index
    %109 = vector.load %arg6[%c0_50, %c0_51] : memref<8x512xf32, #tpu.memory_space<vmem>>, vector<8x512xf32>
    %cst_52 = arith.constant dense<0.000000e+00> : vector<8x8xf32>
    %110 = tpu.matmul %109, %108, %cst_52 {dimension_numbers = #tpu.dot_dimension_numbers<[1], [0], [0], [1], [0, 0, 1, 1], [], []>} : vector<8x512xf32>, vector<512x8xf32>, vector<8x8xf32> -> vector<8x8xf32>
    %c0_53 = arith.constant 0 : index
    %c0_54 = arith.constant 0 : index
    %c0_55 = arith.constant 0 : index
    %111 = vector.load %arg7[%c0_53, %c0_54, %c0_55] : memref<3x8x16xf32, #tpu.memory_space<vmem>>, vector<1x8x16xf32>
    %112 = vector.shape_cast %111 : vector<1x8x16xf32> to vector<8x16xf32>
    %cst_56 = arith.constant dense<0.000000e+00> : vector<8x16xf32>
    %113 = tpu.matmul %110, %112, %cst_56 {dimension_numbers = #tpu.dot_dimension_numbers<[1], [0], [0], [1], [0, 0, 1, 1], [], []>} : vector<8x8xf32>, vector<8x16xf32>, vector<8x16xf32> -> vector<8x16xf32>
    %c0_57 = arith.constant 0 : index
    %c0_58 = arith.constant 0 : index
    %c0_59 = arith.constant 0 : index
    %114 = vector.load %arg8[%c0_57, %c0_58, %c0_59] : memref<3x1x16xf32, #tpu.memory_space<vmem>>, vector<1x1x16xf32>
    %115 = vector.shape_cast %114 : vector<1x1x16xf32> to vector<1x16xf32>
    %116 = vector.broadcast %115 : vector<1x16xf32> to vector<8x16xf32>
    %117 = arith.addf %113, %116 : vector<8x16xf32>
    %c1_60 = arith.constant 1 : index
    %c0_61 = arith.constant 0 : index
    %c0_62 = arith.constant 0 : index
    %118 = vector.load %arg7[%c1_60, %c0_61, %c0_62] : memref<3x8x16xf32, #tpu.memory_space<vmem>>, vector<1x8x16xf32>
    %119 = vector.shape_cast %118 : vector<1x8x16xf32> to vector<8x16xf32>
    %cst_63 = arith.constant dense<0.000000e+00> : vector<8x16xf32>
    %120 = tpu.matmul %110, %119, %cst_63 {dimension_numbers = #tpu.dot_dimension_numbers<[1], [0], [0], [1], [0, 0, 1, 1], [], []>} : vector<8x8xf32>, vector<8x16xf32>, vector<8x16xf32> -> vector<8x16xf32>
    %c1_64 = arith.constant 1 : index
    %c0_65 = arith.constant 0 : index
    %c0_66 = arith.constant 0 : index
    %121 = vector.load %arg8[%c1_64, %c0_65, %c0_66] : memref<3x1x16xf32, #tpu.memory_space<vmem>>, vector<1x1x16xf32>
    %122 = vector.shape_cast %121 : vector<1x1x16xf32> to vector<1x16xf32>
    %123 = vector.broadcast %122 : vector<1x16xf32> to vector<8x16xf32>
    %124 = arith.addf %120, %123 : vector<8x16xf32>
    %c2_67 = arith.constant 2 : index
    %c0_68 = arith.constant 0 : index
    %c0_69 = arith.constant 0 : index
    %125 = vector.load %arg7[%c2_67, %c0_68, %c0_69] : memref<3x8x16xf32, #tpu.memory_space<vmem>>, vector<1x8x16xf32>
    %126 = vector.shape_cast %125 : vector<1x8x16xf32> to vector<8x16xf32>
    %cst_70 = arith.constant dense<0.000000e+00> : vector<8x16xf32>
    %127 = tpu.matmul %110, %126, %cst_70 {dimension_numbers = #tpu.dot_dimension_numbers<[1], [0], [0], [1], [0, 0, 1, 1], [], []>} : vector<8x8xf32>, vector<8x16xf32>, vector<8x16xf32> -> vector<8x16xf32>
    %c2_71 = arith.constant 2 : index
    %c0_72 = arith.constant 0 : index
    %c0_73 = arith.constant 0 : index
    %128 = vector.load %arg8[%c2_71, %c0_72, %c0_73] : memref<3x1x16xf32, #tpu.memory_space<vmem>>, vector<1x1x16xf32>
    %129 = vector.shape_cast %128 : vector<1x1x16xf32> to vector<1x16xf32>
    %130 = vector.broadcast %129 : vector<1x16xf32> to vector<8x16xf32>
    %131 = arith.addf %127, %130 : vector<8x16xf32>
    %cst_74 = arith.constant 0.000000e+00 : f32
    %132 = vector.broadcast %cst_74 : f32 to vector<2x16xf32>
    %133 = vector.extract_strided_slice %117 {offsets = [0, 0], sizes = [2, 16], strides = [1, 1]} : vector<8x16xf32> to vector<2x16xf32>
    %134 = vector.extract_strided_slice %124 {offsets = [0, 0], sizes = [2, 16], strides = [1, 1]} : vector<8x16xf32> to vector<2x16xf32>
    %135 = vector.extract_strided_slice %131 {offsets = [0, 0], sizes = [2, 16], strides = [1, 1]} : vector<8x16xf32> to vector<2x16xf32>
    %c0_75 = arith.constant 0 : index
    %c0_76 = arith.constant 0 : index
    %c0_77 = arith.constant 0 : index
    %136 = vector.load %arg9[%c0_75, %c0_76, %c0_77] : memref<3x16x16xf32, #tpu.memory_space<vmem>>, vector<1x16x16xf32>
    %137 = vector.shape_cast %136 : vector<1x16x16xf32> to vector<16x16xf32>
    %cst_78 = arith.constant dense<0.000000e+00> : vector<2x16xf32>
    %138 = tpu.matmul %132, %137, %cst_78 {dimension_numbers = #tpu.dot_dimension_numbers<[1], [0], [0], [1], [0, 0, 1, 1], [], []>} : vector<2x16xf32>, vector<16x16xf32>, vector<2x16xf32> -> vector<2x16xf32>
    %c0_79 = arith.constant 0 : index
    %c0_80 = arith.constant 0 : index
    %c0_81 = arith.constant 0 : index
    %139 = vector.load %arg10[%c0_79, %c0_80, %c0_81] : memref<3x1x16xf32, #tpu.memory_space<vmem>>, vector<1x1x16xf32>
    %140 = vector.shape_cast %139 : vector<1x1x16xf32> to vector<1x16xf32>
    %141 = vector.broadcast %140 : vector<1x16xf32> to vector<2x16xf32>
    %142 = arith.addf %138, %141 : vector<2x16xf32>
    %c1_82 = arith.constant 1 : index
    %c0_83 = arith.constant 0 : index
    %c0_84 = arith.constant 0 : index
    %143 = vector.load %arg9[%c1_82, %c0_83, %c0_84] : memref<3x16x16xf32, #tpu.memory_space<vmem>>, vector<1x16x16xf32>
    %144 = vector.shape_cast %143 : vector<1x16x16xf32> to vector<16x16xf32>
    %cst_85 = arith.constant dense<0.000000e+00> : vector<2x16xf32>
    %145 = tpu.matmul %132, %144, %cst_85 {dimension_numbers = #tpu.dot_dimension_numbers<[1], [0], [0], [1], [0, 0, 1, 1], [], []>} : vector<2x16xf32>, vector<16x16xf32>, vector<2x16xf32> -> vector<2x16xf32>
    %c1_86 = arith.constant 1 : index
    %c0_87 = arith.constant 0 : index
    %c0_88 = arith.constant 0 : index
    %146 = vector.load %arg10[%c1_86, %c0_87, %c0_88] : memref<3x1x16xf32, #tpu.memory_space<vmem>>, vector<1x1x16xf32>
    %147 = vector.shape_cast %146 : vector<1x1x16xf32> to vector<1x16xf32>
    %148 = vector.broadcast %147 : vector<1x16xf32> to vector<2x16xf32>
    %149 = arith.addf %145, %148 : vector<2x16xf32>
    %c2_89 = arith.constant 2 : index
    %c0_90 = arith.constant 0 : index
    %c0_91 = arith.constant 0 : index
    %150 = vector.load %arg9[%c2_89, %c0_90, %c0_91] : memref<3x16x16xf32, #tpu.memory_space<vmem>>, vector<1x16x16xf32>
    %151 = vector.shape_cast %150 : vector<1x16x16xf32> to vector<16x16xf32>
    %cst_92 = arith.constant dense<0.000000e+00> : vector<2x16xf32>
    %152 = tpu.matmul %132, %151, %cst_92 {dimension_numbers = #tpu.dot_dimension_numbers<[1], [0], [0], [1], [0, 0, 1, 1], [], []>} : vector<2x16xf32>, vector<16x16xf32>, vector<2x16xf32> -> vector<2x16xf32>
    %c2_93 = arith.constant 2 : index
    %c0_94 = arith.constant 0 : index
    %c0_95 = arith.constant 0 : index
    %153 = vector.load %arg10[%c2_93, %c0_94, %c0_95] : memref<3x1x16xf32, #tpu.memory_space<vmem>>, vector<1x1x16xf32>
    %154 = vector.shape_cast %153 : vector<1x1x16xf32> to vector<1x16xf32>
    %155 = vector.broadcast %154 : vector<1x16xf32> to vector<2x16xf32>
    %156 = arith.addf %152, %155 : vector<2x16xf32>
    %157 = arith.addf %133, %142 : vector<2x16xf32>
    %158 = arith.negf %157 : vector<2x16xf32>
    %159 = math.exp %158 : vector<2x16xf32>
    %cst_96 = arith.constant 1.000000e+00 : f32
    %160 = vector.broadcast %cst_96 : f32 to vector<2x16xf32>
    %161 = arith.addf %160, %159 : vector<2x16xf32>
    %162 = arith.divf %160, %161 : vector<2x16xf32>
    %163 = arith.addf %134, %149 : vector<2x16xf32>
    %164 = arith.negf %163 : vector<2x16xf32>
    %165 = math.exp %164 : vector<2x16xf32>
    %cst_97 = arith.constant 1.000000e+00 : f32
    %166 = vector.broadcast %cst_97 : f32 to vector<2x16xf32>
    %167 = arith.addf %166, %165 : vector<2x16xf32>
    %168 = arith.divf %166, %167 : vector<2x16xf32>
    %169 = arith.mulf %162, %156 : vector<2x16xf32>
    %170 = arith.addf %135, %169 : vector<2x16xf32>
    %171 = math.tanh %170 : vector<2x16xf32>
    %cst_98 = arith.constant 1.000000e+00 : f32
    %172 = vector.broadcast %cst_98 : f32 to vector<2x16xf32>
    %173 = arith.subf %172, %168 : vector<2x16xf32>
    %174 = arith.mulf %173, %171 : vector<2x16xf32>
    %175 = arith.mulf %168, %132 : vector<2x16xf32>
    %176 = arith.addf %174, %175 : vector<2x16xf32>
    %c0_99 = arith.constant 0 : index
    %c0_100 = arith.constant 0 : index
    %c0_101 = arith.constant 0 : index
    %177 = vector.load %arg13[%c0_99, %c0_100, %c0_101] : memref<4x2x1xf32, #tpu.memory_space<vmem>>, vector<1x2x1xf32>
    %178 = vector.shape_cast %177 : vector<1x2x1xf32> to vector<2x1xf32>
    %cst_102 = arith.constant 5.000000e-01 : f32
    %179 = vector.broadcast %cst_102 : f32 to vector<2x1xf32>
    %180 = arith.cmpf ogt, %178, %179 : vector<2x1xf32>
    %181 = vector.shape_cast %180 : vector<2x1xi1> to vector<2x1xi1>
    %182 = vector.broadcast %181 : vector<2x1xi1> to vector<2x16xi1>
    %183 = arith.select %182, %176, %132 : vector<2x16xi1>, vector<2x16xf32>
    %184 = vector.extract_strided_slice %117 {offsets = [2, 0], sizes = [2, 16], strides = [1, 1]} : vector<8x16xf32> to vector<2x16xf32>
    %185 = vector.extract_strided_slice %124 {offsets = [2, 0], sizes = [2, 16], strides = [1, 1]} : vector<8x16xf32> to vector<2x16xf32>
    %186 = vector.extract_strided_slice %131 {offsets = [2, 0], sizes = [2, 16], strides = [1, 1]} : vector<8x16xf32> to vector<2x16xf32>
    %c0_103 = arith.constant 0 : index
    %c0_104 = arith.constant 0 : index
    %c0_105 = arith.constant 0 : index
    %187 = vector.load %arg9[%c0_103, %c0_104, %c0_105] : memref<3x16x16xf32, #tpu.memory_space<vmem>>, vector<1x16x16xf32>
    %188 = vector.shape_cast %187 : vector<1x16x16xf32> to vector<16x16xf32>
    %cst_106 = arith.constant dense<0.000000e+00> : vector<2x16xf32>
    %189 = tpu.matmul %183, %188, %cst_106 {dimension_numbers = #tpu.dot_dimension_numbers<[1], [0], [0], [1], [0, 0, 1, 1], [], []>} : vector<2x16xf32>, vector<16x16xf32>, vector<2x16xf32> -> vector<2x16xf32>
    %c0_107 = arith.constant 0 : index
    %c0_108 = arith.constant 0 : index
    %c0_109 = arith.constant 0 : index
    %190 = vector.load %arg10[%c0_107, %c0_108, %c0_109] : memref<3x1x16xf32, #tpu.memory_space<vmem>>, vector<1x1x16xf32>
    %191 = vector.shape_cast %190 : vector<1x1x16xf32> to vector<1x16xf32>
    %192 = vector.broadcast %191 : vector<1x16xf32> to vector<2x16xf32>
    %193 = arith.addf %189, %192 : vector<2x16xf32>
    %c1_110 = arith.constant 1 : index
    %c0_111 = arith.constant 0 : index
    %c0_112 = arith.constant 0 : index
    %194 = vector.load %arg9[%c1_110, %c0_111, %c0_112] : memref<3x16x16xf32, #tpu.memory_space<vmem>>, vector<1x16x16xf32>
    %195 = vector.shape_cast %194 : vector<1x16x16xf32> to vector<16x16xf32>
    %cst_113 = arith.constant dense<0.000000e+00> : vector<2x16xf32>
    %196 = tpu.matmul %183, %195, %cst_113 {dimension_numbers = #tpu.dot_dimension_numbers<[1], [0], [0], [1], [0, 0, 1, 1], [], []>} : vector<2x16xf32>, vector<16x16xf32>, vector<2x16xf32> -> vector<2x16xf32>
    %c1_114 = arith.constant 1 : index
    %c0_115 = arith.constant 0 : index
    %c0_116 = arith.constant 0 : index
    %197 = vector.load %arg10[%c1_114, %c0_115, %c0_116] : memref<3x1x16xf32, #tpu.memory_space<vmem>>, vector<1x1x16xf32>
    %198 = vector.shape_cast %197 : vector<1x1x16xf32> to vector<1x16xf32>
    %199 = vector.broadcast %198 : vector<1x16xf32> to vector<2x16xf32>
    %200 = arith.addf %196, %199 : vector<2x16xf32>
    %c2_117 = arith.constant 2 : index
    %c0_118 = arith.constant 0 : index
    %c0_119 = arith.constant 0 : index
    %201 = vector.load %arg9[%c2_117, %c0_118, %c0_119] : memref<3x16x16xf32, #tpu.memory_space<vmem>>, vector<1x16x16xf32>
    %202 = vector.shape_cast %201 : vector<1x16x16xf32> to vector<16x16xf32>
    %cst_120 = arith.constant dense<0.000000e+00> : vector<2x16xf32>
    %203 = tpu.matmul %183, %202, %cst_120 {dimension_numbers = #tpu.dot_dimension_numbers<[1], [0], [0], [1], [0, 0, 1, 1], [], []>} : vector<2x16xf32>, vector<16x16xf32>, vector<2x16xf32> -> vector<2x16xf32>
    %c2_121 = arith.constant 2 : index
    %c0_122 = arith.constant 0 : index
    %c0_123 = arith.constant 0 : index
    %204 = vector.load %arg10[%c2_121, %c0_122, %c0_123] : memref<3x1x16xf32, #tpu.memory_space<vmem>>, vector<1x1x16xf32>
    %205 = vector.shape_cast %204 : vector<1x1x16xf32> to vector<1x16xf32>
    %206 = vector.broadcast %205 : vector<1x16xf32> to vector<2x16xf32>
    %207 = arith.addf %203, %206 : vector<2x16xf32>
    %208 = arith.addf %184, %193 : vector<2x16xf32>
    %209 = arith.negf %208 : vector<2x16xf32>
    %210 = math.exp %209 : vector<2x16xf32>
    %cst_124 = arith.constant 1.000000e+00 : f32
    %211 = vector.broadcast %cst_124 : f32 to vector<2x16xf32>
    %212 = arith.addf %211, %210 : vector<2x16xf32>
    %213 = arith.divf %211, %212 : vector<2x16xf32>
    %214 = arith.addf %185, %200 : vector<2x16xf32>
    %215 = arith.negf %214 : vector<2x16xf32>
    %216 = math.exp %215 : vector<2x16xf32>
    %cst_125 = arith.constant 1.000000e+00 : f32
    %217 = vector.broadcast %cst_125 : f32 to vector<2x16xf32>
    %218 = arith.addf %217, %216 : vector<2x16xf32>
    %219 = arith.divf %217, %218 : vector<2x16xf32>
    %220 = arith.mulf %213, %207 : vector<2x16xf32>
    %221 = arith.addf %186, %220 : vector<2x16xf32>
    %222 = math.tanh %221 : vector<2x16xf32>
    %cst_126 = arith.constant 1.000000e+00 : f32
    %223 = vector.broadcast %cst_126 : f32 to vector<2x16xf32>
    %224 = arith.subf %223, %219 : vector<2x16xf32>
    %225 = arith.mulf %224, %222 : vector<2x16xf32>
    %226 = arith.mulf %219, %183 : vector<2x16xf32>
    %227 = arith.addf %225, %226 : vector<2x16xf32>
    %c1_127 = arith.constant 1 : index
    %c0_128 = arith.constant 0 : index
    %c0_129 = arith.constant 0 : index
    %228 = vector.load %arg13[%c1_127, %c0_128, %c0_129] : memref<4x2x1xf32, #tpu.memory_space<vmem>>, vector<1x2x1xf32>
    %229 = vector.shape_cast %228 : vector<1x2x1xf32> to vector<2x1xf32>
    %cst_130 = arith.constant 5.000000e-01 : f32
    %230 = vector.broadcast %cst_130 : f32 to vector<2x1xf32>
    %231 = arith.cmpf ogt, %229, %230 : vector<2x1xf32>
    %232 = vector.shape_cast %231 : vector<2x1xi1> to vector<2x1xi1>
    %233 = vector.broadcast %232 : vector<2x1xi1> to vector<2x16xi1>
    %234 = arith.select %233, %227, %183 : vector<2x16xi1>, vector<2x16xf32>
    %235 = vector.extract_strided_slice %117 {offsets = [4, 0], sizes = [2, 16], strides = [1, 1]} : vector<8x16xf32> to vector<2x16xf32>
    %236 = vector.extract_strided_slice %124 {offsets = [4, 0], sizes = [2, 16], strides = [1, 1]} : vector<8x16xf32> to vector<2x16xf32>
    %237 = vector.extract_strided_slice %131 {offsets = [4, 0], sizes = [2, 16], strides = [1, 1]} : vector<8x16xf32> to vector<2x16xf32>
    %c0_131 = arith.constant 0 : index
    %c0_132 = arith.constant 0 : index
    %c0_133 = arith.constant 0 : index
    %238 = vector.load %arg9[%c0_131, %c0_132, %c0_133] : memref<3x16x16xf32, #tpu.memory_space<vmem>>, vector<1x16x16xf32>
    %239 = vector.shape_cast %238 : vector<1x16x16xf32> to vector<16x16xf32>
    %cst_134 = arith.constant dense<0.000000e+00> : vector<2x16xf32>
    %240 = tpu.matmul %234, %239, %cst_134 {dimension_numbers = #tpu.dot_dimension_numbers<[1], [0], [0], [1], [0, 0, 1, 1], [], []>} : vector<2x16xf32>, vector<16x16xf32>, vector<2x16xf32> -> vector<2x16xf32>
    %c0_135 = arith.constant 0 : index
    %c0_136 = arith.constant 0 : index
    %c0_137 = arith.constant 0 : index
    %241 = vector.load %arg10[%c0_135, %c0_136, %c0_137] : memref<3x1x16xf32, #tpu.memory_space<vmem>>, vector<1x1x16xf32>
    %242 = vector.shape_cast %241 : vector<1x1x16xf32> to vector<1x16xf32>
    %243 = vector.broadcast %242 : vector<1x16xf32> to vector<2x16xf32>
    %244 = arith.addf %240, %243 : vector<2x16xf32>
    %c1_138 = arith.constant 1 : index
    %c0_139 = arith.constant 0 : index
    %c0_140 = arith.constant 0 : index
    %245 = vector.load %arg9[%c1_138, %c0_139, %c0_140] : memref<3x16x16xf32, #tpu.memory_space<vmem>>, vector<1x16x16xf32>
    %246 = vector.shape_cast %245 : vector<1x16x16xf32> to vector<16x16xf32>
    %cst_141 = arith.constant dense<0.000000e+00> : vector<2x16xf32>
    %247 = tpu.matmul %234, %246, %cst_141 {dimension_numbers = #tpu.dot_dimension_numbers<[1], [0], [0], [1], [0, 0, 1, 1], [], []>} : vector<2x16xf32>, vector<16x16xf32>, vector<2x16xf32> -> vector<2x16xf32>
    %c1_142 = arith.constant 1 : index
    %c0_143 = arith.constant 0 : index
    %c0_144 = arith.constant 0 : index
    %248 = vector.load %arg10[%c1_142, %c0_143, %c0_144] : memref<3x1x16xf32, #tpu.memory_space<vmem>>, vector<1x1x16xf32>
    %249 = vector.shape_cast %248 : vector<1x1x16xf32> to vector<1x16xf32>
    %250 = vector.broadcast %249 : vector<1x16xf32> to vector<2x16xf32>
    %251 = arith.addf %247, %250 : vector<2x16xf32>
    %c2_145 = arith.constant 2 : index
    %c0_146 = arith.constant 0 : index
    %c0_147 = arith.constant 0 : index
    %252 = vector.load %arg9[%c2_145, %c0_146, %c0_147] : memref<3x16x16xf32, #tpu.memory_space<vmem>>, vector<1x16x16xf32>
    %253 = vector.shape_cast %252 : vector<1x16x16xf32> to vector<16x16xf32>
    %cst_148 = arith.constant dense<0.000000e+00> : vector<2x16xf32>
    %254 = tpu.matmul %234, %253, %cst_148 {dimension_numbers = #tpu.dot_dimension_numbers<[1], [0], [0], [1], [0, 0, 1, 1], [], []>} : vector<2x16xf32>, vector<16x16xf32>, vector<2x16xf32> -> vector<2x16xf32>
    %c2_149 = arith.constant 2 : index
    %c0_150 = arith.constant 0 : index
    %c0_151 = arith.constant 0 : index
    %255 = vector.load %arg10[%c2_149, %c0_150, %c0_151] : memref<3x1x16xf32, #tpu.memory_space<vmem>>, vector<1x1x16xf32>
    %256 = vector.shape_cast %255 : vector<1x1x16xf32> to vector<1x16xf32>
    %257 = vector.broadcast %256 : vector<1x16xf32> to vector<2x16xf32>
    %258 = arith.addf %254, %257 : vector<2x16xf32>
    %259 = arith.addf %235, %244 : vector<2x16xf32>
    %260 = arith.negf %259 : vector<2x16xf32>
    %261 = math.exp %260 : vector<2x16xf32>
    %cst_152 = arith.constant 1.000000e+00 : f32
    %262 = vector.broadcast %cst_152 : f32 to vector<2x16xf32>
    %263 = arith.addf %262, %261 : vector<2x16xf32>
    %264 = arith.divf %262, %263 : vector<2x16xf32>
    %265 = arith.addf %236, %251 : vector<2x16xf32>
    %266 = arith.negf %265 : vector<2x16xf32>
    %267 = math.exp %266 : vector<2x16xf32>
    %cst_153 = arith.constant 1.000000e+00 : f32
    %268 = vector.broadcast %cst_153 : f32 to vector<2x16xf32>
    %269 = arith.addf %268, %267 : vector<2x16xf32>
    %270 = arith.divf %268, %269 : vector<2x16xf32>
    %271 = arith.mulf %264, %258 : vector<2x16xf32>
    %272 = arith.addf %237, %271 : vector<2x16xf32>
    %273 = math.tanh %272 : vector<2x16xf32>
    %cst_154 = arith.constant 1.000000e+00 : f32
    %274 = vector.broadcast %cst_154 : f32 to vector<2x16xf32>
    %275 = arith.subf %274, %270 : vector<2x16xf32>
    %276 = arith.mulf %275, %273 : vector<2x16xf32>
    %277 = arith.mulf %270, %234 : vector<2x16xf32>
    %278 = arith.addf %276, %277 : vector<2x16xf32>
    %c2_155 = arith.constant 2 : index
    %c0_156 = arith.constant 0 : index
    %c0_157 = arith.constant 0 : index
    %279 = vector.load %arg13[%c2_155, %c0_156, %c0_157] : memref<4x2x1xf32, #tpu.memory_space<vmem>>, vector<1x2x1xf32>
    %280 = vector.shape_cast %279 : vector<1x2x1xf32> to vector<2x1xf32>
    %cst_158 = arith.constant 5.000000e-01 : f32
    %281 = vector.broadcast %cst_158 : f32 to vector<2x1xf32>
    %282 = arith.cmpf ogt, %280, %281 : vector<2x1xf32>
    %283 = vector.shape_cast %282 : vector<2x1xi1> to vector<2x1xi1>
    %284 = vector.broadcast %283 : vector<2x1xi1> to vector<2x16xi1>
    %285 = arith.select %284, %278, %234 : vector<2x16xi1>, vector<2x16xf32>
    %286 = vector.extract_strided_slice %117 {offsets = [6, 0], sizes = [2, 16], strides = [1, 1]} : vector<8x16xf32> to vector<2x16xf32>
    %287 = vector.extract_strided_slice %124 {offsets = [6, 0], sizes = [2, 16], strides = [1, 1]} : vector<8x16xf32> to vector<2x16xf32>
    %288 = vector.extract_strided_slice %131 {offsets = [6, 0], sizes = [2, 16], strides = [1, 1]} : vector<8x16xf32> to vector<2x16xf32>
    %c0_159 = arith.constant 0 : index
    %c0_160 = arith.constant 0 : index
    %c0_161 = arith.constant 0 : index
    %289 = vector.load %arg9[%c0_159, %c0_160, %c0_161] : memref<3x16x16xf32, #tpu.memory_space<vmem>>, vector<1x16x16xf32>
    %290 = vector.shape_cast %289 : vector<1x16x16xf32> to vector<16x16xf32>
    %cst_162 = arith.constant dense<0.000000e+00> : vector<2x16xf32>
    %291 = tpu.matmul %285, %290, %cst_162 {dimension_numbers = #tpu.dot_dimension_numbers<[1], [0], [0], [1], [0, 0, 1, 1], [], []>} : vector<2x16xf32>, vector<16x16xf32>, vector<2x16xf32> -> vector<2x16xf32>
    %c0_163 = arith.constant 0 : index
    %c0_164 = arith.constant 0 : index
    %c0_165 = arith.constant 0 : index
    %292 = vector.load %arg10[%c0_163, %c0_164, %c0_165] : memref<3x1x16xf32, #tpu.memory_space<vmem>>, vector<1x1x16xf32>
    %293 = vector.shape_cast %292 : vector<1x1x16xf32> to vector<1x16xf32>
    %294 = vector.broadcast %293 : vector<1x16xf32> to vector<2x16xf32>
    %295 = arith.addf %291, %294 : vector<2x16xf32>
    %c1_166 = arith.constant 1 : index
    %c0_167 = arith.constant 0 : index
    %c0_168 = arith.constant 0 : index
    %296 = vector.load %arg9[%c1_166, %c0_167, %c0_168] : memref<3x16x16xf32, #tpu.memory_space<vmem>>, vector<1x16x16xf32>
    %297 = vector.shape_cast %296 : vector<1x16x16xf32> to vector<16x16xf32>
    %cst_169 = arith.constant dense<0.000000e+00> : vector<2x16xf32>
    %298 = tpu.matmul %285, %297, %cst_169 {dimension_numbers = #tpu.dot_dimension_numbers<[1], [0], [0], [1], [0, 0, 1, 1], [], []>} : vector<2x16xf32>, vector<16x16xf32>, vector<2x16xf32> -> vector<2x16xf32>
    %c1_170 = arith.constant 1 : index
    %c0_171 = arith.constant 0 : index
    %c0_172 = arith.constant 0 : index
    %299 = vector.load %arg10[%c1_170, %c0_171, %c0_172] : memref<3x1x16xf32, #tpu.memory_space<vmem>>, vector<1x1x16xf32>
    %300 = vector.shape_cast %299 : vector<1x1x16xf32> to vector<1x16xf32>
    %301 = vector.broadcast %300 : vector<1x16xf32> to vector<2x16xf32>
    %302 = arith.addf %298, %301 : vector<2x16xf32>
    %c2_173 = arith.constant 2 : index
    %c0_174 = arith.constant 0 : index
    %c0_175 = arith.constant 0 : index
    %303 = vector.load %arg9[%c2_173, %c0_174, %c0_175] : memref<3x16x16xf32, #tpu.memory_space<vmem>>, vector<1x16x16xf32>
    %304 = vector.shape_cast %303 : vector<1x16x16xf32> to vector<16x16xf32>
    %cst_176 = arith.constant dense<0.000000e+00> : vector<2x16xf32>
    %305 = tpu.matmul %285, %304, %cst_176 {dimension_numbers = #tpu.dot_dimension_numbers<[1], [0], [0], [1], [0, 0, 1, 1], [], []>} : vector<2x16xf32>, vector<16x16xf32>, vector<2x16xf32> -> vector<2x16xf32>
    %c2_177 = arith.constant 2 : index
    %c0_178 = arith.constant 0 : index
    %c0_179 = arith.constant 0 : index
    %306 = vector.load %arg10[%c2_177, %c0_178, %c0_179] : memref<3x1x16xf32, #tpu.memory_space<vmem>>, vector<1x1x16xf32>
    %307 = vector.shape_cast %306 : vector<1x1x16xf32> to vector<1x16xf32>
    %308 = vector.broadcast %307 : vector<1x16xf32> to vector<2x16xf32>
    %309 = arith.addf %305, %308 : vector<2x16xf32>
    %310 = arith.addf %286, %295 : vector<2x16xf32>
    %311 = arith.negf %310 : vector<2x16xf32>
    %312 = math.exp %311 : vector<2x16xf32>
    %cst_180 = arith.constant 1.000000e+00 : f32
    %313 = vector.broadcast %cst_180 : f32 to vector<2x16xf32>
    %314 = arith.addf %313, %312 : vector<2x16xf32>
    %315 = arith.divf %313, %314 : vector<2x16xf32>
    %316 = arith.addf %287, %302 : vector<2x16xf32>
    %317 = arith.negf %316 : vector<2x16xf32>
    %318 = math.exp %317 : vector<2x16xf32>
    %cst_181 = arith.constant 1.000000e+00 : f32
    %319 = vector.broadcast %cst_181 : f32 to vector<2x16xf32>
    %320 = arith.addf %319, %318 : vector<2x16xf32>
    %321 = arith.divf %319, %320 : vector<2x16xf32>
    %322 = arith.mulf %315, %309 : vector<2x16xf32>
    %323 = arith.addf %288, %322 : vector<2x16xf32>
    %324 = math.tanh %323 : vector<2x16xf32>
    %cst_182 = arith.constant 1.000000e+00 : f32
    %325 = vector.broadcast %cst_182 : f32 to vector<2x16xf32>
    %326 = arith.subf %325, %321 : vector<2x16xf32>
    %327 = arith.mulf %326, %324 : vector<2x16xf32>
    %328 = arith.mulf %321, %285 : vector<2x16xf32>
    %329 = arith.addf %327, %328 : vector<2x16xf32>
    %c3_183 = arith.constant 3 : index
    %c0_184 = arith.constant 0 : index
    %c0_185 = arith.constant 0 : index
    %330 = vector.load %arg13[%c3_183, %c0_184, %c0_185] : memref<4x2x1xf32, #tpu.memory_space<vmem>>, vector<1x2x1xf32>
    %331 = vector.shape_cast %330 : vector<1x2x1xf32> to vector<2x1xf32>
    %cst_186 = arith.constant 5.000000e-01 : f32
    %332 = vector.broadcast %cst_186 : f32 to vector<2x1xf32>
    %333 = arith.cmpf ogt, %331, %332 : vector<2x1xf32>
    %334 = vector.shape_cast %333 : vector<2x1xi1> to vector<2x1xi1>
    %335 = vector.broadcast %334 : vector<2x1xi1> to vector<2x16xi1>
    %336 = arith.select %335, %329, %285 : vector<2x16xi1>, vector<2x16xf32>
    %c0_187 = arith.constant 0 : index
    %c0_188 = arith.constant 0 : index
    %337 = vector.load %arg11[%c0_187, %c0_188] : memref<16x5xf32, #tpu.memory_space<vmem>>, vector<16x5xf32>
    %cst_189 = arith.constant dense<0.000000e+00> : vector<2x5xf32>
    %338 = tpu.matmul %336, %337, %cst_189 {dimension_numbers = #tpu.dot_dimension_numbers<[1], [0], [0], [1], [0, 0, 1, 1], [], []>} : vector<2x16xf32>, vector<16x5xf32>, vector<2x5xf32> -> vector<2x5xf32>
    %c0_190 = arith.constant 0 : index
    %c0_191 = arith.constant 0 : index
    %339 = vector.load %arg12[%c0_190, %c0_191] : memref<1x5xf32, #tpu.memory_space<vmem>>, vector<1x5xf32>
    %340 = vector.broadcast %339 : vector<1x5xf32> to vector<2x5xf32>
    %341 = arith.addf %338, %340 : vector<2x5xf32>
    %cst_192 = arith.constant dense<0xFF800000> : vector<2xf32>
    %342 = vector.multi_reduction <maximumf>, %341, %cst_192 [1] : vector<2x5xf32> to vector<2xf32>
    %343 = vector.shape_cast %342 : vector<2xf32> to vector<2x1xf32>
    %344 = vector.broadcast %343 : vector<2x1xf32> to vector<2x5xf32>
    %345 = arith.subf %341, %344 : vector<2x5xf32>
    %346 = math.exp %345 : vector<2x5xf32>
    %cst_193 = arith.constant dense<0.000000e+00> : vector<2xf32>
    %347 = vector.multi_reduction <add>, %346, %cst_193 [1] : vector<2x5xf32> to vector<2xf32>
    %348 = vector.shape_cast %347 : vector<2xf32> to vector<2x1xf32>
    %349 = math.log %348 : vector<2x1xf32>
    %350 = arith.addf %349, %343 : vector<2x1xf32>
    %351 = vector.broadcast %350 : vector<2x1xf32> to vector<2x5xf32>
    %352 = arith.subf %341, %351 : vector<2x5xf32>
    %c0_194 = arith.constant 0 : index
    %c0_195 = arith.constant 0 : index
    %353 = vector.load %arg14[%c0_194, %c0_195] : memref<2x5xf32, #tpu.memory_space<vmem>>, vector<2x5xf32>
    tpu.vector_store %arg14[%c0_194, %c0_195], %352 {strides = array<i32>} : memref<2x5xf32, #tpu.memory_space<vmem>>, vector<2x5xf32>,
    return
  }
}

</mosaic_0001>

<llo_original>
// kernel: net_forward.1
$region0: #{net_forward.1}
  #allocation0 [shape = 'u32[]', space=smem, size = 0x4, offset = 0x4, fixed_abs, tag = 'smem constant byte address 0x4 - core index']
  #allocation1 [shape = 'u32[144,128]{1,0:T(1,128)}', space=vmem, size = 0x12000, scoped, tag = 'internal scratch']
  %s0 = inlined_call_operand.vmem [shape: f32[512,25], index: 0, kind: input, shape index: {}]
  %s1 = inlined_call_operand.vmem [shape: f32[25,4], index: 1, kind: input, shape index: {}]
  %s2 = inlined_call_operand.vmem [shape: f32[1,4], index: 2, kind: input, shape index: {}]
  %s3 = inlined_call_operand.vmem [shape: f32[9,4,8], index: 3, kind: input, shape index: {}]
  %s4 = inlined_call_operand.vmem [shape: f32[1,8], index: 4, kind: input, shape index: {}]
  %s5 = inlined_call_operand.vmem [shape: f32[512,9], index: 5, kind: input, shape index: {}]
  %s6 = inlined_call_operand.vmem [shape: f32[8,512], index: 6, kind: input, shape index: {}]
  %s7 = inlined_call_operand.vmem [shape: f32[3,8,16], index: 7, kind: input, shape index: {}]
  %s8 = inlined_call_operand.vmem [shape: f32[3,1,16], index: 8, kind: input, shape index: {}]
  %s9 = inlined_call_operand.vmem [shape: f32[3,16,16], index: 9, kind: input, shape index: {}]
  %s10 = inlined_call_operand.vmem [shape: f32[3,1,16], index: 10, kind: input, shape index: {}]
  %s11 = inlined_call_operand.vmem [shape: f32[16,5], index: 11, kind: input, shape index: {}]
  %s12 = inlined_call_operand.vmem [shape: f32[1,5], index: 12, kind: input, shape index: {}]
  %s13 = inlined_call_operand.vmem [shape: f32[4,2,1], index: 13, kind: input, shape index: {}]
  %s14 = inlined_call_operand.hbm [shape: f32[2,5], index: 14, kind: output, shape index: {}]
  %s15 = sld [smem:[#allocation0]]
  $region66: #{net_forward.1} parent=0
    _
  %s17 = ssub.s32 1, %s15
  %s18 = scalar_select 0, %s17, %s15
  $region1: #{net_forward.1} parent=0
    #allocation2 [shape = 'u8[1024]{0}', space=vmem, size = 0x400, scoped, tag = 'output window, operand 0, single buffered']
    #allocation3 [shape = 's32[1]{0}', space=sflag, size = 0x4, scoped, tag = 'scoped memory for net_forward.1']
    %19 = vsyncpa [#allocation3], 0
    // Predicated region
    $region2: #{net_forward.1} parent=1 // pred_check
      _
    $region3: #{net_forward.1} parent=1 // pred_check_branch
      %21 = sbr.rel (0) target = $region5
    $region4: #{net_forward.1} parent=1 // pred_region
      _
    $region5: #{net_forward.1} parent=1 // pred_fallthru
      _
    // Predicated region
    $region6: #{net_forward.1} parent=1 // pred_check
      _
    $region7: #{net_forward.1} parent=1 // pred_check_branch
      %23 = sbr.rel (0) target = $region9
    $region8: #{net_forward.1} parent=1 // pred_region
      _
    $region9: #{net_forward.1} parent=1 // pred_fallthru
      _
    // Predicated region
    $region10: #{net_forward.1} parent=1 // pred_check
      _
    $region11: #{net_forward.1} parent=1 // pred_check_branch
      %25 = sbr.rel (0) target = $region13
    $region12: #{net_forward.1} parent=1 // pred_region
      _
    $region13: #{net_forward.1} parent=1 // pred_fallthru
      _
    // Predicated region
    $region14: #{net_forward.1} parent=1 // pred_check
      _
    $region15: #{net_forward.1} parent=1 // pred_check_branch
      %27 = sbr.rel (0) target = $region17
    $region16: #{net_forward.1} parent=1 // pred_region
      _
    $region17: #{net_forward.1} parent=1 // pred_fallthru
      _
    // Predicated region
    $region18: #{net_forward.1} parent=1 // pred_check
      _
    $region19: #{net_forward.1} parent=1 // pred_check_branch
      %29 = sbr.rel (0) target = $region21
    $region20: #{net_forward.1} parent=1 // pred_region
      _
    $region21: #{net_forward.1} parent=1 // pred_fallthru
      _
    // Predicated region
    $region22: #{net_forward.1} parent=1 // pred_check
      _
    $region23: #{net_forward.1} parent=1 // pred_check_branch
      %31 = sbr.rel (0) target = $region25
    $region24: #{net_forward.1} parent=1 // pred_region
      _
    $region25: #{net_forward.1} parent=1 // pred_fallthru
      _
    // Predicated region
    $region26: #{net_forward.1} parent=1 // pred_check
      _
    $region27: #{net_forward.1} parent=1 // pred_check_branch
      %33 = sbr.rel (0) target = $region29
    $region28: #{net_forward.1} parent=1 // pred_region
      _
    $region29: #{net_forward.1} parent=1 // pred_fallthru
      _
    // Predicated region
    $region30: #{net_forward.1} parent=1 // pred_check
      _
    $region31: #{net_forward.1} parent=1 // pred_check_branch
      %35 = sbr.rel (0) target = $region33
    $region32: #{net_forward.1} parent=1 // pred_region
      _
    $region33: #{net_forward.1} parent=1 // pred_fallthru
      _
    // Predicated region
    $region34: #{net_forward.1} parent=1 // pred_check
      _
    $region35: #{net_forward.1} parent=1 // pred_check_branch
      %37 = sbr.rel (0) target = $region37
    $region36: #{net_forward.1} parent=1 // pred_region
      _
    $region37: #{net_forward.1} parent=1 // pred_fallthru
      _
    // Predicated region
    $region38: #{net_forward.1} parent=1 // pred_check
      _
    $region39: #{net_forward.1} parent=1 // pred_check_branch
      %39 = sbr.rel (0) target = $region41
    $region40: #{net_forward.1} parent=1 // pred_region
      _
    $region41: #{net_forward.1} parent=1 // pred_fallthru
      _
    // Predicated region
    $region42: #{net_forward.1} parent=1 // pred_check
      _
    $region43: #{net_forward.1} parent=1 // pred_check_branch
      %41 = sbr.rel (0) target = $region45
    $region44: #{net_forward.1} parent=1 // pred_region
      _
    $region45: #{net_forward.1} parent=1 // pred_fallthru
      _
    // Predicated region
    $region46: #{net_forward.1} parent=1 // pred_check
      _
    $region47: #{net_forward.1} parent=1 // pred_check_branch
      %43 = sbr.rel (0) target = $region49
    $region48: #{net_forward.1} parent=1 // pred_region
      _
    $region49: #{net_forward.1} parent=1 // pred_fallthru
      _
    // Predicated region
    $region50: #{net_forward.1} parent=1 // pred_check
      _
    $region51: #{net_forward.1} parent=1 // pred_check_branch
      %45 = sbr.rel (0) target = $region53
    $region52: #{net_forward.1} parent=1 // pred_region
      _
    $region53: #{net_forward.1} parent=1 // pred_fallthru
      _
    // Predicated region
    $region54: #{net_forward.1} parent=1 // pred_check
      _
    $region55: #{net_forward.1} parent=1 // pred_check_branch
      %47 = sbr.rel (0) target = $region57
    $region56: #{net_forward.1} parent=1 // pred_region
      _
    $region57: #{net_forward.1} parent=1 // pred_fallthru
      _
    %v48 = vld [vmem:[%s0] sm:$0xff]
    %v49 = vld [vmem:[%s0 + $0x8] sm:$0xff]
    %v50 = vld [vmem:[%s0 + $0x10] sm:$0xff]
    %v51 = vld [vmem:[%s0 + $0x18] sm:$0xff]
    %v52 = vld [vmem:[%s0 + $0x20] sm:$0xff]
    %v53 = vld [vmem:[%s0 + $0x28] sm:$0xff]
    %v54 = vld [vmem:[%s0 + $0x30] sm:$0xff]
    %v55 = vld [vmem:[%s0 + $0x38] sm:$0xff]
    %v56 = vld [vmem:[%s0 + $0x40] sm:$0xff]
    %v57 = vld [vmem:[%s0 + $0x48] sm:$0xff]
    %v58 = vld [vmem:[%s0 + $0x50] sm:$0xff]
    %v59 = vld [vmem:[%s0 + $0x58] sm:$0xff]
    %v60 = vld [vmem:[%s0 + $0x60] sm:$0xff]
    %v61 = vld [vmem:[%s0 + $0x68] sm:$0xff]
    %v62 = vld [vmem:[%s0 + $0x70] sm:$0xff]
    %v63 = vld [vmem:[%s0 + $0x78] sm:$0xff]
    %v64 = vld [vmem:[%s0 + $0x80] sm:$0xff]
    %v65 = vld [vmem:[%s0 + $0x88] sm:$0xff]
    %v66 = vld [vmem:[%s0 + $0x90] sm:$0xff]
    %v67 = vld [vmem:[%s0 + $0x98] sm:$0xff]
    %v68 = vld [vmem:[%s0 + $0xa0] sm:$0xff]
    %v69 = vld [vmem:[%s0 + $0xa8] sm:$0xff]
    %v70 = vld [vmem:[%s0 + $0xb0] sm:$0xff]
    %v71 = vld [vmem:[%s0 + $0xb8] sm:$0xff]
    %v72 = vld [vmem:[%s0 + $0xc0] sm:$0xff]
    %v73 = vld [vmem:[%s0 + $0xc8] sm:$0xff]
    %v74 = vld [vmem:[%s0 + $0xd0] sm:$0xff]
    %v75 = vld [vmem:[%s0 + $0xd8] sm:$0xff]
    %v76 = vld [vmem:[%s0 + $0xe0] sm:$0xff]
    %v77 = vld [vmem:[%s0 + $0xe8] sm:$0xff]
    %v78 = vld [vmem:[%s0 + $0xf0] sm:$0xff]
    %v79 = vld [vmem:[%s0 + $0xf8] sm:$0xff]
    %v80 = vld [vmem:[%s0 + $0x100] sm:$0xff]
    %v81 = vld [vmem:[%s0 + $0x108] sm:$0xff]
    %v82 = vld [vmem:[%s0 + $0x110] sm:$0xff]
    %v83 = vld [vmem:[%s0 + $0x118] sm:$0xff]
    %v84 = vld [vmem:[%s0 + $0x120] sm:$0xff]
    %v85 = vld [vmem:[%s0 + $0x128] sm:$0xff]
    %v86 = vld [vmem:[%s0 + $0x130] sm:$0xff]
    %v87 = vld [vmem:[%s0 + $0x138] sm:$0xff]
    %v88 = vld [vmem:[%s0 + $0x140] sm:$0xff]
    %v89 = vld [vmem:[%s0 + $0x148] sm:$0xff]
    %v90 = vld [vmem:[%s0 + $0x150] sm:$0xff]
    %v91 = vld [vmem:[%s0 + $0x158] sm:$0xff]
    %v92 = vld [vmem:[%s0 + $0x160] sm:$0xff]
    %v93 = vld [vmem:[%s0 + $0x168] sm:$0xff]
    %v94 = vld [vmem:[%s0 + $0x170] sm:$0xff]
    %v95 = vld [vmem:[%s0 + $0x178] sm:$0xff]
    %v96 = vld [vmem:[%s0 + $0x180] sm:$0xff]
    %v97 = vld [vmem:[%s0 + $0x188] sm:$0xff]
    %v98 = vld [vmem:[%s0 + $0x190] sm:$0xff]
    %v99 = vld [vmem:[%s0 + $0x198] sm:$0xff]
    %v100 = vld [vmem:[%s0 + $0x1a0] sm:$0xff]
    %v101 = vld [vmem:[%s0 + $0x1a8] sm:$0xff]
    %v102 = vld [vmem:[%s0 + $0x1b0] sm:$0xff]
    %v103 = vld [vmem:[%s0 + $0x1b8] sm:$0xff]
    %v104 = vld [vmem:[%s0 + $0x1c0] sm:$0xff]
    %v105 = vld [vmem:[%s0 + $0x1c8] sm:$0xff]
    %v106 = vld [vmem:[%s0 + $0x1d0] sm:$0xff]
    %v107 = vld [vmem:[%s0 + $0x1d8] sm:$0xff]
    %v108 = vld [vmem:[%s0 + $0x1e0] sm:$0xff]
    %v109 = vld [vmem:[%s0 + $0x1e8] sm:$0xff]
    %v110 = vld [vmem:[%s0 + $0x1f0] sm:$0xff]
    %v111 = vld [vmem:[%s0 + $0x1f8] sm:$0xff]
    %v112 = vld [vmem:[%s1] sm:$0xff]
    %v113 = vld [vmem:[%s1 + $0x8] sm:$0xff]
    %v114 = vld [vmem:[%s1 + $0x10] sm:$0xff]
    %v115 = vld [vmem:[%s1 + $0x18] sm:$0x1]
    %v116 = vld [vmem:[%s2] sm:$0x1]
    %v118 = vlaneseq
    %v119 = vshrl.u32 %v118, 7
    %v120 = vsub.s32 0, %v119
    %v121 = vrot.slane %v116, %v120
    %vm123 = vcmask 203776
    %v125 = vsel %vm123, %v48, 0
    %v128 = vsel %vm123, %v49, 0
    %v131 = vsel %vm123, %v50, 0
    %v134 = vsel %vm123, %v51, 0
    %v137 = vsel %vm123, %v52, 0
    %v140 = vsel %vm123, %v53, 0
    %v143 = vsel %vm123, %v54, 0
    %v146 = vsel %vm123, %v55, 0
    %v149 = vsel %vm123, %v56, 0
    %v152 = vsel %vm123, %v57, 0
    %v155 = vsel %vm123, %v58, 0
    %v158 = vsel %vm123, %v59, 0
    %v161 = vsel %vm123, %v60, 0
    %v164 = vsel %vm123, %v61, 0
    %v167 = vsel %vm123, %v62, 0
    %v170 = vsel %vm123, %v63, 0
    %v173 = vsel %vm123, %v64, 0
    %v176 = vsel %vm123, %v65, 0
    %v179 = vsel %vm123, %v66, 0
    %v182 = vsel %vm123, %v67, 0
    %v185 = vsel %vm123, %v68, 0
    %v188 = vsel %vm123, %v69, 0
    %v191 = vsel %vm123, %v70, 0
    %v194 = vsel %vm123, %v71, 0
    %v197 = vsel %vm123, %v72, 0
    %v200 = vsel %vm123, %v73, 0
    %v203 = vsel %vm123, %v74, 0
    %v206 = vsel %vm123, %v75, 0
    %v209 = vsel %vm123, %v76, 0
    %v212 = vsel %vm123, %v77, 0
    %v215 = vsel %vm123, %v78, 0
    %v218 = vsel %vm123, %v79, 0
    %v221 = vsel %vm123, %v80, 0
    %v224 = vsel %vm123, %v81, 0
    %v227 = vsel %vm123, %v82, 0
    %v230 = vsel %vm123, %v83, 0
    %v233 = vsel %vm123, %v84, 0
    %v236 = vsel %vm123, %v85, 0
    %v239 = vsel %vm123, %v86, 0
    %v242 = vsel %vm123, %v87, 0
    %v245 = vsel %vm123, %v88, 0
    %v248 = vsel %vm123, %v89, 0
    %v251 = vsel %vm123, %v90, 0
    %v254 = vsel %vm123, %v91, 0
    %v257 = vsel %vm123, %v92, 0
    %v260 = vsel %vm123, %v93, 0
    %v263 = vsel %vm123, %v94, 0
    %v266 = vsel %vm123, %v95, 0
    %v269 = vsel %vm123, %v96, 0
    %v272 = vsel %vm123, %v97, 0
    %v275 = vsel %vm123, %v98, 0
    %v278 = vsel %vm123, %v99, 0
    %v281 = vsel %vm123, %v100, 0
    %v284 = vsel %vm123, %v101, 0
    %v287 = vsel %vm123, %v102, 0
    %v290 = vsel %vm123, %v103, 0
    %v293 = vsel %vm123, %v104, 0
    %v296 = vsel %vm123, %v105, 0
    %v299 = vsel %vm123, %v106, 0
    %v302 = vsel %vm123, %v107, 0
    %v305 = vsel %vm123, %v108, 0
    %v308 = vsel %vm123, %v109, 0
    %v311 = vsel %vm123, %v110, 0
    %v314 = vsel %vm123, %v111, 0
    %vm316 = vcmask 1040384
    %v318 = vsel %vm316, %v115, 0
    %320 = vmatprep.subr.mxu0 0.0
    %321 = vmatpush1.msra.mxu0 %v112
    %322 = vmatprep.subr.mxu0 0.0
    %323 = vmatpush1.msra.mxu0 %v113
    %324 = vmatprep.subr.mxu0 0.0
    %325 = vmatpush1.msra.mxu0 %v114
    %326 = vmatprep.subr.mxu0 0.0
    %327 = vmatpush1.msra.mxu0 %v318
    %328 = vmatprep.subr.mxu0 0.0
    %329 = vmatpush1.msra.mxu0 0.0
    %330 = vmatprep.subr.mxu0 0.0
    %331 = vmatpush1.msra.mxu0 0.0
    %332 = vmatprep.subr.mxu0 0.0
    %333 = vmatpush1.msra.mxu0 0.0
    %334 = vmatprep.subr.mxu0 0.0
    %335 = vmatpush1.msra.mxu0 0.0
    %336 = vmatprep.subr.mxu0 0.0
    %337 = vmatpush1.msra.mxu0 0.0
    %338 = vmatprep.subr.mxu0 0.0
    %339 = vmatpush1.msra.mxu0 0.0
    %340 = vmatprep.subr.mxu0 0.0
    %341 = vmatpush1.msra.mxu0 0.0
    %342 = vmatprep.subr.mxu0 0.0
    %343 = vmatpush1.msra.mxu0 0.0
    %344 = vmatprep.subr.mxu0 0.0
    %345 = vmatpush1.msra.mxu0 0.0
    %346 = vmatprep.subr.mxu0 0.0
    %347 = vmatpush1.msra.mxu0 0.0
    %348 = vmatprep.subr.mxu0 0.0
    %349 = vmatpush1.msra.mxu0 0.0
    %350 = vmatprep.subr.mxu0 0.0
    %351 = vmatpush1.msra.mxu0 0.0
    %352 = vmatprep.subr.mxu0 0.0
    %353 = vmatpush1.msra.mxu0 0.0
    %354 = vmatprep.subr.mxu0 0.0
    %355 = vmatpush1.msra.mxu0 0.0
    %356 = vmatprep.subr.mxu0 0.0
    %357 = vmatpush1.msra.mxu0 0.0
    %358 = vmatprep.subr.mxu0 0.0
    %359 = vmatpush1.msra.mxu0 0.0
    %360 = vmatprep.subr.mxu0 0.0
    %361 = vmatpush1.msra.mxu0 0.0
    %362 = vmatprep.subr.mxu0 0.0
    %363 = vmatpush1.msra.mxu0 0.0
    %364 = vmatprep.subr.mxu0 0.0
    %365 = vmatpush1.msra.mxu0 0.0
    %366 = vmatprep.subr.mxu0 0.0
    %367 = vmatpush1.msra.mxu0 0.0
    %368 = vmatprep.subr.mxu0 0.0
    %369 = vmatpush1.msra.mxu0 0.0
    %370 = vmatprep.subr.mxu0 0.0
    %371 = vmatpush1.msra.mxu0 0.0
    %372 = vmatprep.subr.mxu0 0.0
    %373 = vmatpush1.msra.mxu0 0.0
    %374 = vmatprep.subr.mxu0 0.0
    %375 = vmatpush1.msra.mxu0 0.0
    %376 = vmatprep.subr.mxu0 0.0
    %377 = vmatpush1.msra.mxu0 0.0
    %378 = vmatprep.subr.mxu0 0.0
    %379 = vmatpush1.msra.mxu0 0.0
    %380 = vmatprep.subr.mxu0 0.0
    %381 = vmatpush1.msra.mxu0 0.0
    %382 = vmatprep.subr.mxu0 0.0
    %383 = vmatpush1.msra.mxu0 0.0
    %384 = vmatprep.mubr.f32.mxu0 0.0
    %385 = vmatmul.mubr.f32.gmra.mrb[0].mxu0 %v125
    %v386 = vpop.f32.mrb[0].mxu0
    %v387 = vadd.f32 %v121, %v386
    %v388 = vpop.f32.mrb[0].mxu0
    %389 = vmatprep.mubr.f32.mxu0 0.0
    %390 = vmatmul.mubr.f32.gmra.mrb[0].mxu0 %v128
    %v391 = vpop.f32.mrb[0].mxu0
    %v392 = vadd.f32 %v121, %v391
    %v393 = vpop.f32.mrb[0].mxu0
    %394 = vmatprep.mubr.f32.mxu0 0.0
    %395 = vmatmul.mubr.f32.gmra.mrb[0].mxu0 %v131
    %v396 = vpop.f32.mrb[0].mxu0
    %v397 = vadd.f32 %v121, %v396
    %v398 = vpop.f32.mrb[0].mxu0
    %399 = vmatprep.mubr.f32.mxu0 0.0
    %400 = vmatmul.mubr.f32.gmra.mrb[0].mxu0 %v134
    %v401 = vpop.f32.mrb[0].mxu0
    %v402 = vadd.f32 %v121, %v401
    %v403 = vpop.f32.mrb[0].mxu0
    %404 = vmatprep.mubr.f32.mxu0 0.0
    %405 = vmatmul.mubr.f32.gmra.mrb[0].mxu0 %v137
    %v406 = vpop.f32.mrb[0].mxu0
    %v407 = vadd.f32 %v121, %v406
    %v408 = vpop.f32.mrb[0].mxu0
    %409 = vmatprep.mubr.f32.mxu0 0.0
    %410 = vmatmul.mubr.f32.gmra.mrb[0].mxu0 %v140
    %v411 = vpop.f32.mrb[0].mxu0
    %v412 = vadd.f32 %v121, %v411
    %v413 = vpop.f32.mrb[0].mxu0
    %414 = vmatprep.mubr.f32.mxu0 0.0
    %415 = vmatmul.mubr.f32.gmra.mrb[0].mxu0 %v143
    %v416 = vpop.f32.mrb[0].mxu0
    %v417 = vadd.f32 %v121, %v416
    %v418 = vpop.f32.mrb[0].mxu0
    %419 = vmatprep.mubr.f32.mxu0 0.0
    %420 = vmatmul.mubr.f32.gmra.mrb[0].mxu0 %v146
    %v421 = vpop.f32.mrb[0].mxu0
    %v422 = vadd.f32 %v121, %v421
    %v423 = vpop.f32.mrb[0].mxu0
    %424 = vmatprep.mubr.f32.mxu0 0.0
    %425 = vmatmul.mubr.f32.gmra.mrb[0].mxu0 %v149
    %v426 = vpop.f32.mrb[0].mxu0
    %v427 = vadd.f32 %v121, %v426
    %v428 = vpop.f32.mrb[0].mxu0
    %429 = vmatprep.mubr.f32.mxu0 0.0
    %430 = vmatmul.mubr.f32.gmra.mrb[0].mxu0 %v152
    %v431 = vpop.f32.mrb[0].mxu0
    %v432 = vadd.f32 %v121, %v431
    %v433 = vpop.f32.mrb[0].mxu0
    %434 = vmatprep.mubr.f32.mxu0 0.0
    %435 = vmatmul.mubr.f32.gmra.mrb[0].mxu0 %v155
    %v436 = vpop.f32.mrb[0].mxu0
    %v437 = vadd.f32 %v121, %v436
    %v438 = vpop.f32.mrb[0].mxu0
    %439 = vmatprep.mubr.f32.mxu0 0.0
    %440 = vmatmul.mubr.f32.gmra.mrb[0].mxu0 %v158
    %v441 = vpop.f32.mrb[0].mxu0
    %v442 = vadd.f32 %v121, %v441
    %v443 = vpop.f32.mrb[0].mxu0
    %444 = vmatprep.mubr.f32.mxu0 0.0
    %445 = vmatmul.mubr.f32.gmra.mrb[0].mxu0 %v161
    %v446 = vpop.f32.mrb[0].mxu0
    %v447 = vadd.f32 %v121, %v446
    %v448 = vpop.f32.mrb[0].mxu0
    %449 = vmatprep.mubr.f32.mxu0 0.0
    %450 = vmatmul.mubr.f32.gmra.mrb[0].mxu0 %v164
    %v451 = vpop.f32.mrb[0].mxu0
    %v452 = vadd.f32 %v121, %v451
    %v453 = vpop.f32.mrb[0].mxu0
    %454 = vmatprep.mubr.f32.mxu0 0.0
    %455 = vmatmul.mubr.f32.gmra.mrb[0].mxu0 %v167
    %v456 = vpop.f32.mrb[0].mxu0
    %v457 = vadd.f32 %v121, %v456
    %v458 = vpop.f32.mrb[0].mxu0
    %459 = vmatprep.mubr.f32.mxu0 0.0
    %460 = vmatmul.mubr.f32.gmra.mrb[0].mxu0 %v170
    %v461 = vpop.f32.mrb[0].mxu0
    %v462 = vadd.f32 %v121, %v461
    %v463 = vpop.f32.mrb[0].mxu0
    %464 = vmatprep.mubr.f32.mxu0 0.0
    %465 = vmatmul.mubr.f32.gmra.mrb[0].mxu0 %v173
    %v466 = vpop.f32.mrb[0].mxu0
    %v467 = vadd.f32 %v121, %v466
    %v468 = vpop.f32.mrb[0].mxu0
    %469 = vmatprep.mubr.f32.mxu0 0.0
    %470 = vmatmul.mubr.f32.gmra.mrb[0].mxu0 %v176
    %v471 = vpop.f32.mrb[0].mxu0
    %v472 = vadd.f32 %v121, %v471
    %v473 = vpop.f32.mrb[0].mxu0
    %474 = vmatprep.mubr.f32.mxu0 0.0
    %475 = vmatmul.mubr.f32.gmra.mrb[0].mxu0 %v179
    %v476 = vpop.f32.mrb[0].mxu0
    %v477 = vadd.f32 %v121, %v476
    %v478 = vpop.f32.mrb[0].mxu0
    %479 = vmatprep.mubr.f32.mxu0 0.0
    %480 = vmatmul.mubr.f32.gmra.mrb[0].mxu0 %v182
    %v481 = vpop.f32.mrb[0].mxu0
    %v482 = vadd.f32 %v121, %v481
    %v483 = vpop.f32.mrb[0].mxu0
    %484 = vmatprep.mubr.f32.mxu0 0.0
    %485 = vmatmul.mubr.f32.gmra.mrb[0].mxu0 %v185
    %v486 = vpop.f32.mrb[0].mxu0
    %v487 = vadd.f32 %v121, %v486
    %v488 = vpop.f32.mrb[0].mxu0
    %489 = vmatprep.mubr.f32.mxu0 0.0
    %490 = vmatmul.mubr.f32.gmra.mrb[0].mxu0 %v188
    %v491 = vpop.f32.mrb[0].mxu0
    %v492 = vadd.f32 %v121, %v491
    %v493 = vpop.f32.mrb[0].mxu0
    %494 = vmatprep.mubr.f32.mxu0 0.0
    %495 = vmatmul.mubr.f32.gmra.mrb[0].mxu0 %v191
    %v496 = vpop.f32.mrb[0].mxu0
    %v497 = vadd.f32 %v121, %v496
    %v498 = vpop.f32.mrb[0].mxu0
    %499 = vmatprep.mubr.f32.mxu0 0.0
    %500 = vmatmul.mubr.f32.gmra.mrb[0].mxu0 %v194
    %v501 = vpop.f32.mrb[0].mxu0
    %v502 = vadd.f32 %v121, %v501
    %v503 = vpop.f32.mrb[0].mxu0
    %504 = vmatprep.mubr.f32.mxu0 0.0
    %505 = vmatmul.mubr.f32.gmra.mrb[0].mxu0 %v197
    %v506 = vpop.f32.mrb[0].mxu0
    %v507 = vadd.f32 %v121, %v506
    %v508 = vpop.f32.mrb[0].mxu0
    %509 = vmatprep.mubr.f32.mxu0 0.0
    %510 = vmatmul.mubr.f32.gmra.mrb[0].mxu0 %v200
    %v511 = vpop.f32.mrb[0].mxu0
    %v512 = vadd.f32 %v121, %v511
    %v513 = vpop.f32.mrb[0].mxu0
    %514 = vmatprep.mubr.f32.mxu0 0.0
    %515 = vmatmul.mubr.f32.gmra.mrb[0].mxu0 %v203
    %v516 = vpop.f32.mrb[0].mxu0
    %v517 = vadd.f32 %v121, %v516
    %v518 = vpop.f32.mrb[0].mxu0
    %519 = vmatprep.mubr.f32.mxu0 0.0
    %520 = vmatmul.mubr.f32.gmra.mrb[0].mxu0 %v206
    %v521 = vpop.f32.mrb[0].mxu0
    %v522 = vadd.f32 %v121, %v521
    %v523 = vpop.f32.mrb[0].mxu0
    %524 = vmatprep.mubr.f32.mxu0 0.0
    %525 = vmatmul.mubr.f32.gmra.mrb[0].mxu0 %v209
    %v526 = vpop.f32.mrb[0].mxu0
    %v527 = vadd.f32 %v121, %v526
    %v528 = vpop.f32.mrb[0].mxu0
    %529 = vmatprep.mubr.f32.mxu0 0.0
    %530 = vmatmul.mubr.f32.gmra.mrb[0].mxu0 %v212
    %v531 = vpop.f32.mrb[0].mxu0
    %v532 = vadd.f32 %v121, %v531
    %v533 = vpop.f32.mrb[0].mxu0
    %534 = vmatprep.mubr.f32.mxu0 0.0
    %535 = vmatmul.mubr.f32.gmra.mrb[0].mxu0 %v215
    %v536 = vpop.f32.mrb[0].mxu0
    %v537 = vadd.f32 %v121, %v536
    %v538 = vpop.f32.mrb[0].mxu0
    %539 = vmatprep.mubr.f32.mxu0 0.0
    %540 = vmatmul.mubr.f32.gmra.mrb[0].mxu0 %v218
    %v541 = vpop.f32.mrb[0].mxu0
    %v542 = vadd.f32 %v121, %v541
    %v543 = vpop.f32.mrb[0].mxu0
    %544 = vmatprep.mubr.f32.mxu0 0.0
    %545 = vmatmul.mubr.f32.gmra.mrb[0].mxu0 %v221
    %v546 = vpop.f32.mrb[0].mxu0
    %v547 = vadd.f32 %v121, %v546
    %v548 = vpop.f32.mrb[0].mxu0
    %549 = vmatprep.mubr.f32.mxu0 0.0
    %550 = vmatmul.mubr.f32.gmra.mrb[0].mxu0 %v224
    %v551 = vpop.f32.mrb[0].mxu0
    %v552 = vadd.f32 %v121, %v551
    %v553 = vpop.f32.mrb[0].mxu0
    %554 = vmatprep.mubr.f32.mxu0 0.0
    %555 = vmatmul.mubr.f32.gmra.mrb[0].mxu0 %v227
    %v556 = vpop.f32.mrb[0].mxu0
    %v557 = vadd.f32 %v121, %v556
    %v558 = vpop.f32.mrb[0].mxu0
    %559 = vmatprep.mubr.f32.mxu0 0.0
    %560 = vmatmul.mubr.f32.gmra.mrb[0].mxu0 %v230
    %v561 = vpop.f32.mrb[0].mxu0
    %v562 = vadd.f32 %v121, %v561
    %v563 = vpop.f32.mrb[0].mxu0
    %564 = vmatprep.mubr.f32.mxu0 0.0
    %565 = vmatmul.mubr.f32.gmra.mrb[0].mxu0 %v233
    %v566 = vpop.f32.mrb[0].mxu0
    %v567 = vadd.f32 %v121, %v566
    %v568 = vpop.f32.mrb[0].mxu0
    %569 = vmatprep.mubr.f32.mxu0 0.0
    %570 = vmatmul.mubr.f32.gmra.mrb[0].mxu0 %v236
    %v571 = vpop.f32.mrb[0].mxu0
    %v572 = vadd.f32 %v121, %v571
    %v573 = vpop.f32.mrb[0].mxu0
    %574 = vmatprep.mubr.f32.mxu0 0.0
    %575 = vmatmul.mubr.f32.gmra.mrb[0].mxu0 %v239
    %v576 = vpop.f32.mrb[0].mxu0
    %v577 = vadd.f32 %v121, %v576
    %v578 = vpop.f32.mrb[0].mxu0
    %579 = vmatprep.mubr.f32.mxu0 0.0
    %580 = vmatmul.mubr.f32.gmra.mrb[0].mxu0 %v242
    %v581 = vpop.f32.mrb[0].mxu0
    %v582 = vadd.f32 %v121, %v581
    %v583 = vpop.f32.mrb[0].mxu0
    %584 = vmatprep.mubr.f32.mxu0 0.0
    %585 = vmatmul.mubr.f32.gmra.mrb[0].mxu0 %v245
    %v586 = vpop.f32.mrb[0].mxu0
    %v587 = vadd.f32 %v121, %v586
    %v588 = vpop.f32.mrb[0].mxu0
    %589 = vmatprep.mubr.f32.mxu0 0.0
    %590 = vmatmul.mubr.f32.gmra.mrb[0].mxu0 %v248
    %v591 = vpop.f32.mrb[0].mxu0
    %v592 = vadd.f32 %v121, %v591
    %v593 = vpop.f32.mrb[0].mxu0
    %594 = vmatprep.mubr.f32.mxu0 0.0
    %595 = vmatmul.mubr.f32.gmra.mrb[0].mxu0 %v251
    %v596 = vpop.f32.mrb[0].mxu0
    %v597 = vadd.f32 %v121, %v596
    %v598 = vpop.f32.mrb[0].mxu0
    %599 = vmatprep.mubr.f32.mxu0 0.0
    %600 = vmatmul.mubr.f32.gmra.mrb[0].mxu0 %v254
    %v601 = vpop.f32.mrb[0].mxu0
    %v602 = vadd.f32 %v121, %v601
    %v603 = vpop.f32.mrb[0].mxu0
    %604 = vmatprep.mubr.f32.mxu0 0.0
    %605 = vmatmul.mubr.f32.gmra.mrb[0].mxu0 %v257
    %v606 = vpop.f32.mrb[0].mxu0
    %v607 = vadd.f32 %v121, %v606
    %v608 = vpop.f32.mrb[0].mxu0
    %609 = vmatprep.mubr.f32.mxu0 0.0
    %610 = vmatmul.mubr.f32.gmra.mrb[0].mxu0 %v260
    %v611 = vpop.f32.mrb[0].mxu0
    %v612 = vadd.f32 %v121, %v611
    %v613 = vpop.f32.mrb[0].mxu0
    %614 = vmatprep.mubr.f32.mxu0 0.0
    %615 = vmatmul.mubr.f32.gmra.mrb[0].mxu0 %v263
    %v616 = vpop.f32.mrb[0].mxu0
    %v617 = vadd.f32 %v121, %v616
    %v618 = vpop.f32.mrb[0].mxu0
    %619 = vmatprep.mubr.f32.mxu0 0.0
    %620 = vmatmul.mubr.f32.gmra.mrb[0].mxu0 %v266
    %v621 = vpop.f32.mrb[0].mxu0
    %v622 = vadd.f32 %v121, %v621
    %v623 = vpop.f32.mrb[0].mxu0
    %624 = vmatprep.mubr.f32.mxu0 0.0
    %625 = vmatmul.mubr.f32.gmra.mrb[0].mxu0 %v269
    %v626 = vpop.f32.mrb[0].mxu0
    %v627 = vadd.f32 %v121, %v626
    %v628 = vpop.f32.mrb[0].mxu0
    %629 = vmatprep.mubr.f32.mxu0 0.0
    %630 = vmatmul.mubr.f32.gmra.mrb[0].mxu0 %v272
    %v631 = vpop.f32.mrb[0].mxu0
    %v632 = vadd.f32 %v121, %v631
    %v633 = vpop.f32.mrb[0].mxu0
    %634 = vmatprep.mubr.f32.mxu0 0.0
    %635 = vmatmul.mubr.f32.gmra.mrb[0].mxu0 %v275
    %v636 = vpop.f32.mrb[0].mxu0
    %v637 = vadd.f32 %v121, %v636
    %v638 = vpop.f32.mrb[0].mxu0
    %639 = vmatprep.mubr.f32.mxu0 0.0
    %640 = vmatmul.mubr.f32.gmra.mrb[0].mxu0 %v278
    %v641 = vpop.f32.mrb[0].mxu0
    %v642 = vadd.f32 %v121, %v641
    %v643 = vpop.f32.mrb[0].mxu0
    %644 = vmatprep.mubr.f32.mxu0 0.0
    %645 = vmatmul.mubr.f32.gmra.mrb[0].mxu0 %v281
    %v646 = vpop.f32.mrb[0].mxu0
    %v647 = vadd.f32 %v121, %v646
    %v648 = vpop.f32.mrb[0].mxu0
    %649 = vmatprep.mubr.f32.mxu0 0.0
    %650 = vmatmul.mubr.f32.gmra.mrb[0].mxu0 %v284
    %v651 = vpop.f32.mrb[0].mxu0
    %v652 = vadd.f32 %v121, %v651
    %v653 = vpop.f32.mrb[0].mxu0
    %654 = vmatprep.mubr.f32.mxu0 0.0
    %655 = vmatmul.mubr.f32.gmra.mrb[0].mxu0 %v287
    %v656 = vpop.f32.mrb[0].mxu0
    %v657 = vadd.f32 %v121, %v656
    %v658 = vpop.f32.mrb[0].mxu0
    %659 = vmatprep.mubr.f32.mxu0 0.0
    %660 = vmatmul.mubr.f32.gmra.mrb[0].mxu0 %v290
    %v661 = vpop.f32.mrb[0].mxu0
    %v662 = vadd.f32 %v121, %v661
    %v663 = vpop.f32.mrb[0].mxu0
    %664 = vmatprep.mubr.f32.mxu0 0.0
    %665 = vmatmul.mubr.f32.gmra.mrb[0].mxu0 %v293
    %v666 = vpop.f32.mrb[0].mxu0
    %v667 = vadd.f32 %v121, %v666
    %v668 = vpop.f32.mrb[0].mxu0
    %669 = vmatprep.mubr.f32.mxu0 0.0
    %670 = vmatmul.mubr.f32.gmra.mrb[0].mxu0 %v296
    %v671 = vpop.f32.mrb[0].mxu0
    %v672 = vadd.f32 %v121, %v671
    %v673 = vpop.f32.mrb[0].mxu0
    %674 = vmatprep.mubr.f32.mxu0 0.0
    %675 = vmatmul.mubr.f32.gmra.mrb[0].mxu0 %v299
    %v676 = vpop.f32.mrb[0].mxu0
    %v677 = vadd.f32 %v121, %v676
    %v678 = vpop.f32.mrb[0].mxu0
    %679 = vmatprep.mubr.f32.mxu0 0.0
    %680 = vmatmul.mubr.f32.gmra.mrb[0].mxu0 %v302
    %v681 = vpop.f32.mrb[0].mxu0
    %v682 = vadd.f32 %v121, %v681
    %v683 = vpop.f32.mrb[0].mxu0
    %684 = vmatprep.mubr.f32.mxu0 0.0
    %685 = vmatmul.mubr.f32.gmra.mrb[0].mxu0 %v305
    %v686 = vpop.f32.mrb[0].mxu0
    %v687 = vadd.f32 %v121, %v686
    %v688 = vpop.f32.mrb[0].mxu0
    %689 = vmatprep.mubr.f32.mxu0 0.0
    %690 = vmatmul.mubr.f32.gmra.mrb[0].mxu0 %v308
    %v691 = vpop.f32.mrb[0].mxu0
    %v692 = vadd.f32 %v121, %v691
    %v693 = vpop.f32.mrb[0].mxu0
    %694 = vmatprep.mubr.f32.mxu0 0.0
    %695 = vmatmul.mubr.f32.gmra.mrb[0].mxu0 %v311
    %v696 = vpop.f32.mrb[0].mxu0
    %v697 = vadd.f32 %v121, %v696
    %v698 = vpop.f32.mrb[0].mxu0
    %699 = vmatprep.mubr.f32.mxu0 0.0
    %700 = vmatmul.mubr.f32.gmra.mrb[0].mxu0 %v314
    %v701 = vpop.f32.mrb[0].mxu0
    %v702 = vadd.f32 %v121, %v701
    %v703 = vpop.f32.mrb[0].mxu0
    %704 = vdwg.mxu0
    %v705 = vmax.f32 %v387, 0.0
    %v706 = vmax.f32 %v392, 0.0
    %v707 = vmax.f32 %v397, 0.0
    %v708 = vmax.f32 %v402, 0.0
    %v709 = vmax.f32 %v407, 0.0
    %v710 = vmax.f32 %v412, 0.0
    %v711 = vmax.f32 %v417, 0.0
    %v712 = vmax.f32 %v422, 0.0
    %v713 = vmax.f32 %v427, 0.0
    %v714 = vmax.f32 %v432, 0.0
    %v715 = vmax.f32 %v437, 0.0
    %v716 = vmax.f32 %v442, 0.0
    %v717 = vmax.f32 %v447, 0.0
    %v718 = vmax.f32 %v452, 0.0
    %v719 = vmax.f32 %v457, 0.0
    %v720 = vmax.f32 %v462, 0.0
    %v721 = vmax.f32 %v467, 0.0
    %v722 = vmax.f32 %v472, 0.0
    %v723 = vmax.f32 %v477, 0.0
    %v724 = vmax.f32 %v482, 0.0
    %v725 = vmax.f32 %v487, 0.0
    %v726 = vmax.f32 %v492, 0.0
    %v727 = vmax.f32 %v497, 0.0
    %v728 = vmax.f32 %v502, 0.0
    %v729 = vmax.f32 %v507, 0.0
    %v730 = vmax.f32 %v512, 0.0
    %v731 = vmax.f32 %v517, 0.0
    %v732 = vmax.f32 %v522, 0.0
    %v733 = vmax.f32 %v527, 0.0
    %v734 = vmax.f32 %v532, 0.0
    %v735 = vmax.f32 %v537, 0.0
    %v736 = vmax.f32 %v542, 0.0
    %v737 = vmax.f32 %v547, 0.0
    %v738 = vmax.f32 %v552, 0.0
    %v739 = vmax.f32 %v557, 0.0
    %v740 = vmax.f32 %v562, 0.0
    %v741 = vmax.f32 %v567, 0.0
    %v742 = vmax.f32 %v572, 0.0
    %v743 = vmax.f32 %v577, 0.0
    %v744 = vmax.f32 %v582, 0.0
    %v745 = vmax.f32 %v587, 0.0
    %v746 = vmax.f32 %v592, 0.0
    %v747 = vmax.f32 %v597, 0.0
    %v748 = vmax.f32 %v602, 0.0
    %v749 = vmax.f32 %v607, 0.0
    %v750 = vmax.f32 %v612, 0.0
    %v751 = vmax.f32 %v617, 0.0
    %v752 = vmax.f32 %v622, 0.0
    %v753 = vmax.f32 %v627, 0.0
    %v754 = vmax.f32 %v632, 0.0
    %v755 = vmax.f32 %v637, 0.0
    %v756 = vmax.f32 %v642, 0.0
    %v757 = vmax.f32 %v647, 0.0
    %v758 = vmax.f32 %v652, 0.0
    %v759 = vmax.f32 %v657, 0.0
    %v760 = vmax.f32 %v662, 0.0
    %v761 = vmax.f32 %v667, 0.0
    %v762 = vmax.f32 %v672, 0.0
    %v763 = vmax.f32 %v677, 0.0
    %v764 = vmax.f32 %v682, 0.0
    %v765 = vmax.f32 %v687, 0.0
    %v766 = vmax.f32 %v692, 0.0
    %v767 = vmax.f32 %v697, 0.0
    %v768 = vmax.f32 %v702, 0.0
    %v769 = vld [vmem:[%s5] sm:$0xff]
    %v770 = vld [vmem:[%s5 + $0x8] sm:$0xff]
    %v771 = vld [vmem:[%s5 + $0x10] sm:$0xff]
    %v772 = vld [vmem:[%s5 + $0x18] sm:$0xff]
    %v773 = vld [vmem:[%s5 + $0x20] sm:$0xff]
    %v774 = vld [vmem:[%s5 + $0x28] sm:$0xff]
    %v775 = vld [vmem:[%s5 + $0x30] sm:$0xff]
    %v776 = vld [vmem:[%s5 + $0x38] sm:$0xff]
    %v777 = vld [vmem:[%s5 + $0x40] sm:$0xff]
    %v778 = vld [vmem:[%s5 + $0x48] sm:$0xff]
    %v779 = vld [vmem:[%s5 + $0x50] sm:$0xff]
    %v780 = vld [vmem:[%s5 + $0x58] sm:$0xff]
    %v781 = vld [vmem:[%s5 + $0x60] sm:$0xff]
    %v782 = vld [vmem:[%s5 + $0x68] sm:$0xff]
    %v783 = vld [vmem:[%s5 + $0x70] sm:$0xff]
    %v784 = vld [vmem:[%s5 + $0x78] sm:$0xff]
    %v785 = vld [vmem:[%s5 + $0x80] sm:$0xff]
    %v786 = vld [vmem:[%s5 + $0x88] sm:$0xff]
    %v787 = vld [vmem:[%s5 + $0x90] sm:$0xff]
    %v788 = vld [vmem:[%s5 + $0x98] sm:$0xff]
    %v789 = vld [vmem:[%s5 + $0xa0] sm:$0xff]
    %v790 = vld [vmem:[%s5 + $0xa8] sm:$0xff]
    %v791 = vld [vmem:[%s5 + $0xb0] sm:$0xff]
    %v792 = vld [vmem:[%s5 + $0xb8] sm:$0xff]
    %v793 = vld [vmem:[%s5 + $0xc0] sm:$0xff]
    %v794 = vld [vmem:[%s5 + $0xc8] sm:$0xff]
    %v795 = vld [vmem:[%s5 + $0xd0] sm:$0xff]
    %v796 = vld [vmem:[%s5 + $0xd8] sm:$0xff]
    %v797 = vld [vmem:[%s5 + $0xe0] sm:$0xff]
    %v798 = vld [vmem:[%s5 + $0xe8] sm:$0xff]
    %v799 = vld [vmem:[%s5 + $0xf0] sm:$0xff]
    %v800 = vld [vmem:[%s5 + $0xf8] sm:$0xff]
    %v801 = vld [vmem:[%s5 + $0x100] sm:$0xff]
    %v802 = vld [vmem:[%s5 + $0x108] sm:$0xff]
    %v803 = vld [vmem:[%s5 + $0x110] sm:$0xff]
    %v804 = vld [vmem:[%s5 + $0x118] sm:$0xff]
    %v805 = vld [vmem:[%s5 + $0x120] sm:$0xff]
    %v806 = vld [vmem:[%s5 + $0x128] sm:$0xff]
    %v807 = vld [vmem:[%s5 + $0x130] sm:$0xff]
    %v808 = vld [vmem:[%s5 + $0x138] sm:$0xff]
    %v809 = vld [vmem:[%s5 + $0x140] sm:$0xff]
    %v810 = vld [vmem:[%s5 + $0x148] sm:$0xff]
    %v811 = vld [vmem:[%s5 + $0x150] sm:$0xff]
    %v812 = vld [vmem:[%s5 + $0x158] sm:$0xff]
    %v813 = vld [vmem:[%s5 + $0x160] sm:$0xff]
    %v814 = vld [vmem:[%s5 + $0x168] sm:$0xff]
    %v815 = vld [vmem:[%s5 + $0x170] sm:$0xff]
    %v816 = vld [vmem:[%s5 + $0x178] sm:$0xff]
    %v817 = vld [vmem:[%s5 + $0x180] sm:$0xff]
    %v818 = vld [vmem:[%s5 + $0x188] sm:$0xff]
    %v819 = vld [vmem:[%s5 + $0x190] sm:$0xff]
    %v820 = vld [vmem:[%s5 + $0x198] sm:$0xff]
    %v821 = vld [vmem:[%s5 + $0x1a0] sm:$0xff]
    %v822 = vld [vmem:[%s5 + $0x1a8] sm:$0xff]
    %v823 = vld [vmem:[%s5 + $0x1b0] sm:$0xff]
    %v824 = vld [vmem:[%s5 + $0x1b8] sm:$0xff]
    %v825 = vld [vmem:[%s5 + $0x1c0] sm:$0xff]
    %v826 = vld [vmem:[%s5 + $0x1c8] sm:$0xff]
    %v827 = vld [vmem:[%s5 + $0x1d0] sm:$0xff]
    %v828 = vld [vmem:[%s5 + $0x1d8] sm:$0xff]
    %v829 = vld [vmem:[%s5 + $0x1e0] sm:$0xff]
    %v830 = vld [vmem:[%s5 + $0x1e8] sm:$0xff]
    %v831 = vld [vmem:[%s5 + $0x1f0] sm:$0xff]
    %v832 = vld [vmem:[%s5 + $0x1f8] sm:$0xff]
    %v833 = vld [vmem:[%s3] sm:$0xf]
    %vm834 = vcmask 31744
    %v836 = vsel %vm834, %v705, 0
    %v839 = vsel %vm834, %v706, 0
    %v842 = vsel %vm834, %v707, 0
    %v845 = vsel %vm834, %v708, 0
    %v848 = vsel %vm834, %v709, 0
    %v851 = vsel %vm834, %v710, 0
    %v854 = vsel %vm834, %v711, 0
    %v857 = vsel %vm834, %v712, 0
    %v860 = vsel %vm834, %v713, 0
    %v863 = vsel %vm834, %v714, 0
    %v866 = vsel %vm834, %v715, 0
    %v869 = vsel %vm834, %v716, 0
    %v872 = vsel %vm834, %v717, 0
    %v875 = vsel %vm834, %v718, 0
    %v878 = vsel %vm834, %v719, 0
    %v881 = vsel %vm834, %v720, 0
    %v884 = vsel %vm834, %v721, 0
    %v887 = vsel %vm834, %v722, 0
    %v890 = vsel %vm834, %v723, 0
    %v893 = vsel %vm834, %v724, 0
    %v896 = vsel %vm834, %v725, 0
    %v899 = vsel %vm834, %v726, 0
    %v902 = vsel %vm834, %v727, 0
    %v905 = vsel %vm834, %v728, 0
    %v908 = vsel %vm834, %v729, 0
    %v911 = vsel %vm834, %v730, 0
    %v914 = vsel %vm834, %v731, 0
    %v917 = vsel %vm834, %v732, 0
    %v920 = vsel %vm834, %v733, 0
    %v923 = vsel %vm834, %v734, 0
    %v926 = vsel %vm834, %v735, 0
    %v929 = vsel %vm834, %v736, 0
    %v932 = vsel %vm834, %v737, 0
    %v935 = vsel %vm834, %v738, 0
    %v938 = vsel %vm834, %v739, 0
    %v941 = vsel %vm834, %v740, 0
    %v944 = vsel %vm834, %v741, 0
    %v947 = vsel %vm834, %v742, 0
    %v950 = vsel %vm834, %v743, 0
    %v953 = vsel %vm834, %v744, 0
    %v956 = vsel %vm834, %v745, 0
    %v959 = vsel %vm834, %v746, 0
    %v962 = vsel %vm834, %v747, 0
    %v965 = vsel %vm834, %v748, 0
    %v968 = vsel %vm834, %v749, 0
    %v971 = vsel %vm834, %v750, 0
    %v974 = vsel %vm834, %v751, 0
    %v977 = vsel %vm834, %v752, 0
    %v980 = vsel %vm834, %v753, 0
    %v983 = vsel %vm834, %v754, 0
    %v986 = vsel %vm834, %v755, 0
    %v989 = vsel %vm834, %v756, 0
    %v992 = vsel %vm834, %v757, 0
    %v995 = vsel %vm834, %v758, 0
    %v998 = vsel %vm834, %v759, 0
    %v1001 = vsel %vm834, %v760, 0
    %v1004 = vsel %vm834, %v761, 0
    %v1007 = vsel %vm834, %v762, 0
    %v1010 = vsel %vm834, %v763, 0
    %v1013 = vsel %vm834, %v764, 0
    %v1016 = vsel %vm834, %v765, 0
    %v1019 = vsel %vm834, %v766, 0
    %v1022 = vsel %vm834, %v767, 0
    %v1025 = vsel %vm834, %v768, 0
    %vm1027 = vcmask 1043456
    %v1029 = vsel %vm1027, %v833, 0
    %1031 = vmatprep.subr.mxu0 0.0
    %1032 = vmatpush1.msra.mxu0 %v1029
    %1033 = vmatprep.subr.mxu0 0.0
    %1034 = vmatpush1.msra.mxu0 0.0
    %1035 = vmatprep.subr.mxu0 0.0
    %1036 = vmatpush1.msra.mxu0 0.0
    %1037 = vmatprep.subr.mxu0 0.0
    %1038 = vmatpush1.msra.mxu0 0.0
    %1039 = vmatprep.subr.mxu0 0.0
    %1040 = vmatpush1.msra.mxu0 0.0
    %1041 = vmatprep.subr.mxu0 0.0
    %1042 = vmatpush1.msra.mxu0 0.0
    %1043 = vmatprep.subr.mxu0 0.0
    %1044 = vmatpush1.msra.mxu0 0.0
    %1045 = vmatprep.subr.mxu0 0.0
    %1046 = vmatpush1.msra.mxu0 0.0
    %1047 = vmatprep.subr.mxu0 0.0
    %1048 = vmatpush1.msra.mxu0 0.0
    %1049 = vmatprep.subr.mxu0 0.0
    %1050 = vmatpush1.msra.mxu0 0.0
    %1051 = vmatprep.subr.mxu0 0.0
    %1052 = vmatpush1.msra.mxu0 0.0
    %1053 = vmatprep.subr.mxu0 0.0
    %1054 = vmatpush1.msra.mxu0 0.0
    %1055 = vmatprep.subr.mxu0 0.0
    %1056 = vmatpush1.msra.mxu0 0.0
    %1057 = vmatprep.subr.mxu0 0.0
    %1058 = vmatpush1.msra.mxu0 0.0
    %1059 = vmatprep.subr.mxu0 0.0
    %1060 = vmatpush1.msra.mxu0 0.0
    %1061 = vmatprep.subr.mxu0 0.0
    %1062 = vmatpush1.msra.mxu0 0.0
    %1063 = vmatprep.subr.mxu0 0.0
    %1064 = vmatpush1.msra.mxu0 0.0
    %1065 = vmatprep.subr.mxu0 0.0
    %1066 = vmatpush1.msra.mxu0 0.0
    %1067 = vmatprep.subr.mxu0 0.0
    %1068 = vmatpush1.msra.mxu0 0.0
    %1069 = vmatprep.subr.mxu0 0.0
    %1070 = vmatpush1.msra.mxu0 0.0
    %1071 = vmatprep.subr.mxu0 0.0
    %1072 = vmatpush1.msra.mxu0 0.0
    %1073 = vmatprep.subr.mxu0 0.0
    %1074 = vmatpush1.msra.mxu0 0.0
    %1075 = vmatprep.subr.mxu0 0.0
    %1076 = vmatpush1.msra.mxu0 0.0
    %1077 = vmatprep.subr.mxu0 0.0
    %1078 = vmatpush1.msra.mxu0 0.0
    %1079 = vmatprep.subr.mxu0 0.0
    %1080 = vmatpush1.msra.mxu0 0.0
    %1081 = vmatprep.subr.mxu0 0.0
    %1082 = vmatpush1.msra.mxu0 0.0
    %1083 = vmatprep.subr.mxu0 0.0
    %1084 = vmatpush1.msra.mxu0 0.0
    %1085 = vmatprep.subr.mxu0 0.0
    %1086 = vmatpush1.msra.mxu0 0.0
    %1087 = vmatprep.subr.mxu0 0.0
    %1088 = vmatpush1.msra.mxu0 0.0
    %1089 = vmatprep.subr.mxu0 0.0
    %1090 = vmatpush1.msra.mxu0 0.0
    %1091 = vmatprep.subr.mxu0 0.0
    %1092 = vmatpush1.msra.mxu0 0.0
    %1093 = vmatprep.subr.mxu0 0.0
    %1094 = vmatpush1.msra.mxu0 0.0
    %1095 = vmatprep.mubr.f32.mxu0 0.0
    %1096 = vmatmul.mubr.f32.gmra.mrb[0].mxu0 %v836
    %v1097 = vpop.f32.mrb[0].mxu0
    %v1098 = vadd.f32 0.0, %v1097
    %v1099 = vpop.f32.mrb[0].mxu0
    %1100 = vmatprep.mubr.f32.mxu0 0.0
    %1101 = vmatmul.mubr.f32.gmra.mrb[0].mxu0 %v839
    %v1102 = vpop.f32.mrb[0].mxu0
    %v1103 = vadd.f32 0.0, %v1102
    %v1104 = vpop.f32.mrb[0].mxu0
    %1105 = vmatprep.mubr.f32.mxu0 0.0
    %1106 = vmatmul.mubr.f32.gmra.mrb[0].mxu0 %v842
    %v1107 = vpop.f32.mrb[0].mxu0
    %v1108 = vadd.f32 0.0, %v1107
    %v1109 = vpop.f32.mrb[0].mxu0
    %1110 = vmatprep.mubr.f32.mxu0 0.0
    %1111 = vmatmul.mubr.f32.gmra.mrb[0].mxu0 %v845
    %v1112 = vpop.f32.mrb[0].mxu0
    %v1113 = vadd.f32 0.0, %v1112
    %v1114 = vpop.f32.mrb[0].mxu0
    %1115 = vmatprep.mubr.f32.mxu0 0.0
    %1116 = vmatmul.mubr.f32.gmra.mrb[0].mxu0 %v848
    %v1117 = vpop.f32.mrb[0].mxu0
    %v1118 = vadd.f32 0.0, %v1117
    %v1119 = vpop.f32.mrb[0].mxu0
    %1120 = vmatprep.mubr.f32.mxu0 0.0
    %1121 = vmatmul.mubr.f32.gmra.mrb[0].mxu0 %v851
    %v1122 = vpop.f32.mrb[0].mxu0
    %v1123 = vadd.f32 0.0, %v1122
    %v1124 = vpop.f32.mrb[0].mxu0
    %1125 = vmatprep.mubr.f32.mxu0 0.0
    %1126 = vmatmul.mubr.f32.gmra.mrb[0].mxu0 %v854
    %v1127 = vpop.f32.mrb[0].mxu0
    %v1128 = vadd.f32 0.0, %v1127
    %v1129 = vpop.f32.mrb[0].mxu0
    %1130 = vmatprep.mubr.f32.mxu0 0.0
    %1131 = vmatmul.mubr.f32.gmra.mrb[0].mxu0 %v857
    %v1132 = vpop.f32.mrb[0].mxu0
    %v1133 = vadd.f32 0.0, %v1132
    %v1134 = vpop.f32.mrb[0].mxu0
    %1135 = vmatprep.mubr.f32.mxu0 0.0
    %1136 = vmatmul.mubr.f32.gmra.mrb[0].mxu0 %v860
    %v1137 = vpop.f32.mrb[0].mxu0
    %v1138 = vadd.f32 0.0, %v1137
    %v1139 = vpop.f32.mrb[0].mxu0
    %1140 = vmatprep.mubr.f32.mxu0 0.0
    %1141 = vmatmul.mubr.f32.gmra.mrb[0].mxu0 %v863
    %v1142 = vpop.f32.mrb[0].mxu0
    %v1143 = vadd.f32 0.0, %v1142
    %v1144 = vpop.f32.mrb[0].mxu0
    %1145 = vmatprep.mubr.f32.mxu0 0.0
    %1146 = vmatmul.mubr.f32.gmra.mrb[0].mxu0 %v866
    %v1147 = vpop.f32.mrb[0].mxu0
    %v1148 = vadd.f32 0.0, %v1147
    %v1149 = vpop.f32.mrb[0].mxu0
    %1150 = vmatprep.mubr.f32.mxu0 0.0
    %1151 = vmatmul.mubr.f32.gmra.mrb[0].mxu0 %v869
    %v1152 = vpop.f32.mrb[0].mxu0
    %v1153 = vadd.f32 0.0, %v1152
    %v1154 = vpop.f32.mrb[0].mxu0
    %1155 = vmatprep.mubr.f32.mxu0 0.0
    %1156 = vmatmul.mubr.f32.gmra.mrb[0].mxu0 %v872
    %v1157 = vpop.f32.mrb[0].mxu0
    %v1158 = vadd.f32 0.0, %v1157
    %v1159 = vpop.f32.mrb[0].mxu0
    %1160 = vmatprep.mubr.f32.mxu0 0.0
    %1161 = vmatmul.mubr.f32.gmra.mrb[0].mxu0 %v875
    %v1162 = vpop.f32.mrb[0].mxu0
    %v1163 = vadd.f32 0.0, %v1162
    %v1164 = vpop.f32.mrb[0].mxu0
    %1165 = vmatprep.mubr.f32.mxu0 0.0
    %1166 = vmatmul.mubr.f32.gmra.mrb[0].mxu0 %v878
    %v1167 = vpop.f32.mrb[0].mxu0
    %v1168 = vadd.f32 0.0, %v1167
    %v1169 = vpop.f32.mrb[0].mxu0
    %1170 = vmatprep.mubr.f32.mxu0 0.0
    %1171 = vmatmul.mubr.f32.gmra.mrb[0].mxu0 %v881
    %v1172 = vpop.f32.mrb[0].mxu0
    %v1173 = vadd.f32 0.0, %v1172
    %v1174 = vpop.f32.mrb[0].mxu0
    %1175 = vmatprep.mubr.f32.mxu0 0.0
    %1176 = vmatmul.mubr.f32.gmra.mrb[0].mxu0 %v884
    %v1177 = vpop.f32.mrb[0].mxu0
    %v1178 = vadd.f32 0.0, %v1177
    %v1179 = vpop.f32.mrb[0].mxu0
    %1180 = vmatprep.mubr.f32.mxu0 0.0
    %1181 = vmatmul.mubr.f32.gmra.mrb[0].mxu0 %v887
    %v1182 = vpop.f32.mrb[0].mxu0
    %v1183 = vadd.f32 0.0, %v1182
    %v1184 = vpop.f32.mrb[0].mxu0
    %1185 = vmatprep.mubr.f32.mxu0 0.0
    %1186 = vmatmul.mubr.f32.gmra.mrb[0].mxu0 %v890
    %v1187 = vpop.f32.mrb[0].mxu0
    %v1188 = vadd.f32 0.0, %v1187
    %v1189 = vpop.f32.mrb[0].mxu0
    %1190 = vmatprep.mubr.f32.mxu0 0.0
    %1191 = vmatmul.mubr.f32.gmra.mrb[0].mxu0 %v893
    %v1192 = vpop.f32.mrb[0].mxu0
    %v1193 = vadd.f32 0.0, %v1192
    %v1194 = vpop.f32.mrb[0].mxu0
    %1195 = vmatprep.mubr.f32.mxu0 0.0
    %1196 = vmatmul.mubr.f32.gmra.mrb[0].mxu0 %v896
    %v1197 = vpop.f32.mrb[0].mxu0
    %v1198 = vadd.f32 0.0, %v1197
    %v1199 = vpop.f32.mrb[0].mxu0
    %1200 = vmatprep.mubr.f32.mxu0 0.0
    %1201 = vmatmul.mubr.f32.gmra.mrb[0].mxu0 %v899
    %v1202 = vpop.f32.mrb[0].mxu0
    %v1203 = vadd.f32 0.0, %v1202
    %v1204 = vpop.f32.mrb[0].mxu0
    %1205 = vmatprep.mubr.f32.mxu0 0.0
    %1206 = vmatmul.mubr.f32.gmra.mrb[0].mxu0 %v902
    %v1207 = vpop.f32.mrb[0].mxu0
    %v1208 = vadd.f32 0.0, %v1207
    %v1209 = vpop.f32.mrb[0].mxu0
    %1210 = vmatprep.mubr.f32.mxu0 0.0
    %1211 = vmatmul.mubr.f32.gmra.mrb[0].mxu0 %v905
    %v1212 = vpop.f32.mrb[0].mxu0
    %v1213 = vadd.f32 0.0, %v1212
    %v1214 = vpop.f32.mrb[0].mxu0
    %1215 = vmatprep.mubr.f32.mxu0 0.0
    %1216 = vmatmul.mubr.f32.gmra.mrb[0].mxu0 %v908
    %v1217 = vpop.f32.mrb[0].mxu0
    %v1218 = vadd.f32 0.0, %v1217
    %v1219 = vpop.f32.mrb[0].mxu0
    %1220 = vmatprep.mubr.f32.mxu0 0.0
    %1221 = vmatmul.mubr.f32.gmra.mrb[0].mxu0 %v911
    %v1222 = vpop.f32.mrb[0].mxu0
    %v1223 = vadd.f32 0.0, %v1222
    %v1224 = vpop.f32.mrb[0].mxu0
    %1225 = vmatprep.mubr.f32.mxu0 0.0
    %1226 = vmatmul.mubr.f32.gmra.mrb[0].mxu0 %v914
    %v1227 = vpop.f32.mrb[0].mxu0
    %v1228 = vadd.f32 0.0, %v1227
    %v1229 = vpop.f32.mrb[0].mxu0
    %1230 = vmatprep.mubr.f32.mxu0 0.0
    %1231 = vmatmul.mubr.f32.gmra.mrb[0].mxu0 %v917
    %v1232 = vpop.f32.mrb[0].mxu0
    %v1233 = vadd.f32 0.0, %v1232
    %v1234 = vpop.f32.mrb[0].mxu0
    %1235 = vmatprep.mubr.f32.mxu0 0.0
    %1236 = vmatmul.mubr.f32.gmra.mrb[0].mxu0 %v920
    %v1237 = vpop.f32.mrb[0].mxu0
    %v1238 = vadd.f32 0.0, %v1237
    %v1239 = vpop.f32.mrb[0].mxu0
    %1240 = vmatprep.mubr.f32.mxu0 0.0
    %1241 = vmatmul.mubr.f32.gmra.mrb[0].mxu0 %v923
    %v1242 = vpop.f32.mrb[0].mxu0
    %v1243 = vadd.f32 0.0, %v1242
    %v1244 = vpop.f32.mrb[0].mxu0
    %1245 = vmatprep.mubr.f32.mxu0 0.0
    %1246 = vmatmul.mubr.f32.gmra.mrb[0].mxu0 %v926
    %v1247 = vpop.f32.mrb[0].mxu0
    %v1248 = vadd.f32 0.0, %v1247
    %v1249 = vpop.f32.mrb[0].mxu0
    %1250 = vmatprep.mubr.f32.mxu0 0.0
    %1251 = vmatmul.mubr.f32.gmra.mrb[0].mxu0 %v929
    %v1252 = vpop.f32.mrb[0].mxu0
    %v1253 = vadd.f32 0.0, %v1252
    %v1254 = vpop.f32.mrb[0].mxu0
    %1255 = vmatprep.mubr.f32.mxu0 0.0
    %1256 = vmatmul.mubr.f32.gmra.mrb[0].mxu0 %v932
    %v1257 = vpop.f32.mrb[0].mxu0
    %v1258 = vadd.f32 0.0, %v1257
    %v1259 = vpop.f32.mrb[0].mxu0
    %1260 = vmatprep.mubr.f32.mxu0 0.0
    %1261 = vmatmul.mubr.f32.gmra.mrb[0].mxu0 %v935
    %v1262 = vpop.f32.mrb[0].mxu0
    %v1263 = vadd.f32 0.0, %v1262
    %v1264 = vpop.f32.mrb[0].mxu0
    %1265 = vmatprep.mubr.f32.mxu0 0.0
    %1266 = vmatmul.mubr.f32.gmra.mrb[0].mxu0 %v938
    %v1267 = vpop.f32.mrb[0].mxu0
    %v1268 = vadd.f32 0.0, %v1267
    %v1269 = vpop.f32.mrb[0].mxu0
    %1270 = vmatprep.mubr.f32.mxu0 0.0
    %1271 = vmatmul.mubr.f32.gmra.mrb[0].mxu0 %v941
    %v1272 = vpop.f32.mrb[0].mxu0
    %v1273 = vadd.f32 0.0, %v1272
    %v1274 = vpop.f32.mrb[0].mxu0
    %1275 = vmatprep.mubr.f32.mxu0 0.0
    %1276 = vmatmul.mubr.f32.gmra.mrb[0].mxu0 %v944
    %v1277 = vpop.f32.mrb[0].mxu0
    %v1278 = vadd.f32 0.0, %v1277
    %v1279 = vpop.f32.mrb[0].mxu0
    %1280 = vmatprep.mubr.f32.mxu0 0.0
    %1281 = vmatmul.mubr.f32.gmra.mrb[0].mxu0 %v947
    %v1282 = vpop.f32.mrb[0].mxu0
    %v1283 = vadd.f32 0.0, %v1282
    %v1284 = vpop.f32.mrb[0].mxu0
    %1285 = vmatprep.mubr.f32.mxu0 0.0
    %1286 = vmatmul.mubr.f32.gmra.mrb[0].mxu0 %v950
    %v1287 = vpop.f32.mrb[0].mxu0
    %v1288 = vadd.f32 0.0, %v1287
    %v1289 = vpop.f32.mrb[0].mxu0
    %1290 = vmatprep.mubr.f32.mxu0 0.0
    %1291 = vmatmul.mubr.f32.gmra.mrb[0].mxu0 %v953
    %v1292 = vpop.f32.mrb[0].mxu0
    %v1293 = vadd.f32 0.0, %v1292
    %v1294 = vpop.f32.mrb[0].mxu0
    %1295 = vmatprep.mubr.f32.mxu0 0.0
    %1296 = vmatmul.mubr.f32.gmra.mrb[0].mxu0 %v956
    %v1297 = vpop.f32.mrb[0].mxu0
    %v1298 = vadd.f32 0.0, %v1297
    %v1299 = vpop.f32.mrb[0].mxu0
    %1300 = vmatprep.mubr.f32.mxu0 0.0
    %1301 = vmatmul.mubr.f32.gmra.mrb[0].mxu0 %v959
    %v1302 = vpop.f32.mrb[0].mxu0
    %v1303 = vadd.f32 0.0, %v1302
    %v1304 = vpop.f32.mrb[0].mxu0
    %1305 = vmatprep.mubr.f32.mxu0 0.0
    %1306 = vmatmul.mubr.f32.gmra.mrb[0].mxu0 %v962
    %v1307 = vpop.f32.mrb[0].mxu0
    %v1308 = vadd.f32 0.0, %v1307
    %v1309 = vpop.f32.mrb[0].mxu0
    %1310 = vmatprep.mubr.f32.mxu0 0.0
    %1311 = vmatmul.mubr.f32.gmra.mrb[0].mxu0 %v965
    %v1312 = vpop.f32.mrb[0].mxu0
    %v1313 = vadd.f32 0.0, %v1312
    %v1314 = vpop.f32.mrb[0].mxu0
    %1315 = vmatprep.mubr.f32.mxu0 0.0
    %1316 = vmatmul.mubr.f32.gmra.mrb[0].mxu0 %v968
    %v1317 = vpop.f32.mrb[0].mxu0
    %v1318 = vadd.f32 0.0, %v1317
    %v1319 = vpop.f32.mrb[0].mxu0
    %1320 = vmatprep.mubr.f32.mxu0 0.0
    %1321 = vmatmul.mubr.f32.gmra.mrb[0].mxu0 %v971
    %v1322 = vpop.f32.mrb[0].mxu0
    %v1323 = vadd.f32 0.0, %v1322
    %v1324 = vpop.f32.mrb[0].mxu0
    %1325 = vmatprep.mubr.f32.mxu0 0.0
    %1326 = vmatmul.mubr.f32.gmra.mrb[0].mxu0 %v974
    %v1327 = vpop.f32.mrb[0].mxu0
    %v1328 = vadd.f32 0.0, %v1327
    %v1329 = vpop.f32.mrb[0].mxu0
    %1330 = vmatprep.mubr.f32.mxu0 0.0
    %1331 = vmatmul.mubr.f32.gmra.mrb[0].mxu0 %v977
    %v1332 = vpop.f32.mrb[0].mxu0
    %v1333 = vadd.f32 0.0, %v1332
    %v1334 = vpop.f32.mrb[0].mxu0
    %1335 = vmatprep.mubr.f32.mxu0 0.0
    %1336 = vmatmul.mubr.f32.gmra.mrb[0].mxu0 %v980
    %v1337 = vpop.f32.mrb[0].mxu0
    %v1338 = vadd.f32 0.0, %v1337
    %v1339 = vpop.f32.mrb[0].mxu0
    %1340 = vmatprep.mubr.f32.mxu0 0.0
    %1341 = vmatmul.mubr.f32.gmra.mrb[0].mxu0 %v983
    %v1342 = vpop.f32.mrb[0].mxu0
    %v1343 = vadd.f32 0.0, %v1342
    %v1344 = vpop.f32.mrb[0].mxu0
    %1345 = vmatprep.mubr.f32.mxu0 0.0
    %1346 = vmatmul.mubr.f32.gmra.mrb[0].mxu0 %v986
    %v1347 = vpop.f32.mrb[0].mxu0
    %v1348 = vadd.f32 0.0, %v1347
    %v1349 = vpop.f32.mrb[0].mxu0
    %1350 = vmatprep.mubr.f32.mxu0 0.0
    %1351 = vmatmul.mubr.f32.gmra.mrb[0].mxu0 %v989
    %v1352 = vpop.f32.mrb[0].mxu0
    %v1353 = vadd.f32 0.0, %v1352
    %v1354 = vpop.f32.mrb[0].mxu0
    %1355 = vmatprep.mubr.f32.mxu0 0.0
    %1356 = vmatmul.mubr.f32.gmra.mrb[0].mxu0 %v992
    %v1357 = vpop.f32.mrb[0].mxu0
    %v1358 = vadd.f32 0.0, %v1357
    %v1359 = vpop.f32.mrb[0].mxu0
    %1360 = vmatprep.mubr.f32.mxu0 0.0
    %1361 = vmatmul.mubr.f32.gmra.mrb[0].mxu0 %v995
    %v1362 = vpop.f32.mrb[0].mxu0
    %v1363 = vadd.f32 0.0, %v1362
    %v1364 = vpop.f32.mrb[0].mxu0
    %1365 = vmatprep.mubr.f32.mxu0 0.0
    %1366 = vmatmul.mubr.f32.gmra.mrb[0].mxu0 %v998
    %v1367 = vpop.f32.mrb[0].mxu0
    %v1368 = vadd.f32 0.0, %v1367
    %v1369 = vpop.f32.mrb[0].mxu0
    %1370 = vmatprep.mubr.f32.mxu0 0.0
    %1371 = vmatmul.mubr.f32.gmra.mrb[0].mxu0 %v1001
    %v1372 = vpop.f32.mrb[0].mxu0
    %v1373 = vadd.f32 0.0, %v1372
    %v1374 = vpop.f32.mrb[0].mxu0
    %1375 = vmatprep.mubr.f32.mxu0 0.0
    %1376 = vmatmul.mubr.f32.gmra.mrb[0].mxu0 %v1004
    %v1377 = vpop.f32.mrb[0].mxu0
    %v1378 = vadd.f32 0.0, %v1377
    %v1379 = vpop.f32.mrb[0].mxu0
    %1380 = vmatprep.mubr.f32.mxu0 0.0
    %1381 = vmatmul.mubr.f32.gmra.mrb[0].mxu0 %v1007
    %v1382 = vpop.f32.mrb[0].mxu0
    %v1383 = vadd.f32 0.0, %v1382
    %v1384 = vpop.f32.mrb[0].mxu0
    %1385 = vmatprep.mubr.f32.mxu0 0.0
    %1386 = vmatmul.mubr.f32.gmra.mrb[0].mxu0 %v1010
    %v1387 = vpop.f32.mrb[0].mxu0
    %v1388 = vadd.f32 0.0, %v1387
    %v1389 = vpop.f32.mrb[0].mxu0
    %1390 = vmatprep.mubr.f32.mxu0 0.0
    %1391 = vmatmul.mubr.f32.gmra.mrb[0].mxu0 %v1013
    %v1392 = vpop.f32.mrb[0].mxu0
    %v1393 = vadd.f32 0.0, %v1392
    %v1394 = vpop.f32.mrb[0].mxu0
    %1395 = vmatprep.mubr.f32.mxu0 0.0
    %1396 = vmatmul.mubr.f32.gmra.mrb[0].mxu0 %v1016
    %v1397 = vpop.f32.mrb[0].mxu0
    %v1398 = vadd.f32 0.0, %v1397
    %v1399 = vpop.f32.mrb[0].mxu0
    %1400 = vmatprep.mubr.f32.mxu0 0.0
    %1401 = vmatmul.mubr.f32.gmra.mrb[0].mxu0 %v1019
    %v1402 = vpop.f32.mrb[0].mxu0
    %v1403 = vadd.f32 0.0, %v1402
    %v1404 = vpop.f32.mrb[0].mxu0
    %1405 = vmatprep.mubr.f32.mxu0 0.0
    %1406 = vmatmul.mubr.f32.gmra.mrb[0].mxu0 %v1022
    %v1407 = vpop.f32.mrb[0].mxu0
    %v1408 = vadd.f32 0.0, %v1407
    %v1409 = vpop.f32.mrb[0].mxu0
    %1410 = vmatprep.mubr.f32.mxu0 0.0
    %1411 = vmatmul.mubr.f32.gmra.mrb[0].mxu0 %v1025
    %v1412 = vpop.f32.mrb[0].mxu0
    %v1413 = vpop.f32.mrb[0].mxu0
    %1414 = vdwg.mxu0
    %v1478 = vrot.slane %v1098, 7
    %v1479 = vrot.slane %v1103, 7
    %v1480 = vsel %vm316, %v1478, %v1479
    %v1481 = vrot.slane %v1108, 7
    %v1482 = vsel %vm316, %v1479, %v1481
    %v1483 = vrot.slane %v1113, 7
    %v1484 = vsel %vm316, %v1481, %v1483
    %v1485 = vrot.slane %v1118, 7
    %v1486 = vsel %vm316, %v1483, %v1485
    %v1487 = vrot.slane %v1123, 7
    %v1488 = vsel %vm316, %v1485, %v1487
    %v1489 = vrot.slane %v1128, 7
    %v1490 = vsel %vm316, %v1487, %v1489
    %v1491 = vrot.slane %v1133, 7
    %v1492 = vsel %vm316, %v1489, %v1491
    %v1493 = vrot.slane %v1138, 7
    %v1494 = vsel %vm316, %v1491, %v1493
    %v1495 = vrot.slane %v1143, 7
    %v1496 = vsel %vm316, %v1493, %v1495
    %v1497 = vrot.slane %v1148, 7
    %v1498 = vsel %vm316, %v1495, %v1497
    %v1499 = vrot.slane %v1153, 7
    %v1500 = vsel %vm316, %v1497, %v1499
    %v1501 = vrot.slane %v1158, 7
    %v1502 = vsel %vm316, %v1499, %v1501
    %v1503 = vrot.slane %v1163, 7
    %v1504 = vsel %vm316, %v1501, %v1503
    %v1505 = vrot.slane %v1168, 7
    %v1506 = vsel %vm316, %v1503, %v1505
    %v1507 = vrot.slane %v1173, 7
    %v1508 = vsel %vm316, %v1505, %v1507
    %v1509 = vrot.slane %v1178, 7
    %v1510 = vsel %vm316, %v1507, %v1509
    %v1511 = vrot.slane %v1183, 7
    %v1512 = vsel %vm316, %v1509, %v1511
    %v1513 = vrot.slane %v1188, 7
    %v1514 = vsel %vm316, %v1511, %v1513
    %v1515 = vrot.slane %v1193, 7
    %v1516 = vsel %vm316, %v1513, %v1515
    %v1517 = vrot.slane %v1198, 7
    %v1518 = vsel %vm316, %v1515, %v1517
    %v1519 = vrot.slane %v1203, 7
    %v1520 = vsel %vm316, %v1517, %v1519
    %v1521 = vrot.slane %v1208, 7
    %v1522 = vsel %vm316, %v1519, %v1521
    %v1523 = vrot.slane %v1213, 7
    %v1524 = vsel %vm316, %v1521, %v1523
    %v1525 = vrot.slane %v1218, 7
    %v1526 = vsel %vm316, %v1523, %v1525
    %v1527 = vrot.slane %v1223, 7
    %v1528 = vsel %vm316, %v1525, %v1527
    %v1529 = vrot.slane %v1228, 7
    %v1530 = vsel %vm316, %v1527, %v1529
    %v1531 = vrot.slane %v1233, 7
    %v1532 = vsel %vm316, %v1529, %v1531
    %v1533 = vrot.slane %v1238, 7
    %v1534 = vsel %vm316, %v1531, %v1533
    %v1535 = vrot.slane %v1243, 7
    %v1536 = vsel %vm316, %v1533, %v1535
    %v1537 = vrot.slane %v1248, 7
    %v1538 = vsel %vm316, %v1535, %v1537
    %v1539 = vrot.slane %v1253, 7
    %v1540 = vsel %vm316, %v1537, %v1539
    %v1541 = vrot.slane %v1258, 7
    %v1542 = vsel %vm316, %v1539, %v1541
    %v1543 = vrot.slane %v1263, 7
    %v1544 = vsel %vm316, %v1541, %v1543
    %v1545 = vrot.slane %v1268, 7
    %v1546 = vsel %vm316, %v1543, %v1545
    %v1547 = vrot.slane %v1273, 7
    %v1548 = vsel %vm316, %v1545, %v1547
    %v1549 = vrot.slane %v1278, 7
    %v1550 = vsel %vm316, %v1547, %v1549
    %v1551 = vrot.slane %v1283, 7
    %v1552 = vsel %vm316, %v1549, %v1551
    %v1553 = vrot.slane %v1288, 7
    %v1554 = vsel %vm316, %v1551, %v1553
    %v1555 = vrot.slane %v1293, 7
    %v1556 = vsel %vm316, %v1553, %v1555
    %v1557 = vrot.slane %v1298, 7
    %v1558 = vsel %vm316, %v1555, %v1557
    %v1559 = vrot.slane %v1303, 7
    %v1560 = vsel %vm316, %v1557, %v1559
    %v1561 = vrot.slane %v1308, 7
    %v1562 = vsel %vm316, %v1559, %v1561
    %v1563 = vrot.slane %v1313, 7
    %v1564 = vsel %vm316, %v1561, %v1563
    %v1565 = vrot.slane %v1318, 7
    %v1566 = vsel %vm316, %v1563, %v1565
    %v1567 = vrot.slane %v1323, 7
    %v1568 = vsel %vm316, %v1565, %v1567
    %v1569 = vrot.slane %v1328, 7
    %v1570 = vsel %vm316, %v1567, %v1569
    %v1571 = vrot.slane %v1333, 7
    %v1572 = vsel %vm316, %v1569, %v1571
    %v1573 = vrot.slane %v1338, 7
    %v1574 = vsel %vm316, %v1571, %v1573
    %v1575 = vrot.slane %v1343, 7
    %v1576 = vsel %vm316, %v1573, %v1575
    %v1577 = vrot.slane %v1348, 7
    %v1578 = vsel %vm316, %v1575, %v1577
    %v1579 = vrot.slane %v1353, 7
    %v1580 = vsel %vm316, %v1577, %v1579
    %v1581 = vrot.slane %v1358, 7
    %v1582 = vsel %vm316, %v1579, %v1581
    %v1583 = vrot.slane %v1363, 7
    %v1584 = vsel %vm316, %v1581, %v1583
    %v1585 = vrot.slane %v1368, 7
    %v1586 = vsel %vm316, %v1583, %v1585
    %v1587 = vrot.slane %v1373, 7
    %v1588 = vsel %vm316, %v1585, %v1587
    %v1589 = vrot.slane %v1378, 7
    %v1590 = vsel %vm316, %v1587, %v1589
    %v1591 = vrot.slane %v1383, 7
    %v1592 = vsel %vm316, %v1589, %v1591
    %v1593 = vrot.slane %v1388, 7
    %v1594 = vsel %vm316, %v1591, %v1593
    %v1595 = vrot.slane %v1393, 7
    %v1596 = vsel %vm316, %v1593, %v1595
    %v1597 = vrot.slane %v1398, 7
    %v1598 = vsel %vm316, %v1595, %v1597
    %v1599 = vrot.slane %v1403, 7
    %v1600 = vsel %vm316, %v1597, %v1599
    %v1601 = vrot.slane %v1408, 7
    %v1602 = vsel %vm316, %v1599, %v1601
    %v1666 = vsel %vm316, 0.0, %v1478
    %1668 = vset.pattern.permute.xlu0 0
    %1669 = vperm.xlu0 %1668, %v769
    %v1670 = vpop.permute.xlu0 %1669
    %1673 = vset.pattern.permute.xlu0 0
    %1674 = vperm.xlu0 %1673, %v770
    %v1675 = vpop.permute.xlu0 %1674
    %1678 = vset.pattern.permute.xlu0 0
    %1679 = vperm.xlu0 %1678, %v771
    %v1680 = vpop.permute.xlu0 %1679
    %1683 = vset.pattern.permute.xlu0 0
    %1684 = vperm.xlu0 %1683, %v772
    %v1685 = vpop.permute.xlu0 %1684
    %1688 = vset.pattern.permute.xlu0 0
    %1689 = vperm.xlu0 %1688, %v773
    %v1690 = vpop.permute.xlu0 %1689
    %1693 = vset.pattern.permute.xlu0 0
    %1694 = vperm.xlu0 %1693, %v774
    %v1695 = vpop.permute.xlu0 %1694
    %1698 = vset.pattern.permute.xlu0 0
    %1699 = vperm.xlu0 %1698, %v775
    %v1700 = vpop.permute.xlu0 %1699
    %1703 = vset.pattern.permute.xlu0 0
    %1704 = vperm.xlu0 %1703, %v776
    %v1705 = vpop.permute.xlu0 %1704
    %1708 = vset.pattern.permute.xlu0 0
    %1709 = vperm.xlu0 %1708, %v777
    %v1710 = vpop.permute.xlu0 %1709
    %1713 = vset.pattern.permute.xlu0 0
    %1714 = vperm.xlu0 %1713, %v778
    %v1715 = vpop.permute.xlu0 %1714
    %1718 = vset.pattern.permute.xlu0 0
    %1719 = vperm.xlu0 %1718, %v779
    %v1720 = vpop.permute.xlu0 %1719
    %1723 = vset.pattern.permute.xlu0 0
    %1724 = vperm.xlu0 %1723, %v780
    %v1725 = vpop.permute.xlu0 %1724
    %1728 = vset.pattern.permute.xlu0 0
    %1729 = vperm.xlu0 %1728, %v781
    %v1730 = vpop.permute.xlu0 %1729
    %1733 = vset.pattern.permute.xlu0 0
    %1734 = vperm.xlu0 %1733, %v782
    %v1735 = vpop.permute.xlu0 %1734
    %1738 = vset.pattern.permute.xlu0 0
    %1739 = vperm.xlu0 %1738, %v783
    %v1740 = vpop.permute.xlu0 %1739
    %1743 = vset.pattern.permute.xlu0 0
    %1744 = vperm.xlu0 %1743, %v784
    %v1745 = vpop.permute.xlu0 %1744
    %1748 = vset.pattern.permute.xlu0 0
    %1749 = vperm.xlu0 %1748, %v785
    %v1750 = vpop.permute.xlu0 %1749
    %1753 = vset.pattern.permute.xlu0 0
    %1754 = vperm.xlu0 %1753, %v786
    %v1755 = vpop.permute.xlu0 %1754
    %1758 = vset.pattern.permute.xlu0 0
    %1759 = vperm.xlu0 %1758, %v787
    %v1760 = vpop.permute.xlu0 %1759
    %1763 = vset.pattern.permute.xlu0 0
    %1764 = vperm.xlu0 %1763, %v788
    %v1765 = vpop.permute.xlu0 %1764
    %1768 = vset.pattern.permute.xlu0 0
    %1769 = vperm.xlu0 %1768, %v789
    %v1770 = vpop.permute.xlu0 %1769
    %1773 = vset.pattern.permute.xlu0 0
    %1774 = vperm.xlu0 %1773, %v790
    %v1775 = vpop.permute.xlu0 %1774
    %1778 = vset.pattern.permute.xlu0 0
    %1779 = vperm.xlu0 %1778, %v791
    %v1780 = vpop.permute.xlu0 %1779
    %1783 = vset.pattern.permute.xlu0 0
    %1784 = vperm.xlu0 %1783, %v792
    %v1785 = vpop.permute.xlu0 %1784
    %1788 = vset.pattern.permute.xlu0 0
    %1789 = vperm.xlu0 %1788, %v793
    %v1790 = vpop.permute.xlu0 %1789
    %1793 = vset.pattern.permute.xlu0 0
    %1794 = vperm.xlu0 %1793, %v794
    %v1795 = vpop.permute.xlu0 %1794
    %1798 = vset.pattern.permute.xlu0 0
    %1799 = vperm.xlu0 %1798, %v795
    %v1800 = vpop.permute.xlu0 %1799
    %1803 = vset.pattern.permute.xlu0 0
    %1804 = vperm.xlu0 %1803, %v796
    %v1805 = vpop.permute.xlu0 %1804
    %1808 = vset.pattern.permute.xlu0 0
    %1809 = vperm.xlu0 %1808, %v797
    %v1810 = vpop.permute.xlu0 %1809
    %1813 = vset.pattern.permute.xlu0 0
    %1814 = vperm.xlu0 %1813, %v798
    %v1815 = vpop.permute.xlu0 %1814
    %1818 = vset.pattern.permute.xlu0 0
    %1819 = vperm.xlu0 %1818, %v799
    %v1820 = vpop.permute.xlu0 %1819
    %1823 = vset.pattern.permute.xlu0 0
    %1824 = vperm.xlu0 %1823, %v800
    %v1825 = vpop.permute.xlu0 %1824
    %1828 = vset.pattern.permute.xlu0 0
    %1829 = vperm.xlu0 %1828, %v801
    %v1830 = vpop.permute.xlu0 %1829
    %1833 = vset.pattern.permute.xlu0 0
    %1834 = vperm.xlu0 %1833, %v802
    %v1835 = vpop.permute.xlu0 %1834
    %1838 = vset.pattern.permute.xlu0 0
    %1839 = vperm.xlu0 %1838, %v803
    %v1840 = vpop.permute.xlu0 %1839
    %1843 = vset.pattern.permute.xlu0 0
    %1844 = vperm.xlu0 %1843, %v804
    %v1845 = vpop.permute.xlu0 %1844
    %1848 = vset.pattern.permute.xlu0 0
    %1849 = vperm.xlu0 %1848, %v805
    %v1850 = vpop.permute.xlu0 %1849
    %1853 = vset.pattern.permute.xlu0 0
    %1854 = vperm.xlu0 %1853, %v806
    %v1855 = vpop.permute.xlu0 %1854
    %1858 = vset.pattern.permute.xlu0 0
    %1859 = vperm.xlu0 %1858, %v807
    %v1860 = vpop.permute.xlu0 %1859
    %1863 = vset.pattern.permute.xlu0 0
    %1864 = vperm.xlu0 %1863, %v808
    %v1865 = vpop.permute.xlu0 %1864
    %1868 = vset.pattern.permute.xlu0 0
    %1869 = vperm.xlu0 %1868, %v809
    %v1870 = vpop.permute.xlu0 %1869
    %1873 = vset.pattern.permute.xlu0 0
    %1874 = vperm.xlu0 %1873, %v810
    %v1875 = vpop.permute.xlu0 %1874
    %1878 = vset.pattern.permute.xlu0 0
    %1879 = vperm.xlu0 %1878, %v811
    %v1880 = vpop.permute.xlu0 %1879
    %1883 = vset.pattern.permute.xlu0 0
    %1884 = vperm.xlu0 %1883, %v812
    %v1885 = vpop.permute.xlu0 %1884
    %1888 = vset.pattern.permute.xlu0 0
    %1889 = vperm.xlu0 %1888, %v813
    %v1890 = vpop.permute.xlu0 %1889
    %1893 = vset.pattern.permute.xlu0 0
    %1894 = vperm.xlu0 %1893, %v814
    %v1895 = vpop.permute.xlu0 %1894
    %1898 = vset.pattern.permute.xlu0 0
    %1899 = vperm.xlu0 %1898, %v815
    %v1900 = vpop.permute.xlu0 %1899
    %1903 = vset.pattern.permute.xlu0 0
    %1904 = vperm.xlu0 %1903, %v816
    %v1905 = vpop.permute.xlu0 %1904
    %1908 = vset.pattern.permute.xlu0 0
    %1909 = vperm.xlu0 %1908, %v817
    %v1910 = vpop.permute.xlu0 %1909
    %1913 = vset.pattern.permute.xlu0 0
    %1914 = vperm.xlu0 %1913, %v818
    %v1915 = vpop.permute.xlu0 %1914
    %1918 = vset.pattern.permute.xlu0 0
    %1919 = vperm.xlu0 %1918, %v819
    %v1920 = vpop.permute.xlu0 %1919
    %1923 = vset.pattern.permute.xlu0 0
    %1924 = vperm.xlu0 %1923, %v820
    %v1925 = vpop.permute.xlu0 %1924
    %1928 = vset.pattern.permute.xlu0 0
    %1929 = vperm.xlu0 %1928, %v821
    %v1930 = vpop.permute.xlu0 %1929
    %1933 = vset.pattern.permute.xlu0 0
    %1934 = vperm.xlu0 %1933, %v822
    %v1935 = vpop.permute.xlu0 %1934
    %1938 = vset.pattern.permute.xlu0 0
    %1939 = vperm.xlu0 %1938, %v823
    %v1940 = vpop.permute.xlu0 %1939
    %1943 = vset.pattern.permute.xlu0 0
    %1944 = vperm.xlu0 %1943, %v824
    %v1945 = vpop.permute.xlu0 %1944
    %1948 = vset.pattern.permute.xlu0 0
    %1949 = vperm.xlu0 %1948, %v825
    %v1950 = vpop.permute.xlu0 %1949
    %1953 = vset.pattern.permute.xlu0 0
    %1954 = vperm.xlu0 %1953, %v826
    %v1955 = vpop.permute.xlu0 %1954
    %1958 = vset.pattern.permute.xlu0 0
    %1959 = vperm.xlu0 %1958, %v827
    %v1960 = vpop.permute.xlu0 %1959
    %1963 = vset.pattern.permute.xlu0 0
    %1964 = vperm.xlu0 %1963, %v828
    %v1965 = vpop.permute.xlu0 %1964
    %1968 = vset.pattern.permute.xlu0 0
    %1969 = vperm.xlu0 %1968, %v829
    %v1970 = vpop.permute.xlu0 %1969
    %1973 = vset.pattern.permute.xlu0 0
    %1974 = vperm.xlu0 %1973, %v830
    %v1975 = vpop.permute.xlu0 %1974
    %1978 = vset.pattern.permute.xlu0 0
    %1979 = vperm.xlu0 %1978, %v831
    %v1980 = vpop.permute.xlu0 %1979
    %1983 = vset.pattern.permute.xlu0 0
    %1984 = vperm.xlu0 %1983, %v832
    %v1985 = vpop.permute.xlu0 %1984
    %v1987 = vmul.f32 %v1670, 0.0
    %v1988 = vmul.f32 %v1666, %v1675
    %v1989 = vmul.f32 %v1480, %v1680
    %v1990 = vmul.f32 %v1482, %v1685
    %v1991 = vmul.f32 %v1484, %v1690
    %v1992 = vmul.f32 %v1486, %v1695
    %v1993 = vmul.f32 %v1488, %v1700
    %v1994 = vmul.f32 %v1490, %v1705
    %v1995 = vmul.f32 %v1492, %v1710
    %v1996 = vmul.f32 %v1494, %v1715
    %v1997 = vmul.f32 %v1496, %v1720
    %v1998 = vmul.f32 %v1498, %v1725
    %v1999 = vmul.f32 %v1500, %v1730
    %v2000 = vmul.f32 %v1502, %v1735
    %v2001 = vmul.f32 %v1504, %v1740
    %v2002 = vmul.f32 %v1506, %v1745
    %v2003 = vmul.f32 %v1508, %v1750
    %v2004 = vmul.f32 %v1510, %v1755
    %v2005 = vmul.f32 %v1512, %v1760
    %v2006 = vmul.f32 %v1514, %v1765
    %v2007 = vmul.f32 %v1516, %v1770
    %v2008 = vmul.f32 %v1518, %v1775
    %v2009 = vmul.f32 %v1520, %v1780
    %v2010 = vmul.f32 %v1522, %v1785
    %v2011 = vmul.f32 %v1524, %v1790
    %v2012 = vmul.f32 %v1526, %v1795
    %v2013 = vmul.f32 %v1528, %v1800
    %v2014 = vmul.f32 %v1530, %v1805
    %v2015 = vmul.f32 %v1532, %v1810
    %v2016 = vmul.f32 %v1534, %v1815
    %v2017 = vmul.f32 %v1536, %v1820
    %v2018 = vmul.f32 %v1538, %v1825
    %v2019 = vmul.f32 %v1540, %v1830
    %v2020 = vmul.f32 %v1542, %v1835
    %v2021 = vmul.f32 %v1544, %v1840
    %v2022 = vmul.f32 %v1546, %v1845
    %v2023 = vmul.f32 %v1548, %v1850
    %v2024 = vmul.f32 %v1550, %v1855
    %v2025 = vmul.f32 %v1552, %v1860
    %v2026 = vmul.f32 %v1554, %v1865
    %v2027 = vmul.f32 %v1556, %v1870
    %v2028 = vmul.f32 %v1558, %v1875
    %v2029 = vmul.f32 %v1560, %v1880
    %v2030 = vmul.f32 %v1562, %v1885
    %v2031 = vmul.f32 %v1564, %v1890
    %v2032 = vmul.f32 %v1566, %v1895
    %v2033 = vmul.f32 %v1568, %v1900
    %v2034 = vmul.f32 %v1570, %v1905
    %v2035 = vmul.f32 %v1572, %v1910
    %v2036 = vmul.f32 %v1574, %v1915
    %v2037 = vmul.f32 %v1576, %v1920
    %v2038 = vmul.f32 %v1578, %v1925
    %v2039 = vmul.f32 %v1580, %v1930
    %v2040 = vmul.f32 %v1582, %v1935
    %v2041 = vmul.f32 %v1584, %v1940
    %v2042 = vmul.f32 %v1586, %v1945
    %v2043 = vmul.f32 %v1588, %v1950
    %v2044 = vmul.f32 %v1590, %v1955
    %v2045 = vmul.f32 %v1592, %v1960
    %v2046 = vmul.f32 %v1594, %v1965
    %v2047 = vmul.f32 %v1596, %v1970
    %v2048 = vmul.f32 %v1598, %v1975
    %v2049 = vmul.f32 %v1600, %v1980
    %v2050 = vmul.f32 %v1602, %v1985
    %s2051 = scalar_lea.vmem %s3, 4
    %v2052 = vld [vmem:[%s2051] sm:$0xf]
    %v2054 = vsel %vm1027, %v2052, 0
    %2056 = vmatprep.subr.mxu0 0.0
    %2057 = vmatpush1.msra.mxu0 %v2054
    %2058 = vmatprep.subr.mxu0 0.0
    %2059 = vmatpush1.msra.mxu0 0.0
    %2060 = vmatprep.subr.mxu0 0.0
    %2061 = vmatpush1.msra.mxu0 0.0
    %2062 = vmatprep.subr.mxu0 0.0
    %2063 = vmatpush1.msra.mxu0 0.0
    %2064 = vmatprep.subr.mxu0 0.0
    %2065 = vmatpush1.msra.mxu0 0.0
    %2066 = vmatprep.subr.mxu0 0.0
    %2067 = vmatpush1.msra.mxu0 0.0
    %2068 = vmatprep.subr.mxu0 0.0
    %2069 = vmatpush1.msra.mxu0 0.0
    %2070 = vmatprep.subr.mxu0 0.0
    %2071 = vmatpush1.msra.mxu0 0.0
    %2072 = vmatprep.subr.mxu0 0.0
    %2073 = vmatpush1.msra.mxu0 0.0
    %2074 = vmatprep.subr.mxu0 0.0
    %2075 = vmatpush1.msra.mxu0 0.0
    %2076 = vmatprep.subr.mxu0 0.0
    %2077 = vmatpush1.msra.mxu0 0.0
    %2078 = vmatprep.subr.mxu0 0.0
    %2079 = vmatpush1.msra.mxu0 0.0
    %2080 = vmatprep.subr.mxu0 0.0
    %2081 = vmatpush1.msra.mxu0 0.0
    %2082 = vmatprep.subr.mxu0 0.0
    %2083 = vmatpush1.msra.mxu0 0.0
    %2084 = vmatprep.subr.mxu0 0.0
    %2085 = vmatpush1.msra.mxu0 0.0
    %2086 = vmatprep.subr.mxu0 0.0
    %2087 = vmatpush1.msra.mxu0 0.0
    %2088 = vmatprep.subr.mxu0 0.0
    %2089 = vmatpush1.msra.mxu0 0.0
    %2090 = vmatprep.subr.mxu0 0.0
    %2091 = vmatpush1.msra.mxu0 0.0
    %2092 = vmatprep.subr.mxu0 0.0
    %2093 = vmatpush1.msra.mxu0 0.0
    %2094 = vmatprep.subr.mxu0 0.0
    %2095 = vmatpush1.msra.mxu0 0.0
    %2096 = vmatprep.subr.mxu0 0.0
    %2097 = vmatpush1.msra.mxu0 0.0
    %2098 = vmatprep.subr.mxu0 0.0
    %2099 = vmatpush1.msra.mxu0 0.0
    %2100 = vmatprep.subr.mxu0 0.0
    %2101 = vmatpush1.msra.mxu0 0.0
    %2102 = vmatprep.subr.mxu0 0.0
    %2103 = vmatpush1.msra.mxu0 0.0
    %2104 = vmatprep.subr.mxu0 0.0
    %2105 = vmatpush1.msra.mxu0 0.0
    %2106 = vmatprep.subr.mxu0 0.0
    %2107 = vmatpush1.msra.mxu0 0.0
    %2108 = vmatprep.subr.mxu0 0.0
    %2109 = vmatpush1.msra.mxu0 0.0
    %2110 = vmatprep.subr.mxu0 0.0
    %2111 = vmatpush1.msra.mxu0 0.0
    %2112 = vmatprep.subr.mxu0 0.0
    %2113 = vmatpush1.msra.mxu0 0.0
    %2114 = vmatprep.subr.mxu0 0.0
    %2115 = vmatpush1.msra.mxu0 0.0
    %2116 = vmatprep.subr.mxu0 0.0
    %2117 = vmatpush1.msra.mxu0 0.0
    %2118 = vmatprep.subr.mxu0 0.0
    %2119 = vmatpush1.msra.mxu0 0.0
    %2120 = vmatprep.mubr.f32.mxu0 0.0
    %2121 = vmatmul.mubr.f32.gmra.mrb[0].mxu0 %v836
    %v2122 = vpop.f32.mrb[0].mxu0
    %v2123 = vadd.f32 0.0, %v2122
    %v2124 = vpop.f32.mrb[0].mxu0
    %2125 = vmatprep.mubr.f32.mxu0 0.0
    %2126 = vmatmul.mubr.f32.gmra.mrb[0].mxu0 %v839
    %v2127 = vpop.f32.mrb[0].mxu0
    %v2128 = vadd.f32 0.0, %v2127
    %v2129 = vpop.f32.mrb[0].mxu0
    %2130 = vmatprep.mubr.f32.mxu0 0.0
    %2131 = vmatmul.mubr.f32.gmra.mrb[0].mxu0 %v842
    %v2132 = vpop.f32.mrb[0].mxu0
    %v2133 = vadd.f32 0.0, %v2132
    %v2134 = vpop.f32.mrb[0].mxu0
    %2135 = vmatprep.mubr.f32.mxu0 0.0
    %2136 = vmatmul.mubr.f32.gmra.mrb[0].mxu0 %v845
    %v2137 = vpop.f32.mrb[0].mxu0
    %v2138 = vadd.f32 0.0, %v2137
    %v2139 = vpop.f32.mrb[0].mxu0
    %2140 = vmatprep.mubr.f32.mxu0 0.0
    %2141 = vmatmul.mubr.f32.gmra.mrb[0].mxu0 %v848
    %v2142 = vpop.f32.mrb[0].mxu0
    %v2143 = vadd.f32 0.0, %v2142
    %v2144 = vpop.f32.mrb[0].mxu0
    %2145 = vmatprep.mubr.f32.mxu0 0.0
    %2146 = vmatmul.mubr.f32.gmra.mrb[0].mxu0 %v851
    %v2147 = vpop.f32.mrb[0].mxu0
    %v2148 = vadd.f32 0.0, %v2147
    %v2149 = vpop.f32.mrb[0].mxu0
    %2150 = vmatprep.mubr.f32.mxu0 0.0
    %2151 = vmatmul.mubr.f32.gmra.mrb[0].mxu0 %v854
    %v2152 = vpop.f32.mrb[0].mxu0
    %v2153 = vadd.f32 0.0, %v2152
    %v2154 = vpop.f32.mrb[0].mxu0
    %2155 = vmatprep.mubr.f32.mxu0 0.0
    %2156 = vmatmul.mubr.f32.gmra.mrb[0].mxu0 %v857
    %v2157 = vpop.f32.mrb[0].mxu0
    %v2158 = vadd.f32 0.0, %v2157
    %v2159 = vpop.f32.mrb[0].mxu0
    %2160 = vmatprep.mubr.f32.mxu0 0.0
    %2161 = vmatmul.mubr.f32.gmra.mrb[0].mxu0 %v860
    %v2162 = vpop.f32.mrb[0].mxu0
    %v2163 = vadd.f32 0.0, %v2162
    %v2164 = vpop.f32.mrb[0].mxu0
    %2165 = vmatprep.mubr.f32.mxu0 0.0
    %2166 = vmatmul.mubr.f32.gmra.mrb[0].mxu0 %v863
    %v2167 = vpop.f32.mrb[0].mxu0
    %v2168 = vadd.f32 0.0, %v2167
    %v2169 = vpop.f32.mrb[0].mxu0
    %2170 = vmatprep.mubr.f32.mxu0 0.0
    %2171 = vmatmul.mubr.f32.gmra.mrb[0].mxu0 %v866
    %v2172 = vpop.f32.mrb[0].mxu0
    %v2173 = vadd.f32 0.0, %v2172
    %v2174 = vpop.f32.mrb[0].mxu0
    %2175 = vmatprep.mubr.f32.mxu0 0.0
    %2176 = vmatmul.mubr.f32.gmra.mrb[0].mxu0 %v869
    %v2177 = vpop.f32.mrb[0].mxu0
    %v2178 = vadd.f32 0.0, %v2177
    %v2179 = vpop.f32.mrb[0].mxu0
    %2180 = vmatprep.mubr.f32.mxu0 0.0
    %2181 = vmatmul.mubr.f32.gmra.mrb[0].mxu0 %v872
    %v2182 = vpop.f32.mrb[0].mxu0
    %v2183 = vadd.f32 0.0, %v2182
    %v2184 = vpop.f32.mrb[0].mxu0
    %2185 = vmatprep.mubr.f32.mxu0 0.0
    %2186 = vmatmul.mubr.f32.gmra.mrb[0].mxu0 %v875
    %v2187 = vpop.f32.mrb[0].mxu0
    %v2188 = vadd.f32 0.0, %v2187
    %v2189 = vpop.f32.mrb[0].mxu0
    %2190 = vmatprep.mubr.f32.mxu0 0.0
    %2191 = vmatmul.mubr.f32.gmra.mrb[0].mxu0 %v878
    %v2192 = vpop.f32.mrb[0].mxu0
    %v2193 = vadd.f32 0.0, %v2192
    %v2194 = vpop.f32.mrb[0].mxu0
    %2195 = vmatprep.mubr.f32.mxu0 0.0
    %2196 = vmatmul.mubr.f32.gmra.mrb[0].mxu0 %v881
    %v2197 = vpop.f32.mrb[0].mxu0
    %v2198 = vadd.f32 0.0, %v2197
    %v2199 = vpop.f32.mrb[0].mxu0
    %2200 = vmatprep.mubr.f32.mxu0 0.0
    %2201 = vmatmul.mubr.f32.gmra.mrb[0].mxu0 %v884
    %v2202 = vpop.f32.mrb[0].mxu0
    %v2203 = vadd.f32 0.0, %v2202
    %v2204 = vpop.f32.mrb[0].mxu0
    %2205 = vmatprep.mubr.f32.mxu0 0.0
    %2206 = vmatmul.mubr.f32.gmra.mrb[0].mxu0 %v887
    %v2207 = vpop.f32.mrb[0].mxu0
    %v2208 = vadd.f32 0.0, %v2207
    %v2209 = vpop.f32.mrb[0].mxu0
    %2210 = vmatprep.mubr.f32.mxu0 0.0
    %2211 = vmatmul.mubr.f32.gmra.mrb[0].mxu0 %v890
    %v2212 = vpop.f32.mrb[0].mxu0
    %v2213 = vadd.f32 0.0, %v2212
    %v2214 = vpop.f32.mrb[0].mxu0
    %2215 = vmatprep.mubr.f32.mxu0 0.0
    %2216 = vmatmul.mubr.f32.gmra.mrb[0].mxu0 %v893
    %v2217 = vpop.f32.mrb[0].mxu0
    %v2218 = vadd.f32 0.0, %v2217
    %v2219 = vpop.f32.mrb[0].mxu0
    %2220 = vmatprep.mubr.f32.mxu0 0.0
    %2221 = vmatmul.mubr.f32.gmra.mrb[0].mxu0 %v896
    %v2222 = vpop.f32.mrb[0].mxu0
    %v2223 = vadd.f32 0.0, %v2222
    %v2224 = vpop.f32.mrb[0].mxu0
    %2225 = vmatprep.mubr.f32.mxu0 0.0
    %2226 = vmatmul.mubr.f32.gmra.mrb[0].mxu0 %v899
    %v2227 = vpop.f32.mrb[0].mxu0
    %v2228 = vadd.f32 0.0, %v2227
    %v2229 = vpop.f32.mrb[0].mxu0
    %2230 = vmatprep.mubr.f32.mxu0 0.0
    %2231 = vmatmul.mubr.f32.gmra.mrb[0].mxu0 %v902
    %v2232 = vpop.f32.mrb[0].mxu0
    %v2233 = vadd.f32 0.0, %v2232
    %v2234 = vpop.f32.mrb[0].mxu0
    %2235 = vmatprep.mubr.f32.mxu0 0.0
    %2236 = vmatmul.mubr.f32.gmra.mrb[0].mxu0 %v905
    %v2237 = vpop.f32.mrb[0].mxu0
    %v2238 = vadd.f32 0.0, %v2237
    %v2239 = vpop.f32.mrb[0].mxu0
    %2240 = vmatprep.mubr.f32.mxu0 0.0
    %2241 = vmatmul.mubr.f32.gmra.mrb[0].mxu0 %v908
    %v2242 = vpop.f32.mrb[0].mxu0
    %v2243 = vadd.f32 0.0, %v2242
    %v2244 = vpop.f32.mrb[0].mxu0
    %2245 = vmatprep.mubr.f32.mxu0 0.0
    %2246 = vmatmul.mubr.f32.gmra.mrb[0].mxu0 %v911
    %v2247 = vpop.f32.mrb[0].mxu0
    %v2248 = vadd.f32 0.0, %v2247
    %v2249 = vpop.f32.mrb[0].mxu0
    %2250 = vmatprep.mubr.f32.mxu0 0.0
    %2251 = vmatmul.mubr.f32.gmra.mrb[0].mxu0 %v914
    %v2252 = vpop.f32.mrb[0].mxu0
    %v2253 = vadd.f32 0.0, %v2252
    %v2254 = vpop.f32.mrb[0].mxu0
    %2255 = vmatprep.mubr.f32.mxu0 0.0
    %2256 = vmatmul.mubr.f32.gmra.mrb[0].mxu0 %v917
    %v2257 = vpop.f32.mrb[0].mxu0
    %v2258 = vadd.f32 0.0, %v2257
    %v2259 = vpop.f32.mrb[0].mxu0
    %2260 = vmatprep.mubr.f32.mxu0 0.0
    %2261 = vmatmul.mubr.f32.gmra.mrb[0].mxu0 %v920
    %v2262 = vpop.f32.mrb[0].mxu0
    %v2263 = vadd.f32 0.0, %v2262
    %v2264 = vpop.f32.mrb[0].mxu0
    %2265 = vmatprep.mubr.f32.mxu0 0.0
    %2266 = vmatmul.mubr.f32.gmra.mrb[0].mxu0 %v923
    %v2267 = vpop.f32.mrb[0].mxu0
    %v2268 = vadd.f32 0.0, %v2267
    %v2269 = vpop.f32.mrb[0].mxu0
    %2270 = vmatprep.mubr.f32.mxu0 0.0
    %2271 = vmatmul.mubr.f32.gmra.mrb[0].mxu0 %v926
    %v2272 = vpop.f32.mrb[0].mxu0
    %v2273 = vadd.f32 0.0, %v2272
    %v2274 = vpop.f32.mrb[0].mxu0
    %2275 = vmatprep.mubr.f32.mxu0 0.0
    %2276 = vmatmul.mubr.f32.gmra.mrb[0].mxu0 %v929
    %v2277 = vpop.f32.mrb[0].mxu0
    %v2278 = vadd.f32 0.0, %v2277
    %v2279 = vpop.f32.mrb[0].mxu0
    %2280 = vmatprep.mubr.f32.mxu0 0.0
    %2281 = vmatmul.mubr.f32.gmra.mrb[0].mxu0 %v932
    %v2282 = vpop.f32.mrb[0].mxu0
    %v2283 = vadd.f32 0.0, %v2282
    %v2284 = vpop.f32.mrb[0].mxu0
    %2285 = vmatprep.mubr.f32.mxu0 0.0
    %2286 = vmatmul.mubr.f32.gmra.mrb[0].mxu0 %v935
    %v2287 = vpop.f32.mrb[0].mxu0
    %v2288 = vadd.f32 0.0, %v2287
    %v2289 = vpop.f32.mrb[0].mxu0
    %2290 = vmatprep.mubr.f32.mxu0 0.0
    %2291 = vmatmul.mubr.f32.gmra.mrb[0].mxu0 %v938
    %v2292 = vpop.f32.mrb[0].mxu0
    %v2293 = vadd.f32 0.0, %v2292
    %v2294 = vpop.f32.mrb[0].mxu0
    %2295 = vmatprep.mubr.f32.mxu0 0.0
    %2296 = vmatmul.mubr.f32.gmra.mrb[0].mxu0 %v941
    %v2297 = vpop.f32.mrb[0].mxu0
    %v2298 = vadd.f32 0.0, %v2297
    %v2299 = vpop.f32.mrb[0].mxu0
    %2300 = vmatprep.mubr.f32.mxu0 0.0
    %2301 = vmatmul.mubr.f32.gmra.mrb[0].mxu0 %v944
    %v2302 = vpop.f32.mrb[0].mxu0
    %v2303 = vadd.f32 0.0, %v2302
    %v2304 = vpop.f32.mrb[0].mxu0
    %2305 = vmatprep.mubr.f32.mxu0 0.0
    %2306 = vmatmul.mubr.f32.gmra.mrb[0].mxu0 %v947
    %v2307 = vpop.f32.mrb[0].mxu0
    %v2308 = vadd.f32 0.0, %v2307
    %v2309 = vpop.f32.mrb[0].mxu0
    %2310 = vmatprep.mubr.f32.mxu0 0.0
    %2311 = vmatmul.mubr.f32.gmra.mrb[0].mxu0 %v950
    %v2312 = vpop.f32.mrb[0].mxu0
    %v2313 = vadd.f32 0.0, %v2312
    %v2314 = vpop.f32.mrb[0].mxu0
    %2315 = vmatprep.mubr.f32.mxu0 0.0
    %2316 = vmatmul.mubr.f32.gmra.mrb[0].mxu0 %v953
    %v2317 = vpop.f32.mrb[0].mxu0
    %v2318 = vadd.f32 0.0, %v2317
    %v2319 = vpop.f32.mrb[0].mxu0
    %2320 = vmatprep.mubr.f32.mxu0 0.0
    %2321 = vmatmul.mubr.f32.gmra.mrb[0].mxu0 %v956
    %v2322 = vpop.f32.mrb[0].mxu0
    %v2323 = vadd.f32 0.0, %v2322
    %v2324 = vpop.f32.mrb[0].mxu0
    %2325 = vmatprep.mubr.f32.mxu0 0.0
    %2326 = vmatmul.mubr.f32.gmra.mrb[0].mxu0 %v959
    %v2327 = vpop.f32.mrb[0].mxu0
    %v2328 = vadd.f32 0.0, %v2327
    %v2329 = vpop.f32.mrb[0].mxu0
    %2330 = vmatprep.mubr.f32.mxu0 0.0
    %2331 = vmatmul.mubr.f32.gmra.mrb[0].mxu0 %v962
    %v2332 = vpop.f32.mrb[0].mxu0
    %v2333 = vadd.f32 0.0, %v2332
    %v2334 = vpop.f32.mrb[0].mxu0
    %2335 = vmatprep.mubr.f32.mxu0 0.0
    %2336 = vmatmul.mubr.f32.gmra.mrb[0].mxu0 %v965
    %v2337 = vpop.f32.mrb[0].mxu0
    %v2338 = vadd.f32 0.0, %v2337
    %v2339 = vpop.f32.mrb[0].mxu0
    %2340 = vmatprep.mubr.f32.mxu0 0.0
    %2341 = vmatmul.mubr.f32.gmra.mrb[0].mxu0 %v968
    %v2342 = vpop.f32.mrb[0].mxu0
    %v2343 = vadd.f32 0.0, %v2342
    %v2344 = vpop.f32.mrb[0].mxu0
    %2345 = vmatprep.mubr.f32.mxu0 0.0
    %2346 = vmatmul.mubr.f32.gmra.mrb[0].mxu0 %v971
    %v2347 = vpop.f32.mrb[0].mxu0
    %v2348 = vadd.f32 0.0, %v2347
    %v2349 = vpop.f32.mrb[0].mxu0
    %2350 = vmatprep.mubr.f32.mxu0 0.0
    %2351 = vmatmul.mubr.f32.gmra.mrb[0].mxu0 %v974
    %v2352 = vpop.f32.mrb[0].mxu0
    %v2353 = vadd.f32 0.0, %v2352
    %v2354 = vpop.f32.mrb[0].mxu0
    %2355 = vmatprep.mubr.f32.mxu0 0.0
    %2356 = vmatmul.mubr.f32.gmra.mrb[0].mxu0 %v977
    %v2357 = vpop.f32.mrb[0].mxu0
    %v2358 = vadd.f32 0.0, %v2357
    %v2359 = vpop.f32.mrb[0].mxu0
    %2360 = vmatprep.mubr.f32.mxu0 0.0
    %2361 = vmatmul.mubr.f32.gmra.mrb[0].mxu0 %v980
    %v2362 = vpop.f32.mrb[0].mxu0
    %v2363 = vadd.f32 0.0, %v2362
    %v2364 = vpop.f32.mrb[0].mxu0
    %2365 = vmatprep.mubr.f32.mxu0 0.0
    %2366 = vmatmul.mubr.f32.gmra.mrb[0].mxu0 %v983
    %v2367 = vpop.f32.mrb[0].mxu0
    %v2368 = vadd.f32 0.0, %v2367
    %v2369 = vpop.f32.mrb[0].mxu0
    %2370 = vmatprep.mubr.f32.mxu0 0.0
    %2371 = vmatmul.mubr.f32.gmra.mrb[0].mxu0 %v986
    %v2372 = vpop.f32.mrb[0].mxu0
    %v2373 = vadd.f32 0.0, %v2372
    %v2374 = vpop.f32.mrb[0].mxu0
    %2375 = vmatprep.mubr.f32.mxu0 0.0
    %2376 = vmatmul.mubr.f32.gmra.mrb[0].mxu0 %v989
    %v2377 = vpop.f32.mrb[0].mxu0
    %v2378 = vadd.f32 0.0, %v2377
    %v2379 = vpop.f32.mrb[0].mxu0
    %2380 = vmatprep.mubr.f32.mxu0 0.0
    %2381 = vmatmul.mubr.f32.gmra.mrb[0].mxu0 %v992
    %v2382 = vpop.f32.mrb[0].mxu0
    %v2383 = vadd.f32 0.0, %v2382
    %v2384 = vpop.f32.mrb[0].mxu0
    %2385 = vmatprep.mubr.f32.mxu0 0.0
    %2386 = vmatmul.mubr.f32.gmra.mrb[0].mxu0 %v995
    %v2387 = vpop.f32.mrb[0].mxu0
    %v2388 = vadd.f32 0.0, %v2387
    %v2389 = vpop.f32.mrb[0].mxu0
    %2390 = vmatprep.mubr.f32.mxu0 0.0
    %2391 = vmatmul.mubr.f32.gmra.mrb[0].mxu0 %v998
    %v2392 = vpop.f32.mrb[0].mxu0
    %v2393 = vadd.f32 0.0, %v2392
    %v2394 = vpop.f32.mrb[0].mxu0
    %2395 = vmatprep.mubr.f32.mxu0 0.0
    %2396 = vmatmul.mubr.f32.gmra.mrb[0].mxu0 %v1001
    %v2397 = vpop.f32.mrb[0].mxu0
    %v2398 = vadd.f32 0.0, %v2397
    %v2399 = vpop.f32.mrb[0].mxu0
    %2400 = vmatprep.mubr.f32.mxu0 0.0
    %2401 = vmatmul.mubr.f32.gmra.mrb[0].mxu0 %v1004
    %v2402 = vpop.f32.mrb[0].mxu0
    %v2403 = vadd.f32 0.0, %v2402
    %v2404 = vpop.f32.mrb[0].mxu0
    %2405 = vmatprep.mubr.f32.mxu0 0.0
    %2406 = vmatmul.mubr.f32.gmra.mrb[0].mxu0 %v1007
    %v2407 = vpop.f32.mrb[0].mxu0
    %v2408 = vadd.f32 0.0, %v2407
    %v2409 = vpop.f32.mrb[0].mxu0
    %2410 = vmatprep.mubr.f32.mxu0 0.0
    %2411 = vmatmul.mubr.f32.gmra.mrb[0].mxu0 %v1010
    %v2412 = vpop.f32.mrb[0].mxu0
    %v2413 = vadd.f32 0.0, %v2412
    %v2414 = vpop.f32.mrb[0].mxu0
    %2415 = vmatprep.mubr.f32.mxu0 0.0
    %2416 = vmatmul.mubr.f32.gmra.mrb[0].mxu0 %v1013
    %v2417 = vpop.f32.mrb[0].mxu0
    %v2418 = vadd.f32 0.0, %v2417
    %v2419 = vpop.f32.mrb[0].mxu0
    %2420 = vmatprep.mubr.f32.mxu0 0.0
    %2421 = vmatmul.mubr.f32.gmra.mrb[0].mxu0 %v1016
    %v2422 = vpop.f32.mrb[0].mxu0
    %v2423 = vadd.f32 0.0, %v2422
    %v2424 = vpop.f32.mrb[0].mxu0
    %2425 = vmatprep.mubr.f32.mxu0 0.0
    %2426 = vmatmul.mubr.f32.gmra.mrb[0].mxu0 %v1019
    %v2427 = vpop.f32.mrb[0].mxu0
    %v2428 = vadd.f32 0.0, %v2427
    %v2429 = vpop.f32.mrb[0].mxu0
    %2430 = vmatprep.mubr.f32.mxu0 0.0
    %2431 = vmatmul.mubr.f32.gmra.mrb[0].mxu0 %v1022
    %v2432 = vpop.f32.mrb[0].mxu0
    %v2433 = vadd.f32 0.0, %v2432
    %v2434 = vpop.f32.mrb[0].mxu0
    %2435 = vmatprep.mubr.f32.mxu0 0.0
    %2436 = vmatmul.mubr.f32.gmra.mrb[0].mxu0 %v1025
    %v2437 = vpop.f32.mrb[0].mxu0
    %v2438 = vpop.f32.mrb[0].mxu0
    %2439 = vdwg.mxu0
    %2440 = vset.pattern.permute.xlu0 1
    %2441 = vperm.xlu0 %2440, %v769
    %v2442 = vpop.permute.xlu0 %2441
    %2444 = vset.pattern.permute.xlu0 1
    %2445 = vperm.xlu0 %2444, %v770
    %v2446 = vpop.permute.xlu0 %2445
    %2448 = vset.pattern.permute.xlu0 1
    %2449 = vperm.xlu0 %2448, %v771
    %v2450 = vpop.permute.xlu0 %2449
    %2452 = vset.pattern.permute.xlu0 1
    %2453 = vperm.xlu0 %2452, %v772
    %v2454 = vpop.permute.xlu0 %2453
    %2456 = vset.pattern.permute.xlu0 1
    %2457 = vperm.xlu0 %2456, %v773
    %v2458 = vpop.permute.xlu0 %2457
    %2460 = vset.pattern.permute.xlu0 1
    %2461 = vperm.xlu0 %2460, %v774
    %v2462 = vpop.permute.xlu0 %2461
    %2464 = vset.pattern.permute.xlu0 1
    %2465 = vperm.xlu0 %2464, %v775
    %v2466 = vpop.permute.xlu0 %2465
    %2468 = vset.pattern.permute.xlu0 1
    %2469 = vperm.xlu0 %2468, %v776
    %v2470 = vpop.permute.xlu0 %2469
    %2472 = vset.pattern.permute.xlu0 1
    %2473 = vperm.xlu0 %2472, %v777
    %v2474 = vpop.permute.xlu0 %2473
    %2476 = vset.pattern.permute.xlu0 1
    %2477 = vperm.xlu0 %2476, %v778
    %v2478 = vpop.permute.xlu0 %2477
    %2480 = vset.pattern.permute.xlu0 1
    %2481 = vperm.xlu0 %2480, %v779
    %v2482 = vpop.permute.xlu0 %2481
    %2484 = vset.pattern.permute.xlu0 1
    %2485 = vperm.xlu0 %2484, %v780
    %v2486 = vpop.permute.xlu0 %2485
    %2488 = vset.pattern.permute.xlu0 1
    %2489 = vperm.xlu0 %2488, %v781
    %v2490 = vpop.permute.xlu0 %2489
    %2492 = vset.pattern.permute.xlu0 1
    %2493 = vperm.xlu0 %2492, %v782
    %v2494 = vpop.permute.xlu0 %2493
    %2496 = vset.pattern.permute.xlu0 1
    %2497 = vperm.xlu0 %2496, %v783
    %v2498 = vpop.permute.xlu0 %2497
    %2500 = vset.pattern.permute.xlu0 1
    %2501 = vperm.xlu0 %2500, %v784
    %v2502 = vpop.permute.xlu0 %2501
    %2504 = vset.pattern.permute.xlu0 1
    %2505 = vperm.xlu0 %2504, %v785
    %v2506 = vpop.permute.xlu0 %2505
    %2508 = vset.pattern.permute.xlu0 1
    %2509 = vperm.xlu0 %2508, %v786
    %v2510 = vpop.permute.xlu0 %2509
    %2512 = vset.pattern.permute.xlu0 1
    %2513 = vperm.xlu0 %2512, %v787
    %v2514 = vpop.permute.xlu0 %2513
    %2516 = vset.pattern.permute.xlu0 1
    %2517 = vperm.xlu0 %2516, %v788
    %v2518 = vpop.permute.xlu0 %2517
    %2520 = vset.pattern.permute.xlu0 1
    %2521 = vperm.xlu0 %2520, %v789
    %v2522 = vpop.permute.xlu0 %2521
    %2524 = vset.pattern.permute.xlu0 1
    %2525 = vperm.xlu0 %2524, %v790
    %v2526 = vpop.permute.xlu0 %2525
    %2528 = vset.pattern.permute.xlu0 1
    %2529 = vperm.xlu0 %2528, %v791
    %v2530 = vpop.permute.xlu0 %2529
    %2532 = vset.pattern.permute.xlu0 1
    %2533 = vperm.xlu0 %2532, %v792
    %v2534 = vpop.permute.xlu0 %2533
    %2536 = vset.pattern.permute.xlu0 1
    %2537 = vperm.xlu0 %2536, %v793
    %v2538 = vpop.permute.xlu0 %2537
    %2540 = vset.pattern.permute.xlu0 1
    %2541 = vperm.xlu0 %2540, %v794
    %v2542 = vpop.permute.xlu0 %2541
    %2544 = vset.pattern.permute.xlu0 1
    %2545 = vperm.xlu0 %2544, %v795
    %v2546 = vpop.permute.xlu0 %2545
    %2548 = vset.pattern.permute.xlu0 1
    %2549 = vperm.xlu0 %2548, %v796
    %v2550 = vpop.permute.xlu0 %2549
    %2552 = vset.pattern.permute.xlu0 1
    %2553 = vperm.xlu0 %2552, %v797
    %v2554 = vpop.permute.xlu0 %2553
    %2556 = vset.pattern.permute.xlu0 1
    %2557 = vperm.xlu0 %2556, %v798
    %v2558 = vpop.permute.xlu0 %2557
    %2560 = vset.pattern.permute.xlu0 1
    %2561 = vperm.xlu0 %2560, %v799
    %v2562 = vpop.permute.xlu0 %2561
    %2564 = vset.pattern.permute.xlu0 1
    %2565 = vperm.xlu0 %2564, %v800
    %v2566 = vpop.permute.xlu0 %2565
    %2568 = vset.pattern.permute.xlu0 1
    %2569 = vperm.xlu0 %2568, %v801
    %v2570 = vpop.permute.xlu0 %2569
    %2572 = vset.pattern.permute.xlu0 1
    %2573 = vperm.xlu0 %2572, %v802
    %v2574 = vpop.permute.xlu0 %2573
    %2576 = vset.pattern.permute.xlu0 1
    %2577 = vperm.xlu0 %2576, %v803
    %v2578 = vpop.permute.xlu0 %2577
    %2580 = vset.pattern.permute.xlu0 1
    %2581 = vperm.xlu0 %2580, %v804
    %v2582 = vpop.permute.xlu0 %2581
    %2584 = vset.pattern.permute.xlu0 1
    %2585 = vperm.xlu0 %2584, %v805
    %v2586 = vpop.permute.xlu0 %2585
    %2588 = vset.pattern.permute.xlu0 1
    %2589 = vperm.xlu0 %2588, %v806
    %v2590 = vpop.permute.xlu0 %2589
    %2592 = vset.pattern.permute.xlu0 1
    %2593 = vperm.xlu0 %2592, %v807
    %v2594 = vpop.permute.xlu0 %2593
    %2596 = vset.pattern.permute.xlu0 1
    %2597 = vperm.xlu0 %2596, %v808
    %v2598 = vpop.permute.xlu0 %2597
    %2600 = vset.pattern.permute.xlu0 1
    %2601 = vperm.xlu0 %2600, %v809
    %v2602 = vpop.permute.xlu0 %2601
    %2604 = vset.pattern.permute.xlu0 1
    %2605 = vperm.xlu0 %2604, %v810
    %v2606 = vpop.permute.xlu0 %2605
    %2608 = vset.pattern.permute.xlu0 1
    %2609 = vperm.xlu0 %2608, %v811
    %v2610 = vpop.permute.xlu0 %2609
    %2612 = vset.pattern.permute.xlu0 1
    %2613 = vperm.xlu0 %2612, %v812
    %v2614 = vpop.permute.xlu0 %2613
    %2616 = vset.pattern.permute.xlu0 1
    %2617 = vperm.xlu0 %2616, %v813
    %v2618 = vpop.permute.xlu0 %2617
    %2620 = vset.pattern.permute.xlu0 1
    %2621 = vperm.xlu0 %2620, %v814
    %v2622 = vpop.permute.xlu0 %2621
    %2624 = vset.pattern.permute.xlu0 1
    %2625 = vperm.xlu0 %2624, %v815
    %v2626 = vpop.permute.xlu0 %2625
    %2628 = vset.pattern.permute.xlu0 1
    %2629 = vperm.xlu0 %2628, %v816
    %v2630 = vpop.permute.xlu0 %2629
    %2632 = vset.pattern.permute.xlu0 1
    %2633 = vperm.xlu0 %2632, %v817
    %v2634 = vpop.permute.xlu0 %2633
    %2636 = vset.pattern.permute.xlu0 1
    %2637 = vperm.xlu0 %2636, %v818
    %v2638 = vpop.permute.xlu0 %2637
    %2640 = vset.pattern.permute.xlu0 1
    %2641 = vperm.xlu0 %2640, %v819
    %v2642 = vpop.permute.xlu0 %2641
    %2644 = vset.pattern.permute.xlu0 1
    %2645 = vperm.xlu0 %2644, %v820
    %v2646 = vpop.permute.xlu0 %2645
    %2648 = vset.pattern.permute.xlu0 1
    %2649 = vperm.xlu0 %2648, %v821
    %v2650 = vpop.permute.xlu0 %2649
    %2652 = vset.pattern.permute.xlu0 1
    %2653 = vperm.xlu0 %2652, %v822
    %v2654 = vpop.permute.xlu0 %2653
    %2656 = vset.pattern.permute.xlu0 1
    %2657 = vperm.xlu0 %2656, %v823
    %v2658 = vpop.permute.xlu0 %2657
    %2660 = vset.pattern.permute.xlu0 1
    %2661 = vperm.xlu0 %2660, %v824
    %v2662 = vpop.permute.xlu0 %2661
    %2664 = vset.pattern.permute.xlu0 1
    %2665 = vperm.xlu0 %2664, %v825
    %v2666 = vpop.permute.xlu0 %2665
    %2668 = vset.pattern.permute.xlu0 1
    %2669 = vperm.xlu0 %2668, %v826
    %v2670 = vpop.permute.xlu0 %2669
    %2672 = vset.pattern.permute.xlu0 1
    %2673 = vperm.xlu0 %2672, %v827
    %v2674 = vpop.permute.xlu0 %2673
    %2676 = vset.pattern.permute.xlu0 1
    %2677 = vperm.xlu0 %2676, %v828
    %v2678 = vpop.permute.xlu0 %2677
    %2680 = vset.pattern.permute.xlu0 1
    %2681 = vperm.xlu0 %2680, %v829
    %v2682 = vpop.permute.xlu0 %2681
    %2684 = vset.pattern.permute.xlu0 1
    %2685 = vperm.xlu0 %2684, %v830
    %v2686 = vpop.permute.xlu0 %2685
    %2688 = vset.pattern.permute.xlu0 1
    %2689 = vperm.xlu0 %2688, %v831
    %v2690 = vpop.permute.xlu0 %2689
    %2692 = vset.pattern.permute.xlu0 1
    %2693 = vperm.xlu0 %2692, %v832
    %v2694 = vpop.permute.xlu0 %2693
    %v2696 = vmul.f32 %v2442, 0.0
    %v2697 = vmul.f32 %v2123, %v2446
    %v2698 = vmul.f32 %v2128, %v2450
    %v2699 = vmul.f32 %v2133, %v2454
    %v2700 = vmul.f32 %v2138, %v2458
    %v2701 = vmul.f32 %v2143, %v2462
    %v2702 = vmul.f32 %v2148, %v2466
    %v2703 = vmul.f32 %v2153, %v2470
    %v2704 = vmul.f32 %v2158, %v2474
    %v2705 = vmul.f32 %v2163, %v2478
    %v2706 = vmul.f32 %v2168, %v2482
    %v2707 = vmul.f32 %v2173, %v2486
    %v2708 = vmul.f32 %v2178, %v2490
    %v2709 = vmul.f32 %v2183, %v2494
    %v2710 = vmul.f32 %v2188, %v2498
    %v2711 = vmul.f32 %v2193, %v2502
    %v2712 = vmul.f32 %v2198, %v2506
    %v2713 = vmul.f32 %v2203, %v2510
    %v2714 = vmul.f32 %v2208, %v2514
    %v2715 = vmul.f32 %v2213, %v2518
    %v2716 = vmul.f32 %v2218, %v2522
    %v2717 = vmul.f32 %v2223, %v2526
    %v2718 = vmul.f32 %v2228, %v2530
    %v2719 = vmul.f32 %v2233, %v2534
    %v2720 = vmul.f32 %v2238, %v2538
    %v2721 = vmul.f32 %v2243, %v2542
    %v2722 = vmul.f32 %v2248, %v2546
    %v2723 = vmul.f32 %v2253, %v2550
    %v2724 = vmul.f32 %v2258, %v2554
    %v2725 = vmul.f32 %v2263, %v2558
    %v2726 = vmul.f32 %v2268, %v2562
    %v2727 = vmul.f32 %v2273, %v2566
    %v2728 = vmul.f32 %v2278, %v2570
    %v2729 = vmul.f32 %v2283, %v2574
    %v2730 = vmul.f32 %v2288, %v2578
    %v2731 = vmul.f32 %v2293, %v2582
    %v2732 = vmul.f32 %v2298, %v2586
    %v2733 = vmul.f32 %v2303, %v2590
    %v2734 = vmul.f32 %v2308, %v2594
    %v2735 = vmul.f32 %v2313, %v2598
    %v2736 = vmul.f32 %v2318, %v2602
    %v2737 = vmul.f32 %v2323, %v2606
    %v2738 = vmul.f32 %v2328, %v2610
    %v2739 = vmul.f32 %v2333, %v2614
    %v2740 = vmul.f32 %v2338, %v2618
    %v2741 = vmul.f32 %v2343, %v2622
    %v2742 = vmul.f32 %v2348, %v2626
    %v2743 = vmul.f32 %v2353, %v2630
    %v2744 = vmul.f32 %v2358, %v2634
    %v2745 = vmul.f32 %v2363, %v2638
    %v2746 = vmul.f32 %v2368, %v2642
    %v2747 = vmul.f32 %v2373, %v2646
    %v2748 = vmul.f32 %v2378, %v2650
    %v2749 = vmul.f32 %v2383, %v2654
    %v2750 = vmul.f32 %v2388, %v2658
    %v2751 = vmul.f32 %v2393, %v2662
    %v2752 = vmul.f32 %v2398, %v2666
    %v2753 = vmul.f32 %v2403, %v2670
    %v2754 = vmul.f32 %v2408, %v2674
    %v2755 = vmul.f32 %v2413, %v2678
    %v2756 = vmul.f32 %v2418, %v2682
    %v2757 = vmul.f32 %v2423, %v2686
    %v2758 = vmul.f32 %v2428, %v2690
    %v2759 = vmul.f32 %v2433, %v2694
    %v2760 = vadd.f32 %v1987, %v2696
    %v2761 = vadd.f32 %v1988, %v2697
    %v2762 = vadd.f32 %v1989, %v2698
    %v2763 = vadd.f32 %v1990, %v2699
    %v2764 = vadd.f32 %v1991, %v2700
    %v2765 = vadd.f32 %v1992, %v2701
    %v2766 = vadd.f32 %v1993, %v2702
    %v2767 = vadd.f32 %v1994, %v2703
    %v2768 = vadd.f32 %v1995, %v2704
    %v2769 = vadd.f32 %v1996, %v2705
    %v2770 = vadd.f32 %v1997, %v2706
    %v2771 = vadd.f32 %v1998, %v2707
    %v2772 = vadd.f32 %v1999, %v2708
    %v2773 = vadd.f32 %v2000, %v2709
    %v2774 = vadd.f32 %v2001, %v2710
    %v2775 = vadd.f32 %v2002, %v2711
    %v2776 = vadd.f32 %v2003, %v2712
    %v2777 = vadd.f32 %v2004, %v2713
    %v2778 = vadd.f32 %v2005, %v2714
    %v2779 = vadd.f32 %v2006, %v2715
    %v2780 = vadd.f32 %v2007, %v2716
    %v2781 = vadd.f32 %v2008, %v2717
    %v2782 = vadd.f32 %v2009, %v2718
    %v2783 = vadd.f32 %v2010, %v2719
    %v2784 = vadd.f32 %v2011, %v2720
    %v2785 = vadd.f32 %v2012, %v2721
    %v2786 = vadd.f32 %v2013, %v2722
    %v2787 = vadd.f32 %v2014, %v2723
    %v2788 = vadd.f32 %v2015, %v2724
    %v2789 = vadd.f32 %v2016, %v2725
    %v2790 = vadd.f32 %v2017, %v2726
    %v2791 = vadd.f32 %v2018, %v2727
    %v2792 = vadd.f32 %v2019, %v2728
    %v2793 = vadd.f32 %v2020, %v2729
    %v2794 = vadd.f32 %v2021, %v2730
    %v2795 = vadd.f32 %v2022, %v2731
    %v2796 = vadd.f32 %v2023, %v2732
    %v2797 = vadd.f32 %v2024, %v2733
    %v2798 = vadd.f32 %v2025, %v2734
    %v2799 = vadd.f32 %v2026, %v2735
    %v2800 = vadd.f32 %v2027, %v2736
    %v2801 = vadd.f32 %v2028, %v2737
    %v2802 = vadd.f32 %v2029, %v2738
    %v2803 = vadd.f32 %v2030, %v2739
    %v2804 = vadd.f32 %v2031, %v2740
    %v2805 = vadd.f32 %v2032, %v2741
    %v2806 = vadd.f32 %v2033, %v2742
    %v2807 = vadd.f32 %v2034, %v2743
    %v2808 = vadd.f32 %v2035, %v2744
    %v2809 = vadd.f32 %v2036, %v2745
    %v2810 = vadd.f32 %v2037, %v2746
    %v2811 = vadd.f32 %v2038, %v2747
    %v2812 = vadd.f32 %v2039, %v2748
    %v2813 = vadd.f32 %v2040, %v2749
    %v2814 = vadd.f32 %v2041, %v2750
    %v2815 = vadd.f32 %v2042, %v2751
    %v2816 = vadd.f32 %v2043, %v2752
    %v2817 = vadd.f32 %v2044, %v2753
    %v2818 = vadd.f32 %v2045, %v2754
    %v2819 = vadd.f32 %v2046, %v2755
    %v2820 = vadd.f32 %v2047, %v2756
    %v2821 = vadd.f32 %v2048, %v2757
    %v2822 = vadd.f32 %v2049, %v2758
    %v2823 = vadd.f32 %v2050, %v2759
    %s2824 = scalar_lea.vmem %s3, 8
    %v2825 = vld [vmem:[%s2824] sm:$0xf]
    %v2827 = vsel %vm1027, %v2825, 0
    %2829 = vmatprep.subr.mxu0 0.0
    %2830 = vmatpush1.msra.mxu0 %v2827
    %2831 = vmatprep.subr.mxu0 0.0
    %2832 = vmatpush1.msra.mxu0 0.0
    %2833 = vmatprep.subr.mxu0 0.0
    %2834 = vmatpush1.msra.mxu0 0.0
    %2835 = vmatprep.subr.mxu0 0.0
    %2836 = vmatpush1.msra.mxu0 0.0
    %2837 = vmatprep.subr.mxu0 0.0
    %2838 = vmatpush1.msra.mxu0 0.0
    %2839 = vmatprep.subr.mxu0 0.0
    %2840 = vmatpush1.msra.mxu0 0.0
    %2841 = vmatprep.subr.mxu0 0.0
    %2842 = vmatpush1.msra.mxu0 0.0
    %2843 = vmatprep.subr.mxu0 0.0
    %2844 = vmatpush1.msra.mxu0 0.0
    %2845 = vmatprep.subr.mxu0 0.0
    %2846 = vmatpush1.msra.mxu0 0.0
    %2847 = vmatprep.subr.mxu0 0.0
    %2848 = vmatpush1.msra.mxu0 0.0
    %2849 = vmatprep.subr.mxu0 0.0
    %2850 = vmatpush1.msra.mxu0 0.0
    %2851 = vmatprep.subr.mxu0 0.0
    %2852 = vmatpush1.msra.mxu0 0.0
    %2853 = vmatprep.subr.mxu0 0.0
    %2854 = vmatpush1.msra.mxu0 0.0
    %2855 = vmatprep.subr.mxu0 0.0
    %2856 = vmatpush1.msra.mxu0 0.0
    %2857 = vmatprep.subr.mxu0 0.0
    %2858 = vmatpush1.msra.mxu0 0.0
    %2859 = vmatprep.subr.mxu0 0.0
    %2860 = vmatpush1.msra.mxu0 0.0
    %2861 = vmatprep.subr.mxu0 0.0
    %2862 = vmatpush1.msra.mxu0 0.0
    %2863 = vmatprep.subr.mxu0 0.0
    %2864 = vmatpush1.msra.mxu0 0.0
    %2865 = vmatprep.subr.mxu0 0.0
    %2866 = vmatpush1.msra.mxu0 0.0
    %2867 = vmatprep.subr.mxu0 0.0
    %2868 = vmatpush1.msra.mxu0 0.0
    %2869 = vmatprep.subr.mxu0 0.0
    %2870 = vmatpush1.msra.mxu0 0.0
    %2871 = vmatprep.subr.mxu0 0.0
    %2872 = vmatpush1.msra.mxu0 0.0
    %2873 = vmatprep.subr.mxu0 0.0
    %2874 = vmatpush1.msra.mxu0 0.0
    %2875 = vmatprep.subr.mxu0 0.0
    %2876 = vmatpush1.msra.mxu0 0.0
    %2877 = vmatprep.subr.mxu0 0.0
    %2878 = vmatpush1.msra.mxu0 0.0
    %2879 = vmatprep.subr.mxu0 0.0
    %2880 = vmatpush1.msra.mxu0 0.0
    %2881 = vmatprep.subr.mxu0 0.0
    %2882 = vmatpush1.msra.mxu0 0.0
    %2883 = vmatprep.subr.mxu0 0.0
    %2884 = vmatpush1.msra.mxu0 0.0
    %2885 = vmatprep.subr.mxu0 0.0
    %2886 = vmatpush1.msra.mxu0 0.0
    %2887 = vmatprep.subr.mxu0 0.0
    %2888 = vmatpush1.msra.mxu0 0.0
    %2889 = vmatprep.subr.mxu0 0.0
    %2890 = vmatpush1.msra.mxu0 0.0
    %2891 = vmatprep.subr.mxu0 0.0
    %2892 = vmatpush1.msra.mxu0 0.0
    %2893 = vmatprep.mubr.f32.mxu0 0.0
    %2894 = vmatmul.mubr.f32.gmra.mrb[0].mxu0 %v836
    %v2895 = vpop.f32.mrb[0].mxu0
    %v2896 = vadd.f32 0.0, %v2895
    %v2897 = vpop.f32.mrb[0].mxu0
    %2898 = vmatprep.mubr.f32.mxu0 0.0
    %2899 = vmatmul.mubr.f32.gmra.mrb[0].mxu0 %v839
    %v2900 = vpop.f32.mrb[0].mxu0
    %v2901 = vadd.f32 0.0, %v2900
    %v2902 = vpop.f32.mrb[0].mxu0
    %2903 = vmatprep.mubr.f32.mxu0 0.0
    %2904 = vmatmul.mubr.f32.gmra.mrb[0].mxu0 %v842
    %v2905 = vpop.f32.mrb[0].mxu0
    %v2906 = vadd.f32 0.0, %v2905
    %v2907 = vpop.f32.mrb[0].mxu0
    %2908 = vmatprep.mubr.f32.mxu0 0.0
    %2909 = vmatmul.mubr.f32.gmra.mrb[0].mxu0 %v845
    %v2910 = vpop.f32.mrb[0].mxu0
    %v2911 = vadd.f32 0.0, %v2910
    %v2912 = vpop.f32.mrb[0].mxu0
    %2913 = vmatprep.mubr.f32.mxu0 0.0
    %2914 = vmatmul.mubr.f32.gmra.mrb[0].mxu0 %v848
    %v2915 = vpop.f32.mrb[0].mxu0
    %v2916 = vadd.f32 0.0, %v2915
    %v2917 = vpop.f32.mrb[0].mxu0
    %2918 = vmatprep.mubr.f32.mxu0 0.0
    %2919 = vmatmul.mubr.f32.gmra.mrb[0].mxu0 %v851
    %v2920 = vpop.f32.mrb[0].mxu0
    %v2921 = vadd.f32 0.0, %v2920
    %v2922 = vpop.f32.mrb[0].mxu0
    %2923 = vmatprep.mubr.f32.mxu0 0.0
    %2924 = vmatmul.mubr.f32.gmra.mrb[0].mxu0 %v854
    %v2925 = vpop.f32.mrb[0].mxu0
    %v2926 = vadd.f32 0.0, %v2925
    %v2927 = vpop.f32.mrb[0].mxu0
    %2928 = vmatprep.mubr.f32.mxu0 0.0
    %2929 = vmatmul.mubr.f32.gmra.mrb[0].mxu0 %v857
    %v2930 = vpop.f32.mrb[0].mxu0
    %v2931 = vadd.f32 0.0, %v2930
    %v2932 = vpop.f32.mrb[0].mxu0
    %2933 = vmatprep.mubr.f32.mxu0 0.0
    %2934 = vmatmul.mubr.f32.gmra.mrb[0].mxu0 %v860
    %v2935 = vpop.f32.mrb[0].mxu0
    %v2936 = vadd.f32 0.0, %v2935
    %v2937 = vpop.f32.mrb[0].mxu0
    %2938 = vmatprep.mubr.f32.mxu0 0.0
    %2939 = vmatmul.mubr.f32.gmra.mrb[0].mxu0 %v863
    %v2940 = vpop.f32.mrb[0].mxu0
    %v2941 = vadd.f32 0.0, %v2940
    %v2942 = vpop.f32.mrb[0].mxu0
    %2943 = vmatprep.mubr.f32.mxu0 0.0
    %2944 = vmatmul.mubr.f32.gmra.mrb[0].mxu0 %v866
    %v2945 = vpop.f32.mrb[0].mxu0
    %v2946 = vadd.f32 0.0, %v2945
    %v2947 = vpop.f32.mrb[0].mxu0
    %2948 = vmatprep.mubr.f32.mxu0 0.0
    %2949 = vmatmul.mubr.f32.gmra.mrb[0].mxu0 %v869
    %v2950 = vpop.f32.mrb[0].mxu0
    %v2951 = vadd.f32 0.0, %v2950
    %v2952 = vpop.f32.mrb[0].mxu0
    %2953 = vmatprep.mubr.f32.mxu0 0.0
    %2954 = vmatmul.mubr.f32.gmra.mrb[0].mxu0 %v872
    %v2955 = vpop.f32.mrb[0].mxu0
    %v2956 = vadd.f32 0.0, %v2955
    %v2957 = vpop.f32.mrb[0].mxu0
    %2958 = vmatprep.mubr.f32.mxu0 0.0
    %2959 = vmatmul.mubr.f32.gmra.mrb[0].mxu0 %v875
    %v2960 = vpop.f32.mrb[0].mxu0
    %v2961 = vadd.f32 0.0, %v2960
    %v2962 = vpop.f32.mrb[0].mxu0
    %2963 = vmatprep.mubr.f32.mxu0 0.0
    %2964 = vmatmul.mubr.f32.gmra.mrb[0].mxu0 %v878
    %v2965 = vpop.f32.mrb[0].mxu0
    %v2966 = vadd.f32 0.0, %v2965
    %v2967 = vpop.f32.mrb[0].mxu0
    %2968 = vmatprep.mubr.f32.mxu0 0.0
    %2969 = vmatmul.mubr.f32.gmra.mrb[0].mxu0 %v881
    %v2970 = vpop.f32.mrb[0].mxu0
    %v2971 = vadd.f32 0.0, %v2970
    %v2972 = vpop.f32.mrb[0].mxu0
    %2973 = vmatprep.mubr.f32.mxu0 0.0
    %2974 = vmatmul.mubr.f32.gmra.mrb[0].mxu0 %v884
    %v2975 = vpop.f32.mrb[0].mxu0
    %v2976 = vadd.f32 0.0, %v2975
    %v2977 = vpop.f32.mrb[0].mxu0
    %2978 = vmatprep.mubr.f32.mxu0 0.0
    %2979 = vmatmul.mubr.f32.gmra.mrb[0].mxu0 %v887
    %v2980 = vpop.f32.mrb[0].mxu0
    %v2981 = vadd.f32 0.0, %v2980
    %v2982 = vpop.f32.mrb[0].mxu0
    %2983 = vmatprep.mubr.f32.mxu0 0.0
    %2984 = vmatmul.mubr.f32.gmra.mrb[0].mxu0 %v890
    %v2985 = vpop.f32.mrb[0].mxu0
    %v2986 = vadd.f32 0.0, %v2985
    %v2987 = vpop.f32.mrb[0].mxu0
    %2988 = vmatprep.mubr.f32.mxu0 0.0
    %2989 = vmatmul.mubr.f32.gmra.mrb[0].mxu0 %v893
    %v2990 = vpop.f32.mrb[0].mxu0
    %v2991 = vadd.f32 0.0, %v2990
    %v2992 = vpop.f32.mrb[0].mxu0
    %2993 = vmatprep.mubr.f32.mxu0 0.0
    %2994 = vmatmul.mubr.f32.gmra.mrb[0].mxu0 %v896
    %v2995 = vpop.f32.mrb[0].mxu0
    %v2996 = vadd.f32 0.0, %v2995
    %v2997 = vpop.f32.mrb[0].mxu0
    %2998 = vmatprep.mubr.f32.mxu0 0.0
    %2999 = vmatmul.mubr.f32.gmra.mrb[0].mxu0 %v899
    %v3000 = vpop.f32.mrb[0].mxu0
    %v3001 = vadd.f32 0.0, %v3000
    %v3002 = vpop.f32.mrb[0].mxu0
    %3003 = vmatprep.mubr.f32.mxu0 0.0
    %3004 = vmatmul.mubr.f32.gmra.mrb[0].mxu0 %v902
    %v3005 = vpop.f32.mrb[0].mxu0
    %v3006 = vadd.f32 0.0, %v3005
    %v3007 = vpop.f32.mrb[0].mxu0
    %3008 = vmatprep.mubr.f32.mxu0 0.0
    %3009 = vmatmul.mubr.f32.gmra.mrb[0].mxu0 %v905
    %v3010 = vpop.f32.mrb[0].mxu0
    %v3011 = vadd.f32 0.0, %v3010
    %v3012 = vpop.f32.mrb[0].mxu0
    %3013 = vmatprep.mubr.f32.mxu0 0.0
    %3014 = vmatmul.mubr.f32.gmra.mrb[0].mxu0 %v908
    %v3015 = vpop.f32.mrb[0].mxu0
    %v3016 = vadd.f32 0.0, %v3015
    %v3017 = vpop.f32.mrb[0].mxu0
    %3018 = vmatprep.mubr.f32.mxu0 0.0
    %3019 = vmatmul.mubr.f32.gmra.mrb[0].mxu0 %v911
    %v3020 = vpop.f32.mrb[0].mxu0
    %v3021 = vadd.f32 0.0, %v3020
    %v3022 = vpop.f32.mrb[0].mxu0
    %3023 = vmatprep.mubr.f32.mxu0 0.0
    %3024 = vmatmul.mubr.f32.gmra.mrb[0].mxu0 %v914
    %v3025 = vpop.f32.mrb[0].mxu0
    %v3026 = vadd.f32 0.0, %v3025
    %v3027 = vpop.f32.mrb[0].mxu0
    %3028 = vmatprep.mubr.f32.mxu0 0.0
    %3029 = vmatmul.mubr.f32.gmra.mrb[0].mxu0 %v917
    %v3030 = vpop.f32.mrb[0].mxu0
    %v3031 = vadd.f32 0.0, %v3030
    %v3032 = vpop.f32.mrb[0].mxu0
    %3033 = vmatprep.mubr.f32.mxu0 0.0
    %3034 = vmatmul.mubr.f32.gmra.mrb[0].mxu0 %v920
    %v3035 = vpop.f32.mrb[0].mxu0
    %v3036 = vadd.f32 0.0, %v3035
    %v3037 = vpop.f32.mrb[0].mxu0
    %3038 = vmatprep.mubr.f32.mxu0 0.0
    %3039 = vmatmul.mubr.f32.gmra.mrb[0].mxu0 %v923
    %v3040 = vpop.f32.mrb[0].mxu0
    %v3041 = vadd.f32 0.0, %v3040
    %v3042 = vpop.f32.mrb[0].mxu0
    %3043 = vmatprep.mubr.f32.mxu0 0.0
    %3044 = vmatmul.mubr.f32.gmra.mrb[0].mxu0 %v926
    %v3045 = vpop.f32.mrb[0].mxu0
    %v3046 = vadd.f32 0.0, %v3045
    %v3047 = vpop.f32.mrb[0].mxu0
    %3048 = vmatprep.mubr.f32.mxu0 0.0
    %3049 = vmatmul.mubr.f32.gmra.mrb[0].mxu0 %v929
    %v3050 = vpop.f32.mrb[0].mxu0
    %v3051 = vadd.f32 0.0, %v3050
    %v3052 = vpop.f32.mrb[0].mxu0
    %3053 = vmatprep.mubr.f32.mxu0 0.0
    %3054 = vmatmul.mubr.f32.gmra.mrb[0].mxu0 %v932
    %v3055 = vpop.f32.mrb[0].mxu0
    %v3056 = vadd.f32 0.0, %v3055
    %v3057 = vpop.f32.mrb[0].mxu0
    %3058 = vmatprep.mubr.f32.mxu0 0.0
    %3059 = vmatmul.mubr.f32.gmra.mrb[0].mxu0 %v935
    %v3060 = vpop.f32.mrb[0].mxu0
    %v3061 = vadd.f32 0.0, %v3060
    %v3062 = vpop.f32.mrb[0].mxu0
    %3063 = vmatprep.mubr.f32.mxu0 0.0
    %3064 = vmatmul.mubr.f32.gmra.mrb[0].mxu0 %v938
    %v3065 = vpop.f32.mrb[0].mxu0
    %v3066 = vadd.f32 0.0, %v3065
    %v3067 = vpop.f32.mrb[0].mxu0
    %3068 = vmatprep.mubr.f32.mxu0 0.0
    %3069 = vmatmul.mubr.f32.gmra.mrb[0].mxu0 %v941
    %v3070 = vpop.f32.mrb[0].mxu0
    %v3071 = vadd.f32 0.0, %v3070
    %v3072 = vpop.f32.mrb[0].mxu0
    %3073 = vmatprep.mubr.f32.mxu0 0.0
    %3074 = vmatmul.mubr.f32.gmra.mrb[0].mxu0 %v944
    %v3075 = vpop.f32.mrb[0].mxu0
    %v3076 = vadd.f32 0.0, %v3075
    %v3077 = vpop.f32.mrb[0].mxu0
    %3078 = vmatprep.mubr.f32.mxu0 0.0
    %3079 = vmatmul.mubr.f32.gmra.mrb[0].mxu0 %v947
    %v3080 = vpop.f32.mrb[0].mxu0
    %v3081 = vadd.f32 0.0, %v3080
    %v3082 = vpop.f32.mrb[0].mxu0
    %3083 = vmatprep.mubr.f32.mxu0 0.0
    %3084 = vmatmul.mubr.f32.gmra.mrb[0].mxu0 %v950
    %v3085 = vpop.f32.mrb[0].mxu0
    %v3086 = vadd.f32 0.0, %v3085
    %v3087 = vpop.f32.mrb[0].mxu0
    %3088 = vmatprep.mubr.f32.mxu0 0.0
    %3089 = vmatmul.mubr.f32.gmra.mrb[0].mxu0 %v953
    %v3090 = vpop.f32.mrb[0].mxu0
    %v3091 = vadd.f32 0.0, %v3090
    %v3092 = vpop.f32.mrb[0].mxu0
    %3093 = vmatprep.mubr.f32.mxu0 0.0
    %3094 = vmatmul.mubr.f32.gmra.mrb[0].mxu0 %v956
    %v3095 = vpop.f32.mrb[0].mxu0
    %v3096 = vadd.f32 0.0, %v3095
    %v3097 = vpop.f32.mrb[0].mxu0
    %3098 = vmatprep.mubr.f32.mxu0 0.0
    %3099 = vmatmul.mubr.f32.gmra.mrb[0].mxu0 %v959
    %v3100 = vpop.f32.mrb[0].mxu0
    %v3101 = vadd.f32 0.0, %v3100
    %v3102 = vpop.f32.mrb[0].mxu0
    %3103 = vmatprep.mubr.f32.mxu0 0.0
    %3104 = vmatmul.mubr.f32.gmra.mrb[0].mxu0 %v962
    %v3105 = vpop.f32.mrb[0].mxu0
    %v3106 = vadd.f32 0.0, %v3105
    %v3107 = vpop.f32.mrb[0].mxu0
    %3108 = vmatprep.mubr.f32.mxu0 0.0
    %3109 = vmatmul.mubr.f32.gmra.mrb[0].mxu0 %v965
    %v3110 = vpop.f32.mrb[0].mxu0
    %v3111 = vadd.f32 0.0, %v3110
    %v3112 = vpop.f32.mrb[0].mxu0
    %3113 = vmatprep.mubr.f32.mxu0 0.0
    %3114 = vmatmul.mubr.f32.gmra.mrb[0].mxu0 %v968
    %v3115 = vpop.f32.mrb[0].mxu0
    %v3116 = vadd.f32 0.0, %v3115
    %v3117 = vpop.f32.mrb[0].mxu0
    %3118 = vmatprep.mubr.f32.mxu0 0.0
    %3119 = vmatmul.mubr.f32.gmra.mrb[0].mxu0 %v971
    %v3120 = vpop.f32.mrb[0].mxu0
    %v3121 = vadd.f32 0.0, %v3120
    %v3122 = vpop.f32.mrb[0].mxu0
    %3123 = vmatprep.mubr.f32.mxu0 0.0
    %3124 = vmatmul.mubr.f32.gmra.mrb[0].mxu0 %v974
    %v3125 = vpop.f32.mrb[0].mxu0
    %v3126 = vadd.f32 0.0, %v3125
    %v3127 = vpop.f32.mrb[0].mxu0
    %3128 = vmatprep.mubr.f32.mxu0 0.0
    %3129 = vmatmul.mubr.f32.gmra.mrb[0].mxu0 %v977
    %v3130 = vpop.f32.mrb[0].mxu0
    %v3131 = vadd.f32 0.0, %v3130
    %v3132 = vpop.f32.mrb[0].mxu0
    %3133 = vmatprep.mubr.f32.mxu0 0.0
    %3134 = vmatmul.mubr.f32.gmra.mrb[0].mxu0 %v980
    %v3135 = vpop.f32.mrb[0].mxu0
    %v3136 = vadd.f32 0.0, %v3135
    %v3137 = vpop.f32.mrb[0].mxu0
    %3138 = vmatprep.mubr.f32.mxu0 0.0
    %3139 = vmatmul.mubr.f32.gmra.mrb[0].mxu0 %v983
    %v3140 = vpop.f32.mrb[0].mxu0
    %v3141 = vadd.f32 0.0, %v3140
    %v3142 = vpop.f32.mrb[0].mxu0
    %3143 = vmatprep.mubr.f32.mxu0 0.0
    %3144 = vmatmul.mubr.f32.gmra.mrb[0].mxu0 %v986
    %v3145 = vpop.f32.mrb[0].mxu0
    %v3146 = vadd.f32 0.0, %v3145
    %v3147 = vpop.f32.mrb[0].mxu0
    %3148 = vmatprep.mubr.f32.mxu0 0.0
    %3149 = vmatmul.mubr.f32.gmra.mrb[0].mxu0 %v989
    %v3150 = vpop.f32.mrb[0].mxu0
    %v3151 = vadd.f32 0.0, %v3150
    %v3152 = vpop.f32.mrb[0].mxu0
    %3153 = vmatprep.mubr.f32.mxu0 0.0
    %3154 = vmatmul.mubr.f32.gmra.mrb[0].mxu0 %v992
    %v3155 = vpop.f32.mrb[0].mxu0
    %v3156 = vadd.f32 0.0, %v3155
    %v3157 = vpop.f32.mrb[0].mxu0
    %3158 = vmatprep.mubr.f32.mxu0 0.0
    %3159 = vmatmul.mubr.f32.gmra.mrb[0].mxu0 %v995
    %v3160 = vpop.f32.mrb[0].mxu0
    %v3161 = vadd.f32 0.0, %v3160
    %v3162 = vpop.f32.mrb[0].mxu0
    %3163 = vmatprep.mubr.f32.mxu0 0.0
    %3164 = vmatmul.mubr.f32.gmra.mrb[0].mxu0 %v998
    %v3165 = vpop.f32.mrb[0].mxu0
    %v3166 = vadd.f32 0.0, %v3165
    %v3167 = vpop.f32.mrb[0].mxu0
    %3168 = vmatprep.mubr.f32.mxu0 0.0
    %3169 = vmatmul.mubr.f32.gmra.mrb[0].mxu0 %v1001
    %v3170 = vpop.f32.mrb[0].mxu0
    %v3171 = vadd.f32 0.0, %v3170
    %v3172 = vpop.f32.mrb[0].mxu0
    %3173 = vmatprep.mubr.f32.mxu0 0.0
    %3174 = vmatmul.mubr.f32.gmra.mrb[0].mxu0 %v1004
    %v3175 = vpop.f32.mrb[0].mxu0
    %v3176 = vadd.f32 0.0, %v3175
    %v3177 = vpop.f32.mrb[0].mxu0
    %3178 = vmatprep.mubr.f32.mxu0 0.0
    %3179 = vmatmul.mubr.f32.gmra.mrb[0].mxu0 %v1007
    %v3180 = vpop.f32.mrb[0].mxu0
    %v3181 = vadd.f32 0.0, %v3180
    %v3182 = vpop.f32.mrb[0].mxu0
    %3183 = vmatprep.mubr.f32.mxu0 0.0
    %3184 = vmatmul.mubr.f32.gmra.mrb[0].mxu0 %v1010
    %v3185 = vpop.f32.mrb[0].mxu0
    %v3186 = vadd.f32 0.0, %v3185
    %v3187 = vpop.f32.mrb[0].mxu0
    %3188 = vmatprep.mubr.f32.mxu0 0.0
    %3189 = vmatmul.mubr.f32.gmra.mrb[0].mxu0 %v1013
    %v3190 = vpop.f32.mrb[0].mxu0
    %v3191 = vadd.f32 0.0, %v3190
    %v3192 = vpop.f32.mrb[0].mxu0
    %3193 = vmatprep.mubr.f32.mxu0 0.0
    %3194 = vmatmul.mubr.f32.gmra.mrb[0].mxu0 %v1016
    %v3195 = vpop.f32.mrb[0].mxu0
    %v3196 = vadd.f32 0.0, %v3195
    %v3197 = vpop.f32.mrb[0].mxu0
    %3198 = vmatprep.mubr.f32.mxu0 0.0
    %3199 = vmatmul.mubr.f32.gmra.mrb[0].mxu0 %v1019
    %v3200 = vpop.f32.mrb[0].mxu0
    %v3201 = vadd.f32 0.0, %v3200
    %v3202 = vpop.f32.mrb[0].mxu0
    %3203 = vmatprep.mubr.f32.mxu0 0.0
    %3204 = vmatmul.mubr.f32.gmra.mrb[0].mxu0 %v1022
    %v3205 = vpop.f32.mrb[0].mxu0
    %v3206 = vadd.f32 0.0, %v3205
    %v3207 = vpop.f32.mrb[0].mxu0
    %3208 = vmatprep.mubr.f32.mxu0 0.0
    %3209 = vmatmul.mubr.f32.gmra.mrb[0].mxu0 %v1025
    %v3210 = vpop.f32.mrb[0].mxu0
    %v3211 = vadd.f32 0.0, %v3210
    %v3212 = vpop.f32.mrb[0].mxu0
    %3213 = vdwg.mxu0
    %vm3278 = vcmask 1046528
    %v3279 = vrot.slane %v2896, 1
    %v3280 = vrot.slane %v2901, 1
    %v3281 = vsel %vm3278, %v3279, %v3280
    %v3282 = vrot.slane %v2906, 1
    %v3283 = vsel %vm3278, %v3280, %v3282
    %v3284 = vrot.slane %v2911, 1
    %v3285 = vsel %vm3278, %v3282, %v3284
    %v3286 = vrot.slane %v2916, 1
    %v3287 = vsel %vm3278, %v3284, %v3286
    %v3288 = vrot.slane %v2921, 1
    %v3289 = vsel %vm3278, %v3286, %v3288
    %v3290 = vrot.slane %v2926, 1
    %v3291 = vsel %vm3278, %v3288, %v3290
    %v3292 = vrot.slane %v2931, 1
    %v3293 = vsel %vm3278, %v3290, %v3292
    %v3294 = vrot.slane %v2936, 1
    %v3295 = vsel %vm3278, %v3292, %v3294
    %v3296 = vrot.slane %v2941, 1
    %v3297 = vsel %vm3278, %v3294, %v3296
    %v3298 = vrot.slane %v2946, 1
    %v3299 = vsel %vm3278, %v3296, %v3298
    %v3300 = vrot.slane %v2951, 1
    %v3301 = vsel %vm3278, %v3298, %v3300
    %v3302 = vrot.slane %v2956, 1
    %v3303 = vsel %vm3278, %v3300, %v3302
    %v3304 = vrot.slane %v2961, 1
    %v3305 = vsel %vm3278, %v3302, %v3304
    %v3306 = vrot.slane %v2966, 1
    %v3307 = vsel %vm3278, %v3304, %v3306
    %v3308 = vrot.slane %v2971, 1
    %v3309 = vsel %vm3278, %v3306, %v3308
    %v3310 = vrot.slane %v2976, 1
    %v3311 = vsel %vm3278, %v3308, %v3310
    %v3312 = vrot.slane %v2981, 1
    %v3313 = vsel %vm3278, %v3310, %v3312
    %v3314 = vrot.slane %v2986, 1
    %v3315 = vsel %vm3278, %v3312, %v3314
    %v3316 = vrot.slane %v2991, 1
    %v3317 = vsel %vm3278, %v3314, %v3316
    %v3318 = vrot.slane %v2996, 1
    %v3319 = vsel %vm3278, %v3316, %v3318
    %v3320 = vrot.slane %v3001, 1
    %v3321 = vsel %vm3278, %v3318, %v3320
    %v3322 = vrot.slane %v3006, 1
    %v3323 = vsel %vm3278, %v3320, %v3322
    %v3324 = vrot.slane %v3011, 1
    %v3325 = vsel %vm3278, %v3322, %v3324
    %v3326 = vrot.slane %v3016, 1
    %v3327 = vsel %vm3278, %v3324, %v3326
    %v3328 = vrot.slane %v3021, 1
    %v3329 = vsel %vm3278, %v3326, %v3328
    %v3330 = vrot.slane %v3026, 1
    %v3331 = vsel %vm3278, %v3328, %v3330
    %v3332 = vrot.slane %v3031, 1
    %v3333 = vsel %vm3278, %v3330, %v3332
    %v3334 = vrot.slane %v3036, 1
    %v3335 = vsel %vm3278, %v3332, %v3334
    %v3336 = vrot.slane %v3041, 1
    %v3337 = vsel %vm3278, %v3334, %v3336
    %v3338 = vrot.slane %v3046, 1
    %v3339 = vsel %vm3278, %v3336, %v3338
    %v3340 = vrot.slane %v3051, 1
    %v3341 = vsel %vm3278, %v3338, %v3340
    %v3342 = vrot.slane %v3056, 1
    %v3343 = vsel %vm3278, %v3340, %v3342
    %v3344 = vrot.slane %v3061, 1
    %v3345 = vsel %vm3278, %v3342, %v3344
    %v3346 = vrot.slane %v3066, 1
    %v3347 = vsel %vm3278, %v3344, %v3346
    %v3348 = vrot.slane %v3071, 1
    %v3349 = vsel %vm3278, %v3346, %v3348
    %v3350 = vrot.slane %v3076, 1
    %v3351 = vsel %vm3278, %v3348, %v3350
    %v3352 = vrot.slane %v3081, 1
    %v3353 = vsel %vm3278, %v3350, %v3352
    %v3354 = vrot.slane %v3086, 1
    %v3355 = vsel %vm3278, %v3352, %v3354
    %v3356 = vrot.slane %v3091, 1
    %v3357 = vsel %vm3278, %v3354, %v3356
    %v3358 = vrot.slane %v3096, 1
    %v3359 = vsel %vm3278, %v3356, %v3358
    %v3360 = vrot.slane %v3101, 1
    %v3361 = vsel %vm3278, %v3358, %v3360
    %v3362 = vrot.slane %v3106, 1
    %v3363 = vsel %vm3278, %v3360, %v3362
    %v3364 = vrot.slane %v3111, 1
    %v3365 = vsel %vm3278, %v3362, %v3364
    %v3366 = vrot.slane %v3116, 1
    %v3367 = vsel %vm3278, %v3364, %v3366
    %v3368 = vrot.slane %v3121, 1
    %v3369 = vsel %vm3278, %v3366, %v3368
    %v3370 = vrot.slane %v3126, 1
    %v3371 = vsel %vm3278, %v3368, %v3370
    %v3372 = vrot.slane %v3131, 1
    %v3373 = vsel %vm3278, %v3370, %v3372
    %v3374 = vrot.slane %v3136, 1
    %v3375 = vsel %vm3278, %v3372, %v3374
    %v3376 = vrot.slane %v3141, 1
    %v3377 = vsel %vm3278, %v3374, %v3376
    %v3378 = vrot.slane %v3146, 1
    %v3379 = vsel %vm3278, %v3376, %v3378
    %v3380 = vrot.slane %v3151, 1
    %v3381 = vsel %vm3278, %v3378, %v3380
    %v3382 = vrot.slane %v3156, 1
    %v3383 = vsel %vm3278, %v3380, %v3382
    %v3384 = vrot.slane %v3161, 1
    %v3385 = vsel %vm3278, %v3382, %v3384
    %v3386 = vrot.slane %v3166, 1
    %v3387 = vsel %vm3278, %v3384, %v3386
    %v3388 = vrot.slane %v3171, 1
    %v3389 = vsel %vm3278, %v3386, %v3388
    %v3390 = vrot.slane %v3176, 1
    %v3391 = vsel %vm3278, %v3388, %v3390
    %v3392 = vrot.slane %v3181, 1
    %v3393 = vsel %vm3278, %v3390, %v3392
    %v3394 = vrot.slane %v3186, 1
    %v3395 = vsel %vm3278, %v3392, %v3394
    %v3396 = vrot.slane %v3191, 1
    %v3397 = vsel %vm3278, %v3394, %v3396
    %v3398 = vrot.slane %v3196, 1
    %v3399 = vsel %vm3278, %v3396, %v3398
    %v3400 = vrot.slane %v3201, 1
    %v3401 = vsel %vm3278, %v3398, %v3400
    %v3402 = vrot.slane %v3206, 1
    %v3403 = vsel %vm3278, %v3400, %v3402
    %v3404 = vrot.slane %v3211, 1
    %v3405 = vsel %vm3278, %v3402, %v3404
    %v3470 = vsel %vm3278, 0.0, %v3279
    %3471 = vset.pattern.permute.xlu0 2
    %3472 = vperm.xlu0 %3471, %v769
    %v3473 = vpop.permute.xlu0 %3472
    %3475 = vset.pattern.permute.xlu0 2
    %3476 = vperm.xlu0 %3475, %v770
    %v3477 = vpop.permute.xlu0 %3476
    %3479 = vset.pattern.permute.xlu0 2
    %3480 = vperm.xlu0 %3479, %v771
    %v3481 = vpop.permute.xlu0 %3480
    %3483 = vset.pattern.permute.xlu0 2
    %3484 = vperm.xlu0 %3483, %v772
    %v3485 = vpop.permute.xlu0 %3484
    %3487 = vset.pattern.permute.xlu0 2
    %3488 = vperm.xlu0 %3487, %v773
    %v3489 = vpop.permute.xlu0 %3488
    %3491 = vset.pattern.permute.xlu0 2
    %3492 = vperm.xlu0 %3491, %v774
    %v3493 = vpop.permute.xlu0 %3492
    %3495 = vset.pattern.permute.xlu0 2
    %3496 = vperm.xlu0 %3495, %v775
    %v3497 = vpop.permute.xlu0 %3496
    %3499 = vset.pattern.permute.xlu0 2
    %3500 = vperm.xlu0 %3499, %v776
    %v3501 = vpop.permute.xlu0 %3500
    %3503 = vset.pattern.permute.xlu0 2
    %3504 = vperm.xlu0 %3503, %v777
    %v3505 = vpop.permute.xlu0 %3504
    %3507 = vset.pattern.permute.xlu0 2
    %3508 = vperm.xlu0 %3507, %v778
    %v3509 = vpop.permute.xlu0 %3508
    %3511 = vset.pattern.permute.xlu0 2
    %3512 = vperm.xlu0 %3511, %v779
    %v3513 = vpop.permute.xlu0 %3512
    %3515 = vset.pattern.permute.xlu0 2
    %3516 = vperm.xlu0 %3515, %v780
    %v3517 = vpop.permute.xlu0 %3516
    %3519 = vset.pattern.permute.xlu0 2
    %3520 = vperm.xlu0 %3519, %v781
    %v3521 = vpop.permute.xlu0 %3520
    %3523 = vset.pattern.permute.xlu0 2
    %3524 = vperm.xlu0 %3523, %v782
    %v3525 = vpop.permute.xlu0 %3524
    %3527 = vset.pattern.permute.xlu0 2
    %3528 = vperm.xlu0 %3527, %v783
    %v3529 = vpop.permute.xlu0 %3528
    %3531 = vset.pattern.permute.xlu0 2
    %3532 = vperm.xlu0 %3531, %v784
    %v3533 = vpop.permute.xlu0 %3532
    %3535 = vset.pattern.permute.xlu0 2
    %3536 = vperm.xlu0 %3535, %v785
    %v3537 = vpop.permute.xlu0 %3536
    %3539 = vset.pattern.permute.xlu0 2
    %3540 = vperm.xlu0 %3539, %v786
    %v3541 = vpop.permute.xlu0 %3540
    %3543 = vset.pattern.permute.xlu0 2
    %3544 = vperm.xlu0 %3543, %v787
    %v3545 = vpop.permute.xlu0 %3544
    %3547 = vset.pattern.permute.xlu0 2
    %3548 = vperm.xlu0 %3547, %v788
    %v3549 = vpop.permute.xlu0 %3548
    %3551 = vset.pattern.permute.xlu0 2
    %3552 = vperm.xlu0 %3551, %v789
    %v3553 = vpop.permute.xlu0 %3552
    %3555 = vset.pattern.permute.xlu0 2
    %3556 = vperm.xlu0 %3555, %v790
    %v3557 = vpop.permute.xlu0 %3556
    %3559 = vset.pattern.permute.xlu0 2
    %3560 = vperm.xlu0 %3559, %v791
    %v3561 = vpop.permute.xlu0 %3560
    %3563 = vset.pattern.permute.xlu0 2
    %3564 = vperm.xlu0 %3563, %v792
    %v3565 = vpop.permute.xlu0 %3564
    %3567 = vset.pattern.permute.xlu0 2
    %3568 = vperm.xlu0 %3567, %v793
    %v3569 = vpop.permute.xlu0 %3568
    %3571 = vset.pattern.permute.xlu0 2
    %3572 = vperm.xlu0 %3571, %v794
    %v3573 = vpop.permute.xlu0 %3572
    %3575 = vset.pattern.permute.xlu0 2
    %3576 = vperm.xlu0 %3575, %v795
    %v3577 = vpop.permute.xlu0 %3576
    %3579 = vset.pattern.permute.xlu0 2
    %3580 = vperm.xlu0 %3579, %v796
    %v3581 = vpop.permute.xlu0 %3580
    %3583 = vset.pattern.permute.xlu0 2
    %3584 = vperm.xlu0 %3583, %v797
    %v3585 = vpop.permute.xlu0 %3584
    %3587 = vset.pattern.permute.xlu0 2
    %3588 = vperm.xlu0 %3587, %v798
    %v3589 = vpop.permute.xlu0 %3588
    %3591 = vset.pattern.permute.xlu0 2
    %3592 = vperm.xlu0 %3591, %v799
    %v3593 = vpop.permute.xlu0 %3592
    %3595 = vset.pattern.permute.xlu0 2
    %3596 = vperm.xlu0 %3595, %v800
    %v3597 = vpop.permute.xlu0 %3596
    %3599 = vset.pattern.permute.xlu0 2
    %3600 = vperm.xlu0 %3599, %v801
    %v3601 = vpop.permute.xlu0 %3600
    %3603 = vset.pattern.permute.xlu0 2
    %3604 = vperm.xlu0 %3603, %v802
    %v3605 = vpop.permute.xlu0 %3604
    %3607 = vset.pattern.permute.xlu0 2
    %3608 = vperm.xlu0 %3607, %v803
    %v3609 = vpop.permute.xlu0 %3608
    %3611 = vset.pattern.permute.xlu0 2
    %3612 = vperm.xlu0 %3611, %v804
    %v3613 = vpop.permute.xlu0 %3612
    %3615 = vset.pattern.permute.xlu0 2
    %3616 = vperm.xlu0 %3615, %v805
    %v3617 = vpop.permute.xlu0 %3616
    %3619 = vset.pattern.permute.xlu0 2
    %3620 = vperm.xlu0 %3619, %v806
    %v3621 = vpop.permute.xlu0 %3620
    %3623 = vset.pattern.permute.xlu0 2
    %3624 = vperm.xlu0 %3623, %v807
    %v3625 = vpop.permute.xlu0 %3624
    %3627 = vset.pattern.permute.xlu0 2
    %3628 = vperm.xlu0 %3627, %v808
    %v3629 = vpop.permute.xlu0 %3628
    %3631 = vset.pattern.permute.xlu0 2
    %3632 = vperm.xlu0 %3631, %v809
    %v3633 = vpop.permute.xlu0 %3632
    %3635 = vset.pattern.permute.xlu0 2
    %3636 = vperm.xlu0 %3635, %v810
    %v3637 = vpop.permute.xlu0 %3636
    %3639 = vset.pattern.permute.xlu0 2
    %3640 = vperm.xlu0 %3639, %v811
    %v3641 = vpop.permute.xlu0 %3640
    %3643 = vset.pattern.permute.xlu0 2
    %3644 = vperm.xlu0 %3643, %v812
    %v3645 = vpop.permute.xlu0 %3644
    %3647 = vset.pattern.permute.xlu0 2
    %3648 = vperm.xlu0 %3647, %v813
    %v3649 = vpop.permute.xlu0 %3648
    %3651 = vset.pattern.permute.xlu0 2
    %3652 = vperm.xlu0 %3651, %v814
    %v3653 = vpop.permute.xlu0 %3652
    %3655 = vset.pattern.permute.xlu0 2
    %3656 = vperm.xlu0 %3655, %v815
    %v3657 = vpop.permute.xlu0 %3656
    %3659 = vset.pattern.permute.xlu0 2
    %3660 = vperm.xlu0 %3659, %v816
    %v3661 = vpop.permute.xlu0 %3660
    %3663 = vset.pattern.permute.xlu0 2
    %3664 = vperm.xlu0 %3663, %v817
    %v3665 = vpop.permute.xlu0 %3664
    %3667 = vset.pattern.permute.xlu0 2
    %3668 = vperm.xlu0 %3667, %v818
    %v3669 = vpop.permute.xlu0 %3668
    %3671 = vset.pattern.permute.xlu0 2
    %3672 = vperm.xlu0 %3671, %v819
    %v3673 = vpop.permute.xlu0 %3672
    %3675 = vset.pattern.permute.xlu0 2
    %3676 = vperm.xlu0 %3675, %v820
    %v3677 = vpop.permute.xlu0 %3676
    %3679 = vset.pattern.permute.xlu0 2
    %3680 = vperm.xlu0 %3679, %v821
    %v3681 = vpop.permute.xlu0 %3680
    %3683 = vset.pattern.permute.xlu0 2
    %3684 = vperm.xlu0 %3683, %v822
    %v3685 = vpop.permute.xlu0 %3684
    %3687 = vset.pattern.permute.xlu0 2
    %3688 = vperm.xlu0 %3687, %v823
    %v3689 = vpop.permute.xlu0 %3688
    %3691 = vset.pattern.permute.xlu0 2
    %3692 = vperm.xlu0 %3691, %v824
    %v3693 = vpop.permute.xlu0 %3692
    %3695 = vset.pattern.permute.xlu0 2
    %3696 = vperm.xlu0 %3695, %v825
    %v3697 = vpop.permute.xlu0 %3696
    %3699 = vset.pattern.permute.xlu0 2
    %3700 = vperm.xlu0 %3699, %v826
    %v3701 = vpop.permute.xlu0 %3700
    %3703 = vset.pattern.permute.xlu0 2
    %3704 = vperm.xlu0 %3703, %v827
    %v3705 = vpop.permute.xlu0 %3704
    %3707 = vset.pattern.permute.xlu0 2
    %3708 = vperm.xlu0 %3707, %v828
    %v3709 = vpop.permute.xlu0 %3708
    %3711 = vset.pattern.permute.xlu0 2
    %3712 = vperm.xlu0 %3711, %v829
    %v3713 = vpop.permute.xlu0 %3712
    %3715 = vset.pattern.permute.xlu0 2
    %3716 = vperm.xlu0 %3715, %v830
    %v3717 = vpop.permute.xlu0 %3716
    %3719 = vset.pattern.permute.xlu0 2
    %3720 = vperm.xlu0 %3719, %v831
    %v3721 = vpop.permute.xlu0 %3720
    %3723 = vset.pattern.permute.xlu0 2
    %3724 = vperm.xlu0 %3723, %v832
    %v3725 = vpop.permute.xlu0 %3724
    %v3727 = vmul.f32 %v3470, %v3473
    %v3728 = vmul.f32 %v3281, %v3477
    %v3729 = vmul.f32 %v3283, %v3481
    %v3730 = vmul.f32 %v3285, %v3485
    %v3731 = vmul.f32 %v3287, %v3489
    %v3732 = vmul.f32 %v3289, %v3493
    %v3733 = vmul.f32 %v3291, %v3497
    %v3734 = vmul.f32 %v3293, %v3501
    %v3735 = vmul.f32 %v3295, %v3505
    %v3736 = vmul.f32 %v3297, %v3509
    %v3737 = vmul.f32 %v3299, %v3513
    %v3738 = vmul.f32 %v3301, %v3517
    %v3739 = vmul.f32 %v3303, %v3521
    %v3740 = vmul.f32 %v3305, %v3525
    %v3741 = vmul.f32 %v3307, %v3529
    %v3742 = vmul.f32 %v3309, %v3533
    %v3743 = vmul.f32 %v3311, %v3537
    %v3744 = vmul.f32 %v3313, %v3541
    %v3745 = vmul.f32 %v3315, %v3545
    %v3746 = vmul.f32 %v3317, %v3549
    %v3747 = vmul.f32 %v3319, %v3553
    %v3748 = vmul.f32 %v3321, %v3557
    %v3749 = vmul.f32 %v3323, %v3561
    %v3750 = vmul.f32 %v3325, %v3565
    %v3751 = vmul.f32 %v3327, %v3569
    %v3752 = vmul.f32 %v3329, %v3573
    %v3753 = vmul.f32 %v3331, %v3577
    %v3754 = vmul.f32 %v3333, %v3581
    %v3755 = vmul.f32 %v3335, %v3585
    %v3756 = vmul.f32 %v3337, %v3589
    %v3757 = vmul.f32 %v3339, %v3593
    %v3758 = vmul.f32 %v3341, %v3597
    %v3759 = vmul.f32 %v3343, %v3601
    %v3760 = vmul.f32 %v3345, %v3605
    %v3761 = vmul.f32 %v3347, %v3609
    %v3762 = vmul.f32 %v3349, %v3613
    %v3763 = vmul.f32 %v3351, %v3617
    %v3764 = vmul.f32 %v3353, %v3621
    %v3765 = vmul.f32 %v3355, %v3625
    %v3766 = vmul.f32 %v3357, %v3629
    %v3767 = vmul.f32 %v3359, %v3633
    %v3768 = vmul.f32 %v3361, %v3637
    %v3769 = vmul.f32 %v3363, %v3641
    %v3770 = vmul.f32 %v3365, %v3645
    %v3771 = vmul.f32 %v3367, %v3649
    %v3772 = vmul.f32 %v3369, %v3653
    %v3773 = vmul.f32 %v3371, %v3657
    %v3774 = vmul.f32 %v3373, %v3661
    %v3775 = vmul.f32 %v3375, %v3665
    %v3776 = vmul.f32 %v3377, %v3669
    %v3777 = vmul.f32 %v3379, %v3673
    %v3778 = vmul.f32 %v3381, %v3677
    %v3779 = vmul.f32 %v3383, %v3681
    %v3780 = vmul.f32 %v3385, %v3685
    %v3781 = vmul.f32 %v3387, %v3689
    %v3782 = vmul.f32 %v3389, %v3693
    %v3783 = vmul.f32 %v3391, %v3697
    %v3784 = vmul.f32 %v3393, %v3701
    %v3785 = vmul.f32 %v3395, %v3705
    %v3786 = vmul.f32 %v3397, %v3709
    %v3787 = vmul.f32 %v3399, %v3713
    %v3788 = vmul.f32 %v3401, %v3717
    %v3789 = vmul.f32 %v3403, %v3721
    %v3790 = vmul.f32 %v3405, %v3725
    %v3791 = vadd.f32 %v2760, %v3727
    %v3792 = vadd.f32 %v2761, %v3728
    %v3793 = vadd.f32 %v2762, %v3729
    %v3794 = vadd.f32 %v2763, %v3730
    %v3795 = vadd.f32 %v2764, %v3731
    %v3796 = vadd.f32 %v2765, %v3732
    %v3797 = vadd.f32 %v2766, %v3733
    %v3798 = vadd.f32 %v2767, %v3734
    %v3799 = vadd.f32 %v2768, %v3735
    %v3800 = vadd.f32 %v2769, %v3736
    %v3801 = vadd.f32 %v2770, %v3737
    %v3802 = vadd.f32 %v2771, %v3738
    %v3803 = vadd.f32 %v2772, %v3739
    %v3804 = vadd.f32 %v2773, %v3740
    %v3805 = vadd.f32 %v2774, %v3741
    %v3806 = vadd.f32 %v2775, %v3742
    %v3807 = vadd.f32 %v2776, %v3743
    %v3808 = vadd.f32 %v2777, %v3744
    %v3809 = vadd.f32 %v2778, %v3745
    %v3810 = vadd.f32 %v2779, %v3746
    %v3811 = vadd.f32 %v2780, %v3747
    %v3812 = vadd.f32 %v2781, %v3748
    %v3813 = vadd.f32 %v2782, %v3749
    %v3814 = vadd.f32 %v2783, %v3750
    %v3815 = vadd.f32 %v2784, %v3751
    %v3816 = vadd.f32 %v2785, %v3752
    %v3817 = vadd.f32 %v2786, %v3753
    %v3818 = vadd.f32 %v2787, %v3754
    %v3819 = vadd.f32 %v2788, %v3755
    %v3820 = vadd.f32 %v2789, %v3756
    %v3821 = vadd.f32 %v2790, %v3757
    %v3822 = vadd.f32 %v2791, %v3758
    %v3823 = vadd.f32 %v2792, %v3759
    %v3824 = vadd.f32 %v2793, %v3760
    %v3825 = vadd.f32 %v2794, %v3761
    %v3826 = vadd.f32 %v2795, %v3762
    %v3827 = vadd.f32 %v2796, %v3763
    %v3828 = vadd.f32 %v2797, %v3764
    %v3829 = vadd.f32 %v2798, %v3765
    %v3830 = vadd.f32 %v2799, %v3766
    %v3831 = vadd.f32 %v2800, %v3767
    %v3832 = vadd.f32 %v2801, %v3768
    %v3833 = vadd.f32 %v2802, %v3769
    %v3834 = vadd.f32 %v2803, %v3770
    %v3835 = vadd.f32 %v2804, %v3771
    %v3836 = vadd.f32 %v2805, %v3772
    %v3837 = vadd.f32 %v2806, %v3773
    %v3838 = vadd.f32 %v2807, %v3774
    %v3839 = vadd.f32 %v2808, %v3775
    %v3840 = vadd.f32 %v2809, %v3776
    %v3841 = vadd.f32 %v2810, %v3777
    %v3842 = vadd.f32 %v2811, %v3778
    %v3843 = vadd.f32 %v2812, %v3779
    %v3844 = vadd.f32 %v2813, %v3780
    %v3845 = vadd.f32 %v2814, %v3781
    %v3846 = vadd.f32 %v2815, %v3782
    %v3847 = vadd.f32 %v2816, %v3783
    %v3848 = vadd.f32 %v2817, %v3784
    %v3849 = vadd.f32 %v2818, %v3785
    %v3850 = vadd.f32 %v2819, %v3786
    %v3851 = vadd.f32 %v2820, %v3787
    %v3852 = vadd.f32 %v2821, %v3788
    %v3853 = vadd.f32 %v2822, %v3789
    %v3854 = vadd.f32 %v2823, %v3790
    %s3855 = scalar_lea.vmem %s3, 12
    %v3856 = vld [vmem:[%s3855] sm:$0xf]
    %v3858 = vsel %vm1027, %v3856, 0
    %3860 = vmatprep.subr.mxu0 0.0
    %3861 = vmatpush1.msra.mxu0 %v3858
    %3862 = vmatprep.subr.mxu0 0.0
    %3863 = vmatpush1.msra.mxu0 0.0
    %3864 = vmatprep.subr.mxu0 0.0
    %3865 = vmatpush1.msra.mxu0 0.0
    %3866 = vmatprep.subr.mxu0 0.0
    %3867 = vmatpush1.msra.mxu0 0.0
    %3868 = vmatprep.subr.mxu0 0.0
    %3869 = vmatpush1.msra.mxu0 0.0
    %3870 = vmatprep.subr.mxu0 0.0
    %3871 = vmatpush1.msra.mxu0 0.0
    %3872 = vmatprep.subr.mxu0 0.0
    %3873 = vmatpush1.msra.mxu0 0.0
    %3874 = vmatprep.subr.mxu0 0.0
    %3875 = vmatpush1.msra.mxu0 0.0
    %3876 = vmatprep.subr.mxu0 0.0
    %3877 = vmatpush1.msra.mxu0 0.0
    %3878 = vmatprep.subr.mxu0 0.0
    %3879 = vmatpush1.msra.mxu0 0.0
    %3880 = vmatprep.subr.mxu0 0.0
    %3881 = vmatpush1.msra.mxu0 0.0
    %3882 = vmatprep.subr.mxu0 0.0
    %3883 = vmatpush1.msra.mxu0 0.0
    %3884 = vmatprep.subr.mxu0 0.0
    %3885 = vmatpush1.msra.mxu0 0.0
    %3886 = vmatprep.subr.mxu0 0.0
    %3887 = vmatpush1.msra.mxu0 0.0
    %3888 = vmatprep.subr.mxu0 0.0
    %3889 = vmatpush1.msra.mxu0 0.0
    %3890 = vmatprep.subr.mxu0 0.0
    %3891 = vmatpush1.msra.mxu0 0.0
    %3892 = vmatprep.subr.mxu0 0.0
    %3893 = vmatpush1.msra.mxu0 0.0
    %3894 = vmatprep.subr.mxu0 0.0
    %3895 = vmatpush1.msra.mxu0 0.0
    %3896 = vmatprep.subr.mxu0 0.0
    %3897 = vmatpush1.msra.mxu0 0.0
    %3898 = vmatprep.subr.mxu0 0.0
    %3899 = vmatpush1.msra.mxu0 0.0
    %3900 = vmatprep.subr.mxu0 0.0
    %3901 = vmatpush1.msra.mxu0 0.0
    %3902 = vmatprep.subr.mxu0 0.0
    %3903 = vmatpush1.msra.mxu0 0.0
    %3904 = vmatprep.subr.mxu0 0.0
    %3905 = vmatpush1.msra.mxu0 0.0
    %3906 = vmatprep.subr.mxu0 0.0
    %3907 = vmatpush1.msra.mxu0 0.0
    %3908 = vmatprep.subr.mxu0 0.0
    %3909 = vmatpush1.msra.mxu0 0.0
    %3910 = vmatprep.subr.mxu0 0.0
    %3911 = vmatpush1.msra.mxu0 0.0
    %3912 = vmatprep.subr.mxu0 0.0
    %3913 = vmatpush1.msra.mxu0 0.0
    %3914 = vmatprep.subr.mxu0 0.0
    %3915 = vmatpush1.msra.mxu0 0.0
    %3916 = vmatprep.subr.mxu0 0.0
    %3917 = vmatpush1.msra.mxu0 0.0
    %3918 = vmatprep.subr.mxu0 0.0
    %3919 = vmatpush1.msra.mxu0 0.0
    %3920 = vmatprep.subr.mxu0 0.0
    %3921 = vmatpush1.msra.mxu0 0.0
    %3922 = vmatprep.subr.mxu0 0.0
    %3923 = vmatpush1.msra.mxu0 0.0
    %3924 = vmatprep.mubr.f32.mxu0 0.0
    %3925 = vmatmul.mubr.f32.gmra.mrb[0].mxu0 %v836
    %v3926 = vpop.f32.mrb[0].mxu0
    %v3927 = vadd.f32 0.0, %v3926
    %v3928 = vpop.f32.mrb[0].mxu0
    %3929 = vmatprep.mubr.f32.mxu0 0.0
    %3930 = vmatmul.mubr.f32.gmra.mrb[0].mxu0 %v839
    %v3931 = vpop.f32.mrb[0].mxu0
    %v3932 = vadd.f32 0.0, %v3931
    %v3933 = vpop.f32.mrb[0].mxu0
    %3934 = vmatprep.mubr.f32.mxu0 0.0
    %3935 = vmatmul.mubr.f32.gmra.mrb[0].mxu0 %v842
    %v3936 = vpop.f32.mrb[0].mxu0
    %v3937 = vadd.f32 0.0, %v3936
    %v3938 = vpop.f32.mrb[0].mxu0
    %3939 = vmatprep.mubr.f32.mxu0 0.0
    %3940 = vmatmul.mubr.f32.gmra.mrb[0].mxu0 %v845
    %v3941 = vpop.f32.mrb[0].mxu0
    %v3942 = vadd.f32 0.0, %v3941
    %v3943 = vpop.f32.mrb[0].mxu0
    %3944 = vmatprep.mubr.f32.mxu0 0.0
    %3945 = vmatmul.mubr.f32.gmra.mrb[0].mxu0 %v848
    %v3946 = vpop.f32.mrb[0].mxu0
    %v3947 = vadd.f32 0.0, %v3946
    %v3948 = vpop.f32.mrb[0].mxu0
    %3949 = vmatprep.mubr.f32.mxu0 0.0
    %3950 = vmatmul.mubr.f32.gmra.mrb[0].mxu0 %v851
    %v3951 = vpop.f32.mrb[0].mxu0
    %v3952 = vadd.f32 0.0, %v3951
    %v3953 = vpop.f32.mrb[0].mxu0
    %3954 = vmatprep.mubr.f32.mxu0 0.0
    %3955 = vmatmul.mubr.f32.gmra.mrb[0].mxu0 %v854
    %v3956 = vpop.f32.mrb[0].mxu0
    %v3957 = vadd.f32 0.0, %v3956
    %v3958 = vpop.f32.mrb[0].mxu0
    %3959 = vmatprep.mubr.f32.mxu0 0.0
    %3960 = vmatmul.mubr.f32.gmra.mrb[0].mxu0 %v857
    %v3961 = vpop.f32.mrb[0].mxu0
    %v3962 = vadd.f32 0.0, %v3961
    %v3963 = vpop.f32.mrb[0].mxu0
    %3964 = vmatprep.mubr.f32.mxu0 0.0
    %3965 = vmatmul.mubr.f32.gmra.mrb[0].mxu0 %v860
    %v3966 = vpop.f32.mrb[0].mxu0
    %v3967 = vadd.f32 0.0, %v3966
    %v3968 = vpop.f32.mrb[0].mxu0
    %3969 = vmatprep.mubr.f32.mxu0 0.0
    %3970 = vmatmul.mubr.f32.gmra.mrb[0].mxu0 %v863
    %v3971 = vpop.f32.mrb[0].mxu0
    %v3972 = vadd.f32 0.0, %v3971
    %v3973 = vpop.f32.mrb[0].mxu0
    %3974 = vmatprep.mubr.f32.mxu0 0.0
    %3975 = vmatmul.mubr.f32.gmra.mrb[0].mxu0 %v866
    %v3976 = vpop.f32.mrb[0].mxu0
    %v3977 = vadd.f32 0.0, %v3976
    %v3978 = vpop.f32.mrb[0].mxu0
    %3979 = vmatprep.mubr.f32.mxu0 0.0
    %3980 = vmatmul.mubr.f32.gmra.mrb[0].mxu0 %v869
    %v3981 = vpop.f32.mrb[0].mxu0
    %v3982 = vadd.f32 0.0, %v3981
    %v3983 = vpop.f32.mrb[0].mxu0
    %3984 = vmatprep.mubr.f32.mxu0 0.0
    %3985 = vmatmul.mubr.f32.gmra.mrb[0].mxu0 %v872
    %v3986 = vpop.f32.mrb[0].mxu0
    %v3987 = vadd.f32 0.0, %v3986
    %v3988 = vpop.f32.mrb[0].mxu0
    %3989 = vmatprep.mubr.f32.mxu0 0.0
    %3990 = vmatmul.mubr.f32.gmra.mrb[0].mxu0 %v875
    %v3991 = vpop.f32.mrb[0].mxu0
    %v3992 = vadd.f32 0.0, %v3991
    %v3993 = vpop.f32.mrb[0].mxu0
    %3994 = vmatprep.mubr.f32.mxu0 0.0
    %3995 = vmatmul.mubr.f32.gmra.mrb[0].mxu0 %v878
    %v3996 = vpop.f32.mrb[0].mxu0
    %v3997 = vadd.f32 0.0, %v3996
    %v3998 = vpop.f32.mrb[0].mxu0
    %3999 = vmatprep.mubr.f32.mxu0 0.0
    %4000 = vmatmul.mubr.f32.gmra.mrb[0].mxu0 %v881
    %v4001 = vpop.f32.mrb[0].mxu0
    %v4002 = vadd.f32 0.0, %v4001
    %v4003 = vpop.f32.mrb[0].mxu0
    %4004 = vmatprep.mubr.f32.mxu0 0.0
    %4005 = vmatmul.mubr.f32.gmra.mrb[0].mxu0 %v884
    %v4006 = vpop.f32.mrb[0].mxu0
    %v4007 = vadd.f32 0.0, %v4006
    %v4008 = vpop.f32.mrb[0].mxu0
    %4009 = vmatprep.mubr.f32.mxu0 0.0
    %4010 = vmatmul.mubr.f32.gmra.mrb[0].mxu0 %v887
    %v4011 = vpop.f32.mrb[0].mxu0
    %v4012 = vadd.f32 0.0, %v4011
    %v4013 = vpop.f32.mrb[0].mxu0
    %4014 = vmatprep.mubr.f32.mxu0 0.0
    %4015 = vmatmul.mubr.f32.gmra.mrb[0].mxu0 %v890
    %v4016 = vpop.f32.mrb[0].mxu0
    %v4017 = vadd.f32 0.0, %v4016
    %v4018 = vpop.f32.mrb[0].mxu0
    %4019 = vmatprep.mubr.f32.mxu0 0.0
    %4020 = vmatmul.mubr.f32.gmra.mrb[0].mxu0 %v893
    %v4021 = vpop.f32.mrb[0].mxu0
    %v4022 = vadd.f32 0.0, %v4021
    %v4023 = vpop.f32.mrb[0].mxu0
    %4024 = vmatprep.mubr.f32.mxu0 0.0
    %4025 = vmatmul.mubr.f32.gmra.mrb[0].mxu0 %v896
    %v4026 = vpop.f32.mrb[0].mxu0
    %v4027 = vadd.f32 0.0, %v4026
    %v4028 = vpop.f32.mrb[0].mxu0
    %4029 = vmatprep.mubr.f32.mxu0 0.0
    %4030 = vmatmul.mubr.f32.gmra.mrb[0].mxu0 %v899
    %v4031 = vpop.f32.mrb[0].mxu0
    %v4032 = vadd.f32 0.0, %v4031
    %v4033 = vpop.f32.mrb[0].mxu0
    %4034 = vmatprep.mubr.f32.mxu0 0.0
    %4035 = vmatmul.mubr.f32.gmra.mrb[0].mxu0 %v902
    %v4036 = vpop.f32.mrb[0].mxu0
    %v4037 = vadd.f32 0.0, %v4036
    %v4038 = vpop.f32.mrb[0].mxu0
    %4039 = vmatprep.mubr.f32.mxu0 0.0
    %4040 = vmatmul.mubr.f32.gmra.mrb[0].mxu0 %v905
    %v4041 = vpop.f32.mrb[0].mxu0
    %v4042 = vadd.f32 0.0, %v4041
    %v4043 = vpop.f32.mrb[0].mxu0
    %4044 = vmatprep.mubr.f32.mxu0 0.0
    %4045 = vmatmul.mubr.f32.gmra.mrb[0].mxu0 %v908
    %v4046 = vpop.f32.mrb[0].mxu0
    %v4047 = vadd.f32 0.0, %v4046
    %v4048 = vpop.f32.mrb[0].mxu0
    %4049 = vmatprep.mubr.f32.mxu0 0.0
    %4050 = vmatmul.mubr.f32.gmra.mrb[0].mxu0 %v911
    %v4051 = vpop.f32.mrb[0].mxu0
    %v4052 = vadd.f32 0.0, %v4051
    %v4053 = vpop.f32.mrb[0].mxu0
    %4054 = vmatprep.mubr.f32.mxu0 0.0
    %4055 = vmatmul.mubr.f32.gmra.mrb[0].mxu0 %v914
    %v4056 = vpop.f32.mrb[0].mxu0
    %v4057 = vadd.f32 0.0, %v4056
    %v4058 = vpop.f32.mrb[0].mxu0
    %4059 = vmatprep.mubr.f32.mxu0 0.0
    %4060 = vmatmul.mubr.f32.gmra.mrb[0].mxu0 %v917
    %v4061 = vpop.f32.mrb[0].mxu0
    %v4062 = vadd.f32 0.0, %v4061
    %v4063 = vpop.f32.mrb[0].mxu0
    %4064 = vmatprep.mubr.f32.mxu0 0.0
    %4065 = vmatmul.mubr.f32.gmra.mrb[0].mxu0 %v920
    %v4066 = vpop.f32.mrb[0].mxu0
    %v4067 = vadd.f32 0.0, %v4066
    %v4068 = vpop.f32.mrb[0].mxu0
    %4069 = vmatprep.mubr.f32.mxu0 0.0
    %4070 = vmatmul.mubr.f32.gmra.mrb[0].mxu0 %v923
    %v4071 = vpop.f32.mrb[0].mxu0
    %v4072 = vadd.f32 0.0, %v4071
    %v4073 = vpop.f32.mrb[0].mxu0
    %4074 = vmatprep.mubr.f32.mxu0 0.0
    %4075 = vmatmul.mubr.f32.gmra.mrb[0].mxu0 %v926
    %v4076 = vpop.f32.mrb[0].mxu0
    %v4077 = vadd.f32 0.0, %v4076
    %v4078 = vpop.f32.mrb[0].mxu0
    %4079 = vmatprep.mubr.f32.mxu0 0.0
    %4080 = vmatmul.mubr.f32.gmra.mrb[0].mxu0 %v929
    %v4081 = vpop.f32.mrb[0].mxu0
    %v4082 = vadd.f32 0.0, %v4081
    %v4083 = vpop.f32.mrb[0].mxu0
    %4084 = vmatprep.mubr.f32.mxu0 0.0
    %4085 = vmatmul.mubr.f32.gmra.mrb[0].mxu0 %v932
    %v4086 = vpop.f32.mrb[0].mxu0
    %v4087 = vadd.f32 0.0, %v4086
    %v4088 = vpop.f32.mrb[0].mxu0
    %4089 = vmatprep.mubr.f32.mxu0 0.0
    %4090 = vmatmul.mubr.f32.gmra.mrb[0].mxu0 %v935
    %v4091 = vpop.f32.mrb[0].mxu0
    %v4092 = vadd.f32 0.0, %v4091
    %v4093 = vpop.f32.mrb[0].mxu0
    %4094 = vmatprep.mubr.f32.mxu0 0.0
    %4095 = vmatmul.mubr.f32.gmra.mrb[0].mxu0 %v938
    %v4096 = vpop.f32.mrb[0].mxu0
    %v4097 = vadd.f32 0.0, %v4096
    %v4098 = vpop.f32.mrb[0].mxu0
    %4099 = vmatprep.mubr.f32.mxu0 0.0
    %4100 = vmatmul.mubr.f32.gmra.mrb[0].mxu0 %v941
    %v4101 = vpop.f32.mrb[0].mxu0
    %v4102 = vadd.f32 0.0, %v4101
    %v4103 = vpop.f32.mrb[0].mxu0
    %4104 = vmatprep.mubr.f32.mxu0 0.0
    %4105 = vmatmul.mubr.f32.gmra.mrb[0].mxu0 %v944
    %v4106 = vpop.f32.mrb[0].mxu0
    %v4107 = vadd.f32 0.0, %v4106
    %v4108 = vpop.f32.mrb[0].mxu0
    %4109 = vmatprep.mubr.f32.mxu0 0.0
    %4110 = vmatmul.mubr.f32.gmra.mrb[0].mxu0 %v947
    %v4111 = vpop.f32.mrb[0].mxu0
    %v4112 = vadd.f32 0.0, %v4111
    %v4113 = vpop.f32.mrb[0].mxu0
    %4114 = vmatprep.mubr.f32.mxu0 0.0
    %4115 = vmatmul.mubr.f32.gmra.mrb[0].mxu0 %v950
    %v4116 = vpop.f32.mrb[0].mxu0
    %v4117 = vadd.f32 0.0, %v4116
    %v4118 = vpop.f32.mrb[0].mxu0
    %4119 = vmatprep.mubr.f32.mxu0 0.0
    %4120 = vmatmul.mubr.f32.gmra.mrb[0].mxu0 %v953
    %v4121 = vpop.f32.mrb[0].mxu0
    %v4122 = vadd.f32 0.0, %v4121
    %v4123 = vpop.f32.mrb[0].mxu0
    %4124 = vmatprep.mubr.f32.mxu0 0.0
    %4125 = vmatmul.mubr.f32.gmra.mrb[0].mxu0 %v956
    %v4126 = vpop.f32.mrb[0].mxu0
    %v4127 = vadd.f32 0.0, %v4126
    %v4128 = vpop.f32.mrb[0].mxu0
    %4129 = vmatprep.mubr.f32.mxu0 0.0
    %4130 = vmatmul.mubr.f32.gmra.mrb[0].mxu0 %v959
    %v4131 = vpop.f32.mrb[0].mxu0
    %v4132 = vadd.f32 0.0, %v4131
    %v4133 = vpop.f32.mrb[0].mxu0
    %4134 = vmatprep.mubr.f32.mxu0 0.0
    %4135 = vmatmul.mubr.f32.gmra.mrb[0].mxu0 %v962
    %v4136 = vpop.f32.mrb[0].mxu0
    %v4137 = vadd.f32 0.0, %v4136
    %v4138 = vpop.f32.mrb[0].mxu0
    %4139 = vmatprep.mubr.f32.mxu0 0.0
    %4140 = vmatmul.mubr.f32.gmra.mrb[0].mxu0 %v965
    %v4141 = vpop.f32.mrb[0].mxu0
    %v4142 = vadd.f32 0.0, %v4141
    %v4143 = vpop.f32.mrb[0].mxu0
    %4144 = vmatprep.mubr.f32.mxu0 0.0
    %4145 = vmatmul.mubr.f32.gmra.mrb[0].mxu0 %v968
    %v4146 = vpop.f32.mrb[0].mxu0
    %v4147 = vadd.f32 0.0, %v4146
    %v4148 = vpop.f32.mrb[0].mxu0
    %4149 = vmatprep.mubr.f32.mxu0 0.0
    %4150 = vmatmul.mubr.f32.gmra.mrb[0].mxu0 %v971
    %v4151 = vpop.f32.mrb[0].mxu0
    %v4152 = vadd.f32 0.0, %v4151
    %v4153 = vpop.f32.mrb[0].mxu0
    %4154 = vmatprep.mubr.f32.mxu0 0.0
    %4155 = vmatmul.mubr.f32.gmra.mrb[0].mxu0 %v974
    %v4156 = vpop.f32.mrb[0].mxu0
    %v4157 = vadd.f32 0.0, %v4156
    %v4158 = vpop.f32.mrb[0].mxu0
    %4159 = vmatprep.mubr.f32.mxu0 0.0
    %4160 = vmatmul.mubr.f32.gmra.mrb[0].mxu0 %v977
    %v4161 = vpop.f32.mrb[0].mxu0
    %v4162 = vadd.f32 0.0, %v4161
    %v4163 = vpop.f32.mrb[0].mxu0
    %4164 = vmatprep.mubr.f32.mxu0 0.0
    %4165 = vmatmul.mubr.f32.gmra.mrb[0].mxu0 %v980
    %v4166 = vpop.f32.mrb[0].mxu0
    %v4167 = vadd.f32 0.0, %v4166
    %v4168 = vpop.f32.mrb[0].mxu0
    %4169 = vmatprep.mubr.f32.mxu0 0.0
    %4170 = vmatmul.mubr.f32.gmra.mrb[0].mxu0 %v983
    %v4171 = vpop.f32.mrb[0].mxu0
    %v4172 = vadd.f32 0.0, %v4171
    %v4173 = vpop.f32.mrb[0].mxu0
    %4174 = vmatprep.mubr.f32.mxu0 0.0
    %4175 = vmatmul.mubr.f32.gmra.mrb[0].mxu0 %v986
    %v4176 = vpop.f32.mrb[0].mxu0
    %v4177 = vadd.f32 0.0, %v4176
    %v4178 = vpop.f32.mrb[0].mxu0
    %4179 = vmatprep.mubr.f32.mxu0 0.0
    %4180 = vmatmul.mubr.f32.gmra.mrb[0].mxu0 %v989
    %v4181 = vpop.f32.mrb[0].mxu0
    %v4182 = vadd.f32 0.0, %v4181
    %v4183 = vpop.f32.mrb[0].mxu0
    %4184 = vmatprep.mubr.f32.mxu0 0.0
    %4185 = vmatmul.mubr.f32.gmra.mrb[0].mxu0 %v992
    %v4186 = vpop.f32.mrb[0].mxu0
    %v4187 = vadd.f32 0.0, %v4186
    %v4188 = vpop.f32.mrb[0].mxu0
    %4189 = vmatprep.mubr.f32.mxu0 0.0
    %4190 = vmatmul.mubr.f32.gmra.mrb[0].mxu0 %v995
    %v4191 = vpop.f32.mrb[0].mxu0
    %v4192 = vadd.f32 0.0, %v4191
    %v4193 = vpop.f32.mrb[0].mxu0
    %4194 = vmatprep.mubr.f32.mxu0 0.0
    %4195 = vmatmul.mubr.f32.gmra.mrb[0].mxu0 %v998
    %v4196 = vpop.f32.mrb[0].mxu0
    %v4197 = vadd.f32 0.0, %v4196
    %v4198 = vpop.f32.mrb[0].mxu0
    %4199 = vmatprep.mubr.f32.mxu0 0.0
    %4200 = vmatmul.mubr.f32.gmra.mrb[0].mxu0 %v1001
    %v4201 = vpop.f32.mrb[0].mxu0
    %v4202 = vadd.f32 0.0, %v4201
    %v4203 = vpop.f32.mrb[0].mxu0
    %4204 = vmatprep.mubr.f32.mxu0 0.0
    %4205 = vmatmul.mubr.f32.gmra.mrb[0].mxu0 %v1004
    %v4206 = vpop.f32.mrb[0].mxu0
    %v4207 = vadd.f32 0.0, %v4206
    %v4208 = vpop.f32.mrb[0].mxu0
    %4209 = vmatprep.mubr.f32.mxu0 0.0
    %4210 = vmatmul.mubr.f32.gmra.mrb[0].mxu0 %v1007
    %v4211 = vpop.f32.mrb[0].mxu0
    %v4212 = vadd.f32 0.0, %v4211
    %v4213 = vpop.f32.mrb[0].mxu0
    %4214 = vmatprep.mubr.f32.mxu0 0.0
    %4215 = vmatmul.mubr.f32.gmra.mrb[0].mxu0 %v1010
    %v4216 = vpop.f32.mrb[0].mxu0
    %v4217 = vadd.f32 0.0, %v4216
    %v4218 = vpop.f32.mrb[0].mxu0
    %4219 = vmatprep.mubr.f32.mxu0 0.0
    %4220 = vmatmul.mubr.f32.gmra.mrb[0].mxu0 %v1013
    %v4221 = vpop.f32.mrb[0].mxu0
    %v4222 = vadd.f32 0.0, %v4221
    %v4223 = vpop.f32.mrb[0].mxu0
    %4224 = vmatprep.mubr.f32.mxu0 0.0
    %4225 = vmatmul.mubr.f32.gmra.mrb[0].mxu0 %v1016
    %v4226 = vpop.f32.mrb[0].mxu0
    %v4227 = vadd.f32 0.0, %v4226
    %v4228 = vpop.f32.mrb[0].mxu0
    %4229 = vmatprep.mubr.f32.mxu0 0.0
    %4230 = vmatmul.mubr.f32.gmra.mrb[0].mxu0 %v1019
    %v4231 = vpop.f32.mrb[0].mxu0
    %v4232 = vadd.f32 0.0, %v4231
    %v4233 = vpop.f32.mrb[0].mxu0
    %4234 = vmatprep.mubr.f32.mxu0 0.0
    %4235 = vmatmul.mubr.f32.gmra.mrb[0].mxu0 %v1022
    %v4236 = vpop.f32.mrb[0].mxu0
    %v4237 = vadd.f32 0.0, %v4236
    %v4238 = vpop.f32.mrb[0].mxu0
    %4239 = vmatprep.mubr.f32.mxu0 0.0
    %4240 = vmatmul.mubr.f32.gmra.mrb[0].mxu0 %v1025
    %v4241 = vpop.f32.mrb[0].mxu0
    %v4242 = vadd.f32 0.0, %v4241
    %v4243 = vpop.f32.mrb[0].mxu0
    %4244 = vdwg.mxu0
    %v4309 = vrot.slane %v3927, 7
    %v4310 = vrot.slane %v3932, 7
    %v4311 = vsel %vm316, %v4309, %v4310
    %v4312 = vrot.slane %v3937, 7
    %v4313 = vsel %vm316, %v4310, %v4312
    %v4314 = vrot.slane %v3942, 7
    %v4315 = vsel %vm316, %v4312, %v4314
    %v4316 = vrot.slane %v3947, 7
    %v4317 = vsel %vm316, %v4314, %v4316
    %v4318 = vrot.slane %v3952, 7
    %v4319 = vsel %vm316, %v4316, %v4318
    %v4320 = vrot.slane %v3957, 7
    %v4321 = vsel %vm316, %v4318, %v4320
    %v4322 = vrot.slane %v3962, 7
    %v4323 = vsel %vm316, %v4320, %v4322
    %v4324 = vrot.slane %v3967, 7
    %v4325 = vsel %vm316, %v4322, %v4324
    %v4326 = vrot.slane %v3972, 7
    %v4327 = vsel %vm316, %v4324, %v4326
    %v4328 = vrot.slane %v3977, 7
    %v4329 = vsel %vm316, %v4326, %v4328
    %v4330 = vrot.slane %v3982, 7
    %v4331 = vsel %vm316, %v4328, %v4330
    %v4332 = vrot.slane %v3987, 7
    %v4333 = vsel %vm316, %v4330, %v4332
    %v4334 = vrot.slane %v3992, 7
    %v4335 = vsel %vm316, %v4332, %v4334
    %v4336 = vrot.slane %v3997, 7
    %v4337 = vsel %vm316, %v4334, %v4336
    %v4338 = vrot.slane %v4002, 7
    %v4339 = vsel %vm316, %v4336, %v4338
    %v4340 = vrot.slane %v4007, 7
    %v4341 = vsel %vm316, %v4338, %v4340
    %v4342 = vrot.slane %v4012, 7
    %v4343 = vsel %vm316, %v4340, %v4342
    %v4344 = vrot.slane %v4017, 7
    %v4345 = vsel %vm316, %v4342, %v4344
    %v4346 = vrot.slane %v4022, 7
    %v4347 = vsel %vm316, %v4344, %v4346
    %v4348 = vrot.slane %v4027, 7
    %v4349 = vsel %vm316, %v4346, %v4348
    %v4350 = vrot.slane %v4032, 7
    %v4351 = vsel %vm316, %v4348, %v4350
    %v4352 = vrot.slane %v4037, 7
    %v4353 = vsel %vm316, %v4350, %v4352
    %v4354 = vrot.slane %v4042, 7
    %v4355 = vsel %vm316, %v4352, %v4354
    %v4356 = vrot.slane %v4047, 7
    %v4357 = vsel %vm316, %v4354, %v4356
    %v4358 = vrot.slane %v4052, 7
    %v4359 = vsel %vm316, %v4356, %v4358
    %v4360 = vrot.slane %v4057, 7
    %v4361 = vsel %vm316, %v4358, %v4360
    %v4362 = vrot.slane %v4062, 7
    %v4363 = vsel %vm316, %v4360, %v4362
    %v4364 = vrot.slane %v4067, 7
    %v4365 = vsel %vm316, %v4362, %v4364
    %v4366 = vrot.slane %v4072, 7
    %v4367 = vsel %vm316, %v4364, %v4366
    %v4368 = vrot.slane %v4077, 7
    %v4369 = vsel %vm316, %v4366, %v4368
    %v4370 = vrot.slane %v4082, 7
    %v4371 = vsel %vm316, %v4368, %v4370
    %v4372 = vrot.slane %v4087, 7
    %v4373 = vsel %vm316, %v4370, %v4372
    %v4374 = vrot.slane %v4092, 7
    %v4375 = vsel %vm316, %v4372, %v4374
    %v4376 = vrot.slane %v4097, 7
    %v4377 = vsel %vm316, %v4374, %v4376
    %v4378 = vrot.slane %v4102, 7
    %v4379 = vsel %vm316, %v4376, %v4378
    %v4380 = vrot.slane %v4107, 7
    %v4381 = vsel %vm316, %v4378, %v4380
    %v4382 = vrot.slane %v4112, 7
    %v4383 = vsel %vm316, %v4380, %v4382
    %v4384 = vrot.slane %v4117, 7
    %v4385 = vsel %vm316, %v4382, %v4384
    %v4386 = vrot.slane %v4122, 7
    %v4387 = vsel %vm316, %v4384, %v4386
    %v4388 = vrot.slane %v4127, 7
    %v4389 = vsel %vm316, %v4386, %v4388
    %v4390 = vrot.slane %v4132, 7
    %v4391 = vsel %vm316, %v4388, %v4390
    %v4392 = vrot.slane %v4137, 7
    %v4393 = vsel %vm316, %v4390, %v4392
    %v4394 = vrot.slane %v4142, 7
    %v4395 = vsel %vm316, %v4392, %v4394
    %v4396 = vrot.slane %v4147, 7
    %v4397 = vsel %vm316, %v4394, %v4396
    %v4398 = vrot.slane %v4152, 7
    %v4399 = vsel %vm316, %v4396, %v4398
    %v4400 = vrot.slane %v4157, 7
    %v4401 = vsel %vm316, %v4398, %v4400
    %v4402 = vrot.slane %v4162, 7
    %v4403 = vsel %vm316, %v4400, %v4402
    %v4404 = vrot.slane %v4167, 7
    %v4405 = vsel %vm316, %v4402, %v4404
    %v4406 = vrot.slane %v4172, 7
    %v4407 = vsel %vm316, %v4404, %v4406
    %v4408 = vrot.slane %v4177, 7
    %v4409 = vsel %vm316, %v4406, %v4408
    %v4410 = vrot.slane %v4182, 7
    %v4411 = vsel %vm316, %v4408, %v4410
    %v4412 = vrot.slane %v4187, 7
    %v4413 = vsel %vm316, %v4410, %v4412
    %v4414 = vrot.slane %v4192, 7
    %v4415 = vsel %vm316, %v4412, %v4414
    %v4416 = vrot.slane %v4197, 7
    %v4417 = vsel %vm316, %v4414, %v4416
    %v4418 = vrot.slane %v4202, 7
    %v4419 = vsel %vm316, %v4416, %v4418
    %v4420 = vrot.slane %v4207, 7
    %v4421 = vsel %vm316, %v4418, %v4420
    %v4422 = vrot.slane %v4212, 7
    %v4423 = vsel %vm316, %v4420, %v4422
    %v4424 = vrot.slane %v4217, 7
    %v4425 = vsel %vm316, %v4422, %v4424
    %v4426 = vrot.slane %v4222, 7
    %v4427 = vsel %vm316, %v4424, %v4426
    %v4428 = vrot.slane %v4227, 7
    %v4429 = vsel %vm316, %v4426, %v4428
    %v4430 = vrot.slane %v4232, 7
    %v4431 = vsel %vm316, %v4428, %v4430
    %v4432 = vrot.slane %v4237, 7
    %v4433 = vsel %vm316, %v4430, %v4432
    %v4434 = vrot.slane %v4242, 7
    %v4435 = vsel %vm316, %v4432, %v4434
    %v4500 = vsel %vm316, 0.0, %v4309
    %4501 = vset.pattern.permute.xlu0 3
    %4502 = vperm.xlu0 %4501, %v769
    %v4503 = vpop.permute.xlu0 %4502
    %4505 = vset.pattern.permute.xlu0 3
    %4506 = vperm.xlu0 %4505, %v770
    %v4507 = vpop.permute.xlu0 %4506
    %4509 = vset.pattern.permute.xlu0 3
    %4510 = vperm.xlu0 %4509, %v771
    %v4511 = vpop.permute.xlu0 %4510
    %4513 = vset.pattern.permute.xlu0 3
    %4514 = vperm.xlu0 %4513, %v772
    %v4515 = vpop.permute.xlu0 %4514
    %4517 = vset.pattern.permute.xlu0 3
    %4518 = vperm.xlu0 %4517, %v773
    %v4519 = vpop.permute.xlu0 %4518
    %4521 = vset.pattern.permute.xlu0 3
    %4522 = vperm.xlu0 %4521, %v774
    %v4523 = vpop.permute.xlu0 %4522
    %4525 = vset.pattern.permute.xlu0 3
    %4526 = vperm.xlu0 %4525, %v775
    %v4527 = vpop.permute.xlu0 %4526
    %4529 = vset.pattern.permute.xlu0 3
    %4530 = vperm.xlu0 %4529, %v776
    %v4531 = vpop.permute.xlu0 %4530
    %4533 = vset.pattern.permute.xlu0 3
    %4534 = vperm.xlu0 %4533, %v777
    %v4535 = vpop.permute.xlu0 %4534
    %4537 = vset.pattern.permute.xlu0 3
    %4538 = vperm.xlu0 %4537, %v778
    %v4539 = vpop.permute.xlu0 %4538
    %4541 = vset.pattern.permute.xlu0 3
    %4542 = vperm.xlu0 %4541, %v779
    %v4543 = vpop.permute.xlu0 %4542
    %4545 = vset.pattern.permute.xlu0 3
    %4546 = vperm.xlu0 %4545, %v780
    %v4547 = vpop.permute.xlu0 %4546
    %4549 = vset.pattern.permute.xlu0 3
    %4550 = vperm.xlu0 %4549, %v781
    %v4551 = vpop.permute.xlu0 %4550
    %4553 = vset.pattern.permute.xlu0 3
    %4554 = vperm.xlu0 %4553, %v782
    %v4555 = vpop.permute.xlu0 %4554
    %4557 = vset.pattern.permute.xlu0 3
    %4558 = vperm.xlu0 %4557, %v783
    %v4559 = vpop.permute.xlu0 %4558
    %4561 = vset.pattern.permute.xlu0 3
    %4562 = vperm.xlu0 %4561, %v784
    %v4563 = vpop.permute.xlu0 %4562
    %4565 = vset.pattern.permute.xlu0 3
    %4566 = vperm.xlu0 %4565, %v785
    %v4567 = vpop.permute.xlu0 %4566
    %4569 = vset.pattern.permute.xlu0 3
    %4570 = vperm.xlu0 %4569, %v786
    %v4571 = vpop.permute.xlu0 %4570
    %4573 = vset.pattern.permute.xlu0 3
    %4574 = vperm.xlu0 %4573, %v787
    %v4575 = vpop.permute.xlu0 %4574
    %4577 = vset.pattern.permute.xlu0 3
    %4578 = vperm.xlu0 %4577, %v788
    %v4579 = vpop.permute.xlu0 %4578
    %4581 = vset.pattern.permute.xlu0 3
    %4582 = vperm.xlu0 %4581, %v789
    %v4583 = vpop.permute.xlu0 %4582
    %4585 = vset.pattern.permute.xlu0 3
    %4586 = vperm.xlu0 %4585, %v790
    %v4587 = vpop.permute.xlu0 %4586
    %4589 = vset.pattern.permute.xlu0 3
    %4590 = vperm.xlu0 %4589, %v791
    %v4591 = vpop.permute.xlu0 %4590
    %4593 = vset.pattern.permute.xlu0 3
    %4594 = vperm.xlu0 %4593, %v792
    %v4595 = vpop.permute.xlu0 %4594
    %4597 = vset.pattern.permute.xlu0 3
    %4598 = vperm.xlu0 %4597, %v793
    %v4599 = vpop.permute.xlu0 %4598
    %4601 = vset.pattern.permute.xlu0 3
    %4602 = vperm.xlu0 %4601, %v794
    %v4603 = vpop.permute.xlu0 %4602
    %4605 = vset.pattern.permute.xlu0 3
    %4606 = vperm.xlu0 %4605, %v795
    %v4607 = vpop.permute.xlu0 %4606
    %4609 = vset.pattern.permute.xlu0 3
    %4610 = vperm.xlu0 %4609, %v796
    %v4611 = vpop.permute.xlu0 %4610
    %4613 = vset.pattern.permute.xlu0 3
    %4614 = vperm.xlu0 %4613, %v797
    %v4615 = vpop.permute.xlu0 %4614
    %4617 = vset.pattern.permute.xlu0 3
    %4618 = vperm.xlu0 %4617, %v798
    %v4619 = vpop.permute.xlu0 %4618
    %4621 = vset.pattern.permute.xlu0 3
    %4622 = vperm.xlu0 %4621, %v799
    %v4623 = vpop.permute.xlu0 %4622
    %4625 = vset.pattern.permute.xlu0 3
    %4626 = vperm.xlu0 %4625, %v800
    %v4627 = vpop.permute.xlu0 %4626
    %4629 = vset.pattern.permute.xlu0 3
    %4630 = vperm.xlu0 %4629, %v801
    %v4631 = vpop.permute.xlu0 %4630
    %4633 = vset.pattern.permute.xlu0 3
    %4634 = vperm.xlu0 %4633, %v802
    %v4635 = vpop.permute.xlu0 %4634
    %4637 = vset.pattern.permute.xlu0 3
    %4638 = vperm.xlu0 %4637, %v803
    %v4639 = vpop.permute.xlu0 %4638
    %4641 = vset.pattern.permute.xlu0 3
    %4642 = vperm.xlu0 %4641, %v804
    %v4643 = vpop.permute.xlu0 %4642
    %4645 = vset.pattern.permute.xlu0 3
    %4646 = vperm.xlu0 %4645, %v805
    %v4647 = vpop.permute.xlu0 %4646
    %4649 = vset.pattern.permute.xlu0 3
    %4650 = vperm.xlu0 %4649, %v806
    %v4651 = vpop.permute.xlu0 %4650
    %4653 = vset.pattern.permute.xlu0 3
    %4654 = vperm.xlu0 %4653, %v807
    %v4655 = vpop.permute.xlu0 %4654
    %4657 = vset.pattern.permute.xlu0 3
    %4658 = vperm.xlu0 %4657, %v808
    %v4659 = vpop.permute.xlu0 %4658
    %4661 = vset.pattern.permute.xlu0 3
    %4662 = vperm.xlu0 %4661, %v809
    %v4663 = vpop.permute.xlu0 %4662
    %4665 = vset.pattern.permute.xlu0 3
    %4666 = vperm.xlu0 %4665, %v810
    %v4667 = vpop.permute.xlu0 %4666
    %4669 = vset.pattern.permute.xlu0 3
    %4670 = vperm.xlu0 %4669, %v811
    %v4671 = vpop.permute.xlu0 %4670
    %4673 = vset.pattern.permute.xlu0 3
    %4674 = vperm.xlu0 %4673, %v812
    %v4675 = vpop.permute.xlu0 %4674
    %4677 = vset.pattern.permute.xlu0 3
    %4678 = vperm.xlu0 %4677, %v813
    %v4679 = vpop.permute.xlu0 %4678
    %4681 = vset.pattern.permute.xlu0 3
    %4682 = vperm.xlu0 %4681, %v814
    %v4683 = vpop.permute.xlu0 %4682
    %4685 = vset.pattern.permute.xlu0 3
    %4686 = vperm.xlu0 %4685, %v815
    %v4687 = vpop.permute.xlu0 %4686
    %4689 = vset.pattern.permute.xlu0 3
    %4690 = vperm.xlu0 %4689, %v816
    %v4691 = vpop.permute.xlu0 %4690
    %4693 = vset.pattern.permute.xlu0 3
    %4694 = vperm.xlu0 %4693, %v817
    %v4695 = vpop.permute.xlu0 %4694
    %4697 = vset.pattern.permute.xlu0 3
    %4698 = vperm.xlu0 %4697, %v818
    %v4699 = vpop.permute.xlu0 %4698
    %4701 = vset.pattern.permute.xlu0 3
    %4702 = vperm.xlu0 %4701, %v819
    %v4703 = vpop.permute.xlu0 %4702
    %4705 = vset.pattern.permute.xlu0 3
    %4706 = vperm.xlu0 %4705, %v820
    %v4707 = vpop.permute.xlu0 %4706
    %4709 = vset.pattern.permute.xlu0 3
    %4710 = vperm.xlu0 %4709, %v821
    %v4711 = vpop.permute.xlu0 %4710
    %4713 = vset.pattern.permute.xlu0 3
    %4714 = vperm.xlu0 %4713, %v822
    %v4715 = vpop.permute.xlu0 %4714
    %4717 = vset.pattern.permute.xlu0 3
    %4718 = vperm.xlu0 %4717, %v823
    %v4719 = vpop.permute.xlu0 %4718
    %4721 = vset.pattern.permute.xlu0 3
    %4722 = vperm.xlu0 %4721, %v824
    %v4723 = vpop.permute.xlu0 %4722
    %4725 = vset.pattern.permute.xlu0 3
    %4726 = vperm.xlu0 %4725, %v825
    %v4727 = vpop.permute.xlu0 %4726
    %4729 = vset.pattern.permute.xlu0 3
    %4730 = vperm.xlu0 %4729, %v826
    %v4731 = vpop.permute.xlu0 %4730
    %4733 = vset.pattern.permute.xlu0 3
    %4734 = vperm.xlu0 %4733, %v827
    %v4735 = vpop.permute.xlu0 %4734
    %4737 = vset.pattern.permute.xlu0 3
    %4738 = vperm.xlu0 %4737, %v828
    %v4739 = vpop.permute.xlu0 %4738
    %4741 = vset.pattern.permute.xlu0 3
    %4742 = vperm.xlu0 %4741, %v829
    %v4743 = vpop.permute.xlu0 %4742
    %4745 = vset.pattern.permute.xlu0 3
    %4746 = vperm.xlu0 %4745, %v830
    %v4747 = vpop.permute.xlu0 %4746
    %4749 = vset.pattern.permute.xlu0 3
    %4750 = vperm.xlu0 %4749, %v831
    %v4751 = vpop.permute.xlu0 %4750
    %4753 = vset.pattern.permute.xlu0 3
    %4754 = vperm.xlu0 %4753, %v832
    %v4755 = vpop.permute.xlu0 %4754
    %v4757 = vmul.f32 %v4500, %v4503
    %v4758 = vmul.f32 %v4311, %v4507
    %v4759 = vmul.f32 %v4313, %v4511
    %v4760 = vmul.f32 %v4315, %v4515
    %v4761 = vmul.f32 %v4317, %v4519
    %v4762 = vmul.f32 %v4319, %v4523
    %v4763 = vmul.f32 %v4321, %v4527
    %v4764 = vmul.f32 %v4323, %v4531
    %v4765 = vmul.f32 %v4325, %v4535
    %v4766 = vmul.f32 %v4327, %v4539
    %v4767 = vmul.f32 %v4329, %v4543
    %v4768 = vmul.f32 %v4331, %v4547
    %v4769 = vmul.f32 %v4333, %v4551
    %v4770 = vmul.f32 %v4335, %v4555
    %v4771 = vmul.f32 %v4337, %v4559
    %v4772 = vmul.f32 %v4339, %v4563
    %v4773 = vmul.f32 %v4341, %v4567
    %v4774 = vmul.f32 %v4343, %v4571
    %v4775 = vmul.f32 %v4345, %v4575
    %v4776 = vmul.f32 %v4347, %v4579
    %v4777 = vmul.f32 %v4349, %v4583
    %v4778 = vmul.f32 %v4351, %v4587
    %v4779 = vmul.f32 %v4353, %v4591
    %v4780 = vmul.f32 %v4355, %v4595
    %v4781 = vmul.f32 %v4357, %v4599
    %v4782 = vmul.f32 %v4359, %v4603
    %v4783 = vmul.f32 %v4361, %v4607
    %v4784 = vmul.f32 %v4363, %v4611
    %v4785 = vmul.f32 %v4365, %v4615
    %v4786 = vmul.f32 %v4367, %v4619
    %v4787 = vmul.f32 %v4369, %v4623
    %v4788 = vmul.f32 %v4371, %v4627
    %v4789 = vmul.f32 %v4373, %v4631
    %v4790 = vmul.f32 %v4375, %v4635
    %v4791 = vmul.f32 %v4377, %v4639
    %v4792 = vmul.f32 %v4379, %v4643
    %v4793 = vmul.f32 %v4381, %v4647
    %v4794 = vmul.f32 %v4383, %v4651
    %v4795 = vmul.f32 %v4385, %v4655
    %v4796 = vmul.f32 %v4387, %v4659
    %v4797 = vmul.f32 %v4389, %v4663
    %v4798 = vmul.f32 %v4391, %v4667
    %v4799 = vmul.f32 %v4393, %v4671
    %v4800 = vmul.f32 %v4395, %v4675
    %v4801 = vmul.f32 %v4397, %v4679
    %v4802 = vmul.f32 %v4399, %v4683
    %v4803 = vmul.f32 %v4401, %v4687
    %v4804 = vmul.f32 %v4403, %v4691
    %v4805 = vmul.f32 %v4405, %v4695
    %v4806 = vmul.f32 %v4407, %v4699
    %v4807 = vmul.f32 %v4409, %v4703
    %v4808 = vmul.f32 %v4411, %v4707
    %v4809 = vmul.f32 %v4413, %v4711
    %v4810 = vmul.f32 %v4415, %v4715
    %v4811 = vmul.f32 %v4417, %v4719
    %v4812 = vmul.f32 %v4419, %v4723
    %v4813 = vmul.f32 %v4421, %v4727
    %v4814 = vmul.f32 %v4423, %v4731
    %v4815 = vmul.f32 %v4425, %v4735
    %v4816 = vmul.f32 %v4427, %v4739
    %v4817 = vmul.f32 %v4429, %v4743
    %v4818 = vmul.f32 %v4431, %v4747
    %v4819 = vmul.f32 %v4433, %v4751
    %v4820 = vmul.f32 %v4435, %v4755
    %v4821 = vadd.f32 %v3791, %v4757
    %v4822 = vadd.f32 %v3792, %v4758
    %v4823 = vadd.f32 %v3793, %v4759
    %v4824 = vadd.f32 %v3794, %v4760
    %v4825 = vadd.f32 %v3795, %v4761
    %v4826 = vadd.f32 %v3796, %v4762
    %v4827 = vadd.f32 %v3797, %v4763
    %v4828 = vadd.f32 %v3798, %v4764
    %v4829 = vadd.f32 %v3799, %v4765
    %v4830 = vadd.f32 %v3800, %v4766
    %v4831 = vadd.f32 %v3801, %v4767
    %v4832 = vadd.f32 %v3802, %v4768
    %v4833 = vadd.f32 %v3803, %v4769
    %v4834 = vadd.f32 %v3804, %v4770
    %v4835 = vadd.f32 %v3805, %v4771
    %v4836 = vadd.f32 %v3806, %v4772
    %v4837 = vadd.f32 %v3807, %v4773
    %v4838 = vadd.f32 %v3808, %v4774
    %v4839 = vadd.f32 %v3809, %v4775
    %v4840 = vadd.f32 %v3810, %v4776
    %v4841 = vadd.f32 %v3811, %v4777
    %v4842 = vadd.f32 %v3812, %v4778
    %v4843 = vadd.f32 %v3813, %v4779
    %v4844 = vadd.f32 %v3814, %v4780
    %v4845 = vadd.f32 %v3815, %v4781
    %v4846 = vadd.f32 %v3816, %v4782
    %v4847 = vadd.f32 %v3817, %v4783
    %v4848 = vadd.f32 %v3818, %v4784
    %v4849 = vadd.f32 %v3819, %v4785
    %v4850 = vadd.f32 %v3820, %v4786
    %v4851 = vadd.f32 %v3821, %v4787
    %v4852 = vadd.f32 %v3822, %v4788
    %v4853 = vadd.f32 %v3823, %v4789
    %v4854 = vadd.f32 %v3824, %v4790
    %v4855 = vadd.f32 %v3825, %v4791
    %v4856 = vadd.f32 %v3826, %v4792
    %v4857 = vadd.f32 %v3827, %v4793
    %v4858 = vadd.f32 %v3828, %v4794
    %v4859 = vadd.f32 %v3829, %v4795
    %v4860 = vadd.f32 %v3830, %v4796
    %v4861 = vadd.f32 %v3831, %v4797
    %v4862 = vadd.f32 %v3832, %v4798
    %v4863 = vadd.f32 %v3833, %v4799
    %v4864 = vadd.f32 %v3834, %v4800
    %v4865 = vadd.f32 %v3835, %v4801
    %v4866 = vadd.f32 %v3836, %v4802
    %v4867 = vadd.f32 %v3837, %v4803
    %v4868 = vadd.f32 %v3838, %v4804
    %v4869 = vadd.f32 %v3839, %v4805
    %v4870 = vadd.f32 %v3840, %v4806
    %v4871 = vadd.f32 %v3841, %v4807
    %v4872 = vadd.f32 %v3842, %v4808
    %v4873 = vadd.f32 %v3843, %v4809
    %v4874 = vadd.f32 %v3844, %v4810
    %v4875 = vadd.f32 %v3845, %v4811
    %v4876 = vadd.f32 %v3846, %v4812
    %v4877 = vadd.f32 %v3847, %v4813
    %v4878 = vadd.f32 %v3848, %v4814
    %v4879 = vadd.f32 %v3849, %v4815
    %v4880 = vadd.f32 %v3850, %v4816
    %v4881 = vadd.f32 %v3851, %v4817
    %v4882 = vadd.f32 %v3852, %v4818
    %v4883 = vadd.f32 %v3853, %v4819
    %v4884 = vadd.f32 %v3854, %v4820
    %s4885 = scalar_lea.vmem %s3, 16
    %v4886 = vld [vmem:[%s4885] sm:$0xf]
    %v4888 = vsel %vm1027, %v4886, 0
    %4890 = vmatprep.subr.mxu0 0.0
    %4891 = vmatpush1.msra.mxu0 %v4888
    %4892 = vmatprep.subr.mxu0 0.0
    %4893 = vmatpush1.msra.mxu0 0.0
    %4894 = vmatprep.subr.mxu0 0.0
    %4895 = vmatpush1.msra.mxu0 0.0
    %4896 = vmatprep.subr.mxu0 0.0
    %4897 = vmatpush1.msra.mxu0 0.0
    %4898 = vmatprep.subr.mxu0 0.0
    %4899 = vmatpush1.msra.mxu0 0.0
    %4900 = vmatprep.subr.mxu0 0.0
    %4901 = vmatpush1.msra.mxu0 0.0
    %4902 = vmatprep.subr.mxu0 0.0
    %4903 = vmatpush1.msra.mxu0 0.0
    %4904 = vmatprep.subr.mxu0 0.0
    %4905 = vmatpush1.msra.mxu0 0.0
    %4906 = vmatprep.subr.mxu0 0.0
    %4907 = vmatpush1.msra.mxu0 0.0
    %4908 = vmatprep.subr.mxu0 0.0
    %4909 = vmatpush1.msra.mxu0 0.0
    %4910 = vmatprep.subr.mxu0 0.0
    %4911 = vmatpush1.msra.mxu0 0.0
    %4912 = vmatprep.subr.mxu0 0.0
    %4913 = vmatpush1.msra.mxu0 0.0
    %4914 = vmatprep.subr.mxu0 0.0
    %4915 = vmatpush1.msra.mxu0 0.0
    %4916 = vmatprep.subr.mxu0 0.0
    %4917 = vmatpush1.msra.mxu0 0.0
    %4918 = vmatprep.subr.mxu0 0.0
    %4919 = vmatpush1.msra.mxu0 0.0
    %4920 = vmatprep.subr.mxu0 0.0
    %4921 = vmatpush1.msra.mxu0 0.0
    %4922 = vmatprep.subr.mxu0 0.0
    %4923 = vmatpush1.msra.mxu0 0.0
    %4924 = vmatprep.subr.mxu0 0.0
    %4925 = vmatpush1.msra.mxu0 0.0
    %4926 = vmatprep.subr.mxu0 0.0
    %4927 = vmatpush1.msra.mxu0 0.0
    %4928 = vmatprep.subr.mxu0 0.0
    %4929 = vmatpush1.msra.mxu0 0.0
    %4930 = vmatprep.subr.mxu0 0.0
    %4931 = vmatpush1.msra.mxu0 0.0
    %4932 = vmatprep.subr.mxu0 0.0
    %4933 = vmatpush1.msra.mxu0 0.0
    %4934 = vmatprep.subr.mxu0 0.0
    %4935 = vmatpush1.msra.mxu0 0.0
    %4936 = vmatprep.subr.mxu0 0.0
    %4937 = vmatpush1.msra.mxu0 0.0
    %4938 = vmatprep.subr.mxu0 0.0
    %4939 = vmatpush1.msra.mxu0 0.0
    %4940 = vmatprep.subr.mxu0 0.0
    %4941 = vmatpush1.msra.mxu0 0.0
    %4942 = vmatprep.subr.mxu0 0.0
    %4943 = vmatpush1.msra.mxu0 0.0
    %4944 = vmatprep.subr.mxu0 0.0
    %4945 = vmatpush1.msra.mxu0 0.0
    %4946 = vmatprep.subr.mxu0 0.0
    %4947 = vmatpush1.msra.mxu0 0.0
    %4948 = vmatprep.subr.mxu0 0.0
    %4949 = vmatpush1.msra.mxu0 0.0
    %4950 = vmatprep.subr.mxu0 0.0
    %4951 = vmatpush1.msra.mxu0 0.0
    %4952 = vmatprep.subr.mxu0 0.0
    %4953 = vmatpush1.msra.mxu0 0.0
    %4954 = vmatprep.mubr.f32.mxu0 0.0
    %4955 = vmatmul.mubr.f32.gmra.mrb[0].mxu0 %v836
    %v4956 = vpop.f32.mrb[0].mxu0
    %v4957 = vadd.f32 0.0, %v4956
    %v4958 = vpop.f32.mrb[0].mxu0
    %4959 = vmatprep.mubr.f32.mxu0 0.0
    %4960 = vmatmul.mubr.f32.gmra.mrb[0].mxu0 %v839
    %v4961 = vpop.f32.mrb[0].mxu0
    %v4962 = vadd.f32 0.0, %v4961
    %v4963 = vpop.f32.mrb[0].mxu0
    %4964 = vmatprep.mubr.f32.mxu0 0.0
    %4965 = vmatmul.mubr.f32.gmra.mrb[0].mxu0 %v842
    %v4966 = vpop.f32.mrb[0].mxu0
    %v4967 = vadd.f32 0.0, %v4966
    %v4968 = vpop.f32.mrb[0].mxu0
    %4969 = vmatprep.mubr.f32.mxu0 0.0
    %4970 = vmatmul.mubr.f32.gmra.mrb[0].mxu0 %v845
    %v4971 = vpop.f32.mrb[0].mxu0
    %v4972 = vadd.f32 0.0, %v4971
    %v4973 = vpop.f32.mrb[0].mxu0
    %4974 = vmatprep.mubr.f32.mxu0 0.0
    %4975 = vmatmul.mubr.f32.gmra.mrb[0].mxu0 %v848
    %v4976 = vpop.f32.mrb[0].mxu0
    %v4977 = vadd.f32 0.0, %v4976
    %v4978 = vpop.f32.mrb[0].mxu0
    %4979 = vmatprep.mubr.f32.mxu0 0.0
    %4980 = vmatmul.mubr.f32.gmra.mrb[0].mxu0 %v851
    %v4981 = vpop.f32.mrb[0].mxu0
    %v4982 = vadd.f32 0.0, %v4981
    %v4983 = vpop.f32.mrb[0].mxu0
    %4984 = vmatprep.mubr.f32.mxu0 0.0
    %4985 = vmatmul.mubr.f32.gmra.mrb[0].mxu0 %v854
    %v4986 = vpop.f32.mrb[0].mxu0
    %v4987 = vadd.f32 0.0, %v4986
    %v4988 = vpop.f32.mrb[0].mxu0
    %4989 = vmatprep.mubr.f32.mxu0 0.0
    %4990 = vmatmul.mubr.f32.gmra.mrb[0].mxu0 %v857
    %v4991 = vpop.f32.mrb[0].mxu0
    %v4992 = vadd.f32 0.0, %v4991
    %v4993 = vpop.f32.mrb[0].mxu0
    %4994 = vmatprep.mubr.f32.mxu0 0.0
    %4995 = vmatmul.mubr.f32.gmra.mrb[0].mxu0 %v860
    %v4996 = vpop.f32.mrb[0].mxu0
    %v4997 = vadd.f32 0.0, %v4996
    %v4998 = vpop.f32.mrb[0].mxu0
    %4999 = vmatprep.mubr.f32.mxu0 0.0
    %5000 = vmatmul.mubr.f32.gmra.mrb[0].mxu0 %v863
    %v5001 = vpop.f32.mrb[0].mxu0
    %v5002 = vadd.f32 0.0, %v5001
    %v5003 = vpop.f32.mrb[0].mxu0
    %5004 = vmatprep.mubr.f32.mxu0 0.0
    %5005 = vmatmul.mubr.f32.gmra.mrb[0].mxu0 %v866
    %v5006 = vpop.f32.mrb[0].mxu0
    %v5007 = vadd.f32 0.0, %v5006
    %v5008 = vpop.f32.mrb[0].mxu0
    %5009 = vmatprep.mubr.f32.mxu0 0.0
    %5010 = vmatmul.mubr.f32.gmra.mrb[0].mxu0 %v869
    %v5011 = vpop.f32.mrb[0].mxu0
    %v5012 = vadd.f32 0.0, %v5011
    %v5013 = vpop.f32.mrb[0].mxu0
    %5014 = vmatprep.mubr.f32.mxu0 0.0
    %5015 = vmatmul.mubr.f32.gmra.mrb[0].mxu0 %v872
    %v5016 = vpop.f32.mrb[0].mxu0
    %v5017 = vadd.f32 0.0, %v5016
    %v5018 = vpop.f32.mrb[0].mxu0
    %5019 = vmatprep.mubr.f32.mxu0 0.0
    %5020 = vmatmul.mubr.f32.gmra.mrb[0].mxu0 %v875
    %v5021 = vpop.f32.mrb[0].mxu0
    %v5022 = vadd.f32 0.0, %v5021
    %v5023 = vpop.f32.mrb[0].mxu0
    %5024 = vmatprep.mubr.f32.mxu0 0.0
    %5025 = vmatmul.mubr.f32.gmra.mrb[0].mxu0 %v878
    %v5026 = vpop.f32.mrb[0].mxu0
    %v5027 = vadd.f32 0.0, %v5026
    %v5028 = vpop.f32.mrb[0].mxu0
    %5029 = vmatprep.mubr.f32.mxu0 0.0
    %5030 = vmatmul.mubr.f32.gmra.mrb[0].mxu0 %v881
    %v5031 = vpop.f32.mrb[0].mxu0
    %v5032 = vadd.f32 0.0, %v5031
    %v5033 = vpop.f32.mrb[0].mxu0
    %5034 = vmatprep.mubr.f32.mxu0 0.0
    %5035 = vmatmul.mubr.f32.gmra.mrb[0].mxu0 %v884
    %v5036 = vpop.f32.mrb[0].mxu0
    %v5037 = vadd.f32 0.0, %v5036
    %v5038 = vpop.f32.mrb[0].mxu0
    %5039 = vmatprep.mubr.f32.mxu0 0.0
    %5040 = vmatmul.mubr.f32.gmra.mrb[0].mxu0 %v887
    %v5041 = vpop.f32.mrb[0].mxu0
    %v5042 = vadd.f32 0.0, %v5041
    %v5043 = vpop.f32.mrb[0].mxu0
    %5044 = vmatprep.mubr.f32.mxu0 0.0
    %5045 = vmatmul.mubr.f32.gmra.mrb[0].mxu0 %v890
    %v5046 = vpop.f32.mrb[0].mxu0
    %v5047 = vadd.f32 0.0, %v5046
    %v5048 = vpop.f32.mrb[0].mxu0
    %5049 = vmatprep.mubr.f32.mxu0 0.0
    %5050 = vmatmul.mubr.f32.gmra.mrb[0].mxu0 %v893
    %v5051 = vpop.f32.mrb[0].mxu0
    %v5052 = vadd.f32 0.0, %v5051
    %v5053 = vpop.f32.mrb[0].mxu0
    %5054 = vmatprep.mubr.f32.mxu0 0.0
    %5055 = vmatmul.mubr.f32.gmra.mrb[0].mxu0 %v896
    %v5056 = vpop.f32.mrb[0].mxu0
    %v5057 = vadd.f32 0.0, %v5056
    %v5058 = vpop.f32.mrb[0].mxu0
    %5059 = vmatprep.mubr.f32.mxu0 0.0
    %5060 = vmatmul.mubr.f32.gmra.mrb[0].mxu0 %v899
    %v5061 = vpop.f32.mrb[0].mxu0
    %v5062 = vadd.f32 0.0, %v5061
    %v5063 = vpop.f32.mrb[0].mxu0
    %5064 = vmatprep.mubr.f32.mxu0 0.0
    %5065 = vmatmul.mubr.f32.gmra.mrb[0].mxu0 %v902
    %v5066 = vpop.f32.mrb[0].mxu0
    %v5067 = vadd.f32 0.0, %v5066
    %v5068 = vpop.f32.mrb[0].mxu0
    %5069 = vmatprep.mubr.f32.mxu0 0.0
    %5070 = vmatmul.mubr.f32.gmra.mrb[0].mxu0 %v905
    %v5071 = vpop.f32.mrb[0].mxu0
    %v5072 = vadd.f32 0.0, %v5071
    %v5073 = vpop.f32.mrb[0].mxu0
    %5074 = vmatprep.mubr.f32.mxu0 0.0
    %5075 = vmatmul.mubr.f32.gmra.mrb[0].mxu0 %v908
    %v5076 = vpop.f32.mrb[0].mxu0
    %v5077 = vadd.f32 0.0, %v5076
    %v5078 = vpop.f32.mrb[0].mxu0
    %5079 = vmatprep.mubr.f32.mxu0 0.0
    %5080 = vmatmul.mubr.f32.gmra.mrb[0].mxu0 %v911
    %v5081 = vpop.f32.mrb[0].mxu0
    %v5082 = vadd.f32 0.0, %v5081
    %v5083 = vpop.f32.mrb[0].mxu0
    %5084 = vmatprep.mubr.f32.mxu0 0.0
    %5085 = vmatmul.mubr.f32.gmra.mrb[0].mxu0 %v914
    %v5086 = vpop.f32.mrb[0].mxu0
    %v5087 = vadd.f32 0.0, %v5086
    %v5088 = vpop.f32.mrb[0].mxu0
    %5089 = vmatprep.mubr.f32.mxu0 0.0
    %5090 = vmatmul.mubr.f32.gmra.mrb[0].mxu0 %v917
    %v5091 = vpop.f32.mrb[0].mxu0
    %v5092 = vadd.f32 0.0, %v5091
    %v5093 = vpop.f32.mrb[0].mxu0
    %5094 = vmatprep.mubr.f32.mxu0 0.0
    %5095 = vmatmul.mubr.f32.gmra.mrb[0].mxu0 %v920
    %v5096 = vpop.f32.mrb[0].mxu0
    %v5097 = vadd.f32 0.0, %v5096
    %v5098 = vpop.f32.mrb[0].mxu0
    %5099 = vmatprep.mubr.f32.mxu0 0.0
    %5100 = vmatmul.mubr.f32.gmra.mrb[0].mxu0 %v923
    %v5101 = vpop.f32.mrb[0].mxu0
    %v5102 = vadd.f32 0.0, %v5101
    %v5103 = vpop.f32.mrb[0].mxu0
    %5104 = vmatprep.mubr.f32.mxu0 0.0
    %5105 = vmatmul.mubr.f32.gmra.mrb[0].mxu0 %v926
    %v5106 = vpop.f32.mrb[0].mxu0
    %v5107 = vadd.f32 0.0, %v5106
    %v5108 = vpop.f32.mrb[0].mxu0
    %5109 = vmatprep.mubr.f32.mxu0 0.0
    %5110 = vmatmul.mubr.f32.gmra.mrb[0].mxu0 %v929
    %v5111 = vpop.f32.mrb[0].mxu0
    %v5112 = vadd.f32 0.0, %v5111
    %v5113 = vpop.f32.mrb[0].mxu0
    %5114 = vmatprep.mubr.f32.mxu0 0.0
    %5115 = vmatmul.mubr.f32.gmra.mrb[0].mxu0 %v932
    %v5116 = vpop.f32.mrb[0].mxu0
    %v5117 = vadd.f32 0.0, %v5116
    %v5118 = vpop.f32.mrb[0].mxu0
    %5119 = vmatprep.mubr.f32.mxu0 0.0
    %5120 = vmatmul.mubr.f32.gmra.mrb[0].mxu0 %v935
    %v5121 = vpop.f32.mrb[0].mxu0
    %v5122 = vadd.f32 0.0, %v5121
    %v5123 = vpop.f32.mrb[0].mxu0
    %5124 = vmatprep.mubr.f32.mxu0 0.0
    %5125 = vmatmul.mubr.f32.gmra.mrb[0].mxu0 %v938
    %v5126 = vpop.f32.mrb[0].mxu0
    %v5127 = vadd.f32 0.0, %v5126
    %v5128 = vpop.f32.mrb[0].mxu0
    %5129 = vmatprep.mubr.f32.mxu0 0.0
    %5130 = vmatmul.mubr.f32.gmra.mrb[0].mxu0 %v941
    %v5131 = vpop.f32.mrb[0].mxu0
    %v5132 = vadd.f32 0.0, %v5131
    %v5133 = vpop.f32.mrb[0].mxu0
    %5134 = vmatprep.mubr.f32.mxu0 0.0
    %5135 = vmatmul.mubr.f32.gmra.mrb[0].mxu0 %v944
    %v5136 = vpop.f32.mrb[0].mxu0
    %v5137 = vadd.f32 0.0, %v5136
    %v5138 = vpop.f32.mrb[0].mxu0
    %5139 = vmatprep.mubr.f32.mxu0 0.0
    %5140 = vmatmul.mubr.f32.gmra.mrb[0].mxu0 %v947
    %v5141 = vpop.f32.mrb[0].mxu0
    %v5142 = vadd.f32 0.0, %v5141
    %v5143 = vpop.f32.mrb[0].mxu0
    %5144 = vmatprep.mubr.f32.mxu0 0.0
    %5145 = vmatmul.mubr.f32.gmra.mrb[0].mxu0 %v950
    %v5146 = vpop.f32.mrb[0].mxu0
    %v5147 = vadd.f32 0.0, %v5146
    %v5148 = vpop.f32.mrb[0].mxu0
    %5149 = vmatprep.mubr.f32.mxu0 0.0
    %5150 = vmatmul.mubr.f32.gmra.mrb[0].mxu0 %v953
    %v5151 = vpop.f32.mrb[0].mxu0
    %v5152 = vadd.f32 0.0, %v5151
    %v5153 = vpop.f32.mrb[0].mxu0
    %5154 = vmatprep.mubr.f32.mxu0 0.0
    %5155 = vmatmul.mubr.f32.gmra.mrb[0].mxu0 %v956
    %v5156 = vpop.f32.mrb[0].mxu0
    %v5157 = vadd.f32 0.0, %v5156
    %v5158 = vpop.f32.mrb[0].mxu0
    %5159 = vmatprep.mubr.f32.mxu0 0.0
    %5160 = vmatmul.mubr.f32.gmra.mrb[0].mxu0 %v959
    %v5161 = vpop.f32.mrb[0].mxu0
    %v5162 = vadd.f32 0.0, %v5161
    %v5163 = vpop.f32.mrb[0].mxu0
    %5164 = vmatprep.mubr.f32.mxu0 0.0
    %5165 = vmatmul.mubr.f32.gmra.mrb[0].mxu0 %v962
    %v5166 = vpop.f32.mrb[0].mxu0
    %v5167 = vadd.f32 0.0, %v5166
    %v5168 = vpop.f32.mrb[0].mxu0
    %5169 = vmatprep.mubr.f32.mxu0 0.0
    %5170 = vmatmul.mubr.f32.gmra.mrb[0].mxu0 %v965
    %v5171 = vpop.f32.mrb[0].mxu0
    %v5172 = vadd.f32 0.0, %v5171
    %v5173 = vpop.f32.mrb[0].mxu0
    %5174 = vmatprep.mubr.f32.mxu0 0.0
    %5175 = vmatmul.mubr.f32.gmra.mrb[0].mxu0 %v968
    %v5176 = vpop.f32.mrb[0].mxu0
    %v5177 = vadd.f32 0.0, %v5176
    %v5178 = vpop.f32.mrb[0].mxu0
    %5179 = vmatprep.mubr.f32.mxu0 0.0
    %5180 = vmatmul.mubr.f32.gmra.mrb[0].mxu0 %v971
    %v5181 = vpop.f32.mrb[0].mxu0
    %v5182 = vadd.f32 0.0, %v5181
    %v5183 = vpop.f32.mrb[0].mxu0
    %5184 = vmatprep.mubr.f32.mxu0 0.0
    %5185 = vmatmul.mubr.f32.gmra.mrb[0].mxu0 %v974
    %v5186 = vpop.f32.mrb[0].mxu0
    %v5187 = vadd.f32 0.0, %v5186
    %v5188 = vpop.f32.mrb[0].mxu0
    %5189 = vmatprep.mubr.f32.mxu0 0.0
    %5190 = vmatmul.mubr.f32.gmra.mrb[0].mxu0 %v977
    %v5191 = vpop.f32.mrb[0].mxu0
    %v5192 = vadd.f32 0.0, %v5191
    %v5193 = vpop.f32.mrb[0].mxu0
    %5194 = vmatprep.mubr.f32.mxu0 0.0
    %5195 = vmatmul.mubr.f32.gmra.mrb[0].mxu0 %v980
    %v5196 = vpop.f32.mrb[0].mxu0
    %v5197 = vadd.f32 0.0, %v5196
    %v5198 = vpop.f32.mrb[0].mxu0
    %5199 = vmatprep.mubr.f32.mxu0 0.0
    %5200 = vmatmul.mubr.f32.gmra.mrb[0].mxu0 %v983
    %v5201 = vpop.f32.mrb[0].mxu0
    %v5202 = vadd.f32 0.0, %v5201
    %v5203 = vpop.f32.mrb[0].mxu0
    %5204 = vmatprep.mubr.f32.mxu0 0.0
    %5205 = vmatmul.mubr.f32.gmra.mrb[0].mxu0 %v986
    %v5206 = vpop.f32.mrb[0].mxu0
    %v5207 = vadd.f32 0.0, %v5206
    %v5208 = vpop.f32.mrb[0].mxu0
    %5209 = vmatprep.mubr.f32.mxu0 0.0
    %5210 = vmatmul.mubr.f32.gmra.mrb[0].mxu0 %v989
    %v5211 = vpop.f32.mrb[0].mxu0
    %v5212 = vadd.f32 0.0, %v5211
    %v5213 = vpop.f32.mrb[0].mxu0
    %5214 = vmatprep.mubr.f32.mxu0 0.0
    %5215 = vmatmul.mubr.f32.gmra.mrb[0].mxu0 %v992
    %v5216 = vpop.f32.mrb[0].mxu0
    %v5217 = vadd.f32 0.0, %v5216
    %v5218 = vpop.f32.mrb[0].mxu0
    %5219 = vmatprep.mubr.f32.mxu0 0.0
    %5220 = vmatmul.mubr.f32.gmra.mrb[0].mxu0 %v995
    %v5221 = vpop.f32.mrb[0].mxu0
    %v5222 = vadd.f32 0.0, %v5221
    %v5223 = vpop.f32.mrb[0].mxu0
    %5224 = vmatprep.mubr.f32.mxu0 0.0
    %5225 = vmatmul.mubr.f32.gmra.mrb[0].mxu0 %v998
    %v5226 = vpop.f32.mrb[0].mxu0
    %v5227 = vadd.f32 0.0, %v5226
    %v5228 = vpop.f32.mrb[0].mxu0
    %5229 = vmatprep.mubr.f32.mxu0 0.0
    %5230 = vmatmul.mubr.f32.gmra.mrb[0].mxu0 %v1001
    %v5231 = vpop.f32.mrb[0].mxu0
    %v5232 = vadd.f32 0.0, %v5231
    %v5233 = vpop.f32.mrb[0].mxu0
    %5234 = vmatprep.mubr.f32.mxu0 0.0
    %5235 = vmatmul.mubr.f32.gmra.mrb[0].mxu0 %v1004
    %v5236 = vpop.f32.mrb[0].mxu0
    %v5237 = vadd.f32 0.0, %v5236
    %v5238 = vpop.f32.mrb[0].mxu0
    %5239 = vmatprep.mubr.f32.mxu0 0.0
    %5240 = vmatmul.mubr.f32.gmra.mrb[0].mxu0 %v1007
    %v5241 = vpop.f32.mrb[0].mxu0
    %v5242 = vadd.f32 0.0, %v5241
    %v5243 = vpop.f32.mrb[0].mxu0
    %5244 = vmatprep.mubr.f32.mxu0 0.0
    %5245 = vmatmul.mubr.f32.gmra.mrb[0].mxu0 %v1010
    %v5246 = vpop.f32.mrb[0].mxu0
    %v5247 = vadd.f32 0.0, %v5246
    %v5248 = vpop.f32.mrb[0].mxu0
    %5249 = vmatprep.mubr.f32.mxu0 0.0
    %5250 = vmatmul.mubr.f32.gmra.mrb[0].mxu0 %v1013
    %v5251 = vpop.f32.mrb[0].mxu0
    %v5252 = vadd.f32 0.0, %v5251
    %v5253 = vpop.f32.mrb[0].mxu0
    %5254 = vmatprep.mubr.f32.mxu0 0.0
    %5255 = vmatmul.mubr.f32.gmra.mrb[0].mxu0 %v1016
    %v5256 = vpop.f32.mrb[0].mxu0
    %v5257 = vadd.f32 0.0, %v5256
    %v5258 = vpop.f32.mrb[0].mxu0
    %5259 = vmatprep.mubr.f32.mxu0 0.0
    %5260 = vmatmul.mubr.f32.gmra.mrb[0].mxu0 %v1019
    %v5261 = vpop.f32.mrb[0].mxu0
    %v5262 = vadd.f32 0.0, %v5261
    %v5263 = vpop.f32.mrb[0].mxu0
    %5264 = vmatprep.mubr.f32.mxu0 0.0
    %5265 = vmatmul.mubr.f32.gmra.mrb[0].mxu0 %v1022
    %v5266 = vpop.f32.mrb[0].mxu0
    %v5267 = vadd.f32 0.0, %v5266
    %v5268 = vpop.f32.mrb[0].mxu0
    %5269 = vmatprep.mubr.f32.mxu0 0.0
    %5270 = vmatmul.mubr.f32.gmra.mrb[0].mxu0 %v1025
    %v5271 = vpop.f32.mrb[0].mxu0
    %v5272 = vadd.f32 0.0, %v5271
    %v5273 = vpop.f32.mrb[0].mxu0
    %5274 = vdwg.mxu0
    %v5275 = vadd.f32 %v4821, %v4957
    %v5276 = vadd.f32 %v4822, %v4962
    %v5277 = vadd.f32 %v4823, %v4967
    %v5278 = vadd.f32 %v4824, %v4972
    %v5279 = vadd.f32 %v4825, %v4977
    %v5280 = vadd.f32 %v4826, %v4982
    %v5281 = vadd.f32 %v4827, %v4987
    %v5282 = vadd.f32 %v4828, %v4992
    %v5283 = vadd.f32 %v4829, %v4997
    %v5284 = vadd.f32 %v4830, %v5002
    %v5285 = vadd.f32 %v4831, %v5007
    %v5286 = vadd.f32 %v4832, %v5012
    %v5287 = vadd.f32 %v4833, %v5017
    %v5288 = vadd.f32 %v4834, %v5022
    %v5289 = vadd.f32 %v4835, %v5027
    %v5290 = vadd.f32 %v4836, %v5032
    %v5291 = vadd.f32 %v4837, %v5037
    %v5292 = vadd.f32 %v4838, %v5042
    %v5293 = vadd.f32 %v4839, %v5047
    %v5294 = vadd.f32 %v4840, %v5052
    %v5295 = vadd.f32 %v4841, %v5057
    %v5296 = vadd.f32 %v4842, %v5062
    %v5297 = vadd.f32 %v4843, %v5067
    %v5298 = vadd.f32 %v4844, %v5072
    %v5299 = vadd.f32 %v4845, %v5077
    %v5300 = vadd.f32 %v4846, %v5082
    %v5301 = vadd.f32 %v4847, %v5087
    %v5302 = vadd.f32 %v4848, %v5092
    %v5303 = vadd.f32 %v4849, %v5097
    %v5304 = vadd.f32 %v4850, %v5102
    %v5305 = vadd.f32 %v4851, %v5107
    %v5306 = vadd.f32 %v4852, %v5112
    %v5307 = vadd.f32 %v4853, %v5117
    %v5308 = vadd.f32 %v4854, %v5122
    %v5309 = vadd.f32 %v4855, %v5127
    %v5310 = vadd.f32 %v4856, %v5132
    %v5311 = vadd.f32 %v4857, %v5137
    %v5312 = vadd.f32 %v4858, %v5142
    %v5313 = vadd.f32 %v4859, %v5147
    %v5314 = vadd.f32 %v4860, %v5152
    %v5315 = vadd.f32 %v4861, %v5157
    %v5316 = vadd.f32 %v4862, %v5162
    %v5317 = vadd.f32 %v4863, %v5167
    %v5318 = vadd.f32 %v4864, %v5172
    %v5319 = vadd.f32 %v4865, %v5177
    %v5320 = vadd.f32 %v4866, %v5182
    %v5321 = vadd.f32 %v4867, %v5187
    %v5322 = vadd.f32 %v4868, %v5192
    %v5323 = vadd.f32 %v4869, %v5197
    %v5324 = vadd.f32 %v4870, %v5202
    %v5325 = vadd.f32 %v4871, %v5207
    %v5326 = vadd.f32 %v4872, %v5212
    %v5327 = vadd.f32 %v4873, %v5217
    %v5328 = vadd.f32 %v4874, %v5222
    %v5329 = vadd.f32 %v4875, %v5227
    %v5330 = vadd.f32 %v4876, %v5232
    %v5331 = vadd.f32 %v4877, %v5237
    %v5332 = vadd.f32 %v4878, %v5242
    %v5333 = vadd.f32 %v4879, %v5247
    %v5334 = vadd.f32 %v4880, %v5252
    %v5335 = vadd.f32 %v4881, %v5257
    %v5336 = vadd.f32 %v4882, %v5262
    %v5337 = vadd.f32 %v4883, %v5267
    %v5338 = vadd.f32 %v4884, %v5272
    %s5339 = scalar_lea.vmem %s3, 20
    %v5340 = vld [vmem:[%s5339] sm:$0xf]
    %v5342 = vsel %vm1027, %v5340, 0
    %5344 = vmatprep.subr.mxu0 0.0
    %5345 = vmatpush1.msra.mxu0 %v5342
    %5346 = vmatprep.subr.mxu0 0.0
    %5347 = vmatpush1.msra.mxu0 0.0
    %5348 = vmatprep.subr.mxu0 0.0
    %5349 = vmatpush1.msra.mxu0 0.0
    %5350 = vmatprep.subr.mxu0 0.0
    %5351 = vmatpush1.msra.mxu0 0.0
    %5352 = vmatprep.subr.mxu0 0.0
    %5353 = vmatpush1.msra.mxu0 0.0
    %5354 = vmatprep.subr.mxu0 0.0
    %5355 = vmatpush1.msra.mxu0 0.0
    %5356 = vmatprep.subr.mxu0 0.0
    %5357 = vmatpush1.msra.mxu0 0.0
    %5358 = vmatprep.subr.mxu0 0.0
    %5359 = vmatpush1.msra.mxu0 0.0
    %5360 = vmatprep.subr.mxu0 0.0
    %5361 = vmatpush1.msra.mxu0 0.0
    %5362 = vmatprep.subr.mxu0 0.0
    %5363 = vmatpush1.msra.mxu0 0.0
    %5364 = vmatprep.subr.mxu0 0.0
    %5365 = vmatpush1.msra.mxu0 0.0
    %5366 = vmatprep.subr.mxu0 0.0
    %5367 = vmatpush1.msra.mxu0 0.0
    %5368 = vmatprep.subr.mxu0 0.0
    %5369 = vmatpush1.msra.mxu0 0.0
    %5370 = vmatprep.subr.mxu0 0.0
    %5371 = vmatpush1.msra.mxu0 0.0
    %5372 = vmatprep.subr.mxu0 0.0
    %5373 = vmatpush1.msra.mxu0 0.0
    %5374 = vmatprep.subr.mxu0 0.0
    %5375 = vmatpush1.msra.mxu0 0.0
    %5376 = vmatprep.subr.mxu0 0.0
    %5377 = vmatpush1.msra.mxu0 0.0
    %5378 = vmatprep.subr.mxu0 0.0
    %5379 = vmatpush1.msra.mxu0 0.0
    %5380 = vmatprep.subr.mxu0 0.0
    %5381 = vmatpush1.msra.mxu0 0.0
    %5382 = vmatprep.subr.mxu0 0.0
    %5383 = vmatpush1.msra.mxu0 0.0
    %5384 = vmatprep.subr.mxu0 0.0
    %5385 = vmatpush1.msra.mxu0 0.0
    %5386 = vmatprep.subr.mxu0 0.0
    %5387 = vmatpush1.msra.mxu0 0.0
    %5388 = vmatprep.subr.mxu0 0.0
    %5389 = vmatpush1.msra.mxu0 0.0
    %5390 = vmatprep.subr.mxu0 0.0
    %5391 = vmatpush1.msra.mxu0 0.0
    %5392 = vmatprep.subr.mxu0 0.0
    %5393 = vmatpush1.msra.mxu0 0.0
    %5394 = vmatprep.subr.mxu0 0.0
    %5395 = vmatpush1.msra.mxu0 0.0
    %5396 = vmatprep.subr.mxu0 0.0
    %5397 = vmatpush1.msra.mxu0 0.0
    %5398 = vmatprep.subr.mxu0 0.0
    %5399 = vmatpush1.msra.mxu0 0.0
    %5400 = vmatprep.subr.mxu0 0.0
    %5401 = vmatpush1.msra.mxu0 0.0
    %5402 = vmatprep.subr.mxu0 0.0
    %5403 = vmatpush1.msra.mxu0 0.0
    %5404 = vmatprep.subr.mxu0 0.0
    %5405 = vmatpush1.msra.mxu0 0.0
    %5406 = vmatprep.subr.mxu0 0.0
    %5407 = vmatpush1.msra.mxu0 0.0
    %5408 = vmatprep.mubr.f32.mxu0 0.0
    %5409 = vmatmul.mubr.f32.gmra.mrb[0].mxu0 %v836
    %v5410 = vpop.f32.mrb[0].mxu0
    %v5411 = vadd.f32 0.0, %v5410
    %v5412 = vpop.f32.mrb[0].mxu0
    %5413 = vmatprep.mubr.f32.mxu0 0.0
    %5414 = vmatmul.mubr.f32.gmra.mrb[0].mxu0 %v839
    %v5415 = vpop.f32.mrb[0].mxu0
    %v5416 = vadd.f32 0.0, %v5415
    %v5417 = vpop.f32.mrb[0].mxu0
    %5418 = vmatprep.mubr.f32.mxu0 0.0
    %5419 = vmatmul.mubr.f32.gmra.mrb[0].mxu0 %v842
    %v5420 = vpop.f32.mrb[0].mxu0
    %v5421 = vadd.f32 0.0, %v5420
    %v5422 = vpop.f32.mrb[0].mxu0
    %5423 = vmatprep.mubr.f32.mxu0 0.0
    %5424 = vmatmul.mubr.f32.gmra.mrb[0].mxu0 %v845
    %v5425 = vpop.f32.mrb[0].mxu0
    %v5426 = vadd.f32 0.0, %v5425
    %v5427 = vpop.f32.mrb[0].mxu0
    %5428 = vmatprep.mubr.f32.mxu0 0.0
    %5429 = vmatmul.mubr.f32.gmra.mrb[0].mxu0 %v848
    %v5430 = vpop.f32.mrb[0].mxu0
    %v5431 = vadd.f32 0.0, %v5430
    %v5432 = vpop.f32.mrb[0].mxu0
    %5433 = vmatprep.mubr.f32.mxu0 0.0
    %5434 = vmatmul.mubr.f32.gmra.mrb[0].mxu0 %v851
    %v5435 = vpop.f32.mrb[0].mxu0
    %v5436 = vadd.f32 0.0, %v5435
    %v5437 = vpop.f32.mrb[0].mxu0
    %5438 = vmatprep.mubr.f32.mxu0 0.0
    %5439 = vmatmul.mubr.f32.gmra.mrb[0].mxu0 %v854
    %v5440 = vpop.f32.mrb[0].mxu0
    %v5441 = vadd.f32 0.0, %v5440
    %v5442 = vpop.f32.mrb[0].mxu0
    %5443 = vmatprep.mubr.f32.mxu0 0.0
    %5444 = vmatmul.mubr.f32.gmra.mrb[0].mxu0 %v857
    %v5445 = vpop.f32.mrb[0].mxu0
    %v5446 = vadd.f32 0.0, %v5445
    %v5447 = vpop.f32.mrb[0].mxu0
    %5448 = vmatprep.mubr.f32.mxu0 0.0
    %5449 = vmatmul.mubr.f32.gmra.mrb[0].mxu0 %v860
    %v5450 = vpop.f32.mrb[0].mxu0
    %v5451 = vadd.f32 0.0, %v5450
    %v5452 = vpop.f32.mrb[0].mxu0
    %5453 = vmatprep.mubr.f32.mxu0 0.0
    %5454 = vmatmul.mubr.f32.gmra.mrb[0].mxu0 %v863
    %v5455 = vpop.f32.mrb[0].mxu0
    %v5456 = vadd.f32 0.0, %v5455
    %v5457 = vpop.f32.mrb[0].mxu0
    %5458 = vmatprep.mubr.f32.mxu0 0.0
    %5459 = vmatmul.mubr.f32.gmra.mrb[0].mxu0 %v866
    %v5460 = vpop.f32.mrb[0].mxu0
    %v5461 = vadd.f32 0.0, %v5460
    %v5462 = vpop.f32.mrb[0].mxu0
    %5463 = vmatprep.mubr.f32.mxu0 0.0
    %5464 = vmatmul.mubr.f32.gmra.mrb[0].mxu0 %v869
    %v5465 = vpop.f32.mrb[0].mxu0
    %v5466 = vadd.f32 0.0, %v5465
    %v5467 = vpop.f32.mrb[0].mxu0
    %5468 = vmatprep.mubr.f32.mxu0 0.0
    %5469 = vmatmul.mubr.f32.gmra.mrb[0].mxu0 %v872
    %v5470 = vpop.f32.mrb[0].mxu0
    %v5471 = vadd.f32 0.0, %v5470
    %v5472 = vpop.f32.mrb[0].mxu0
    %5473 = vmatprep.mubr.f32.mxu0 0.0
    %5474 = vmatmul.mubr.f32.gmra.mrb[0].mxu0 %v875
    %v5475 = vpop.f32.mrb[0].mxu0
    %v5476 = vadd.f32 0.0, %v5475
    %v5477 = vpop.f32.mrb[0].mxu0
    %5478 = vmatprep.mubr.f32.mxu0 0.0
    %5479 = vmatmul.mubr.f32.gmra.mrb[0].mxu0 %v878
    %v5480 = vpop.f32.mrb[0].mxu0
    %v5481 = vadd.f32 0.0, %v5480
    %v5482 = vpop.f32.mrb[0].mxu0
    %5483 = vmatprep.mubr.f32.mxu0 0.0
    %5484 = vmatmul.mubr.f32.gmra.mrb[0].mxu0 %v881
    %v5485 = vpop.f32.mrb[0].mxu0
    %v5486 = vadd.f32 0.0, %v5485
    %v5487 = vpop.f32.mrb[0].mxu0
    %5488 = vmatprep.mubr.f32.mxu0 0.0
    %5489 = vmatmul.mubr.f32.gmra.mrb[0].mxu0 %v884
    %v5490 = vpop.f32.mrb[0].mxu0
    %v5491 = vadd.f32 0.0, %v5490
    %v5492 = vpop.f32.mrb[0].mxu0
    %5493 = vmatprep.mubr.f32.mxu0 0.0
    %5494 = vmatmul.mubr.f32.gmra.mrb[0].mxu0 %v887
    %v5495 = vpop.f32.mrb[0].mxu0
    %v5496 = vadd.f32 0.0, %v5495
    %v5497 = vpop.f32.mrb[0].mxu0
    %5498 = vmatprep.mubr.f32.mxu0 0.0
    %5499 = vmatmul.mubr.f32.gmra.mrb[0].mxu0 %v890
    %v5500 = vpop.f32.mrb[0].mxu0
    %v5501 = vadd.f32 0.0, %v5500
    %v5502 = vpop.f32.mrb[0].mxu0
    %5503 = vmatprep.mubr.f32.mxu0 0.0
    %5504 = vmatmul.mubr.f32.gmra.mrb[0].mxu0 %v893
    %v5505 = vpop.f32.mrb[0].mxu0
    %v5506 = vadd.f32 0.0, %v5505
    %v5507 = vpop.f32.mrb[0].mxu0
    %5508 = vmatprep.mubr.f32.mxu0 0.0
    %5509 = vmatmul.mubr.f32.gmra.mrb[0].mxu0 %v896
    %v5510 = vpop.f32.mrb[0].mxu0
    %v5511 = vadd.f32 0.0, %v5510
    %v5512 = vpop.f32.mrb[0].mxu0
    %5513 = vmatprep.mubr.f32.mxu0 0.0
    %5514 = vmatmul.mubr.f32.gmra.mrb[0].mxu0 %v899
    %v5515 = vpop.f32.mrb[0].mxu0
    %v5516 = vadd.f32 0.0, %v5515
    %v5517 = vpop.f32.mrb[0].mxu0
    %5518 = vmatprep.mubr.f32.mxu0 0.0
    %5519 = vmatmul.mubr.f32.gmra.mrb[0].mxu0 %v902
    %v5520 = vpop.f32.mrb[0].mxu0
    %v5521 = vadd.f32 0.0, %v5520
    %v5522 = vpop.f32.mrb[0].mxu0
    %5523 = vmatprep.mubr.f32.mxu0 0.0
    %5524 = vmatmul.mubr.f32.gmra.mrb[0].mxu0 %v905
    %v5525 = vpop.f32.mrb[0].mxu0
    %v5526 = vadd.f32 0.0, %v5525
    %v5527 = vpop.f32.mrb[0].mxu0
    %5528 = vmatprep.mubr.f32.mxu0 0.0
    %5529 = vmatmul.mubr.f32.gmra.mrb[0].mxu0 %v908
    %v5530 = vpop.f32.mrb[0].mxu0
    %v5531 = vadd.f32 0.0, %v5530
    %v5532 = vpop.f32.mrb[0].mxu0
    %5533 = vmatprep.mubr.f32.mxu0 0.0
    %5534 = vmatmul.mubr.f32.gmra.mrb[0].mxu0 %v911
    %v5535 = vpop.f32.mrb[0].mxu0
    %v5536 = vadd.f32 0.0, %v5535
    %v5537 = vpop.f32.mrb[0].mxu0
    %5538 = vmatprep.mubr.f32.mxu0 0.0
    %5539 = vmatmul.mubr.f32.gmra.mrb[0].mxu0 %v914
    %v5540 = vpop.f32.mrb[0].mxu0
    %v5541 = vadd.f32 0.0, %v5540
    %v5542 = vpop.f32.mrb[0].mxu0
    %5543 = vmatprep.mubr.f32.mxu0 0.0
    %5544 = vmatmul.mubr.f32.gmra.mrb[0].mxu0 %v917
    %v5545 = vpop.f32.mrb[0].mxu0
    %v5546 = vadd.f32 0.0, %v5545
    %v5547 = vpop.f32.mrb[0].mxu0
    %5548 = vmatprep.mubr.f32.mxu0 0.0
    %5549 = vmatmul.mubr.f32.gmra.mrb[0].mxu0 %v920
    %v5550 = vpop.f32.mrb[0].mxu0
    %v5551 = vadd.f32 0.0, %v5550
    %v5552 = vpop.f32.mrb[0].mxu0
    %5553 = vmatprep.mubr.f32.mxu0 0.0
    %5554 = vmatmul.mubr.f32.gmra.mrb[0].mxu0 %v923
    %v5555 = vpop.f32.mrb[0].mxu0
    %v5556 = vadd.f32 0.0, %v5555
    %v5557 = vpop.f32.mrb[0].mxu0
    %5558 = vmatprep.mubr.f32.mxu0 0.0
    %5559 = vmatmul.mubr.f32.gmra.mrb[0].mxu0 %v926
    %v5560 = vpop.f32.mrb[0].mxu0
    %v5561 = vadd.f32 0.0, %v5560
    %v5562 = vpop.f32.mrb[0].mxu0
    %5563 = vmatprep.mubr.f32.mxu0 0.0
    %5564 = vmatmul.mubr.f32.gmra.mrb[0].mxu0 %v929
    %v5565 = vpop.f32.mrb[0].mxu0
    %v5566 = vadd.f32 0.0, %v5565
    %v5567 = vpop.f32.mrb[0].mxu0
    %5568 = vmatprep.mubr.f32.mxu0 0.0
    %5569 = vmatmul.mubr.f32.gmra.mrb[0].mxu0 %v932
    %v5570 = vpop.f32.mrb[0].mxu0
    %v5571 = vadd.f32 0.0, %v5570
    %v5572 = vpop.f32.mrb[0].mxu0
    %5573 = vmatprep.mubr.f32.mxu0 0.0
    %5574 = vmatmul.mubr.f32.gmra.mrb[0].mxu0 %v935
    %v5575 = vpop.f32.mrb[0].mxu0
    %v5576 = vadd.f32 0.0, %v5575
    %v5577 = vpop.f32.mrb[0].mxu0
    %5578 = vmatprep.mubr.f32.mxu0 0.0
    %5579 = vmatmul.mubr.f32.gmra.mrb[0].mxu0 %v938
    %v5580 = vpop.f32.mrb[0].mxu0
    %v5581 = vadd.f32 0.0, %v5580
    %v5582 = vpop.f32.mrb[0].mxu0
    %5583 = vmatprep.mubr.f32.mxu0 0.0
    %5584 = vmatmul.mubr.f32.gmra.mrb[0].mxu0 %v941
    %v5585 = vpop.f32.mrb[0].mxu0
    %v5586 = vadd.f32 0.0, %v5585
    %v5587 = vpop.f32.mrb[0].mxu0
    %5588 = vmatprep.mubr.f32.mxu0 0.0
    %5589 = vmatmul.mubr.f32.gmra.mrb[0].mxu0 %v944
    %v5590 = vpop.f32.mrb[0].mxu0
    %v5591 = vadd.f32 0.0, %v5590
    %v5592 = vpop.f32.mrb[0].mxu0
    %5593 = vmatprep.mubr.f32.mxu0 0.0
    %5594 = vmatmul.mubr.f32.gmra.mrb[0].mxu0 %v947
    %v5595 = vpop.f32.mrb[0].mxu0
    %v5596 = vadd.f32 0.0, %v5595
    %v5597 = vpop.f32.mrb[0].mxu0
    %5598 = vmatprep.mubr.f32.mxu0 0.0
    %5599 = vmatmul.mubr.f32.gmra.mrb[0].mxu0 %v950
    %v5600 = vpop.f32.mrb[0].mxu0
    %v5601 = vadd.f32 0.0, %v5600
    %v5602 = vpop.f32.mrb[0].mxu0
    %5603 = vmatprep.mubr.f32.mxu0 0.0
    %5604 = vmatmul.mubr.f32.gmra.mrb[0].mxu0 %v953
    %v5605 = vpop.f32.mrb[0].mxu0
    %v5606 = vadd.f32 0.0, %v5605
    %v5607 = vpop.f32.mrb[0].mxu0
    %5608 = vmatprep.mubr.f32.mxu0 0.0
    %5609 = vmatmul.mubr.f32.gmra.mrb[0].mxu0 %v956
    %v5610 = vpop.f32.mrb[0].mxu0
    %v5611 = vadd.f32 0.0, %v5610
    %v5612 = vpop.f32.mrb[0].mxu0
    %5613 = vmatprep.mubr.f32.mxu0 0.0
    %5614 = vmatmul.mubr.f32.gmra.mrb[0].mxu0 %v959
    %v5615 = vpop.f32.mrb[0].mxu0
    %v5616 = vadd.f32 0.0, %v5615
    %v5617 = vpop.f32.mrb[0].mxu0
    %5618 = vmatprep.mubr.f32.mxu0 0.0
    %5619 = vmatmul.mubr.f32.gmra.mrb[0].mxu0 %v962
    %v5620 = vpop.f32.mrb[0].mxu0
    %v5621 = vadd.f32 0.0, %v5620
    %v5622 = vpop.f32.mrb[0].mxu0
    %5623 = vmatprep.mubr.f32.mxu0 0.0
    %5624 = vmatmul.mubr.f32.gmra.mrb[0].mxu0 %v965
    %v5625 = vpop.f32.mrb[0].mxu0
    %v5626 = vadd.f32 0.0, %v5625
    %v5627 = vpop.f32.mrb[0].mxu0
    %5628 = vmatprep.mubr.f32.mxu0 0.0
    %5629 = vmatmul.mubr.f32.gmra.mrb[0].mxu0 %v968
    %v5630 = vpop.f32.mrb[0].mxu0
    %v5631 = vadd.f32 0.0, %v5630
    %v5632 = vpop.f32.mrb[0].mxu0
    %5633 = vmatprep.mubr.f32.mxu0 0.0
    %5634 = vmatmul.mubr.f32.gmra.mrb[0].mxu0 %v971
    %v5635 = vpop.f32.mrb[0].mxu0
    %v5636 = vadd.f32 0.0, %v5635
    %v5637 = vpop.f32.mrb[0].mxu0
    %5638 = vmatprep.mubr.f32.mxu0 0.0
    %5639 = vmatmul.mubr.f32.gmra.mrb[0].mxu0 %v974
    %v5640 = vpop.f32.mrb[0].mxu0
    %v5641 = vadd.f32 0.0, %v5640
    %v5642 = vpop.f32.mrb[0].mxu0
    %5643 = vmatprep.mubr.f32.mxu0 0.0
    %5644 = vmatmul.mubr.f32.gmra.mrb[0].mxu0 %v977
    %v5645 = vpop.f32.mrb[0].mxu0
    %v5646 = vadd.f32 0.0, %v5645
    %v5647 = vpop.f32.mrb[0].mxu0
    %5648 = vmatprep.mubr.f32.mxu0 0.0
    %5649 = vmatmul.mubr.f32.gmra.mrb[0].mxu0 %v980
    %v5650 = vpop.f32.mrb[0].mxu0
    %v5651 = vadd.f32 0.0, %v5650
    %v5652 = vpop.f32.mrb[0].mxu0
    %5653 = vmatprep.mubr.f32.mxu0 0.0
    %5654 = vmatmul.mubr.f32.gmra.mrb[0].mxu0 %v983
    %v5655 = vpop.f32.mrb[0].mxu0
    %v5656 = vadd.f32 0.0, %v5655
    %v5657 = vpop.f32.mrb[0].mxu0
    %5658 = vmatprep.mubr.f32.mxu0 0.0
    %5659 = vmatmul.mubr.f32.gmra.mrb[0].mxu0 %v986
    %v5660 = vpop.f32.mrb[0].mxu0
    %v5661 = vadd.f32 0.0, %v5660
    %v5662 = vpop.f32.mrb[0].mxu0
    %5663 = vmatprep.mubr.f32.mxu0 0.0
    %5664 = vmatmul.mubr.f32.gmra.mrb[0].mxu0 %v989
    %v5665 = vpop.f32.mrb[0].mxu0
    %v5666 = vadd.f32 0.0, %v5665
    %v5667 = vpop.f32.mrb[0].mxu0
    %5668 = vmatprep.mubr.f32.mxu0 0.0
    %5669 = vmatmul.mubr.f32.gmra.mrb[0].mxu0 %v992
    %v5670 = vpop.f32.mrb[0].mxu0
    %v5671 = vadd.f32 0.0, %v5670
    %v5672 = vpop.f32.mrb[0].mxu0
    %5673 = vmatprep.mubr.f32.mxu0 0.0
    %5674 = vmatmul.mubr.f32.gmra.mrb[0].mxu0 %v995
    %v5675 = vpop.f32.mrb[0].mxu0
    %v5676 = vadd.f32 0.0, %v5675
    %v5677 = vpop.f32.mrb[0].mxu0
    %5678 = vmatprep.mubr.f32.mxu0 0.0
    %5679 = vmatmul.mubr.f32.gmra.mrb[0].mxu0 %v998
    %v5680 = vpop.f32.mrb[0].mxu0
    %v5681 = vadd.f32 0.0, %v5680
    %v5682 = vpop.f32.mrb[0].mxu0
    %5683 = vmatprep.mubr.f32.mxu0 0.0
    %5684 = vmatmul.mubr.f32.gmra.mrb[0].mxu0 %v1001
    %v5685 = vpop.f32.mrb[0].mxu0
    %v5686 = vadd.f32 0.0, %v5685
    %v5687 = vpop.f32.mrb[0].mxu0
    %5688 = vmatprep.mubr.f32.mxu0 0.0
    %5689 = vmatmul.mubr.f32.gmra.mrb[0].mxu0 %v1004
    %v5690 = vpop.f32.mrb[0].mxu0
    %v5691 = vadd.f32 0.0, %v5690
    %v5692 = vpop.f32.mrb[0].mxu0
    %5693 = vmatprep.mubr.f32.mxu0 0.0
    %5694 = vmatmul.mubr.f32.gmra.mrb[0].mxu0 %v1007
    %v5695 = vpop.f32.mrb[0].mxu0
    %v5696 = vadd.f32 0.0, %v5695
    %v5697 = vpop.f32.mrb[0].mxu0
    %5698 = vmatprep.mubr.f32.mxu0 0.0
    %5699 = vmatmul.mubr.f32.gmra.mrb[0].mxu0 %v1010
    %v5700 = vpop.f32.mrb[0].mxu0
    %v5701 = vadd.f32 0.0, %v5700
    %v5702 = vpop.f32.mrb[0].mxu0
    %5703 = vmatprep.mubr.f32.mxu0 0.0
    %5704 = vmatmul.mubr.f32.gmra.mrb[0].mxu0 %v1013
    %v5705 = vpop.f32.mrb[0].mxu0
    %v5706 = vadd.f32 0.0, %v5705
    %v5707 = vpop.f32.mrb[0].mxu0
    %5708 = vmatprep.mubr.f32.mxu0 0.0
    %5709 = vmatmul.mubr.f32.gmra.mrb[0].mxu0 %v1016
    %v5710 = vpop.f32.mrb[0].mxu0
    %v5711 = vadd.f32 0.0, %v5710
    %v5712 = vpop.f32.mrb[0].mxu0
    %5713 = vmatprep.mubr.f32.mxu0 0.0
    %5714 = vmatmul.mubr.f32.gmra.mrb[0].mxu0 %v1019
    %v5715 = vpop.f32.mrb[0].mxu0
    %v5716 = vadd.f32 0.0, %v5715
    %v5717 = vpop.f32.mrb[0].mxu0
    %5718 = vmatprep.mubr.f32.mxu0 0.0
    %5719 = vmatmul.mubr.f32.gmra.mrb[0].mxu0 %v1022
    %v5720 = vpop.f32.mrb[0].mxu0
    %v5721 = vadd.f32 0.0, %v5720
    %v5722 = vpop.f32.mrb[0].mxu0
    %5723 = vmatprep.mubr.f32.mxu0 0.0
    %5724 = vmatmul.mubr.f32.gmra.mrb[0].mxu0 %v1025
    %v5725 = vpop.f32.mrb[0].mxu0
    %v5726 = vadd.f32 0.0, %v5725
    %v5727 = vpop.f32.mrb[0].mxu0
    %5728 = vdwg.mxu0
    %v5793 = vrot.slane %v5411, 1
    %v5794 = vrot.slane %v5416, 1
    %v5795 = vsel %vm3278, %v5793, %v5794
    %v5796 = vrot.slane %v5421, 1
    %v5797 = vsel %vm3278, %v5794, %v5796
    %v5798 = vrot.slane %v5426, 1
    %v5799 = vsel %vm3278, %v5796, %v5798
    %v5800 = vrot.slane %v5431, 1
    %v5801 = vsel %vm3278, %v5798, %v5800
    %v5802 = vrot.slane %v5436, 1
    %v5803 = vsel %vm3278, %v5800, %v5802
    %v5804 = vrot.slane %v5441, 1
    %v5805 = vsel %vm3278, %v5802, %v5804
    %v5806 = vrot.slane %v5446, 1
    %v5807 = vsel %vm3278, %v5804, %v5806
    %v5808 = vrot.slane %v5451, 1
    %v5809 = vsel %vm3278, %v5806, %v5808
    %v5810 = vrot.slane %v5456, 1
    %v5811 = vsel %vm3278, %v5808, %v5810
    %v5812 = vrot.slane %v5461, 1
    %v5813 = vsel %vm3278, %v5810, %v5812
    %v5814 = vrot.slane %v5466, 1
    %v5815 = vsel %vm3278, %v5812, %v5814
    %v5816 = vrot.slane %v5471, 1
    %v5817 = vsel %vm3278, %v5814, %v5816
    %v5818 = vrot.slane %v5476, 1
    %v5819 = vsel %vm3278, %v5816, %v5818
    %v5820 = vrot.slane %v5481, 1
    %v5821 = vsel %vm3278, %v5818, %v5820
    %v5822 = vrot.slane %v5486, 1
    %v5823 = vsel %vm3278, %v5820, %v5822
    %v5824 = vrot.slane %v5491, 1
    %v5825 = vsel %vm3278, %v5822, %v5824
    %v5826 = vrot.slane %v5496, 1
    %v5827 = vsel %vm3278, %v5824, %v5826
    %v5828 = vrot.slane %v5501, 1
    %v5829 = vsel %vm3278, %v5826, %v5828
    %v5830 = vrot.slane %v5506, 1
    %v5831 = vsel %vm3278, %v5828, %v5830
    %v5832 = vrot.slane %v5511, 1
    %v5833 = vsel %vm3278, %v5830, %v5832
    %v5834 = vrot.slane %v5516, 1
    %v5835 = vsel %vm3278, %v5832, %v5834
    %v5836 = vrot.slane %v5521, 1
    %v5837 = vsel %vm3278, %v5834, %v5836
    %v5838 = vrot.slane %v5526, 1
    %v5839 = vsel %vm3278, %v5836, %v5838
    %v5840 = vrot.slane %v5531, 1
    %v5841 = vsel %vm3278, %v5838, %v5840
    %v5842 = vrot.slane %v5536, 1
    %v5843 = vsel %vm3278, %v5840, %v5842
    %v5844 = vrot.slane %v5541, 1
    %v5845 = vsel %vm3278, %v5842, %v5844
    %v5846 = vrot.slane %v5546, 1
    %v5847 = vsel %vm3278, %v5844, %v5846
    %v5848 = vrot.slane %v5551, 1
    %v5849 = vsel %vm3278, %v5846, %v5848
    %v5850 = vrot.slane %v5556, 1
    %v5851 = vsel %vm3278, %v5848, %v5850
    %v5852 = vrot.slane %v5561, 1
    %v5853 = vsel %vm3278, %v5850, %v5852
    %v5854 = vrot.slane %v5566, 1
    %v5855 = vsel %vm3278, %v5852, %v5854
    %v5856 = vrot.slane %v5571, 1
    %v5857 = vsel %vm3278, %v5854, %v5856
    %v5858 = vrot.slane %v5576, 1
    %v5859 = vsel %vm3278, %v5856, %v5858
    %v5860 = vrot.slane %v5581, 1
    %v5861 = vsel %vm3278, %v5858, %v5860
    %v5862 = vrot.slane %v5586, 1
    %v5863 = vsel %vm3278, %v5860, %v5862
    %v5864 = vrot.slane %v5591, 1
    %v5865 = vsel %vm3278, %v5862, %v5864
    %v5866 = vrot.slane %v5596, 1
    %v5867 = vsel %vm3278, %v5864, %v5866
    %v5868 = vrot.slane %v5601, 1
    %v5869 = vsel %vm3278, %v5866, %v5868
    %v5870 = vrot.slane %v5606, 1
    %v5871 = vsel %vm3278, %v5868, %v5870
    %v5872 = vrot.slane %v5611, 1
    %v5873 = vsel %vm3278, %v5870, %v5872
    %v5874 = vrot.slane %v5616, 1
    %v5875 = vsel %vm3278, %v5872, %v5874
    %v5876 = vrot.slane %v5621, 1
    %v5877 = vsel %vm3278, %v5874, %v5876
    %v5878 = vrot.slane %v5626, 1
    %v5879 = vsel %vm3278, %v5876, %v5878
    %v5880 = vrot.slane %v5631, 1
    %v5881 = vsel %vm3278, %v5878, %v5880
    %v5882 = vrot.slane %v5636, 1
    %v5883 = vsel %vm3278, %v5880, %v5882
    %v5884 = vrot.slane %v5641, 1
    %v5885 = vsel %vm3278, %v5882, %v5884
    %v5886 = vrot.slane %v5646, 1
    %v5887 = vsel %vm3278, %v5884, %v5886
    %v5888 = vrot.slane %v5651, 1
    %v5889 = vsel %vm3278, %v5886, %v5888
    %v5890 = vrot.slane %v5656, 1
    %v5891 = vsel %vm3278, %v5888, %v5890
    %v5892 = vrot.slane %v5661, 1
    %v5893 = vsel %vm3278, %v5890, %v5892
    %v5894 = vrot.slane %v5666, 1
    %v5895 = vsel %vm3278, %v5892, %v5894
    %v5896 = vrot.slane %v5671, 1
    %v5897 = vsel %vm3278, %v5894, %v5896
    %v5898 = vrot.slane %v5676, 1
    %v5899 = vsel %vm3278, %v5896, %v5898
    %v5900 = vrot.slane %v5681, 1
    %v5901 = vsel %vm3278, %v5898, %v5900
    %v5902 = vrot.slane %v5686, 1
    %v5903 = vsel %vm3278, %v5900, %v5902
    %v5904 = vrot.slane %v5691, 1
    %v5905 = vsel %vm3278, %v5902, %v5904
    %v5906 = vrot.slane %v5696, 1
    %v5907 = vsel %vm3278, %v5904, %v5906
    %v5908 = vrot.slane %v5701, 1
    %v5909 = vsel %vm3278, %v5906, %v5908
    %v5910 = vrot.slane %v5706, 1
    %v5911 = vsel %vm3278, %v5908, %v5910
    %v5912 = vrot.slane %v5711, 1
    %v5913 = vsel %vm3278, %v5910, %v5912
    %v5914 = vrot.slane %v5716, 1
    %v5915 = vsel %vm3278, %v5912, %v5914
    %v5916 = vrot.slane %v5721, 1
    %v5917 = vsel %vm3278, %v5914, %v5916
    %v5918 = vrot.slane %v5726, 1
    %v5919 = vsel %vm3278, %v5916, %v5918
    %v5984 = vsel %vm3278, %v5918, 0.0
    %5985 = vset.pattern.permute.xlu0 5
    %5986 = vperm.xlu0 %5985, %v769
    %v5987 = vpop.permute.xlu0 %5986
    %5989 = vset.pattern.permute.xlu0 5
    %5990 = vperm.xlu0 %5989, %v770
    %v5991 = vpop.permute.xlu0 %5990
    %5993 = vset.pattern.permute.xlu0 5
    %5994 = vperm.xlu0 %5993, %v771
    %v5995 = vpop.permute.xlu0 %5994
    %5997 = vset.pattern.permute.xlu0 5
    %5998 = vperm.xlu0 %5997, %v772
    %v5999 = vpop.permute.xlu0 %5998
    %6001 = vset.pattern.permute.xlu0 5
    %6002 = vperm.xlu0 %6001, %v773
    %v6003 = vpop.permute.xlu0 %6002
    %6005 = vset.pattern.permute.xlu0 5
    %6006 = vperm.xlu0 %6005, %v774
    %v6007 = vpop.permute.xlu0 %6006
    %6009 = vset.pattern.permute.xlu0 5
    %6010 = vperm.xlu0 %6009, %v775
    %v6011 = vpop.permute.xlu0 %6010
    %6013 = vset.pattern.permute.xlu0 5
    %6014 = vperm.xlu0 %6013, %v776
    %v6015 = vpop.permute.xlu0 %6014
    %6017 = vset.pattern.permute.xlu0 5
    %6018 = vperm.xlu0 %6017, %v777
    %v6019 = vpop.permute.xlu0 %6018
    %6021 = vset.pattern.permute.xlu0 5
    %6022 = vperm.xlu0 %6021, %v778
    %v6023 = vpop.permute.xlu0 %6022
    %6025 = vset.pattern.permute.xlu0 5
    %6026 = vperm.xlu0 %6025, %v779
    %v6027 = vpop.permute.xlu0 %6026
    %6029 = vset.pattern.permute.xlu0 5
    %6030 = vperm.xlu0 %6029, %v780
    %v6031 = vpop.permute.xlu0 %6030
    %6033 = vset.pattern.permute.xlu0 5
    %6034 = vperm.xlu0 %6033, %v781
    %v6035 = vpop.permute.xlu0 %6034
    %6037 = vset.pattern.permute.xlu0 5
    %6038 = vperm.xlu0 %6037, %v782
    %v6039 = vpop.permute.xlu0 %6038
    %6041 = vset.pattern.permute.xlu0 5
    %6042 = vperm.xlu0 %6041, %v783
    %v6043 = vpop.permute.xlu0 %6042
    %6045 = vset.pattern.permute.xlu0 5
    %6046 = vperm.xlu0 %6045, %v784
    %v6047 = vpop.permute.xlu0 %6046
    %6049 = vset.pattern.permute.xlu0 5
    %6050 = vperm.xlu0 %6049, %v785
    %v6051 = vpop.permute.xlu0 %6050
    %6053 = vset.pattern.permute.xlu0 5
    %6054 = vperm.xlu0 %6053, %v786
    %v6055 = vpop.permute.xlu0 %6054
    %6057 = vset.pattern.permute.xlu0 5
    %6058 = vperm.xlu0 %6057, %v787
    %v6059 = vpop.permute.xlu0 %6058
    %6061 = vset.pattern.permute.xlu0 5
    %6062 = vperm.xlu0 %6061, %v788
    %v6063 = vpop.permute.xlu0 %6062
    %6065 = vset.pattern.permute.xlu0 5
    %6066 = vperm.xlu0 %6065, %v789
    %v6067 = vpop.permute.xlu0 %6066
    %6069 = vset.pattern.permute.xlu0 5
    %6070 = vperm.xlu0 %6069, %v790
    %v6071 = vpop.permute.xlu0 %6070
    %6073 = vset.pattern.permute.xlu0 5
    %6074 = vperm.xlu0 %6073, %v791
    %v6075 = vpop.permute.xlu0 %6074
    %6077 = vset.pattern.permute.xlu0 5
    %6078 = vperm.xlu0 %6077, %v792
    %v6079 = vpop.permute.xlu0 %6078
    %6081 = vset.pattern.permute.xlu0 5
    %6082 = vperm.xlu0 %6081, %v793
    %v6083 = vpop.permute.xlu0 %6082
    %6085 = vset.pattern.permute.xlu0 5
    %6086 = vperm.xlu0 %6085, %v794
    %v6087 = vpop.permute.xlu0 %6086
    %6089 = vset.pattern.permute.xlu0 5
    %6090 = vperm.xlu0 %6089, %v795
    %v6091 = vpop.permute.xlu0 %6090
    %6093 = vset.pattern.permute.xlu0 5
    %6094 = vperm.xlu0 %6093, %v796
    %v6095 = vpop.permute.xlu0 %6094
    %6097 = vset.pattern.permute.xlu0 5
    %6098 = vperm.xlu0 %6097, %v797
    %v6099 = vpop.permute.xlu0 %6098
    %6101 = vset.pattern.permute.xlu0 5
    %6102 = vperm.xlu0 %6101, %v798
    %v6103 = vpop.permute.xlu0 %6102
    %6105 = vset.pattern.permute.xlu0 5
    %6106 = vperm.xlu0 %6105, %v799
    %v6107 = vpop.permute.xlu0 %6106
    %6109 = vset.pattern.permute.xlu0 5
    %6110 = vperm.xlu0 %6109, %v800
    %v6111 = vpop.permute.xlu0 %6110
    %6113 = vset.pattern.permute.xlu0 5
    %6114 = vperm.xlu0 %6113, %v801
    %v6115 = vpop.permute.xlu0 %6114
    %6117 = vset.pattern.permute.xlu0 5
    %6118 = vperm.xlu0 %6117, %v802
    %v6119 = vpop.permute.xlu0 %6118
    %6121 = vset.pattern.permute.xlu0 5
    %6122 = vperm.xlu0 %6121, %v803
    %v6123 = vpop.permute.xlu0 %6122
    %6125 = vset.pattern.permute.xlu0 5
    %6126 = vperm.xlu0 %6125, %v804
    %v6127 = vpop.permute.xlu0 %6126
    %6129 = vset.pattern.permute.xlu0 5
    %6130 = vperm.xlu0 %6129, %v805
    %v6131 = vpop.permute.xlu0 %6130
    %6133 = vset.pattern.permute.xlu0 5
    %6134 = vperm.xlu0 %6133, %v806
    %v6135 = vpop.permute.xlu0 %6134
    %6137 = vset.pattern.permute.xlu0 5
    %6138 = vperm.xlu0 %6137, %v807
    %v6139 = vpop.permute.xlu0 %6138
    %6141 = vset.pattern.permute.xlu0 5
    %6142 = vperm.xlu0 %6141, %v808
    %v6143 = vpop.permute.xlu0 %6142
    %6145 = vset.pattern.permute.xlu0 5
    %6146 = vperm.xlu0 %6145, %v809
    %v6147 = vpop.permute.xlu0 %6146
    %6149 = vset.pattern.permute.xlu0 5
    %6150 = vperm.xlu0 %6149, %v810
    %v6151 = vpop.permute.xlu0 %6150
    %6153 = vset.pattern.permute.xlu0 5
    %6154 = vperm.xlu0 %6153, %v811
    %v6155 = vpop.permute.xlu0 %6154
    %6157 = vset.pattern.permute.xlu0 5
    %6158 = vperm.xlu0 %6157, %v812
    %v6159 = vpop.permute.xlu0 %6158
    %6161 = vset.pattern.permute.xlu0 5
    %6162 = vperm.xlu0 %6161, %v813
    %v6163 = vpop.permute.xlu0 %6162
    %6165 = vset.pattern.permute.xlu0 5
    %6166 = vperm.xlu0 %6165, %v814
    %v6167 = vpop.permute.xlu0 %6166
    %6169 = vset.pattern.permute.xlu0 5
    %6170 = vperm.xlu0 %6169, %v815
    %v6171 = vpop.permute.xlu0 %6170
    %6173 = vset.pattern.permute.xlu0 5
    %6174 = vperm.xlu0 %6173, %v816
    %v6175 = vpop.permute.xlu0 %6174
    %6177 = vset.pattern.permute.xlu0 5
    %6178 = vperm.xlu0 %6177, %v817
    %v6179 = vpop.permute.xlu0 %6178
    %6181 = vset.pattern.permute.xlu0 5
    %6182 = vperm.xlu0 %6181, %v818
    %v6183 = vpop.permute.xlu0 %6182
    %6185 = vset.pattern.permute.xlu0 5
    %6186 = vperm.xlu0 %6185, %v819
    %v6187 = vpop.permute.xlu0 %6186
    %6189 = vset.pattern.permute.xlu0 5
    %6190 = vperm.xlu0 %6189, %v820
    %v6191 = vpop.permute.xlu0 %6190
    %6193 = vset.pattern.permute.xlu0 5
    %6194 = vperm.xlu0 %6193, %v821
    %v6195 = vpop.permute.xlu0 %6194
    %6197 = vset.pattern.permute.xlu0 5
    %6198 = vperm.xlu0 %6197, %v822
    %v6199 = vpop.permute.xlu0 %6198
    %6201 = vset.pattern.permute.xlu0 5
    %6202 = vperm.xlu0 %6201, %v823
    %v6203 = vpop.permute.xlu0 %6202
    %6205 = vset.pattern.permute.xlu0 5
    %6206 = vperm.xlu0 %6205, %v824
    %v6207 = vpop.permute.xlu0 %6206
    %6209 = vset.pattern.permute.xlu0 5
    %6210 = vperm.xlu0 %6209, %v825
    %v6211 = vpop.permute.xlu0 %6210
    %6213 = vset.pattern.permute.xlu0 5
    %6214 = vperm.xlu0 %6213, %v826
    %v6215 = vpop.permute.xlu0 %6214
    %6217 = vset.pattern.permute.xlu0 5
    %6218 = vperm.xlu0 %6217, %v827
    %v6219 = vpop.permute.xlu0 %6218
    %6221 = vset.pattern.permute.xlu0 5
    %6222 = vperm.xlu0 %6221, %v828
    %v6223 = vpop.permute.xlu0 %6222
    %6225 = vset.pattern.permute.xlu0 5
    %6226 = vperm.xlu0 %6225, %v829
    %v6227 = vpop.permute.xlu0 %6226
    %6229 = vset.pattern.permute.xlu0 5
    %6230 = vperm.xlu0 %6229, %v830
    %v6231 = vpop.permute.xlu0 %6230
    %6233 = vset.pattern.permute.xlu0 5
    %6234 = vperm.xlu0 %6233, %v831
    %v6235 = vpop.permute.xlu0 %6234
    %6237 = vset.pattern.permute.xlu0 5
    %6238 = vperm.xlu0 %6237, %v832
    %v6239 = vpop.permute.xlu0 %6238
    %v6241 = vmul.f32 %v5795, %v5987
    %v6242 = vmul.f32 %v5797, %v5991
    %v6243 = vmul.f32 %v5799, %v5995
    %v6244 = vmul.f32 %v5801, %v5999
    %v6245 = vmul.f32 %v5803, %v6003
    %v6246 = vmul.f32 %v5805, %v6007
    %v6247 = vmul.f32 %v5807, %v6011
    %v6248 = vmul.f32 %v5809, %v6015
    %v6249 = vmul.f32 %v5811, %v6019
    %v6250 = vmul.f32 %v5813, %v6023
    %v6251 = vmul.f32 %v5815, %v6027
    %v6252 = vmul.f32 %v5817, %v6031
    %v6253 = vmul.f32 %v5819, %v6035
    %v6254 = vmul.f32 %v5821, %v6039
    %v6255 = vmul.f32 %v5823, %v6043
    %v6256 = vmul.f32 %v5825, %v6047
    %v6257 = vmul.f32 %v5827, %v6051
    %v6258 = vmul.f32 %v5829, %v6055
    %v6259 = vmul.f32 %v5831, %v6059
    %v6260 = vmul.f32 %v5833, %v6063
    %v6261 = vmul.f32 %v5835, %v6067
    %v6262 = vmul.f32 %v5837, %v6071
    %v6263 = vmul.f32 %v5839, %v6075
    %v6264 = vmul.f32 %v5841, %v6079
    %v6265 = vmul.f32 %v5843, %v6083
    %v6266 = vmul.f32 %v5845, %v6087
    %v6267 = vmul.f32 %v5847, %v6091
    %v6268 = vmul.f32 %v5849, %v6095
    %v6269 = vmul.f32 %v5851, %v6099
    %v6270 = vmul.f32 %v5853, %v6103
    %v6271 = vmul.f32 %v5855, %v6107
    %v6272 = vmul.f32 %v5857, %v6111
    %v6273 = vmul.f32 %v5859, %v6115
    %v6274 = vmul.f32 %v5861, %v6119
    %v6275 = vmul.f32 %v5863, %v6123
    %v6276 = vmul.f32 %v5865, %v6127
    %v6277 = vmul.f32 %v5867, %v6131
    %v6278 = vmul.f32 %v5869, %v6135
    %v6279 = vmul.f32 %v5871, %v6139
    %v6280 = vmul.f32 %v5873, %v6143
    %v6281 = vmul.f32 %v5875, %v6147
    %v6282 = vmul.f32 %v5877, %v6151
    %v6283 = vmul.f32 %v5879, %v6155
    %v6284 = vmul.f32 %v5881, %v6159
    %v6285 = vmul.f32 %v5883, %v6163
    %v6286 = vmul.f32 %v5885, %v6167
    %v6287 = vmul.f32 %v5887, %v6171
    %v6288 = vmul.f32 %v5889, %v6175
    %v6289 = vmul.f32 %v5891, %v6179
    %v6290 = vmul.f32 %v5893, %v6183
    %v6291 = vmul.f32 %v5895, %v6187
    %v6292 = vmul.f32 %v5897, %v6191
    %v6293 = vmul.f32 %v5899, %v6195
    %v6294 = vmul.f32 %v5901, %v6199
    %v6295 = vmul.f32 %v5903, %v6203
    %v6296 = vmul.f32 %v5905, %v6207
    %v6297 = vmul.f32 %v5907, %v6211
    %v6298 = vmul.f32 %v5909, %v6215
    %v6299 = vmul.f32 %v5911, %v6219
    %v6300 = vmul.f32 %v5913, %v6223
    %v6301 = vmul.f32 %v5915, %v6227
    %v6302 = vmul.f32 %v5917, %v6231
    %v6303 = vmul.f32 %v5919, %v6235
    %v6304 = vmul.f32 %v5984, %v6239
    %v6305 = vadd.f32 %v5275, %v6241
    %v6306 = vadd.f32 %v5276, %v6242
    %v6307 = vadd.f32 %v5277, %v6243
    %v6308 = vadd.f32 %v5278, %v6244
    %v6309 = vadd.f32 %v5279, %v6245
    %v6310 = vadd.f32 %v5280, %v6246
    %v6311 = vadd.f32 %v5281, %v6247
    %v6312 = vadd.f32 %v5282, %v6248
    %v6313 = vadd.f32 %v5283, %v6249
    %v6314 = vadd.f32 %v5284, %v6250
    %v6315 = vadd.f32 %v5285, %v6251
    %v6316 = vadd.f32 %v5286, %v6252
    %v6317 = vadd.f32 %v5287, %v6253
    %v6318 = vadd.f32 %v5288, %v6254
    %v6319 = vadd.f32 %v5289, %v6255
    %v6320 = vadd.f32 %v5290, %v6256
    %v6321 = vadd.f32 %v5291, %v6257
    %v6322 = vadd.f32 %v5292, %v6258
    %v6323 = vadd.f32 %v5293, %v6259
    %v6324 = vadd.f32 %v5294, %v6260
    %v6325 = vadd.f32 %v5295, %v6261
    %v6326 = vadd.f32 %v5296, %v6262
    %v6327 = vadd.f32 %v5297, %v6263
    %v6328 = vadd.f32 %v5298, %v6264
    %v6329 = vadd.f32 %v5299, %v6265
    %v6330 = vadd.f32 %v5300, %v6266
    %v6331 = vadd.f32 %v5301, %v6267
    %v6332 = vadd.f32 %v5302, %v6268
    %v6333 = vadd.f32 %v5303, %v6269
    %v6334 = vadd.f32 %v5304, %v6270
    %v6335 = vadd.f32 %v5305, %v6271
    %v6336 = vadd.f32 %v5306, %v6272
    %v6337 = vadd.f32 %v5307, %v6273
    %v6338 = vadd.f32 %v5308, %v6274
    %v6339 = vadd.f32 %v5309, %v6275
    %v6340 = vadd.f32 %v5310, %v6276
    %v6341 = vadd.f32 %v5311, %v6277
    %v6342 = vadd.f32 %v5312, %v6278
    %v6343 = vadd.f32 %v5313, %v6279
    %v6344 = vadd.f32 %v5314, %v6280
    %v6345 = vadd.f32 %v5315, %v6281
    %v6346 = vadd.f32 %v5316, %v6282
    %v6347 = vadd.f32 %v5317, %v6283
    %v6348 = vadd.f32 %v5318, %v6284
    %v6349 = vadd.f32 %v5319, %v6285
    %v6350 = vadd.f32 %v5320, %v6286
    %v6351 = vadd.f32 %v5321, %v6287
    %v6352 = vadd.f32 %v5322, %v6288
    %v6353 = vadd.f32 %v5323, %v6289
    %v6354 = vadd.f32 %v5324, %v6290
    %v6355 = vadd.f32 %v5325, %v6291
    %v6356 = vadd.f32 %v5326, %v6292
    %v6357 = vadd.f32 %v5327, %v6293
    %v6358 = vadd.f32 %v5328, %v6294
    %v6359 = vadd.f32 %v5329, %v6295
    %v6360 = vadd.f32 %v5330, %v6296
    %v6361 = vadd.f32 %v5331, %v6297
    %v6362 = vadd.f32 %v5332, %v6298
    %v6363 = vadd.f32 %v5333, %v6299
    %v6364 = vadd.f32 %v5334, %v6300
    %v6365 = vadd.f32 %v5335, %v6301
    %v6366 = vadd.f32 %v5336, %v6302
    %v6367 = vadd.f32 %v5337, %v6303
    %v6368 = vadd.f32 %v5338, %v6304
    %s6369 = scalar_lea.vmem %s3, 24
    %v6370 = vld [vmem:[%s6369] sm:$0xf]
    %v6372 = vsel %vm1027, %v6370, 0
    %6374 = vmatprep.subr.mxu0 0.0
    %6375 = vmatpush1.msra.mxu0 %v6372
    %6376 = vmatprep.subr.mxu0 0.0
    %6377 = vmatpush1.msra.mxu0 0.0
    %6378 = vmatprep.subr.mxu0 0.0
    %6379 = vmatpush1.msra.mxu0 0.0
    %6380 = vmatprep.subr.mxu0 0.0
    %6381 = vmatpush1.msra.mxu0 0.0
    %6382 = vmatprep.subr.mxu0 0.0
    %6383 = vmatpush1.msra.mxu0 0.0
    %6384 = vmatprep.subr.mxu0 0.0
    %6385 = vmatpush1.msra.mxu0 0.0
    %6386 = vmatprep.subr.mxu0 0.0
    %6387 = vmatpush1.msra.mxu0 0.0
    %6388 = vmatprep.subr.mxu0 0.0
    %6389 = vmatpush1.msra.mxu0 0.0
    %6390 = vmatprep.subr.mxu0 0.0
    %6391 = vmatpush1.msra.mxu0 0.0
    %6392 = vmatprep.subr.mxu0 0.0
    %6393 = vmatpush1.msra.mxu0 0.0
    %6394 = vmatprep.subr.mxu0 0.0
    %6395 = vmatpush1.msra.mxu0 0.0
    %6396 = vmatprep.subr.mxu0 0.0
    %6397 = vmatpush1.msra.mxu0 0.0
    %6398 = vmatprep.subr.mxu0 0.0
    %6399 = vmatpush1.msra.mxu0 0.0
    %6400 = vmatprep.subr.mxu0 0.0
    %6401 = vmatpush1.msra.mxu0 0.0
    %6402 = vmatprep.subr.mxu0 0.0
    %6403 = vmatpush1.msra.mxu0 0.0
    %6404 = vmatprep.subr.mxu0 0.0
    %6405 = vmatpush1.msra.mxu0 0.0
    %6406 = vmatprep.subr.mxu0 0.0
    %6407 = vmatpush1.msra.mxu0 0.0
    %6408 = vmatprep.subr.mxu0 0.0
    %6409 = vmatpush1.msra.mxu0 0.0
    %6410 = vmatprep.subr.mxu0 0.0
    %6411 = vmatpush1.msra.mxu0 0.0
    %6412 = vmatprep.subr.mxu0 0.0
    %6413 = vmatpush1.msra.mxu0 0.0
    %6414 = vmatprep.subr.mxu0 0.0
    %6415 = vmatpush1.msra.mxu0 0.0
    %6416 = vmatprep.subr.mxu0 0.0
    %6417 = vmatpush1.msra.mxu0 0.0
    %6418 = vmatprep.subr.mxu0 0.0
    %6419 = vmatpush1.msra.mxu0 0.0
    %6420 = vmatprep.subr.mxu0 0.0
    %6421 = vmatpush1.msra.mxu0 0.0
    %6422 = vmatprep.subr.mxu0 0.0
    %6423 = vmatpush1.msra.mxu0 0.0
    %6424 = vmatprep.subr.mxu0 0.0
    %6425 = vmatpush1.msra.mxu0 0.0
    %6426 = vmatprep.subr.mxu0 0.0
    %6427 = vmatpush1.msra.mxu0 0.0
    %6428 = vmatprep.subr.mxu0 0.0
    %6429 = vmatpush1.msra.mxu0 0.0
    %6430 = vmatprep.subr.mxu0 0.0
    %6431 = vmatpush1.msra.mxu0 0.0
    %6432 = vmatprep.subr.mxu0 0.0
    %6433 = vmatpush1.msra.mxu0 0.0
    %6434 = vmatprep.subr.mxu0 0.0
    %6435 = vmatpush1.msra.mxu0 0.0
    %6436 = vmatprep.subr.mxu0 0.0
    %6437 = vmatpush1.msra.mxu0 0.0
    %6438 = vmatprep.mubr.f32.mxu0 0.0
    %6439 = vmatmul.mubr.f32.gmra.mrb[0].mxu0 %v836
    %v6440 = vpop.f32.mrb[0].mxu0
    %v6441 = vadd.f32 0.0, %v6440
    %v6442 = vpop.f32.mrb[0].mxu0
    %6443 = vmatprep.mubr.f32.mxu0 0.0
    %6444 = vmatmul.mubr.f32.gmra.mrb[0].mxu0 %v839
    %v6445 = vpop.f32.mrb[0].mxu0
    %v6446 = vadd.f32 0.0, %v6445
    %v6447 = vpop.f32.mrb[0].mxu0
    %6448 = vmatprep.mubr.f32.mxu0 0.0
    %6449 = vmatmul.mubr.f32.gmra.mrb[0].mxu0 %v842
    %v6450 = vpop.f32.mrb[0].mxu0
    %v6451 = vadd.f32 0.0, %v6450
    %v6452 = vpop.f32.mrb[0].mxu0
    %6453 = vmatprep.mubr.f32.mxu0 0.0
    %6454 = vmatmul.mubr.f32.gmra.mrb[0].mxu0 %v845
    %v6455 = vpop.f32.mrb[0].mxu0
    %v6456 = vadd.f32 0.0, %v6455
    %v6457 = vpop.f32.mrb[0].mxu0
    %6458 = vmatprep.mubr.f32.mxu0 0.0
    %6459 = vmatmul.mubr.f32.gmra.mrb[0].mxu0 %v848
    %v6460 = vpop.f32.mrb[0].mxu0
    %v6461 = vadd.f32 0.0, %v6460
    %v6462 = vpop.f32.mrb[0].mxu0
    %6463 = vmatprep.mubr.f32.mxu0 0.0
    %6464 = vmatmul.mubr.f32.gmra.mrb[0].mxu0 %v851
    %v6465 = vpop.f32.mrb[0].mxu0
    %v6466 = vadd.f32 0.0, %v6465
    %v6467 = vpop.f32.mrb[0].mxu0
    %6468 = vmatprep.mubr.f32.mxu0 0.0
    %6469 = vmatmul.mubr.f32.gmra.mrb[0].mxu0 %v854
    %v6470 = vpop.f32.mrb[0].mxu0
    %v6471 = vadd.f32 0.0, %v6470
    %v6472 = vpop.f32.mrb[0].mxu0
    %6473 = vmatprep.mubr.f32.mxu0 0.0
    %6474 = vmatmul.mubr.f32.gmra.mrb[0].mxu0 %v857
    %v6475 = vpop.f32.mrb[0].mxu0
    %v6476 = vadd.f32 0.0, %v6475
    %v6477 = vpop.f32.mrb[0].mxu0
    %6478 = vmatprep.mubr.f32.mxu0 0.0
    %6479 = vmatmul.mubr.f32.gmra.mrb[0].mxu0 %v860
    %v6480 = vpop.f32.mrb[0].mxu0
    %v6481 = vadd.f32 0.0, %v6480
    %v6482 = vpop.f32.mrb[0].mxu0
    %6483 = vmatprep.mubr.f32.mxu0 0.0
    %6484 = vmatmul.mubr.f32.gmra.mrb[0].mxu0 %v863
    %v6485 = vpop.f32.mrb[0].mxu0
    %v6486 = vadd.f32 0.0, %v6485
    %v6487 = vpop.f32.mrb[0].mxu0
    %6488 = vmatprep.mubr.f32.mxu0 0.0
    %6489 = vmatmul.mubr.f32.gmra.mrb[0].mxu0 %v866
    %v6490 = vpop.f32.mrb[0].mxu0
    %v6491 = vadd.f32 0.0, %v6490
    %v6492 = vpop.f32.mrb[0].mxu0
    %6493 = vmatprep.mubr.f32.mxu0 0.0
    %6494 = vmatmul.mubr.f32.gmra.mrb[0].mxu0 %v869
    %v6495 = vpop.f32.mrb[0].mxu0
    %v6496 = vadd.f32 0.0, %v6495
    %v6497 = vpop.f32.mrb[0].mxu0
    %6498 = vmatprep.mubr.f32.mxu0 0.0
    %6499 = vmatmul.mubr.f32.gmra.mrb[0].mxu0 %v872
    %v6500 = vpop.f32.mrb[0].mxu0
    %v6501 = vadd.f32 0.0, %v6500
    %v6502 = vpop.f32.mrb[0].mxu0
    %6503 = vmatprep.mubr.f32.mxu0 0.0
    %6504 = vmatmul.mubr.f32.gmra.mrb[0].mxu0 %v875
    %v6505 = vpop.f32.mrb[0].mxu0
    %v6506 = vadd.f32 0.0, %v6505
    %v6507 = vpop.f32.mrb[0].mxu0
    %6508 = vmatprep.mubr.f32.mxu0 0.0
    %6509 = vmatmul.mubr.f32.gmra.mrb[0].mxu0 %v878
    %v6510 = vpop.f32.mrb[0].mxu0
    %v6511 = vadd.f32 0.0, %v6510
    %v6512 = vpop.f32.mrb[0].mxu0
    %6513 = vmatprep.mubr.f32.mxu0 0.0
    %6514 = vmatmul.mubr.f32.gmra.mrb[0].mxu0 %v881
    %v6515 = vpop.f32.mrb[0].mxu0
    %v6516 = vadd.f32 0.0, %v6515
    %v6517 = vpop.f32.mrb[0].mxu0
    %6518 = vmatprep.mubr.f32.mxu0 0.0
    %6519 = vmatmul.mubr.f32.gmra.mrb[0].mxu0 %v884
    %v6520 = vpop.f32.mrb[0].mxu0
    %v6521 = vadd.f32 0.0, %v6520
    %v6522 = vpop.f32.mrb[0].mxu0
    %6523 = vmatprep.mubr.f32.mxu0 0.0
    %6524 = vmatmul.mubr.f32.gmra.mrb[0].mxu0 %v887
    %v6525 = vpop.f32.mrb[0].mxu0
    %v6526 = vadd.f32 0.0, %v6525
    %v6527 = vpop.f32.mrb[0].mxu0
    %6528 = vmatprep.mubr.f32.mxu0 0.0
    %6529 = vmatmul.mubr.f32.gmra.mrb[0].mxu0 %v890
    %v6530 = vpop.f32.mrb[0].mxu0
    %v6531 = vadd.f32 0.0, %v6530
    %v6532 = vpop.f32.mrb[0].mxu0
    %6533 = vmatprep.mubr.f32.mxu0 0.0
    %6534 = vmatmul.mubr.f32.gmra.mrb[0].mxu0 %v893
    %v6535 = vpop.f32.mrb[0].mxu0
    %v6536 = vadd.f32 0.0, %v6535
    %v6537 = vpop.f32.mrb[0].mxu0
    %6538 = vmatprep.mubr.f32.mxu0 0.0
    %6539 = vmatmul.mubr.f32.gmra.mrb[0].mxu0 %v896
    %v6540 = vpop.f32.mrb[0].mxu0
    %v6541 = vadd.f32 0.0, %v6540
    %v6542 = vpop.f32.mrb[0].mxu0
    %6543 = vmatprep.mubr.f32.mxu0 0.0
    %6544 = vmatmul.mubr.f32.gmra.mrb[0].mxu0 %v899
    %v6545 = vpop.f32.mrb[0].mxu0
    %v6546 = vadd.f32 0.0, %v6545
    %v6547 = vpop.f32.mrb[0].mxu0
    %6548 = vmatprep.mubr.f32.mxu0 0.0
    %6549 = vmatmul.mubr.f32.gmra.mrb[0].mxu0 %v902
    %v6550 = vpop.f32.mrb[0].mxu0
    %v6551 = vadd.f32 0.0, %v6550
    %v6552 = vpop.f32.mrb[0].mxu0
    %6553 = vmatprep.mubr.f32.mxu0 0.0
    %6554 = vmatmul.mubr.f32.gmra.mrb[0].mxu0 %v905
    %v6555 = vpop.f32.mrb[0].mxu0
    %v6556 = vadd.f32 0.0, %v6555
    %v6557 = vpop.f32.mrb[0].mxu0
    %6558 = vmatprep.mubr.f32.mxu0 0.0
    %6559 = vmatmul.mubr.f32.gmra.mrb[0].mxu0 %v908
    %v6560 = vpop.f32.mrb[0].mxu0
    %v6561 = vadd.f32 0.0, %v6560
    %v6562 = vpop.f32.mrb[0].mxu0
    %6563 = vmatprep.mubr.f32.mxu0 0.0
    %6564 = vmatmul.mubr.f32.gmra.mrb[0].mxu0 %v911
    %v6565 = vpop.f32.mrb[0].mxu0
    %v6566 = vadd.f32 0.0, %v6565
    %v6567 = vpop.f32.mrb[0].mxu0
    %6568 = vmatprep.mubr.f32.mxu0 0.0
    %6569 = vmatmul.mubr.f32.gmra.mrb[0].mxu0 %v914
    %v6570 = vpop.f32.mrb[0].mxu0
    %v6571 = vadd.f32 0.0, %v6570
    %v6572 = vpop.f32.mrb[0].mxu0
    %6573 = vmatprep.mubr.f32.mxu0 0.0
    %6574 = vmatmul.mubr.f32.gmra.mrb[0].mxu0 %v917
    %v6575 = vpop.f32.mrb[0].mxu0
    %v6576 = vadd.f32 0.0, %v6575
    %v6577 = vpop.f32.mrb[0].mxu0
    %6578 = vmatprep.mubr.f32.mxu0 0.0
    %6579 = vmatmul.mubr.f32.gmra.mrb[0].mxu0 %v920
    %v6580 = vpop.f32.mrb[0].mxu0
    %v6581 = vadd.f32 0.0, %v6580
    %v6582 = vpop.f32.mrb[0].mxu0
    %6583 = vmatprep.mubr.f32.mxu0 0.0
    %6584 = vmatmul.mubr.f32.gmra.mrb[0].mxu0 %v923
    %v6585 = vpop.f32.mrb[0].mxu0
    %v6586 = vadd.f32 0.0, %v6585
    %v6587 = vpop.f32.mrb[0].mxu0
    %6588 = vmatprep.mubr.f32.mxu0 0.0
    %6589 = vmatmul.mubr.f32.gmra.mrb[0].mxu0 %v926
    %v6590 = vpop.f32.mrb[0].mxu0
    %v6591 = vadd.f32 0.0, %v6590
    %v6592 = vpop.f32.mrb[0].mxu0
    %6593 = vmatprep.mubr.f32.mxu0 0.0
    %6594 = vmatmul.mubr.f32.gmra.mrb[0].mxu0 %v929
    %v6595 = vpop.f32.mrb[0].mxu0
    %v6596 = vadd.f32 0.0, %v6595
    %v6597 = vpop.f32.mrb[0].mxu0
    %6598 = vmatprep.mubr.f32.mxu0 0.0
    %6599 = vmatmul.mubr.f32.gmra.mrb[0].mxu0 %v932
    %v6600 = vpop.f32.mrb[0].mxu0
    %v6601 = vadd.f32 0.0, %v6600
    %v6602 = vpop.f32.mrb[0].mxu0
    %6603 = vmatprep.mubr.f32.mxu0 0.0
    %6604 = vmatmul.mubr.f32.gmra.mrb[0].mxu0 %v935
    %v6605 = vpop.f32.mrb[0].mxu0
    %v6606 = vadd.f32 0.0, %v6605
    %v6607 = vpop.f32.mrb[0].mxu0
    %6608 = vmatprep.mubr.f32.mxu0 0.0
    %6609 = vmatmul.mubr.f32.gmra.mrb[0].mxu0 %v938
    %v6610 = vpop.f32.mrb[0].mxu0
    %v6611 = vadd.f32 0.0, %v6610
    %v6612 = vpop.f32.mrb[0].mxu0
    %6613 = vmatprep.mubr.f32.mxu0 0.0
    %6614 = vmatmul.mubr.f32.gmra.mrb[0].mxu0 %v941
    %v6615 = vpop.f32.mrb[0].mxu0
    %v6616 = vadd.f32 0.0, %v6615
    %v6617 = vpop.f32.mrb[0].mxu0
    %6618 = vmatprep.mubr.f32.mxu0 0.0
    %6619 = vmatmul.mubr.f32.gmra.mrb[0].mxu0 %v944
    %v6620 = vpop.f32.mrb[0].mxu0
    %v6621 = vadd.f32 0.0, %v6620
    %v6622 = vpop.f32.mrb[0].mxu0
    %6623 = vmatprep.mubr.f32.mxu0 0.0
    %6624 = vmatmul.mubr.f32.gmra.mrb[0].mxu0 %v947
    %v6625 = vpop.f32.mrb[0].mxu0
    %v6626 = vadd.f32 0.0, %v6625
    %v6627 = vpop.f32.mrb[0].mxu0
    %6628 = vmatprep.mubr.f32.mxu0 0.0
    %6629 = vmatmul.mubr.f32.gmra.mrb[0].mxu0 %v950
    %v6630 = vpop.f32.mrb[0].mxu0
    %v6631 = vadd.f32 0.0, %v6630
    %v6632 = vpop.f32.mrb[0].mxu0
    %6633 = vmatprep.mubr.f32.mxu0 0.0
    %6634 = vmatmul.mubr.f32.gmra.mrb[0].mxu0 %v953
    %v6635 = vpop.f32.mrb[0].mxu0
    %v6636 = vadd.f32 0.0, %v6635
    %v6637 = vpop.f32.mrb[0].mxu0
    %6638 = vmatprep.mubr.f32.mxu0 0.0
    %6639 = vmatmul.mubr.f32.gmra.mrb[0].mxu0 %v956
    %v6640 = vpop.f32.mrb[0].mxu0
    %v6641 = vadd.f32 0.0, %v6640
    %v6642 = vpop.f32.mrb[0].mxu0
    %6643 = vmatprep.mubr.f32.mxu0 0.0
    %6644 = vmatmul.mubr.f32.gmra.mrb[0].mxu0 %v959
    %v6645 = vpop.f32.mrb[0].mxu0
    %v6646 = vadd.f32 0.0, %v6645
    %v6647 = vpop.f32.mrb[0].mxu0
    %6648 = vmatprep.mubr.f32.mxu0 0.0
    %6649 = vmatmul.mubr.f32.gmra.mrb[0].mxu0 %v962
    %v6650 = vpop.f32.mrb[0].mxu0
    %v6651 = vadd.f32 0.0, %v6650
    %v6652 = vpop.f32.mrb[0].mxu0
    %6653 = vmatprep.mubr.f32.mxu0 0.0
    %6654 = vmatmul.mubr.f32.gmra.mrb[0].mxu0 %v965
    %v6655 = vpop.f32.mrb[0].mxu0
    %v6656 = vadd.f32 0.0, %v6655
    %v6657 = vpop.f32.mrb[0].mxu0
    %6658 = vmatprep.mubr.f32.mxu0 0.0
    %6659 = vmatmul.mubr.f32.gmra.mrb[0].mxu0 %v968
    %v6660 = vpop.f32.mrb[0].mxu0
    %v6661 = vadd.f32 0.0, %v6660
    %v6662 = vpop.f32.mrb[0].mxu0
    %6663 = vmatprep.mubr.f32.mxu0 0.0
    %6664 = vmatmul.mubr.f32.gmra.mrb[0].mxu0 %v971
    %v6665 = vpop.f32.mrb[0].mxu0
    %v6666 = vadd.f32 0.0, %v6665
    %v6667 = vpop.f32.mrb[0].mxu0
    %6668 = vmatprep.mubr.f32.mxu0 0.0
    %6669 = vmatmul.mubr.f32.gmra.mrb[0].mxu0 %v974
    %v6670 = vpop.f32.mrb[0].mxu0
    %v6671 = vadd.f32 0.0, %v6670
    %v6672 = vpop.f32.mrb[0].mxu0
    %6673 = vmatprep.mubr.f32.mxu0 0.0
    %6674 = vmatmul.mubr.f32.gmra.mrb[0].mxu0 %v977
    %v6675 = vpop.f32.mrb[0].mxu0
    %v6676 = vadd.f32 0.0, %v6675
    %v6677 = vpop.f32.mrb[0].mxu0
    %6678 = vmatprep.mubr.f32.mxu0 0.0
    %6679 = vmatmul.mubr.f32.gmra.mrb[0].mxu0 %v980
    %v6680 = vpop.f32.mrb[0].mxu0
    %v6681 = vadd.f32 0.0, %v6680
    %v6682 = vpop.f32.mrb[0].mxu0
    %6683 = vmatprep.mubr.f32.mxu0 0.0
    %6684 = vmatmul.mubr.f32.gmra.mrb[0].mxu0 %v983
    %v6685 = vpop.f32.mrb[0].mxu0
    %v6686 = vadd.f32 0.0, %v6685
    %v6687 = vpop.f32.mrb[0].mxu0
    %6688 = vmatprep.mubr.f32.mxu0 0.0
    %6689 = vmatmul.mubr.f32.gmra.mrb[0].mxu0 %v986
    %v6690 = vpop.f32.mrb[0].mxu0
    %v6691 = vadd.f32 0.0, %v6690
    %v6692 = vpop.f32.mrb[0].mxu0
    %6693 = vmatprep.mubr.f32.mxu0 0.0
    %6694 = vmatmul.mubr.f32.gmra.mrb[0].mxu0 %v989
    %v6695 = vpop.f32.mrb[0].mxu0
    %v6696 = vadd.f32 0.0, %v6695
    %v6697 = vpop.f32.mrb[0].mxu0
    %6698 = vmatprep.mubr.f32.mxu0 0.0
    %6699 = vmatmul.mubr.f32.gmra.mrb[0].mxu0 %v992
    %v6700 = vpop.f32.mrb[0].mxu0
    %v6701 = vadd.f32 0.0, %v6700
    %v6702 = vpop.f32.mrb[0].mxu0
    %6703 = vmatprep.mubr.f32.mxu0 0.0
    %6704 = vmatmul.mubr.f32.gmra.mrb[0].mxu0 %v995
    %v6705 = vpop.f32.mrb[0].mxu0
    %v6706 = vadd.f32 0.0, %v6705
    %v6707 = vpop.f32.mrb[0].mxu0
    %6708 = vmatprep.mubr.f32.mxu0 0.0
    %6709 = vmatmul.mubr.f32.gmra.mrb[0].mxu0 %v998
    %v6710 = vpop.f32.mrb[0].mxu0
    %v6711 = vadd.f32 0.0, %v6710
    %v6712 = vpop.f32.mrb[0].mxu0
    %6713 = vmatprep.mubr.f32.mxu0 0.0
    %6714 = vmatmul.mubr.f32.gmra.mrb[0].mxu0 %v1001
    %v6715 = vpop.f32.mrb[0].mxu0
    %v6716 = vadd.f32 0.0, %v6715
    %v6717 = vpop.f32.mrb[0].mxu0
    %6718 = vmatprep.mubr.f32.mxu0 0.0
    %6719 = vmatmul.mubr.f32.gmra.mrb[0].mxu0 %v1004
    %v6720 = vpop.f32.mrb[0].mxu0
    %v6721 = vadd.f32 0.0, %v6720
    %v6722 = vpop.f32.mrb[0].mxu0
    %6723 = vmatprep.mubr.f32.mxu0 0.0
    %6724 = vmatmul.mubr.f32.gmra.mrb[0].mxu0 %v1007
    %v6725 = vpop.f32.mrb[0].mxu0
    %v6726 = vadd.f32 0.0, %v6725
    %v6727 = vpop.f32.mrb[0].mxu0
    %6728 = vmatprep.mubr.f32.mxu0 0.0
    %6729 = vmatmul.mubr.f32.gmra.mrb[0].mxu0 %v1010
    %v6730 = vpop.f32.mrb[0].mxu0
    %v6731 = vadd.f32 0.0, %v6730
    %v6732 = vpop.f32.mrb[0].mxu0
    %6733 = vmatprep.mubr.f32.mxu0 0.0
    %6734 = vmatmul.mubr.f32.gmra.mrb[0].mxu0 %v1013
    %v6735 = vpop.f32.mrb[0].mxu0
    %v6736 = vadd.f32 0.0, %v6735
    %v6737 = vpop.f32.mrb[0].mxu0
    %6738 = vmatprep.mubr.f32.mxu0 0.0
    %6739 = vmatmul.mubr.f32.gmra.mrb[0].mxu0 %v1016
    %v6740 = vpop.f32.mrb[0].mxu0
    %v6741 = vadd.f32 0.0, %v6740
    %v6742 = vpop.f32.mrb[0].mxu0
    %6743 = vmatprep.mubr.f32.mxu0 0.0
    %6744 = vmatmul.mubr.f32.gmra.mrb[0].mxu0 %v1019
    %v6745 = vpop.f32.mrb[0].mxu0
    %v6746 = vadd.f32 0.0, %v6745
    %v6747 = vpop.f32.mrb[0].mxu0
    %6748 = vmatprep.mubr.f32.mxu0 0.0
    %6749 = vmatmul.mubr.f32.gmra.mrb[0].mxu0 %v1022
    %v6750 = vpop.f32.mrb[0].mxu0
    %v6751 = vadd.f32 0.0, %v6750
    %v6752 = vpop.f32.mrb[0].mxu0
    %6753 = vmatprep.mubr.f32.mxu0 0.0
    %6754 = vmatmul.mubr.f32.gmra.mrb[0].mxu0 %v1025
    %v6755 = vpop.f32.mrb[0].mxu0
    %v6756 = vadd.f32 0.0, %v6755
    %v6757 = vpop.f32.mrb[0].mxu0
    %6758 = vdwg.mxu0
    %v6823 = vrot.slane %v6441, 7
    %v6824 = vrot.slane %v6446, 7
    %v6825 = vsel %vm316, %v6823, %v6824
    %v6826 = vrot.slane %v6451, 7
    %v6827 = vsel %vm316, %v6824, %v6826
    %v6828 = vrot.slane %v6456, 7
    %v6829 = vsel %vm316, %v6826, %v6828
    %v6830 = vrot.slane %v6461, 7
    %v6831 = vsel %vm316, %v6828, %v6830
    %v6832 = vrot.slane %v6466, 7
    %v6833 = vsel %vm316, %v6830, %v6832
    %v6834 = vrot.slane %v6471, 7
    %v6835 = vsel %vm316, %v6832, %v6834
    %v6836 = vrot.slane %v6476, 7
    %v6837 = vsel %vm316, %v6834, %v6836
    %v6838 = vrot.slane %v6481, 7
    %v6839 = vsel %vm316, %v6836, %v6838
    %v6840 = vrot.slane %v6486, 7
    %v6841 = vsel %vm316, %v6838, %v6840
    %v6842 = vrot.slane %v6491, 7
    %v6843 = vsel %vm316, %v6840, %v6842
    %v6844 = vrot.slane %v6496, 7
    %v6845 = vsel %vm316, %v6842, %v6844
    %v6846 = vrot.slane %v6501, 7
    %v6847 = vsel %vm316, %v6844, %v6846
    %v6848 = vrot.slane %v6506, 7
    %v6849 = vsel %vm316, %v6846, %v6848
    %v6850 = vrot.slane %v6511, 7
    %v6851 = vsel %vm316, %v6848, %v6850
    %v6852 = vrot.slane %v6516, 7
    %v6853 = vsel %vm316, %v6850, %v6852
    %v6854 = vrot.slane %v6521, 7
    %v6855 = vsel %vm316, %v6852, %v6854
    %v6856 = vrot.slane %v6526, 7
    %v6857 = vsel %vm316, %v6854, %v6856
    %v6858 = vrot.slane %v6531, 7
    %v6859 = vsel %vm316, %v6856, %v6858
    %v6860 = vrot.slane %v6536, 7
    %v6861 = vsel %vm316, %v6858, %v6860
    %v6862 = vrot.slane %v6541, 7
    %v6863 = vsel %vm316, %v6860, %v6862
    %v6864 = vrot.slane %v6546, 7
    %v6865 = vsel %vm316, %v6862, %v6864
    %v6866 = vrot.slane %v6551, 7
    %v6867 = vsel %vm316, %v6864, %v6866
    %v6868 = vrot.slane %v6556, 7
    %v6869 = vsel %vm316, %v6866, %v6868
    %v6870 = vrot.slane %v6561, 7
    %v6871 = vsel %vm316, %v6868, %v6870
    %v6872 = vrot.slane %v6566, 7
    %v6873 = vsel %vm316, %v6870, %v6872
    %v6874 = vrot.slane %v6571, 7
    %v6875 = vsel %vm316, %v6872, %v6874
    %v6876 = vrot.slane %v6576, 7
    %v6877 = vsel %vm316, %v6874, %v6876
    %v6878 = vrot.slane %v6581, 7
    %v6879 = vsel %vm316, %v6876, %v6878
    %v6880 = vrot.slane %v6586, 7
    %v6881 = vsel %vm316, %v6878, %v6880
    %v6882 = vrot.slane %v6591, 7
    %v6883 = vsel %vm316, %v6880, %v6882
    %v6884 = vrot.slane %v6596, 7
    %v6885 = vsel %vm316, %v6882, %v6884
    %v6886 = vrot.slane %v6601, 7
    %v6887 = vsel %vm316, %v6884, %v6886
    %v6888 = vrot.slane %v6606, 7
    %v6889 = vsel %vm316, %v6886, %v6888
    %v6890 = vrot.slane %v6611, 7
    %v6891 = vsel %vm316, %v6888, %v6890
    %v6892 = vrot.slane %v6616, 7
    %v6893 = vsel %vm316, %v6890, %v6892
    %v6894 = vrot.slane %v6621, 7
    %v6895 = vsel %vm316, %v6892, %v6894
    %v6896 = vrot.slane %v6626, 7
    %v6897 = vsel %vm316, %v6894, %v6896
    %v6898 = vrot.slane %v6631, 7
    %v6899 = vsel %vm316, %v6896, %v6898
    %v6900 = vrot.slane %v6636, 7
    %v6901 = vsel %vm316, %v6898, %v6900
    %v6902 = vrot.slane %v6641, 7
    %v6903 = vsel %vm316, %v6900, %v6902
    %v6904 = vrot.slane %v6646, 7
    %v6905 = vsel %vm316, %v6902, %v6904
    %v6906 = vrot.slane %v6651, 7
    %v6907 = vsel %vm316, %v6904, %v6906
    %v6908 = vrot.slane %v6656, 7
    %v6909 = vsel %vm316, %v6906, %v6908
    %v6910 = vrot.slane %v6661, 7
    %v6911 = vsel %vm316, %v6908, %v6910
    %v6912 = vrot.slane %v6666, 7
    %v6913 = vsel %vm316, %v6910, %v6912
    %v6914 = vrot.slane %v6671, 7
    %v6915 = vsel %vm316, %v6912, %v6914
    %v6916 = vrot.slane %v6676, 7
    %v6917 = vsel %vm316, %v6914, %v6916
    %v6918 = vrot.slane %v6681, 7
    %v6919 = vsel %vm316, %v6916, %v6918
    %v6920 = vrot.slane %v6686, 7
    %v6921 = vsel %vm316, %v6918, %v6920
    %v6922 = vrot.slane %v6691, 7
    %v6923 = vsel %vm316, %v6920, %v6922
    %v6924 = vrot.slane %v6696, 7
    %v6925 = vsel %vm316, %v6922, %v6924
    %v6926 = vrot.slane %v6701, 7
    %v6927 = vsel %vm316, %v6924, %v6926
    %v6928 = vrot.slane %v6706, 7
    %v6929 = vsel %vm316, %v6926, %v6928
    %v6930 = vrot.slane %v6711, 7
    %v6931 = vsel %vm316, %v6928, %v6930
    %v6932 = vrot.slane %v6716, 7
    %v6933 = vsel %vm316, %v6930, %v6932
    %v6934 = vrot.slane %v6721, 7
    %v6935 = vsel %vm316, %v6932, %v6934
    %v6936 = vrot.slane %v6726, 7
    %v6937 = vsel %vm316, %v6934, %v6936
    %v6938 = vrot.slane %v6731, 7
    %v6939 = vsel %vm316, %v6936, %v6938
    %v6940 = vrot.slane %v6736, 7
    %v6941 = vsel %vm316, %v6938, %v6940
    %v6942 = vrot.slane %v6741, 7
    %v6943 = vsel %vm316, %v6940, %v6942
    %v6944 = vrot.slane %v6746, 7
    %v6945 = vsel %vm316, %v6942, %v6944
    %v6946 = vrot.slane %v6751, 7
    %v6947 = vsel %vm316, %v6944, %v6946
    %v6948 = vrot.slane %v6756, 7
    %v6949 = vsel %vm316, %v6946, %v6948
    %v7014 = vsel %vm316, %v6948, 0.0
    %7015 = vset.pattern.permute.xlu0 6
    %7016 = vperm.xlu0 %7015, %v769
    %v7017 = vpop.permute.xlu0 %7016
    %7019 = vset.pattern.permute.xlu0 6
    %7020 = vperm.xlu0 %7019, %v770
    %v7021 = vpop.permute.xlu0 %7020
    %7023 = vset.pattern.permute.xlu0 6
    %7024 = vperm.xlu0 %7023, %v771
    %v7025 = vpop.permute.xlu0 %7024
    %7027 = vset.pattern.permute.xlu0 6
    %7028 = vperm.xlu0 %7027, %v772
    %v7029 = vpop.permute.xlu0 %7028
    %7031 = vset.pattern.permute.xlu0 6
    %7032 = vperm.xlu0 %7031, %v773
    %v7033 = vpop.permute.xlu0 %7032
    %7035 = vset.pattern.permute.xlu0 6
    %7036 = vperm.xlu0 %7035, %v774
    %v7037 = vpop.permute.xlu0 %7036
    %7039 = vset.pattern.permute.xlu0 6
    %7040 = vperm.xlu0 %7039, %v775
    %v7041 = vpop.permute.xlu0 %7040
    %7043 = vset.pattern.permute.xlu0 6
    %7044 = vperm.xlu0 %7043, %v776
    %v7045 = vpop.permute.xlu0 %7044
    %7047 = vset.pattern.permute.xlu0 6
    %7048 = vperm.xlu0 %7047, %v777
    %v7049 = vpop.permute.xlu0 %7048
    %7051 = vset.pattern.permute.xlu0 6
    %7052 = vperm.xlu0 %7051, %v778
    %v7053 = vpop.permute.xlu0 %7052
    %7055 = vset.pattern.permute.xlu0 6
    %7056 = vperm.xlu0 %7055, %v779
    %v7057 = vpop.permute.xlu0 %7056
    %7059 = vset.pattern.permute.xlu0 6
    %7060 = vperm.xlu0 %7059, %v780
    %v7061 = vpop.permute.xlu0 %7060
    %7063 = vset.pattern.permute.xlu0 6
    %7064 = vperm.xlu0 %7063, %v781
    %v7065 = vpop.permute.xlu0 %7064
    %7067 = vset.pattern.permute.xlu0 6
    %7068 = vperm.xlu0 %7067, %v782
    %v7069 = vpop.permute.xlu0 %7068
    %7071 = vset.pattern.permute.xlu0 6
    %7072 = vperm.xlu0 %7071, %v783
    %v7073 = vpop.permute.xlu0 %7072
    %7075 = vset.pattern.permute.xlu0 6
    %7076 = vperm.xlu0 %7075, %v784
    %v7077 = vpop.permute.xlu0 %7076
    %7079 = vset.pattern.permute.xlu0 6
    %7080 = vperm.xlu0 %7079, %v785
    %v7081 = vpop.permute.xlu0 %7080
    %7083 = vset.pattern.permute.xlu0 6
    %7084 = vperm.xlu0 %7083, %v786
    %v7085 = vpop.permute.xlu0 %7084
    %7087 = vset.pattern.permute.xlu0 6
    %7088 = vperm.xlu0 %7087, %v787
    %v7089 = vpop.permute.xlu0 %7088
    %7091 = vset.pattern.permute.xlu0 6
    %7092 = vperm.xlu0 %7091, %v788
    %v7093 = vpop.permute.xlu0 %7092
    %7095 = vset.pattern.permute.xlu0 6
    %7096 = vperm.xlu0 %7095, %v789
    %v7097 = vpop.permute.xlu0 %7096
    %7099 = vset.pattern.permute.xlu0 6
    %7100 = vperm.xlu0 %7099, %v790
    %v7101 = vpop.permute.xlu0 %7100
    %7103 = vset.pattern.permute.xlu0 6
    %7104 = vperm.xlu0 %7103, %v791
    %v7105 = vpop.permute.xlu0 %7104
    %7107 = vset.pattern.permute.xlu0 6
    %7108 = vperm.xlu0 %7107, %v792
    %v7109 = vpop.permute.xlu0 %7108
    %7111 = vset.pattern.permute.xlu0 6
    %7112 = vperm.xlu0 %7111, %v793
    %v7113 = vpop.permute.xlu0 %7112
    %7115 = vset.pattern.permute.xlu0 6
    %7116 = vperm.xlu0 %7115, %v794
    %v7117 = vpop.permute.xlu0 %7116
    %7119 = vset.pattern.permute.xlu0 6
    %7120 = vperm.xlu0 %7119, %v795
    %v7121 = vpop.permute.xlu0 %7120
    %7123 = vset.pattern.permute.xlu0 6
    %7124 = vperm.xlu0 %7123, %v796
    %v7125 = vpop.permute.xlu0 %7124
    %7127 = vset.pattern.permute.xlu0 6
    %7128 = vperm.xlu0 %7127, %v797
    %v7129 = vpop.permute.xlu0 %7128
    %7131 = vset.pattern.permute.xlu0 6
    %7132 = vperm.xlu0 %7131, %v798
    %v7133 = vpop.permute.xlu0 %7132
    %7135 = vset.pattern.permute.xlu0 6
    %7136 = vperm.xlu0 %7135, %v799
    %v7137 = vpop.permute.xlu0 %7136
    %7139 = vset.pattern.permute.xlu0 6
    %7140 = vperm.xlu0 %7139, %v800
    %v7141 = vpop.permute.xlu0 %7140
    %7143 = vset.pattern.permute.xlu0 6
    %7144 = vperm.xlu0 %7143, %v801
    %v7145 = vpop.permute.xlu0 %7144
    %7147 = vset.pattern.permute.xlu0 6
    %7148 = vperm.xlu0 %7147, %v802
    %v7149 = vpop.permute.xlu0 %7148
    %7151 = vset.pattern.permute.xlu0 6
    %7152 = vperm.xlu0 %7151, %v803
    %v7153 = vpop.permute.xlu0 %7152
    %7155 = vset.pattern.permute.xlu0 6
    %7156 = vperm.xlu0 %7155, %v804
    %v7157 = vpop.permute.xlu0 %7156
    %7159 = vset.pattern.permute.xlu0 6
    %7160 = vperm.xlu0 %7159, %v805
    %v7161 = vpop.permute.xlu0 %7160
    %7163 = vset.pattern.permute.xlu0 6
    %7164 = vperm.xlu0 %7163, %v806
    %v7165 = vpop.permute.xlu0 %7164
    %7167 = vset.pattern.permute.xlu0 6
    %7168 = vperm.xlu0 %7167, %v807
    %v7169 = vpop.permute.xlu0 %7168
    %7171 = vset.pattern.permute.xlu0 6
    %7172 = vperm.xlu0 %7171, %v808
    %v7173 = vpop.permute.xlu0 %7172
    %7175 = vset.pattern.permute.xlu0 6
    %7176 = vperm.xlu0 %7175, %v809
    %v7177 = vpop.permute.xlu0 %7176
    %7179 = vset.pattern.permute.xlu0 6
    %7180 = vperm.xlu0 %7179, %v810
    %v7181 = vpop.permute.xlu0 %7180
    %7183 = vset.pattern.permute.xlu0 6
    %7184 = vperm.xlu0 %7183, %v811
    %v7185 = vpop.permute.xlu0 %7184
    %7187 = vset.pattern.permute.xlu0 6
    %7188 = vperm.xlu0 %7187, %v812
    %v7189 = vpop.permute.xlu0 %7188
    %7191 = vset.pattern.permute.xlu0 6
    %7192 = vperm.xlu0 %7191, %v813
    %v7193 = vpop.permute.xlu0 %7192
    %7195 = vset.pattern.permute.xlu0 6
    %7196 = vperm.xlu0 %7195, %v814
    %v7197 = vpop.permute.xlu0 %7196
    %7199 = vset.pattern.permute.xlu0 6
    %7200 = vperm.xlu0 %7199, %v815
    %v7201 = vpop.permute.xlu0 %7200
    %7203 = vset.pattern.permute.xlu0 6
    %7204 = vperm.xlu0 %7203, %v816
    %v7205 = vpop.permute.xlu0 %7204
    %7207 = vset.pattern.permute.xlu0 6
    %7208 = vperm.xlu0 %7207, %v817
    %v7209 = vpop.permute.xlu0 %7208
    %7211 = vset.pattern.permute.xlu0 6
    %7212 = vperm.xlu0 %7211, %v818
    %v7213 = vpop.permute.xlu0 %7212
    %7215 = vset.pattern.permute.xlu0 6
    %7216 = vperm.xlu0 %7215, %v819
    %v7217 = vpop.permute.xlu0 %7216
    %7219 = vset.pattern.permute.xlu0 6
    %7220 = vperm.xlu0 %7219, %v820
    %v7221 = vpop.permute.xlu0 %7220
    %7223 = vset.pattern.permute.xlu0 6
    %7224 = vperm.xlu0 %7223, %v821
    %v7225 = vpop.permute.xlu0 %7224
    %7227 = vset.pattern.permute.xlu0 6
    %7228 = vperm.xlu0 %7227, %v822
    %v7229 = vpop.permute.xlu0 %7228
    %7231 = vset.pattern.permute.xlu0 6
    %7232 = vperm.xlu0 %7231, %v823
    %v7233 = vpop.permute.xlu0 %7232
    %7235 = vset.pattern.permute.xlu0 6
    %7236 = vperm.xlu0 %7235, %v824
    %v7237 = vpop.permute.xlu0 %7236
    %7239 = vset.pattern.permute.xlu0 6
    %7240 = vperm.xlu0 %7239, %v825
    %v7241 = vpop.permute.xlu0 %7240
    %7243 = vset.pattern.permute.xlu0 6
    %7244 = vperm.xlu0 %7243, %v826
    %v7245 = vpop.permute.xlu0 %7244
    %7247 = vset.pattern.permute.xlu0 6
    %7248 = vperm.xlu0 %7247, %v827
    %v7249 = vpop.permute.xlu0 %7248
    %7251 = vset.pattern.permute.xlu0 6
    %7252 = vperm.xlu0 %7251, %v828
    %v7253 = vpop.permute.xlu0 %7252
    %7255 = vset.pattern.permute.xlu0 6
    %7256 = vperm.xlu0 %7255, %v829
    %v7257 = vpop.permute.xlu0 %7256
    %7259 = vset.pattern.permute.xlu0 6
    %7260 = vperm.xlu0 %7259, %v830
    %v7261 = vpop.permute.xlu0 %7260
    %7263 = vset.pattern.permute.xlu0 6
    %7264 = vperm.xlu0 %7263, %v831
    %v7265 = vpop.permute.xlu0 %7264
    %7267 = vset.pattern.permute.xlu0 6
    %7268 = vperm.xlu0 %7267, %v832
    %v7269 = vpop.permute.xlu0 %7268
    %v7271 = vmul.f32 %v6825, %v7017
    %v7272 = vmul.f32 %v6827, %v7021
    %v7273 = vmul.f32 %v6829, %v7025
    %v7274 = vmul.f32 %v6831, %v7029
    %v7275 = vmul.f32 %v6833, %v7033
    %v7276 = vmul.f32 %v6835, %v7037
    %v7277 = vmul.f32 %v6837, %v7041
    %v7278 = vmul.f32 %v6839, %v7045
    %v7279 = vmul.f32 %v6841, %v7049
    %v7280 = vmul.f32 %v6843, %v7053
    %v7281 = vmul.f32 %v6845, %v7057
    %v7282 = vmul.f32 %v6847, %v7061
    %v7283 = vmul.f32 %v6849, %v7065
    %v7284 = vmul.f32 %v6851, %v7069
    %v7285 = vmul.f32 %v6853, %v7073
    %v7286 = vmul.f32 %v6855, %v7077
    %v7287 = vmul.f32 %v6857, %v7081
    %v7288 = vmul.f32 %v6859, %v7085
    %v7289 = vmul.f32 %v6861, %v7089
    %v7290 = vmul.f32 %v6863, %v7093
    %v7291 = vmul.f32 %v6865, %v7097
    %v7292 = vmul.f32 %v6867, %v7101
    %v7293 = vmul.f32 %v6869, %v7105
    %v7294 = vmul.f32 %v6871, %v7109
    %v7295 = vmul.f32 %v6873, %v7113
    %v7296 = vmul.f32 %v6875, %v7117
    %v7297 = vmul.f32 %v6877, %v7121
    %v7298 = vmul.f32 %v6879, %v7125
    %v7299 = vmul.f32 %v6881, %v7129
    %v7300 = vmul.f32 %v6883, %v7133
    %v7301 = vmul.f32 %v6885, %v7137
    %v7302 = vmul.f32 %v6887, %v7141
    %v7303 = vmul.f32 %v6889, %v7145
    %v7304 = vmul.f32 %v6891, %v7149
    %v7305 = vmul.f32 %v6893, %v7153
    %v7306 = vmul.f32 %v6895, %v7157
    %v7307 = vmul.f32 %v6897, %v7161
    %v7308 = vmul.f32 %v6899, %v7165
    %v7309 = vmul.f32 %v6901, %v7169
    %v7310 = vmul.f32 %v6903, %v7173
    %v7311 = vmul.f32 %v6905, %v7177
    %v7312 = vmul.f32 %v6907, %v7181
    %v7313 = vmul.f32 %v6909, %v7185
    %v7314 = vmul.f32 %v6911, %v7189
    %v7315 = vmul.f32 %v6913, %v7193
    %v7316 = vmul.f32 %v6915, %v7197
    %v7317 = vmul.f32 %v6917, %v7201
    %v7318 = vmul.f32 %v6919, %v7205
    %v7319 = vmul.f32 %v6921, %v7209
    %v7320 = vmul.f32 %v6923, %v7213
    %v7321 = vmul.f32 %v6925, %v7217
    %v7322 = vmul.f32 %v6927, %v7221
    %v7323 = vmul.f32 %v6929, %v7225
    %v7324 = vmul.f32 %v6931, %v7229
    %v7325 = vmul.f32 %v6933, %v7233
    %v7326 = vmul.f32 %v6935, %v7237
    %v7327 = vmul.f32 %v6937, %v7241
    %v7328 = vmul.f32 %v6939, %v7245
    %v7329 = vmul.f32 %v6941, %v7249
    %v7330 = vmul.f32 %v6943, %v7253
    %v7331 = vmul.f32 %v6945, %v7257
    %v7332 = vmul.f32 %v6947, %v7261
    %v7333 = vmul.f32 %v6949, %v7265
    %v7334 = vmul.f32 %v7014, %v7269
    %v7335 = vadd.f32 %v6305, %v7271
    %v7336 = vadd.f32 %v6306, %v7272
    %v7337 = vadd.f32 %v6307, %v7273
    %v7338 = vadd.f32 %v6308, %v7274
    %v7339 = vadd.f32 %v6309, %v7275
    %v7340 = vadd.f32 %v6310, %v7276
    %v7341 = vadd.f32 %v6311, %v7277
    %v7342 = vadd.f32 %v6312, %v7278
    %v7343 = vadd.f32 %v6313, %v7279
    %v7344 = vadd.f32 %v6314, %v7280
    %v7345 = vadd.f32 %v6315, %v7281
    %v7346 = vadd.f32 %v6316, %v7282
    %v7347 = vadd.f32 %v6317, %v7283
    %v7348 = vadd.f32 %v6318, %v7284
    %v7349 = vadd.f32 %v6319, %v7285
    %v7350 = vadd.f32 %v6320, %v7286
    %v7351 = vadd.f32 %v6321, %v7287
    %v7352 = vadd.f32 %v6322, %v7288
    %v7353 = vadd.f32 %v6323, %v7289
    %v7354 = vadd.f32 %v6324, %v7290
    %v7355 = vadd.f32 %v6325, %v7291
    %v7356 = vadd.f32 %v6326, %v7292
    %v7357 = vadd.f32 %v6327, %v7293
    %v7358 = vadd.f32 %v6328, %v7294
    %v7359 = vadd.f32 %v6329, %v7295
    %v7360 = vadd.f32 %v6330, %v7296
    %v7361 = vadd.f32 %v6331, %v7297
    %v7362 = vadd.f32 %v6332, %v7298
    %v7363 = vadd.f32 %v6333, %v7299
    %v7364 = vadd.f32 %v6334, %v7300
    %v7365 = vadd.f32 %v6335, %v7301
    %v7366 = vadd.f32 %v6336, %v7302
    %v7367 = vadd.f32 %v6337, %v7303
    %v7368 = vadd.f32 %v6338, %v7304
    %v7369 = vadd.f32 %v6339, %v7305
    %v7370 = vadd.f32 %v6340, %v7306
    %v7371 = vadd.f32 %v6341, %v7307
    %v7372 = vadd.f32 %v6342, %v7308
    %v7373 = vadd.f32 %v6343, %v7309
    %v7374 = vadd.f32 %v6344, %v7310
    %v7375 = vadd.f32 %v6345, %v7311
    %v7376 = vadd.f32 %v6346, %v7312
    %v7377 = vadd.f32 %v6347, %v7313
    %v7378 = vadd.f32 %v6348, %v7314
    %v7379 = vadd.f32 %v6349, %v7315
    %v7380 = vadd.f32 %v6350, %v7316
    %v7381 = vadd.f32 %v6351, %v7317
    %v7382 = vadd.f32 %v6352, %v7318
    %v7383 = vadd.f32 %v6353, %v7319
    %v7384 = vadd.f32 %v6354, %v7320
    %v7385 = vadd.f32 %v6355, %v7321
    %v7386 = vadd.f32 %v6356, %v7322
    %v7387 = vadd.f32 %v6357, %v7323
    %v7388 = vadd.f32 %v6358, %v7324
    %v7389 = vadd.f32 %v6359, %v7325
    %v7390 = vadd.f32 %v6360, %v7326
    %v7391 = vadd.f32 %v6361, %v7327
    %v7392 = vadd.f32 %v6362, %v7328
    %v7393 = vadd.f32 %v6363, %v7329
    %v7394 = vadd.f32 %v6364, %v7330
    %v7395 = vadd.f32 %v6365, %v7331
    %v7396 = vadd.f32 %v6366, %v7332
    %v7397 = vadd.f32 %v6367, %v7333
    %v7398 = vadd.f32 %v6368, %v7334
    %s7399 = scalar_lea.vmem %s3, 28
    %v7400 = vld [vmem:[%s7399] sm:$0xf]
    %v7402 = vsel %vm1027, %v7400, 0
    %7404 = vmatprep.subr.mxu0 0.0
    %7405 = vmatpush1.msra.mxu0 %v7402
    %7406 = vmatprep.subr.mxu0 0.0
    %7407 = vmatpush1.msra.mxu0 0.0
    %7408 = vmatprep.subr.mxu0 0.0
    %7409 = vmatpush1.msra.mxu0 0.0
    %7410 = vmatprep.subr.mxu0 0.0
    %7411 = vmatpush1.msra.mxu0 0.0
    %7412 = vmatprep.subr.mxu0 0.0
    %7413 = vmatpush1.msra.mxu0 0.0
    %7414 = vmatprep.subr.mxu0 0.0
    %7415 = vmatpush1.msra.mxu0 0.0
    %7416 = vmatprep.subr.mxu0 0.0
    %7417 = vmatpush1.msra.mxu0 0.0
    %7418 = vmatprep.subr.mxu0 0.0
    %7419 = vmatpush1.msra.mxu0 0.0
    %7420 = vmatprep.subr.mxu0 0.0
    %7421 = vmatpush1.msra.mxu0 0.0
    %7422 = vmatprep.subr.mxu0 0.0
    %7423 = vmatpush1.msra.mxu0 0.0
    %7424 = vmatprep.subr.mxu0 0.0
    %7425 = vmatpush1.msra.mxu0 0.0
    %7426 = vmatprep.subr.mxu0 0.0
    %7427 = vmatpush1.msra.mxu0 0.0
    %7428 = vmatprep.subr.mxu0 0.0
    %7429 = vmatpush1.msra.mxu0 0.0
    %7430 = vmatprep.subr.mxu0 0.0
    %7431 = vmatpush1.msra.mxu0 0.0
    %7432 = vmatprep.subr.mxu0 0.0
    %7433 = vmatpush1.msra.mxu0 0.0
    %7434 = vmatprep.subr.mxu0 0.0
    %7435 = vmatpush1.msra.mxu0 0.0
    %7436 = vmatprep.subr.mxu0 0.0
    %7437 = vmatpush1.msra.mxu0 0.0
    %7438 = vmatprep.subr.mxu0 0.0
    %7439 = vmatpush1.msra.mxu0 0.0
    %7440 = vmatprep.subr.mxu0 0.0
    %7441 = vmatpush1.msra.mxu0 0.0
    %7442 = vmatprep.subr.mxu0 0.0
    %7443 = vmatpush1.msra.mxu0 0.0
    %7444 = vmatprep.subr.mxu0 0.0
    %7445 = vmatpush1.msra.mxu0 0.0
    %7446 = vmatprep.subr.mxu0 0.0
    %7447 = vmatpush1.msra.mxu0 0.0
    %7448 = vmatprep.subr.mxu0 0.0
    %7449 = vmatpush1.msra.mxu0 0.0
    %7450 = vmatprep.subr.mxu0 0.0
    %7451 = vmatpush1.msra.mxu0 0.0
    %7452 = vmatprep.subr.mxu0 0.0
    %7453 = vmatpush1.msra.mxu0 0.0
    %7454 = vmatprep.subr.mxu0 0.0
    %7455 = vmatpush1.msra.mxu0 0.0
    %7456 = vmatprep.subr.mxu0 0.0
    %7457 = vmatpush1.msra.mxu0 0.0
    %7458 = vmatprep.subr.mxu0 0.0
    %7459 = vmatpush1.msra.mxu0 0.0
    %7460 = vmatprep.subr.mxu0 0.0
    %7461 = vmatpush1.msra.mxu0 0.0
    %7462 = vmatprep.subr.mxu0 0.0
    %7463 = vmatpush1.msra.mxu0 0.0
    %7464 = vmatprep.subr.mxu0 0.0
    %7465 = vmatpush1.msra.mxu0 0.0
    %7466 = vmatprep.subr.mxu0 0.0
    %7467 = vmatpush1.msra.mxu0 0.0
    %7468 = vmatprep.mubr.f32.mxu0 0.0
    %7469 = vmatmul.mubr.f32.gmra.mrb[0].mxu0 %v836
    %v7470 = vpop.f32.mrb[0].mxu0
    %v7471 = vpop.f32.mrb[0].mxu0
    %7472 = vmatprep.mubr.f32.mxu0 0.0
    %7473 = vmatmul.mubr.f32.gmra.mrb[0].mxu0 %v839
    %v7474 = vpop.f32.mrb[0].mxu0
    %v7475 = vadd.f32 0.0, %v7474
    %v7476 = vpop.f32.mrb[0].mxu0
    %7477 = vmatprep.mubr.f32.mxu0 0.0
    %7478 = vmatmul.mubr.f32.gmra.mrb[0].mxu0 %v842
    %v7479 = vpop.f32.mrb[0].mxu0
    %v7480 = vadd.f32 0.0, %v7479
    %v7481 = vpop.f32.mrb[0].mxu0
    %7482 = vmatprep.mubr.f32.mxu0 0.0
    %7483 = vmatmul.mubr.f32.gmra.mrb[0].mxu0 %v845
    %v7484 = vpop.f32.mrb[0].mxu0
    %v7485 = vadd.f32 0.0, %v7484
    %v7486 = vpop.f32.mrb[0].mxu0
    %7487 = vmatprep.mubr.f32.mxu0 0.0
    %7488 = vmatmul.mubr.f32.gmra.mrb[0].mxu0 %v848
    %v7489 = vpop.f32.mrb[0].mxu0
    %v7490 = vadd.f32 0.0, %v7489
    %v7491 = vpop.f32.mrb[0].mxu0
    %7492 = vmatprep.mubr.f32.mxu0 0.0
    %7493 = vmatmul.mubr.f32.gmra.mrb[0].mxu0 %v851
    %v7494 = vpop.f32.mrb[0].mxu0
    %v7495 = vadd.f32 0.0, %v7494
    %v7496 = vpop.f32.mrb[0].mxu0
    %7497 = vmatprep.mubr.f32.mxu0 0.0
    %7498 = vmatmul.mubr.f32.gmra.mrb[0].mxu0 %v854
    %v7499 = vpop.f32.mrb[0].mxu0
    %v7500 = vadd.f32 0.0, %v7499
    %v7501 = vpop.f32.mrb[0].mxu0
    %7502 = vmatprep.mubr.f32.mxu0 0.0
    %7503 = vmatmul.mubr.f32.gmra.mrb[0].mxu0 %v857
    %v7504 = vpop.f32.mrb[0].mxu0
    %v7505 = vadd.f32 0.0, %v7504
    %v7506 = vpop.f32.mrb[0].mxu0
    %7507 = vmatprep.mubr.f32.mxu0 0.0
    %7508 = vmatmul.mubr.f32.gmra.mrb[0].mxu0 %v860
    %v7509 = vpop.f32.mrb[0].mxu0
    %v7510 = vadd.f32 0.0, %v7509
    %v7511 = vpop.f32.mrb[0].mxu0
    %7512 = vmatprep.mubr.f32.mxu0 0.0
    %7513 = vmatmul.mubr.f32.gmra.mrb[0].mxu0 %v863
    %v7514 = vpop.f32.mrb[0].mxu0
    %v7515 = vadd.f32 0.0, %v7514
    %v7516 = vpop.f32.mrb[0].mxu0
    %7517 = vmatprep.mubr.f32.mxu0 0.0
    %7518 = vmatmul.mubr.f32.gmra.mrb[0].mxu0 %v866
    %v7519 = vpop.f32.mrb[0].mxu0
    %v7520 = vadd.f32 0.0, %v7519
    %v7521 = vpop.f32.mrb[0].mxu0
    %7522 = vmatprep.mubr.f32.mxu0 0.0
    %7523 = vmatmul.mubr.f32.gmra.mrb[0].mxu0 %v869
    %v7524 = vpop.f32.mrb[0].mxu0
    %v7525 = vadd.f32 0.0, %v7524
    %v7526 = vpop.f32.mrb[0].mxu0
    %7527 = vmatprep.mubr.f32.mxu0 0.0
    %7528 = vmatmul.mubr.f32.gmra.mrb[0].mxu0 %v872
    %v7529 = vpop.f32.mrb[0].mxu0
    %v7530 = vadd.f32 0.0, %v7529
    %v7531 = vpop.f32.mrb[0].mxu0
    %7532 = vmatprep.mubr.f32.mxu0 0.0
    %7533 = vmatmul.mubr.f32.gmra.mrb[0].mxu0 %v875
    %v7534 = vpop.f32.mrb[0].mxu0
    %v7535 = vadd.f32 0.0, %v7534
    %v7536 = vpop.f32.mrb[0].mxu0
    %7537 = vmatprep.mubr.f32.mxu0 0.0
    %7538 = vmatmul.mubr.f32.gmra.mrb[0].mxu0 %v878
    %v7539 = vpop.f32.mrb[0].mxu0
    %v7540 = vadd.f32 0.0, %v7539
    %v7541 = vpop.f32.mrb[0].mxu0
    %7542 = vmatprep.mubr.f32.mxu0 0.0
    %7543 = vmatmul.mubr.f32.gmra.mrb[0].mxu0 %v881
    %v7544 = vpop.f32.mrb[0].mxu0
    %v7545 = vadd.f32 0.0, %v7544
    %v7546 = vpop.f32.mrb[0].mxu0
    %7547 = vmatprep.mubr.f32.mxu0 0.0
    %7548 = vmatmul.mubr.f32.gmra.mrb[0].mxu0 %v884
    %v7549 = vpop.f32.mrb[0].mxu0
    %v7550 = vadd.f32 0.0, %v7549
    %v7551 = vpop.f32.mrb[0].mxu0
    %7552 = vmatprep.mubr.f32.mxu0 0.0
    %7553 = vmatmul.mubr.f32.gmra.mrb[0].mxu0 %v887
    %v7554 = vpop.f32.mrb[0].mxu0
    %v7555 = vadd.f32 0.0, %v7554
    %v7556 = vpop.f32.mrb[0].mxu0
    %7557 = vmatprep.mubr.f32.mxu0 0.0
    %7558 = vmatmul.mubr.f32.gmra.mrb[0].mxu0 %v890
    %v7559 = vpop.f32.mrb[0].mxu0
    %v7560 = vadd.f32 0.0, %v7559
    %v7561 = vpop.f32.mrb[0].mxu0
    %7562 = vmatprep.mubr.f32.mxu0 0.0
    %7563 = vmatmul.mubr.f32.gmra.mrb[0].mxu0 %v893
    %v7564 = vpop.f32.mrb[0].mxu0
    %v7565 = vadd.f32 0.0, %v7564
    %v7566 = vpop.f32.mrb[0].mxu0
    %7567 = vmatprep.mubr.f32.mxu0 0.0
    %7568 = vmatmul.mubr.f32.gmra.mrb[0].mxu0 %v896
    %v7569 = vpop.f32.mrb[0].mxu0
    %v7570 = vadd.f32 0.0, %v7569
    %v7571 = vpop.f32.mrb[0].mxu0
    %7572 = vmatprep.mubr.f32.mxu0 0.0
    %7573 = vmatmul.mubr.f32.gmra.mrb[0].mxu0 %v899
    %v7574 = vpop.f32.mrb[0].mxu0
    %v7575 = vadd.f32 0.0, %v7574
    %v7576 = vpop.f32.mrb[0].mxu0
    %7577 = vmatprep.mubr.f32.mxu0 0.0
    %7578 = vmatmul.mubr.f32.gmra.mrb[0].mxu0 %v902
    %v7579 = vpop.f32.mrb[0].mxu0
    %v7580 = vadd.f32 0.0, %v7579
    %v7581 = vpop.f32.mrb[0].mxu0
    %7582 = vmatprep.mubr.f32.mxu0 0.0
    %7583 = vmatmul.mubr.f32.gmra.mrb[0].mxu0 %v905
    %v7584 = vpop.f32.mrb[0].mxu0
    %v7585 = vadd.f32 0.0, %v7584
    %v7586 = vpop.f32.mrb[0].mxu0
    %7587 = vmatprep.mubr.f32.mxu0 0.0
    %7588 = vmatmul.mubr.f32.gmra.mrb[0].mxu0 %v908
    %v7589 = vpop.f32.mrb[0].mxu0
    %v7590 = vadd.f32 0.0, %v7589
    %v7591 = vpop.f32.mrb[0].mxu0
    %7592 = vmatprep.mubr.f32.mxu0 0.0
    %7593 = vmatmul.mubr.f32.gmra.mrb[0].mxu0 %v911
    %v7594 = vpop.f32.mrb[0].mxu0
    %v7595 = vadd.f32 0.0, %v7594
    %v7596 = vpop.f32.mrb[0].mxu0
    %7597 = vmatprep.mubr.f32.mxu0 0.0
    %7598 = vmatmul.mubr.f32.gmra.mrb[0].mxu0 %v914
    %v7599 = vpop.f32.mrb[0].mxu0
    %v7600 = vadd.f32 0.0, %v7599
    %v7601 = vpop.f32.mrb[0].mxu0
    %7602 = vmatprep.mubr.f32.mxu0 0.0
    %7603 = vmatmul.mubr.f32.gmra.mrb[0].mxu0 %v917
    %v7604 = vpop.f32.mrb[0].mxu0
    %v7605 = vadd.f32 0.0, %v7604
    %v7606 = vpop.f32.mrb[0].mxu0
    %7607 = vmatprep.mubr.f32.mxu0 0.0
    %7608 = vmatmul.mubr.f32.gmra.mrb[0].mxu0 %v920
    %v7609 = vpop.f32.mrb[0].mxu0
    %v7610 = vadd.f32 0.0, %v7609
    %v7611 = vpop.f32.mrb[0].mxu0
    %7612 = vmatprep.mubr.f32.mxu0 0.0
    %7613 = vmatmul.mubr.f32.gmra.mrb[0].mxu0 %v923
    %v7614 = vpop.f32.mrb[0].mxu0
    %v7615 = vadd.f32 0.0, %v7614
    %v7616 = vpop.f32.mrb[0].mxu0
    %7617 = vmatprep.mubr.f32.mxu0 0.0
    %7618 = vmatmul.mubr.f32.gmra.mrb[0].mxu0 %v926
    %v7619 = vpop.f32.mrb[0].mxu0
    %v7620 = vadd.f32 0.0, %v7619
    %v7621 = vpop.f32.mrb[0].mxu0
    %7622 = vmatprep.mubr.f32.mxu0 0.0
    %7623 = vmatmul.mubr.f32.gmra.mrb[0].mxu0 %v929
    %v7624 = vpop.f32.mrb[0].mxu0
    %v7625 = vadd.f32 0.0, %v7624
    %v7626 = vpop.f32.mrb[0].mxu0
    %7627 = vmatprep.mubr.f32.mxu0 0.0
    %7628 = vmatmul.mubr.f32.gmra.mrb[0].mxu0 %v932
    %v7629 = vpop.f32.mrb[0].mxu0
    %v7630 = vadd.f32 0.0, %v7629
    %v7631 = vpop.f32.mrb[0].mxu0
    %7632 = vmatprep.mubr.f32.mxu0 0.0
    %7633 = vmatmul.mubr.f32.gmra.mrb[0].mxu0 %v935
    %v7634 = vpop.f32.mrb[0].mxu0
    %v7635 = vadd.f32 0.0, %v7634
    %v7636 = vpop.f32.mrb[0].mxu0
    %7637 = vmatprep.mubr.f32.mxu0 0.0
    %7638 = vmatmul.mubr.f32.gmra.mrb[0].mxu0 %v938
    %v7639 = vpop.f32.mrb[0].mxu0
    %v7640 = vadd.f32 0.0, %v7639
    %v7641 = vpop.f32.mrb[0].mxu0
    %7642 = vmatprep.mubr.f32.mxu0 0.0
    %7643 = vmatmul.mubr.f32.gmra.mrb[0].mxu0 %v941
    %v7644 = vpop.f32.mrb[0].mxu0
    %v7645 = vadd.f32 0.0, %v7644
    %v7646 = vpop.f32.mrb[0].mxu0
    %7647 = vmatprep.mubr.f32.mxu0 0.0
    %7648 = vmatmul.mubr.f32.gmra.mrb[0].mxu0 %v944
    %v7649 = vpop.f32.mrb[0].mxu0
    %v7650 = vadd.f32 0.0, %v7649
    %v7651 = vpop.f32.mrb[0].mxu0
    %7652 = vmatprep.mubr.f32.mxu0 0.0
    %7653 = vmatmul.mubr.f32.gmra.mrb[0].mxu0 %v947
    %v7654 = vpop.f32.mrb[0].mxu0
    %v7655 = vadd.f32 0.0, %v7654
    %v7656 = vpop.f32.mrb[0].mxu0
    %7657 = vmatprep.mubr.f32.mxu0 0.0
    %7658 = vmatmul.mubr.f32.gmra.mrb[0].mxu0 %v950
    %v7659 = vpop.f32.mrb[0].mxu0
    %v7660 = vadd.f32 0.0, %v7659
    %v7661 = vpop.f32.mrb[0].mxu0
    %7662 = vmatprep.mubr.f32.mxu0 0.0
    %7663 = vmatmul.mubr.f32.gmra.mrb[0].mxu0 %v953
    %v7664 = vpop.f32.mrb[0].mxu0
    %v7665 = vadd.f32 0.0, %v7664
    %v7666 = vpop.f32.mrb[0].mxu0
    %7667 = vmatprep.mubr.f32.mxu0 0.0
    %7668 = vmatmul.mubr.f32.gmra.mrb[0].mxu0 %v956
    %v7669 = vpop.f32.mrb[0].mxu0
    %v7670 = vadd.f32 0.0, %v7669
    %v7671 = vpop.f32.mrb[0].mxu0
    %7672 = vmatprep.mubr.f32.mxu0 0.0
    %7673 = vmatmul.mubr.f32.gmra.mrb[0].mxu0 %v959
    %v7674 = vpop.f32.mrb[0].mxu0
    %v7675 = vadd.f32 0.0, %v7674
    %v7676 = vpop.f32.mrb[0].mxu0
    %7677 = vmatprep.mubr.f32.mxu0 0.0
    %7678 = vmatmul.mubr.f32.gmra.mrb[0].mxu0 %v962
    %v7679 = vpop.f32.mrb[0].mxu0
    %v7680 = vadd.f32 0.0, %v7679
    %v7681 = vpop.f32.mrb[0].mxu0
    %7682 = vmatprep.mubr.f32.mxu0 0.0
    %7683 = vmatmul.mubr.f32.gmra.mrb[0].mxu0 %v965
    %v7684 = vpop.f32.mrb[0].mxu0
    %v7685 = vadd.f32 0.0, %v7684
    %v7686 = vpop.f32.mrb[0].mxu0
    %7687 = vmatprep.mubr.f32.mxu0 0.0
    %7688 = vmatmul.mubr.f32.gmra.mrb[0].mxu0 %v968
    %v7689 = vpop.f32.mrb[0].mxu0
    %v7690 = vadd.f32 0.0, %v7689
    %v7691 = vpop.f32.mrb[0].mxu0
    %7692 = vmatprep.mubr.f32.mxu0 0.0
    %7693 = vmatmul.mubr.f32.gmra.mrb[0].mxu0 %v971
    %v7694 = vpop.f32.mrb[0].mxu0
    %v7695 = vadd.f32 0.0, %v7694
    %v7696 = vpop.f32.mrb[0].mxu0
    %7697 = vmatprep.mubr.f32.mxu0 0.0
    %7698 = vmatmul.mubr.f32.gmra.mrb[0].mxu0 %v974
    %v7699 = vpop.f32.mrb[0].mxu0
    %v7700 = vadd.f32 0.0, %v7699
    %v7701 = vpop.f32.mrb[0].mxu0
    %7702 = vmatprep.mubr.f32.mxu0 0.0
    %7703 = vmatmul.mubr.f32.gmra.mrb[0].mxu0 %v977
    %v7704 = vpop.f32.mrb[0].mxu0
    %v7705 = vadd.f32 0.0, %v7704
    %v7706 = vpop.f32.mrb[0].mxu0
    %7707 = vmatprep.mubr.f32.mxu0 0.0
    %7708 = vmatmul.mubr.f32.gmra.mrb[0].mxu0 %v980
    %v7709 = vpop.f32.mrb[0].mxu0
    %v7710 = vadd.f32 0.0, %v7709
    %v7711 = vpop.f32.mrb[0].mxu0
    %7712 = vmatprep.mubr.f32.mxu0 0.0
    %7713 = vmatmul.mubr.f32.gmra.mrb[0].mxu0 %v983
    %v7714 = vpop.f32.mrb[0].mxu0
    %v7715 = vadd.f32 0.0, %v7714
    %v7716 = vpop.f32.mrb[0].mxu0
    %7717 = vmatprep.mubr.f32.mxu0 0.0
    %7718 = vmatmul.mubr.f32.gmra.mrb[0].mxu0 %v986
    %v7719 = vpop.f32.mrb[0].mxu0
    %v7720 = vadd.f32 0.0, %v7719
    %v7721 = vpop.f32.mrb[0].mxu0
    %7722 = vmatprep.mubr.f32.mxu0 0.0
    %7723 = vmatmul.mubr.f32.gmra.mrb[0].mxu0 %v989
    %v7724 = vpop.f32.mrb[0].mxu0
    %v7725 = vadd.f32 0.0, %v7724
    %v7726 = vpop.f32.mrb[0].mxu0
    %7727 = vmatprep.mubr.f32.mxu0 0.0
    %7728 = vmatmul.mubr.f32.gmra.mrb[0].mxu0 %v992
    %v7729 = vpop.f32.mrb[0].mxu0
    %v7730 = vadd.f32 0.0, %v7729
    %v7731 = vpop.f32.mrb[0].mxu0
    %7732 = vmatprep.mubr.f32.mxu0 0.0
    %7733 = vmatmul.mubr.f32.gmra.mrb[0].mxu0 %v995
    %v7734 = vpop.f32.mrb[0].mxu0
    %v7735 = vadd.f32 0.0, %v7734
    %v7736 = vpop.f32.mrb[0].mxu0
    %7737 = vmatprep.mubr.f32.mxu0 0.0
    %7738 = vmatmul.mubr.f32.gmra.mrb[0].mxu0 %v998
    %v7739 = vpop.f32.mrb[0].mxu0
    %v7740 = vadd.f32 0.0, %v7739
    %v7741 = vpop.f32.mrb[0].mxu0
    %7742 = vmatprep.mubr.f32.mxu0 0.0
    %7743 = vmatmul.mubr.f32.gmra.mrb[0].mxu0 %v1001
    %v7744 = vpop.f32.mrb[0].mxu0
    %v7745 = vadd.f32 0.0, %v7744
    %v7746 = vpop.f32.mrb[0].mxu0
    %7747 = vmatprep.mubr.f32.mxu0 0.0
    %7748 = vmatmul.mubr.f32.gmra.mrb[0].mxu0 %v1004
    %v7749 = vpop.f32.mrb[0].mxu0
    %v7750 = vadd.f32 0.0, %v7749
    %v7751 = vpop.f32.mrb[0].mxu0
    %7752 = vmatprep.mubr.f32.mxu0 0.0
    %7753 = vmatmul.mubr.f32.gmra.mrb[0].mxu0 %v1007
    %v7754 = vpop.f32.mrb[0].mxu0
    %v7755 = vadd.f32 0.0, %v7754
    %v7756 = vpop.f32.mrb[0].mxu0
    %7757 = vmatprep.mubr.f32.mxu0 0.0
    %7758 = vmatmul.mubr.f32.gmra.mrb[0].mxu0 %v1010
    %v7759 = vpop.f32.mrb[0].mxu0
    %v7760 = vadd.f32 0.0, %v7759
    %v7761 = vpop.f32.mrb[0].mxu0
    %7762 = vmatprep.mubr.f32.mxu0 0.0
    %7763 = vmatmul.mubr.f32.gmra.mrb[0].mxu0 %v1013
    %v7764 = vpop.f32.mrb[0].mxu0
    %v7765 = vadd.f32 0.0, %v7764
    %v7766 = vpop.f32.mrb[0].mxu0
    %7767 = vmatprep.mubr.f32.mxu0 0.0
    %7768 = vmatmul.mubr.f32.gmra.mrb[0].mxu0 %v1016
    %v7769 = vpop.f32.mrb[0].mxu0
    %v7770 = vadd.f32 0.0, %v7769
    %v7771 = vpop.f32.mrb[0].mxu0
    %7772 = vmatprep.mubr.f32.mxu0 0.0
    %7773 = vmatmul.mubr.f32.gmra.mrb[0].mxu0 %v1019
    %v7774 = vpop.f32.mrb[0].mxu0
    %v7775 = vadd.f32 0.0, %v7774
    %v7776 = vpop.f32.mrb[0].mxu0
    %7777 = vmatprep.mubr.f32.mxu0 0.0
    %7778 = vmatmul.mubr.f32.gmra.mrb[0].mxu0 %v1022
    %v7779 = vpop.f32.mrb[0].mxu0
    %v7780 = vadd.f32 0.0, %v7779
    %v7781 = vpop.f32.mrb[0].mxu0
    %7782 = vmatprep.mubr.f32.mxu0 0.0
    %7783 = vmatmul.mubr.f32.gmra.mrb[0].mxu0 %v1025
    %v7784 = vpop.f32.mrb[0].mxu0
    %v7785 = vadd.f32 0.0, %v7784
    %v7786 = vpop.f32.mrb[0].mxu0
    %7787 = vdwg.mxu0
    %7788 = vset.pattern.permute.xlu0 7
    %7789 = vperm.xlu0 %7788, %v769
    %v7790 = vpop.permute.xlu0 %7789
    %7792 = vset.pattern.permute.xlu0 7
    %7793 = vperm.xlu0 %7792, %v770
    %v7794 = vpop.permute.xlu0 %7793
    %7796 = vset.pattern.permute.xlu0 7
    %7797 = vperm.xlu0 %7796, %v771
    %v7798 = vpop.permute.xlu0 %7797
    %7800 = vset.pattern.permute.xlu0 7
    %7801 = vperm.xlu0 %7800, %v772
    %v7802 = vpop.permute.xlu0 %7801
    %7804 = vset.pattern.permute.xlu0 7
    %7805 = vperm.xlu0 %7804, %v773
    %v7806 = vpop.permute.xlu0 %7805
    %7808 = vset.pattern.permute.xlu0 7
    %7809 = vperm.xlu0 %7808, %v774
    %v7810 = vpop.permute.xlu0 %7809
    %7812 = vset.pattern.permute.xlu0 7
    %7813 = vperm.xlu0 %7812, %v775
    %v7814 = vpop.permute.xlu0 %7813
    %7816 = vset.pattern.permute.xlu0 7
    %7817 = vperm.xlu0 %7816, %v776
    %v7818 = vpop.permute.xlu0 %7817
    %7820 = vset.pattern.permute.xlu0 7
    %7821 = vperm.xlu0 %7820, %v777
    %v7822 = vpop.permute.xlu0 %7821
    %7824 = vset.pattern.permute.xlu0 7
    %7825 = vperm.xlu0 %7824, %v778
    %v7826 = vpop.permute.xlu0 %7825
    %7828 = vset.pattern.permute.xlu0 7
    %7829 = vperm.xlu0 %7828, %v779
    %v7830 = vpop.permute.xlu0 %7829
    %7832 = vset.pattern.permute.xlu0 7
    %7833 = vperm.xlu0 %7832, %v780
    %v7834 = vpop.permute.xlu0 %7833
    %7836 = vset.pattern.permute.xlu0 7
    %7837 = vperm.xlu0 %7836, %v781
    %v7838 = vpop.permute.xlu0 %7837
    %7840 = vset.pattern.permute.xlu0 7
    %7841 = vperm.xlu0 %7840, %v782
    %v7842 = vpop.permute.xlu0 %7841
    %7844 = vset.pattern.permute.xlu0 7
    %7845 = vperm.xlu0 %7844, %v783
    %v7846 = vpop.permute.xlu0 %7845
    %7848 = vset.pattern.permute.xlu0 7
    %7849 = vperm.xlu0 %7848, %v784
    %v7850 = vpop.permute.xlu0 %7849
    %7852 = vset.pattern.permute.xlu0 7
    %7853 = vperm.xlu0 %7852, %v785
    %v7854 = vpop.permute.xlu0 %7853
    %7856 = vset.pattern.permute.xlu0 7
    %7857 = vperm.xlu0 %7856, %v786
    %v7858 = vpop.permute.xlu0 %7857
    %7860 = vset.pattern.permute.xlu0 7
    %7861 = vperm.xlu0 %7860, %v787
    %v7862 = vpop.permute.xlu0 %7861
    %7864 = vset.pattern.permute.xlu0 7
    %7865 = vperm.xlu0 %7864, %v788
    %v7866 = vpop.permute.xlu0 %7865
    %7868 = vset.pattern.permute.xlu0 7
    %7869 = vperm.xlu0 %7868, %v789
    %v7870 = vpop.permute.xlu0 %7869
    %7872 = vset.pattern.permute.xlu0 7
    %7873 = vperm.xlu0 %7872, %v790
    %v7874 = vpop.permute.xlu0 %7873
    %7876 = vset.pattern.permute.xlu0 7
    %7877 = vperm.xlu0 %7876, %v791
    %v7878 = vpop.permute.xlu0 %7877
    %7880 = vset.pattern.permute.xlu0 7
    %7881 = vperm.xlu0 %7880, %v792
    %v7882 = vpop.permute.xlu0 %7881
    %7884 = vset.pattern.permute.xlu0 7
    %7885 = vperm.xlu0 %7884, %v793
    %v7886 = vpop.permute.xlu0 %7885
    %7888 = vset.pattern.permute.xlu0 7
    %7889 = vperm.xlu0 %7888, %v794
    %v7890 = vpop.permute.xlu0 %7889
    %7892 = vset.pattern.permute.xlu0 7
    %7893 = vperm.xlu0 %7892, %v795
    %v7894 = vpop.permute.xlu0 %7893
    %7896 = vset.pattern.permute.xlu0 7
    %7897 = vperm.xlu0 %7896, %v796
    %v7898 = vpop.permute.xlu0 %7897
    %7900 = vset.pattern.permute.xlu0 7
    %7901 = vperm.xlu0 %7900, %v797
    %v7902 = vpop.permute.xlu0 %7901
    %7904 = vset.pattern.permute.xlu0 7
    %7905 = vperm.xlu0 %7904, %v798
    %v7906 = vpop.permute.xlu0 %7905
    %7908 = vset.pattern.permute.xlu0 7
    %7909 = vperm.xlu0 %7908, %v799
    %v7910 = vpop.permute.xlu0 %7909
    %7912 = vset.pattern.permute.xlu0 7
    %7913 = vperm.xlu0 %7912, %v800
    %v7914 = vpop.permute.xlu0 %7913
    %7916 = vset.pattern.permute.xlu0 7
    %7917 = vperm.xlu0 %7916, %v801
    %v7918 = vpop.permute.xlu0 %7917
    %7920 = vset.pattern.permute.xlu0 7
    %7921 = vperm.xlu0 %7920, %v802
    %v7922 = vpop.permute.xlu0 %7921
    %7924 = vset.pattern.permute.xlu0 7
    %7925 = vperm.xlu0 %7924, %v803
    %v7926 = vpop.permute.xlu0 %7925
    %7928 = vset.pattern.permute.xlu0 7
    %7929 = vperm.xlu0 %7928, %v804
    %v7930 = vpop.permute.xlu0 %7929
    %7932 = vset.pattern.permute.xlu0 7
    %7933 = vperm.xlu0 %7932, %v805
    %v7934 = vpop.permute.xlu0 %7933
    %7936 = vset.pattern.permute.xlu0 7
    %7937 = vperm.xlu0 %7936, %v806
    %v7938 = vpop.permute.xlu0 %7937
    %7940 = vset.pattern.permute.xlu0 7
    %7941 = vperm.xlu0 %7940, %v807
    %v7942 = vpop.permute.xlu0 %7941
    %7944 = vset.pattern.permute.xlu0 7
    %7945 = vperm.xlu0 %7944, %v808
    %v7946 = vpop.permute.xlu0 %7945
    %7948 = vset.pattern.permute.xlu0 7
    %7949 = vperm.xlu0 %7948, %v809
    %v7950 = vpop.permute.xlu0 %7949
    %7952 = vset.pattern.permute.xlu0 7
    %7953 = vperm.xlu0 %7952, %v810
    %v7954 = vpop.permute.xlu0 %7953
    %7956 = vset.pattern.permute.xlu0 7
    %7957 = vperm.xlu0 %7956, %v811
    %v7958 = vpop.permute.xlu0 %7957
    %7960 = vset.pattern.permute.xlu0 7
    %7961 = vperm.xlu0 %7960, %v812
    %v7962 = vpop.permute.xlu0 %7961
    %7964 = vset.pattern.permute.xlu0 7
    %7965 = vperm.xlu0 %7964, %v813
    %v7966 = vpop.permute.xlu0 %7965
    %7968 = vset.pattern.permute.xlu0 7
    %7969 = vperm.xlu0 %7968, %v814
    %v7970 = vpop.permute.xlu0 %7969
    %7972 = vset.pattern.permute.xlu0 7
    %7973 = vperm.xlu0 %7972, %v815
    %v7974 = vpop.permute.xlu0 %7973
    %7976 = vset.pattern.permute.xlu0 7
    %7977 = vperm.xlu0 %7976, %v816
    %v7978 = vpop.permute.xlu0 %7977
    %7980 = vset.pattern.permute.xlu0 7
    %7981 = vperm.xlu0 %7980, %v817
    %v7982 = vpop.permute.xlu0 %7981
    %7984 = vset.pattern.permute.xlu0 7
    %7985 = vperm.xlu0 %7984, %v818
    %v7986 = vpop.permute.xlu0 %7985
    %7988 = vset.pattern.permute.xlu0 7
    %7989 = vperm.xlu0 %7988, %v819
    %v7990 = vpop.permute.xlu0 %7989
    %7992 = vset.pattern.permute.xlu0 7
    %7993 = vperm.xlu0 %7992, %v820
    %v7994 = vpop.permute.xlu0 %7993
    %7996 = vset.pattern.permute.xlu0 7
    %7997 = vperm.xlu0 %7996, %v821
    %v7998 = vpop.permute.xlu0 %7997
    %8000 = vset.pattern.permute.xlu0 7
    %8001 = vperm.xlu0 %8000, %v822
    %v8002 = vpop.permute.xlu0 %8001
    %8004 = vset.pattern.permute.xlu0 7
    %8005 = vperm.xlu0 %8004, %v823
    %v8006 = vpop.permute.xlu0 %8005
    %8008 = vset.pattern.permute.xlu0 7
    %8009 = vperm.xlu0 %8008, %v824
    %v8010 = vpop.permute.xlu0 %8009
    %8012 = vset.pattern.permute.xlu0 7
    %8013 = vperm.xlu0 %8012, %v825
    %v8014 = vpop.permute.xlu0 %8013
    %8016 = vset.pattern.permute.xlu0 7
    %8017 = vperm.xlu0 %8016, %v826
    %v8018 = vpop.permute.xlu0 %8017
    %8020 = vset.pattern.permute.xlu0 7
    %8021 = vperm.xlu0 %8020, %v827
    %v8022 = vpop.permute.xlu0 %8021
    %8024 = vset.pattern.permute.xlu0 7
    %8025 = vperm.xlu0 %8024, %v828
    %v8026 = vpop.permute.xlu0 %8025
    %8028 = vset.pattern.permute.xlu0 7
    %8029 = vperm.xlu0 %8028, %v829
    %v8030 = vpop.permute.xlu0 %8029
    %8032 = vset.pattern.permute.xlu0 7
    %8033 = vperm.xlu0 %8032, %v830
    %v8034 = vpop.permute.xlu0 %8033
    %8036 = vset.pattern.permute.xlu0 7
    %8037 = vperm.xlu0 %8036, %v831
    %v8038 = vpop.permute.xlu0 %8037
    %8040 = vset.pattern.permute.xlu0 7
    %8041 = vperm.xlu0 %8040, %v832
    %v8042 = vpop.permute.xlu0 %8041
    %v8044 = vmul.f32 %v7475, %v7790
    %v8045 = vmul.f32 %v7480, %v7794
    %v8046 = vmul.f32 %v7485, %v7798
    %v8047 = vmul.f32 %v7490, %v7802
    %v8048 = vmul.f32 %v7495, %v7806
    %v8049 = vmul.f32 %v7500, %v7810
    %v8050 = vmul.f32 %v7505, %v7814
    %v8051 = vmul.f32 %v7510, %v7818
    %v8052 = vmul.f32 %v7515, %v7822
    %v8053 = vmul.f32 %v7520, %v7826
    %v8054 = vmul.f32 %v7525, %v7830
    %v8055 = vmul.f32 %v7530, %v7834
    %v8056 = vmul.f32 %v7535, %v7838
    %v8057 = vmul.f32 %v7540, %v7842
    %v8058 = vmul.f32 %v7545, %v7846
    %v8059 = vmul.f32 %v7550, %v7850
    %v8060 = vmul.f32 %v7555, %v7854
    %v8061 = vmul.f32 %v7560, %v7858
    %v8062 = vmul.f32 %v7565, %v7862
    %v8063 = vmul.f32 %v7570, %v7866
    %v8064 = vmul.f32 %v7575, %v7870
    %v8065 = vmul.f32 %v7580, %v7874
    %v8066 = vmul.f32 %v7585, %v7878
    %v8067 = vmul.f32 %v7590, %v7882
    %v8068 = vmul.f32 %v7595, %v7886
    %v8069 = vmul.f32 %v7600, %v7890
    %v8070 = vmul.f32 %v7605, %v7894
    %v8071 = vmul.f32 %v7610, %v7898
    %v8072 = vmul.f32 %v7615, %v7902
    %v8073 = vmul.f32 %v7620, %v7906
    %v8074 = vmul.f32 %v7625, %v7910
    %v8075 = vmul.f32 %v7630, %v7914
    %v8076 = vmul.f32 %v7635, %v7918
    %v8077 = vmul.f32 %v7640, %v7922
    %v8078 = vmul.f32 %v7645, %v7926
    %v8079 = vmul.f32 %v7650, %v7930
    %v8080 = vmul.f32 %v7655, %v7934
    %v8081 = vmul.f32 %v7660, %v7938
    %v8082 = vmul.f32 %v7665, %v7942
    %v8083 = vmul.f32 %v7670, %v7946
    %v8084 = vmul.f32 %v7675, %v7950
    %v8085 = vmul.f32 %v7680, %v7954
    %v8086 = vmul.f32 %v7685, %v7958
    %v8087 = vmul.f32 %v7690, %v7962
    %v8088 = vmul.f32 %v7695, %v7966
    %v8089 = vmul.f32 %v7700, %v7970
    %v8090 = vmul.f32 %v7705, %v7974
    %v8091 = vmul.f32 %v7710, %v7978
    %v8092 = vmul.f32 %v7715, %v7982
    %v8093 = vmul.f32 %v7720, %v7986
    %v8094 = vmul.f32 %v7725, %v7990
    %v8095 = vmul.f32 %v7730, %v7994
    %v8096 = vmul.f32 %v7735, %v7998
    %v8097 = vmul.f32 %v7740, %v8002
    %v8098 = vmul.f32 %v7745, %v8006
    %v8099 = vmul.f32 %v7750, %v8010
    %v8100 = vmul.f32 %v7755, %v8014
    %v8101 = vmul.f32 %v7760, %v8018
    %v8102 = vmul.f32 %v7765, %v8022
    %v8103 = vmul.f32 %v7770, %v8026
    %v8104 = vmul.f32 %v7775, %v8030
    %v8105 = vmul.f32 %v7780, %v8034
    %v8106 = vmul.f32 %v7785, %v8038
    %v8107 = vmul.f32 %v8042, 0.0
    %v8108 = vadd.f32 %v7335, %v8044
    %v8109 = vadd.f32 %v7336, %v8045
    %v8110 = vadd.f32 %v7337, %v8046
    %v8111 = vadd.f32 %v7338, %v8047
    %v8112 = vadd.f32 %v7339, %v8048
    %v8113 = vadd.f32 %v7340, %v8049
    %v8114 = vadd.f32 %v7341, %v8050
    %v8115 = vadd.f32 %v7342, %v8051
    %v8116 = vadd.f32 %v7343, %v8052
    %v8117 = vadd.f32 %v7344, %v8053
    %v8118 = vadd.f32 %v7345, %v8054
    %v8119 = vadd.f32 %v7346, %v8055
    %v8120 = vadd.f32 %v7347, %v8056
    %v8121 = vadd.f32 %v7348, %v8057
    %v8122 = vadd.f32 %v7349, %v8058
    %v8123 = vadd.f32 %v7350, %v8059
    %v8124 = vadd.f32 %v7351, %v8060
    %v8125 = vadd.f32 %v7352, %v8061
    %v8126 = vadd.f32 %v7353, %v8062
    %v8127 = vadd.f32 %v7354, %v8063
    %v8128 = vadd.f32 %v7355, %v8064
    %v8129 = vadd.f32 %v7356, %v8065
    %v8130 = vadd.f32 %v7357, %v8066
    %v8131 = vadd.f32 %v7358, %v8067
    %v8132 = vadd.f32 %v7359, %v8068
    %v8133 = vadd.f32 %v7360, %v8069
    %v8134 = vadd.f32 %v7361, %v8070
    %v8135 = vadd.f32 %v7362, %v8071
    %v8136 = vadd.f32 %v7363, %v8072
    %v8137 = vadd.f32 %v7364, %v8073
    %v8138 = vadd.f32 %v7365, %v8074
    %v8139 = vadd.f32 %v7366, %v8075
    %v8140 = vadd.f32 %v7367, %v8076
    %v8141 = vadd.f32 %v7368, %v8077
    %v8142 = vadd.f32 %v7369, %v8078
    %v8143 = vadd.f32 %v7370, %v8079
    %v8144 = vadd.f32 %v7371, %v8080
    %v8145 = vadd.f32 %v7372, %v8081
    %v8146 = vadd.f32 %v7373, %v8082
    %v8147 = vadd.f32 %v7374, %v8083
    %v8148 = vadd.f32 %v7375, %v8084
    %v8149 = vadd.f32 %v7376, %v8085
    %v8150 = vadd.f32 %v7377, %v8086
    %v8151 = vadd.f32 %v7378, %v8087
    %v8152 = vadd.f32 %v7379, %v8088
    %v8153 = vadd.f32 %v7380, %v8089
    %v8154 = vadd.f32 %v7381, %v8090
    %v8155 = vadd.f32 %v7382, %v8091
    %v8156 = vadd.f32 %v7383, %v8092
    %v8157 = vadd.f32 %v7384, %v8093
    %v8158 = vadd.f32 %v7385, %v8094
    %v8159 = vadd.f32 %v7386, %v8095
    %v8160 = vadd.f32 %v7387, %v8096
    %v8161 = vadd.f32 %v7388, %v8097
    %v8162 = vadd.f32 %v7389, %v8098
    %v8163 = vadd.f32 %v7390, %v8099
    %v8164 = vadd.f32 %v7391, %v8100
    %v8165 = vadd.f32 %v7392, %v8101
    %v8166 = vadd.f32 %v7393, %v8102
    %v8167 = vadd.f32 %v7394, %v8103
    %v8168 = vadd.f32 %v7395, %v8104
    %v8169 = vadd.f32 %v7396, %v8105
    %v8170 = vadd.f32 %v7397, %v8106
    %v8171 = vadd.f32 %v7398, %v8107
    %s8172 = scalar_lea.vmem %s3, 32
    %v8173 = vld [vmem:[%s8172] sm:$0xf]
    %v8175 = vsel %vm1027, %v8173, 0
    %8177 = vmatprep.subr.mxu0 0.0
    %8178 = vmatpush1.msra.mxu0 %v8175
    %8179 = vmatprep.subr.mxu0 0.0
    %8180 = vmatpush1.msra.mxu0 0.0
    %8181 = vmatprep.subr.mxu0 0.0
    %8182 = vmatpush1.msra.mxu0 0.0
    %8183 = vmatprep.subr.mxu0 0.0
    %8184 = vmatpush1.msra.mxu0 0.0
    %8185 = vmatprep.subr.mxu0 0.0
    %8186 = vmatpush1.msra.mxu0 0.0
    %8187 = vmatprep.subr.mxu0 0.0
    %8188 = vmatpush1.msra.mxu0 0.0
    %8189 = vmatprep.subr.mxu0 0.0
    %8190 = vmatpush1.msra.mxu0 0.0
    %8191 = vmatprep.subr.mxu0 0.0
    %8192 = vmatpush1.msra.mxu0 0.0
    %8193 = vmatprep.subr.mxu0 0.0
    %8194 = vmatpush1.msra.mxu0 0.0
    %8195 = vmatprep.subr.mxu0 0.0
    %8196 = vmatpush1.msra.mxu0 0.0
    %8197 = vmatprep.subr.mxu0 0.0
    %8198 = vmatpush1.msra.mxu0 0.0
    %8199 = vmatprep.subr.mxu0 0.0
    %8200 = vmatpush1.msra.mxu0 0.0
    %8201 = vmatprep.subr.mxu0 0.0
    %8202 = vmatpush1.msra.mxu0 0.0
    %8203 = vmatprep.subr.mxu0 0.0
    %8204 = vmatpush1.msra.mxu0 0.0
    %8205 = vmatprep.subr.mxu0 0.0
    %8206 = vmatpush1.msra.mxu0 0.0
    %8207 = vmatprep.subr.mxu0 0.0
    %8208 = vmatpush1.msra.mxu0 0.0
    %8209 = vmatprep.subr.mxu0 0.0
    %8210 = vmatpush1.msra.mxu0 0.0
    %8211 = vmatprep.subr.mxu0 0.0
    %8212 = vmatpush1.msra.mxu0 0.0
    %8213 = vmatprep.subr.mxu0 0.0
    %8214 = vmatpush1.msra.mxu0 0.0
    %8215 = vmatprep.subr.mxu0 0.0
    %8216 = vmatpush1.msra.mxu0 0.0
    %8217 = vmatprep.subr.mxu0 0.0
    %8218 = vmatpush1.msra.mxu0 0.0
    %8219 = vmatprep.subr.mxu0 0.0
    %8220 = vmatpush1.msra.mxu0 0.0
    %8221 = vmatprep.subr.mxu0 0.0
    %8222 = vmatpush1.msra.mxu0 0.0
    %8223 = vmatprep.subr.mxu0 0.0
    %8224 = vmatpush1.msra.mxu0 0.0
    %8225 = vmatprep.subr.mxu0 0.0
    %8226 = vmatpush1.msra.mxu0 0.0
    %8227 = vmatprep.subr.mxu0 0.0
    %8228 = vmatpush1.msra.mxu0 0.0
    %8229 = vmatprep.subr.mxu0 0.0
    %8230 = vmatpush1.msra.mxu0 0.0
    %8231 = vmatprep.subr.mxu0 0.0
    %8232 = vmatpush1.msra.mxu0 0.0
    %8233 = vmatprep.subr.mxu0 0.0
    %8234 = vmatpush1.msra.mxu0 0.0
    %8235 = vmatprep.subr.mxu0 0.0
    %8236 = vmatpush1.msra.mxu0 0.0
    %8237 = vmatprep.subr.mxu0 0.0
    %8238 = vmatpush1.msra.mxu0 0.0
    %8239 = vmatprep.subr.mxu0 0.0
    %8240 = vmatpush1.msra.mxu0 0.0
    %8241 = vmatprep.mubr.f32.mxu0 0.0
    %8242 = vmatmul.mubr.f32.gmra.mrb[0].mxu0 %v836
    %v8243 = vpop.f32.mrb[0].mxu0
    %v8244 = vpop.f32.mrb[0].mxu0
    %8245 = vmatprep.mubr.f32.mxu0 0.0
    %8246 = vmatmul.mubr.f32.gmra.mrb[0].mxu0 %v839
    %v8247 = vpop.f32.mrb[0].mxu0
    %v8248 = vadd.f32 0.0, %v8247
    %v8249 = vpop.f32.mrb[0].mxu0
    %8250 = vmatprep.mubr.f32.mxu0 0.0
    %8251 = vmatmul.mubr.f32.gmra.mrb[0].mxu0 %v842
    %v8252 = vpop.f32.mrb[0].mxu0
    %v8253 = vadd.f32 0.0, %v8252
    %v8254 = vpop.f32.mrb[0].mxu0
    %8255 = vmatprep.mubr.f32.mxu0 0.0
    %8256 = vmatmul.mubr.f32.gmra.mrb[0].mxu0 %v845
    %v8257 = vpop.f32.mrb[0].mxu0
    %v8258 = vadd.f32 0.0, %v8257
    %v8259 = vpop.f32.mrb[0].mxu0
    %8260 = vmatprep.mubr.f32.mxu0 0.0
    %8261 = vmatmul.mubr.f32.gmra.mrb[0].mxu0 %v848
    %v8262 = vpop.f32.mrb[0].mxu0
    %v8263 = vadd.f32 0.0, %v8262
    %v8264 = vpop.f32.mrb[0].mxu0
    %8265 = vmatprep.mubr.f32.mxu0 0.0
    %8266 = vmatmul.mubr.f32.gmra.mrb[0].mxu0 %v851
    %v8267 = vpop.f32.mrb[0].mxu0
    %v8268 = vadd.f32 0.0, %v8267
    %v8269 = vpop.f32.mrb[0].mxu0
    %8270 = vmatprep.mubr.f32.mxu0 0.0
    %8271 = vmatmul.mubr.f32.gmra.mrb[0].mxu0 %v854
    %v8272 = vpop.f32.mrb[0].mxu0
    %v8273 = vadd.f32 0.0, %v8272
    %v8274 = vpop.f32.mrb[0].mxu0
    %8275 = vmatprep.mubr.f32.mxu0 0.0
    %8276 = vmatmul.mubr.f32.gmra.mrb[0].mxu0 %v857
    %v8277 = vpop.f32.mrb[0].mxu0
    %v8278 = vadd.f32 0.0, %v8277
    %v8279 = vpop.f32.mrb[0].mxu0
    %8280 = vmatprep.mubr.f32.mxu0 0.0
    %8281 = vmatmul.mubr.f32.gmra.mrb[0].mxu0 %v860
    %v8282 = vpop.f32.mrb[0].mxu0
    %v8283 = vadd.f32 0.0, %v8282
    %v8284 = vpop.f32.mrb[0].mxu0
    %8285 = vmatprep.mubr.f32.mxu0 0.0
    %8286 = vmatmul.mubr.f32.gmra.mrb[0].mxu0 %v863
    %v8287 = vpop.f32.mrb[0].mxu0
    %v8288 = vadd.f32 0.0, %v8287
    %v8289 = vpop.f32.mrb[0].mxu0
    %8290 = vmatprep.mubr.f32.mxu0 0.0
    %8291 = vmatmul.mubr.f32.gmra.mrb[0].mxu0 %v866
    %v8292 = vpop.f32.mrb[0].mxu0
    %v8293 = vadd.f32 0.0, %v8292
    %v8294 = vpop.f32.mrb[0].mxu0
    %8295 = vmatprep.mubr.f32.mxu0 0.0
    %8296 = vmatmul.mubr.f32.gmra.mrb[0].mxu0 %v869
    %v8297 = vpop.f32.mrb[0].mxu0
    %v8298 = vadd.f32 0.0, %v8297
    %v8299 = vpop.f32.mrb[0].mxu0
    %8300 = vmatprep.mubr.f32.mxu0 0.0
    %8301 = vmatmul.mubr.f32.gmra.mrb[0].mxu0 %v872
    %v8302 = vpop.f32.mrb[0].mxu0
    %v8303 = vadd.f32 0.0, %v8302
    %v8304 = vpop.f32.mrb[0].mxu0
    %8305 = vmatprep.mubr.f32.mxu0 0.0
    %8306 = vmatmul.mubr.f32.gmra.mrb[0].mxu0 %v875
    %v8307 = vpop.f32.mrb[0].mxu0
    %v8308 = vadd.f32 0.0, %v8307
    %v8309 = vpop.f32.mrb[0].mxu0
    %8310 = vmatprep.mubr.f32.mxu0 0.0
    %8311 = vmatmul.mubr.f32.gmra.mrb[0].mxu0 %v878
    %v8312 = vpop.f32.mrb[0].mxu0
    %v8313 = vadd.f32 0.0, %v8312
    %v8314 = vpop.f32.mrb[0].mxu0
    %8315 = vmatprep.mubr.f32.mxu0 0.0
    %8316 = vmatmul.mubr.f32.gmra.mrb[0].mxu0 %v881
    %v8317 = vpop.f32.mrb[0].mxu0
    %v8318 = vadd.f32 0.0, %v8317
    %v8319 = vpop.f32.mrb[0].mxu0
    %8320 = vmatprep.mubr.f32.mxu0 0.0
    %8321 = vmatmul.mubr.f32.gmra.mrb[0].mxu0 %v884
    %v8322 = vpop.f32.mrb[0].mxu0
    %v8323 = vadd.f32 0.0, %v8322
    %v8324 = vpop.f32.mrb[0].mxu0
    %8325 = vmatprep.mubr.f32.mxu0 0.0
    %8326 = vmatmul.mubr.f32.gmra.mrb[0].mxu0 %v887
    %v8327 = vpop.f32.mrb[0].mxu0
    %v8328 = vadd.f32 0.0, %v8327
    %v8329 = vpop.f32.mrb[0].mxu0
    %8330 = vmatprep.mubr.f32.mxu0 0.0
    %8331 = vmatmul.mubr.f32.gmra.mrb[0].mxu0 %v890
    %v8332 = vpop.f32.mrb[0].mxu0
    %v8333 = vadd.f32 0.0, %v8332
    %v8334 = vpop.f32.mrb[0].mxu0
    %8335 = vmatprep.mubr.f32.mxu0 0.0
    %8336 = vmatmul.mubr.f32.gmra.mrb[0].mxu0 %v893
    %v8337 = vpop.f32.mrb[0].mxu0
    %v8338 = vadd.f32 0.0, %v8337
    %v8339 = vpop.f32.mrb[0].mxu0
    %8340 = vmatprep.mubr.f32.mxu0 0.0
    %8341 = vmatmul.mubr.f32.gmra.mrb[0].mxu0 %v896
    %v8342 = vpop.f32.mrb[0].mxu0
    %v8343 = vadd.f32 0.0, %v8342
    %v8344 = vpop.f32.mrb[0].mxu0
    %8345 = vmatprep.mubr.f32.mxu0 0.0
    %8346 = vmatmul.mubr.f32.gmra.mrb[0].mxu0 %v899
    %v8347 = vpop.f32.mrb[0].mxu0
    %v8348 = vadd.f32 0.0, %v8347
    %v8349 = vpop.f32.mrb[0].mxu0
    %8350 = vmatprep.mubr.f32.mxu0 0.0
    %8351 = vmatmul.mubr.f32.gmra.mrb[0].mxu0 %v902
    %v8352 = vpop.f32.mrb[0].mxu0
    %v8353 = vadd.f32 0.0, %v8352
    %v8354 = vpop.f32.mrb[0].mxu0
    %8355 = vmatprep.mubr.f32.mxu0 0.0
    %8356 = vmatmul.mubr.f32.gmra.mrb[0].mxu0 %v905
    %v8357 = vpop.f32.mrb[0].mxu0
    %v8358 = vadd.f32 0.0, %v8357
    %v8359 = vpop.f32.mrb[0].mxu0
    %8360 = vmatprep.mubr.f32.mxu0 0.0
    %8361 = vmatmul.mubr.f32.gmra.mrb[0].mxu0 %v908
    %v8362 = vpop.f32.mrb[0].mxu0
    %v8363 = vadd.f32 0.0, %v8362
    %v8364 = vpop.f32.mrb[0].mxu0
    %8365 = vmatprep.mubr.f32.mxu0 0.0
    %8366 = vmatmul.mubr.f32.gmra.mrb[0].mxu0 %v911
    %v8367 = vpop.f32.mrb[0].mxu0
    %v8368 = vadd.f32 0.0, %v8367
    %v8369 = vpop.f32.mrb[0].mxu0
    %8370 = vmatprep.mubr.f32.mxu0 0.0
    %8371 = vmatmul.mubr.f32.gmra.mrb[0].mxu0 %v914
    %v8372 = vpop.f32.mrb[0].mxu0
    %v8373 = vadd.f32 0.0, %v8372
    %v8374 = vpop.f32.mrb[0].mxu0
    %8375 = vmatprep.mubr.f32.mxu0 0.0
    %8376 = vmatmul.mubr.f32.gmra.mrb[0].mxu0 %v917
    %v8377 = vpop.f32.mrb[0].mxu0
    %v8378 = vadd.f32 0.0, %v8377
    %v8379 = vpop.f32.mrb[0].mxu0
    %8380 = vmatprep.mubr.f32.mxu0 0.0
    %8381 = vmatmul.mubr.f32.gmra.mrb[0].mxu0 %v920
    %v8382 = vpop.f32.mrb[0].mxu0
    %v8383 = vadd.f32 0.0, %v8382
    %v8384 = vpop.f32.mrb[0].mxu0
    %8385 = vmatprep.mubr.f32.mxu0 0.0
    %8386 = vmatmul.mubr.f32.gmra.mrb[0].mxu0 %v923
    %v8387 = vpop.f32.mrb[0].mxu0
    %v8388 = vadd.f32 0.0, %v8387
    %v8389 = vpop.f32.mrb[0].mxu0
    %8390 = vmatprep.mubr.f32.mxu0 0.0
    %8391 = vmatmul.mubr.f32.gmra.mrb[0].mxu0 %v926
    %v8392 = vpop.f32.mrb[0].mxu0
    %v8393 = vadd.f32 0.0, %v8392
    %v8394 = vpop.f32.mrb[0].mxu0
    %8395 = vmatprep.mubr.f32.mxu0 0.0
    %8396 = vmatmul.mubr.f32.gmra.mrb[0].mxu0 %v929
    %v8397 = vpop.f32.mrb[0].mxu0
    %v8398 = vadd.f32 0.0, %v8397
    %v8399 = vpop.f32.mrb[0].mxu0
    %8400 = vmatprep.mubr.f32.mxu0 0.0
    %8401 = vmatmul.mubr.f32.gmra.mrb[0].mxu0 %v932
    %v8402 = vpop.f32.mrb[0].mxu0
    %v8403 = vadd.f32 0.0, %v8402
    %v8404 = vpop.f32.mrb[0].mxu0
    %8405 = vmatprep.mubr.f32.mxu0 0.0
    %8406 = vmatmul.mubr.f32.gmra.mrb[0].mxu0 %v935
    %v8407 = vpop.f32.mrb[0].mxu0
    %v8408 = vadd.f32 0.0, %v8407
    %v8409 = vpop.f32.mrb[0].mxu0
    %8410 = vmatprep.mubr.f32.mxu0 0.0
    %8411 = vmatmul.mubr.f32.gmra.mrb[0].mxu0 %v938
    %v8412 = vpop.f32.mrb[0].mxu0
    %v8413 = vadd.f32 0.0, %v8412
    %v8414 = vpop.f32.mrb[0].mxu0
    %8415 = vmatprep.mubr.f32.mxu0 0.0
    %8416 = vmatmul.mubr.f32.gmra.mrb[0].mxu0 %v941
    %v8417 = vpop.f32.mrb[0].mxu0
    %v8418 = vadd.f32 0.0, %v8417
    %v8419 = vpop.f32.mrb[0].mxu0
    %8420 = vmatprep.mubr.f32.mxu0 0.0
    %8421 = vmatmul.mubr.f32.gmra.mrb[0].mxu0 %v944
    %v8422 = vpop.f32.mrb[0].mxu0
    %v8423 = vadd.f32 0.0, %v8422
    %v8424 = vpop.f32.mrb[0].mxu0
    %8425 = vmatprep.mubr.f32.mxu0 0.0
    %8426 = vmatmul.mubr.f32.gmra.mrb[0].mxu0 %v947
    %v8427 = vpop.f32.mrb[0].mxu0
    %v8428 = vadd.f32 0.0, %v8427
    %v8429 = vpop.f32.mrb[0].mxu0
    %8430 = vmatprep.mubr.f32.mxu0 0.0
    %8431 = vmatmul.mubr.f32.gmra.mrb[0].mxu0 %v950
    %v8432 = vpop.f32.mrb[0].mxu0
    %v8433 = vadd.f32 0.0, %v8432
    %v8434 = vpop.f32.mrb[0].mxu0
    %8435 = vmatprep.mubr.f32.mxu0 0.0
    %8436 = vmatmul.mubr.f32.gmra.mrb[0].mxu0 %v953
    %v8437 = vpop.f32.mrb[0].mxu0
    %v8438 = vadd.f32 0.0, %v8437
    %v8439 = vpop.f32.mrb[0].mxu0
    %8440 = vmatprep.mubr.f32.mxu0 0.0
    %8441 = vmatmul.mubr.f32.gmra.mrb[0].mxu0 %v956
    %v8442 = vpop.f32.mrb[0].mxu0
    %v8443 = vadd.f32 0.0, %v8442
    %v8444 = vpop.f32.mrb[0].mxu0
    %8445 = vmatprep.mubr.f32.mxu0 0.0
    %8446 = vmatmul.mubr.f32.gmra.mrb[0].mxu0 %v959
    %v8447 = vpop.f32.mrb[0].mxu0
    %v8448 = vadd.f32 0.0, %v8447
    %v8449 = vpop.f32.mrb[0].mxu0
    %8450 = vmatprep.mubr.f32.mxu0 0.0
    %8451 = vmatmul.mubr.f32.gmra.mrb[0].mxu0 %v962
    %v8452 = vpop.f32.mrb[0].mxu0
    %v8453 = vadd.f32 0.0, %v8452
    %v8454 = vpop.f32.mrb[0].mxu0
    %8455 = vmatprep.mubr.f32.mxu0 0.0
    %8456 = vmatmul.mubr.f32.gmra.mrb[0].mxu0 %v965
    %v8457 = vpop.f32.mrb[0].mxu0
    %v8458 = vadd.f32 0.0, %v8457
    %v8459 = vpop.f32.mrb[0].mxu0
    %8460 = vmatprep.mubr.f32.mxu0 0.0
    %8461 = vmatmul.mubr.f32.gmra.mrb[0].mxu0 %v968
    %v8462 = vpop.f32.mrb[0].mxu0
    %v8463 = vadd.f32 0.0, %v8462
    %v8464 = vpop.f32.mrb[0].mxu0
    %8465 = vmatprep.mubr.f32.mxu0 0.0
    %8466 = vmatmul.mubr.f32.gmra.mrb[0].mxu0 %v971
    %v8467 = vpop.f32.mrb[0].mxu0
    %v8468 = vadd.f32 0.0, %v8467
    %v8469 = vpop.f32.mrb[0].mxu0
    %8470 = vmatprep.mubr.f32.mxu0 0.0
    %8471 = vmatmul.mubr.f32.gmra.mrb[0].mxu0 %v974
    %v8472 = vpop.f32.mrb[0].mxu0
    %v8473 = vadd.f32 0.0, %v8472
    %v8474 = vpop.f32.mrb[0].mxu0
    %8475 = vmatprep.mubr.f32.mxu0 0.0
    %8476 = vmatmul.mubr.f32.gmra.mrb[0].mxu0 %v977
    %v8477 = vpop.f32.mrb[0].mxu0
    %v8478 = vadd.f32 0.0, %v8477
    %v8479 = vpop.f32.mrb[0].mxu0
    %8480 = vmatprep.mubr.f32.mxu0 0.0
    %8481 = vmatmul.mubr.f32.gmra.mrb[0].mxu0 %v980
    %v8482 = vpop.f32.mrb[0].mxu0
    %v8483 = vadd.f32 0.0, %v8482
    %v8484 = vpop.f32.mrb[0].mxu0
    %8485 = vmatprep.mubr.f32.mxu0 0.0
    %8486 = vmatmul.mubr.f32.gmra.mrb[0].mxu0 %v983
    %v8487 = vpop.f32.mrb[0].mxu0
    %v8488 = vadd.f32 0.0, %v8487
    %v8489 = vpop.f32.mrb[0].mxu0
    %8490 = vmatprep.mubr.f32.mxu0 0.0
    %8491 = vmatmul.mubr.f32.gmra.mrb[0].mxu0 %v986
    %v8492 = vpop.f32.mrb[0].mxu0
    %v8493 = vadd.f32 0.0, %v8492
    %v8494 = vpop.f32.mrb[0].mxu0
    %8495 = vmatprep.mubr.f32.mxu0 0.0
    %8496 = vmatmul.mubr.f32.gmra.mrb[0].mxu0 %v989
    %v8497 = vpop.f32.mrb[0].mxu0
    %v8498 = vadd.f32 0.0, %v8497
    %v8499 = vpop.f32.mrb[0].mxu0
    %8500 = vmatprep.mubr.f32.mxu0 0.0
    %8501 = vmatmul.mubr.f32.gmra.mrb[0].mxu0 %v992
    %v8502 = vpop.f32.mrb[0].mxu0
    %v8503 = vadd.f32 0.0, %v8502
    %v8504 = vpop.f32.mrb[0].mxu0
    %8505 = vmatprep.mubr.f32.mxu0 0.0
    %8506 = vmatmul.mubr.f32.gmra.mrb[0].mxu0 %v995
    %v8507 = vpop.f32.mrb[0].mxu0
    %v8508 = vadd.f32 0.0, %v8507
    %v8509 = vpop.f32.mrb[0].mxu0
    %8510 = vmatprep.mubr.f32.mxu0 0.0
    %8511 = vmatmul.mubr.f32.gmra.mrb[0].mxu0 %v998
    %v8512 = vpop.f32.mrb[0].mxu0
    %v8513 = vadd.f32 0.0, %v8512
    %v8514 = vpop.f32.mrb[0].mxu0
    %8515 = vmatprep.mubr.f32.mxu0 0.0
    %8516 = vmatmul.mubr.f32.gmra.mrb[0].mxu0 %v1001
    %v8517 = vpop.f32.mrb[0].mxu0
    %v8518 = vadd.f32 0.0, %v8517
    %v8519 = vpop.f32.mrb[0].mxu0
    %8520 = vmatprep.mubr.f32.mxu0 0.0
    %8521 = vmatmul.mubr.f32.gmra.mrb[0].mxu0 %v1004
    %v8522 = vpop.f32.mrb[0].mxu0
    %v8523 = vadd.f32 0.0, %v8522
    %v8524 = vpop.f32.mrb[0].mxu0
    %8525 = vmatprep.mubr.f32.mxu0 0.0
    %8526 = vmatmul.mubr.f32.gmra.mrb[0].mxu0 %v1007
    %v8527 = vpop.f32.mrb[0].mxu0
    %v8528 = vadd.f32 0.0, %v8527
    %v8529 = vpop.f32.mrb[0].mxu0
    %8530 = vmatprep.mubr.f32.mxu0 0.0
    %8531 = vmatmul.mubr.f32.gmra.mrb[0].mxu0 %v1010
    %v8532 = vpop.f32.mrb[0].mxu0
    %v8533 = vadd.f32 0.0, %v8532
    %v8534 = vpop.f32.mrb[0].mxu0
    %8535 = vmatprep.mubr.f32.mxu0 0.0
    %8536 = vmatmul.mubr.f32.gmra.mrb[0].mxu0 %v1013
    %v8537 = vpop.f32.mrb[0].mxu0
    %v8538 = vadd.f32 0.0, %v8537
    %v8539 = vpop.f32.mrb[0].mxu0
    %8540 = vmatprep.mubr.f32.mxu0 0.0
    %8541 = vmatmul.mubr.f32.gmra.mrb[0].mxu0 %v1016
    %v8542 = vpop.f32.mrb[0].mxu0
    %v8543 = vadd.f32 0.0, %v8542
    %v8544 = vpop.f32.mrb[0].mxu0
    %8545 = vmatprep.mubr.f32.mxu0 0.0
    %8546 = vmatmul.mubr.f32.gmra.mrb[0].mxu0 %v1019
    %v8547 = vpop.f32.mrb[0].mxu0
    %v8548 = vadd.f32 0.0, %v8547
    %v8549 = vpop.f32.mrb[0].mxu0
    %8550 = vmatprep.mubr.f32.mxu0 0.0
    %8551 = vmatmul.mubr.f32.gmra.mrb[0].mxu0 %v1022
    %v8552 = vpop.f32.mrb[0].mxu0
    %v8553 = vadd.f32 0.0, %v8552
    %v8554 = vpop.f32.mrb[0].mxu0
    %8555 = vmatprep.mubr.f32.mxu0 0.0
    %8556 = vmatmul.mubr.f32.gmra.mrb[0].mxu0 %v1025
    %v8557 = vpop.f32.mrb[0].mxu0
    %v8558 = vadd.f32 0.0, %v8557
    %v8559 = vpop.f32.mrb[0].mxu0
    %8560 = vdwg.mxu0
    %v8624 = vrot.slane %v8248, 1
    %v8625 = vrot.slane %v8253, 1
    %v8626 = vsel %vm3278, %v8624, %v8625
    %v8627 = vrot.slane %v8258, 1
    %v8628 = vsel %vm3278, %v8625, %v8627
    %v8629 = vrot.slane %v8263, 1
    %v8630 = vsel %vm3278, %v8627, %v8629
    %v8631 = vrot.slane %v8268, 1
    %v8632 = vsel %vm3278, %v8629, %v8631
    %v8633 = vrot.slane %v8273, 1
    %v8634 = vsel %vm3278, %v8631, %v8633
    %v8635 = vrot.slane %v8278, 1
    %v8636 = vsel %vm3278, %v8633, %v8635
    %v8637 = vrot.slane %v8283, 1
    %v8638 = vsel %vm3278, %v8635, %v8637
    %v8639 = vrot.slane %v8288, 1
    %v8640 = vsel %vm3278, %v8637, %v8639
    %v8641 = vrot.slane %v8293, 1
    %v8642 = vsel %vm3278, %v8639, %v8641
    %v8643 = vrot.slane %v8298, 1
    %v8644 = vsel %vm3278, %v8641, %v8643
    %v8645 = vrot.slane %v8303, 1
    %v8646 = vsel %vm3278, %v8643, %v8645
    %v8647 = vrot.slane %v8308, 1
    %v8648 = vsel %vm3278, %v8645, %v8647
    %v8649 = vrot.slane %v8313, 1
    %v8650 = vsel %vm3278, %v8647, %v8649
    %v8651 = vrot.slane %v8318, 1
    %v8652 = vsel %vm3278, %v8649, %v8651
    %v8653 = vrot.slane %v8323, 1
    %v8654 = vsel %vm3278, %v8651, %v8653
    %v8655 = vrot.slane %v8328, 1
    %v8656 = vsel %vm3278, %v8653, %v8655
    %v8657 = vrot.slane %v8333, 1
    %v8658 = vsel %vm3278, %v8655, %v8657
    %v8659 = vrot.slane %v8338, 1
    %v8660 = vsel %vm3278, %v8657, %v8659
    %v8661 = vrot.slane %v8343, 1
    %v8662 = vsel %vm3278, %v8659, %v8661
    %v8663 = vrot.slane %v8348, 1
    %v8664 = vsel %vm3278, %v8661, %v8663
    %v8665 = vrot.slane %v8353, 1
    %v8666 = vsel %vm3278, %v8663, %v8665
    %v8667 = vrot.slane %v8358, 1
    %v8668 = vsel %vm3278, %v8665, %v8667
    %v8669 = vrot.slane %v8363, 1
    %v8670 = vsel %vm3278, %v8667, %v8669
    %v8671 = vrot.slane %v8368, 1
    %v8672 = vsel %vm3278, %v8669, %v8671
    %v8673 = vrot.slane %v8373, 1
    %v8674 = vsel %vm3278, %v8671, %v8673
    %v8675 = vrot.slane %v8378, 1
    %v8676 = vsel %vm3278, %v8673, %v8675
    %v8677 = vrot.slane %v8383, 1
    %v8678 = vsel %vm3278, %v8675, %v8677
    %v8679 = vrot.slane %v8388, 1
    %v8680 = vsel %vm3278, %v8677, %v8679
    %v8681 = vrot.slane %v8393, 1
    %v8682 = vsel %vm3278, %v8679, %v8681
    %v8683 = vrot.slane %v8398, 1
    %v8684 = vsel %vm3278, %v8681, %v8683
    %v8685 = vrot.slane %v8403, 1
    %v8686 = vsel %vm3278, %v8683, %v8685
    %v8687 = vrot.slane %v8408, 1
    %v8688 = vsel %vm3278, %v8685, %v8687
    %v8689 = vrot.slane %v8413, 1
    %v8690 = vsel %vm3278, %v8687, %v8689
    %v8691 = vrot.slane %v8418, 1
    %v8692 = vsel %vm3278, %v8689, %v8691
    %v8693 = vrot.slane %v8423, 1
    %v8694 = vsel %vm3278, %v8691, %v8693
    %v8695 = vrot.slane %v8428, 1
    %v8696 = vsel %vm3278, %v8693, %v8695
    %v8697 = vrot.slane %v8433, 1
    %v8698 = vsel %vm3278, %v8695, %v8697
    %v8699 = vrot.slane %v8438, 1
    %v8700 = vsel %vm3278, %v8697, %v8699
    %v8701 = vrot.slane %v8443, 1
    %v8702 = vsel %vm3278, %v8699, %v8701
    %v8703 = vrot.slane %v8448, 1
    %v8704 = vsel %vm3278, %v8701, %v8703
    %v8705 = vrot.slane %v8453, 1
    %v8706 = vsel %vm3278, %v8703, %v8705
    %v8707 = vrot.slane %v8458, 1
    %v8708 = vsel %vm3278, %v8705, %v8707
    %v8709 = vrot.slane %v8463, 1
    %v8710 = vsel %vm3278, %v8707, %v8709
    %v8711 = vrot.slane %v8468, 1
    %v8712 = vsel %vm3278, %v8709, %v8711
    %v8713 = vrot.slane %v8473, 1
    %v8714 = vsel %vm3278, %v8711, %v8713
    %v8715 = vrot.slane %v8478, 1
    %v8716 = vsel %vm3278, %v8713, %v8715
    %v8717 = vrot.slane %v8483, 1
    %v8718 = vsel %vm3278, %v8715, %v8717
    %v8719 = vrot.slane %v8488, 1
    %v8720 = vsel %vm3278, %v8717, %v8719
    %v8721 = vrot.slane %v8493, 1
    %v8722 = vsel %vm3278, %v8719, %v8721
    %v8723 = vrot.slane %v8498, 1
    %v8724 = vsel %vm3278, %v8721, %v8723
    %v8725 = vrot.slane %v8503, 1
    %v8726 = vsel %vm3278, %v8723, %v8725
    %v8727 = vrot.slane %v8508, 1
    %v8728 = vsel %vm3278, %v8725, %v8727
    %v8729 = vrot.slane %v8513, 1
    %v8730 = vsel %vm3278, %v8727, %v8729
    %v8731 = vrot.slane %v8518, 1
    %v8732 = vsel %vm3278, %v8729, %v8731
    %v8733 = vrot.slane %v8523, 1
    %v8734 = vsel %vm3278, %v8731, %v8733
    %v8735 = vrot.slane %v8528, 1
    %v8736 = vsel %vm3278, %v8733, %v8735
    %v8737 = vrot.slane %v8533, 1
    %v8738 = vsel %vm3278, %v8735, %v8737
    %v8739 = vrot.slane %v8538, 1
    %v8740 = vsel %vm3278, %v8737, %v8739
    %v8741 = vrot.slane %v8543, 1
    %v8742 = vsel %vm3278, %v8739, %v8741
    %v8743 = vrot.slane %v8548, 1
    %v8744 = vsel %vm3278, %v8741, %v8743
    %v8745 = vrot.slane %v8553, 1
    %v8746 = vsel %vm3278, %v8743, %v8745
    %v8747 = vrot.slane %v8558, 1
    %v8748 = vsel %vm3278, %v8745, %v8747
    %v8812 = vsel %vm3278, %v8747, 0.0
    %8813 = vset.pattern.permute.xlu0 8
    %8814 = vperm.xlu0 %8813, %v769
    %v8815 = vpop.permute.xlu0 %8814
    %8817 = vset.pattern.permute.xlu0 8
    %8818 = vperm.xlu0 %8817, %v770
    %v8819 = vpop.permute.xlu0 %8818
    %8821 = vset.pattern.permute.xlu0 8
    %8822 = vperm.xlu0 %8821, %v771
    %v8823 = vpop.permute.xlu0 %8822
    %8825 = vset.pattern.permute.xlu0 8
    %8826 = vperm.xlu0 %8825, %v772
    %v8827 = vpop.permute.xlu0 %8826
    %8829 = vset.pattern.permute.xlu0 8
    %8830 = vperm.xlu0 %8829, %v773
    %v8831 = vpop.permute.xlu0 %8830
    %8833 = vset.pattern.permute.xlu0 8
    %8834 = vperm.xlu0 %8833, %v774
    %v8835 = vpop.permute.xlu0 %8834
    %8837 = vset.pattern.permute.xlu0 8
    %8838 = vperm.xlu0 %8837, %v775
    %v8839 = vpop.permute.xlu0 %8838
    %8841 = vset.pattern.permute.xlu0 8
    %8842 = vperm.xlu0 %8841, %v776
    %v8843 = vpop.permute.xlu0 %8842
    %8845 = vset.pattern.permute.xlu0 8
    %8846 = vperm.xlu0 %8845, %v777
    %v8847 = vpop.permute.xlu0 %8846
    %8849 = vset.pattern.permute.xlu0 8
    %8850 = vperm.xlu0 %8849, %v778
    %v8851 = vpop.permute.xlu0 %8850
    %8853 = vset.pattern.permute.xlu0 8
    %8854 = vperm.xlu0 %8853, %v779
    %v8855 = vpop.permute.xlu0 %8854
    %8857 = vset.pattern.permute.xlu0 8
    %8858 = vperm.xlu0 %8857, %v780
    %v8859 = vpop.permute.xlu0 %8858
    %8861 = vset.pattern.permute.xlu0 8
    %8862 = vperm.xlu0 %8861, %v781
    %v8863 = vpop.permute.xlu0 %8862
    %8865 = vset.pattern.permute.xlu0 8
    %8866 = vperm.xlu0 %8865, %v782
    %v8867 = vpop.permute.xlu0 %8866
    %8869 = vset.pattern.permute.xlu0 8
    %8870 = vperm.xlu0 %8869, %v783
    %v8871 = vpop.permute.xlu0 %8870
    %8873 = vset.pattern.permute.xlu0 8
    %8874 = vperm.xlu0 %8873, %v784
    %v8875 = vpop.permute.xlu0 %8874
    %8877 = vset.pattern.permute.xlu0 8
    %8878 = vperm.xlu0 %8877, %v785
    %v8879 = vpop.permute.xlu0 %8878
    %8881 = vset.pattern.permute.xlu0 8
    %8882 = vperm.xlu0 %8881, %v786
    %v8883 = vpop.permute.xlu0 %8882
    %8885 = vset.pattern.permute.xlu0 8
    %8886 = vperm.xlu0 %8885, %v787
    %v8887 = vpop.permute.xlu0 %8886
    %8889 = vset.pattern.permute.xlu0 8
    %8890 = vperm.xlu0 %8889, %v788
    %v8891 = vpop.permute.xlu0 %8890
    %8893 = vset.pattern.permute.xlu0 8
    %8894 = vperm.xlu0 %8893, %v789
    %v8895 = vpop.permute.xlu0 %8894
    %8897 = vset.pattern.permute.xlu0 8
    %8898 = vperm.xlu0 %8897, %v790
    %v8899 = vpop.permute.xlu0 %8898
    %8901 = vset.pattern.permute.xlu0 8
    %8902 = vperm.xlu0 %8901, %v791
    %v8903 = vpop.permute.xlu0 %8902
    %8905 = vset.pattern.permute.xlu0 8
    %8906 = vperm.xlu0 %8905, %v792
    %v8907 = vpop.permute.xlu0 %8906
    %8909 = vset.pattern.permute.xlu0 8
    %8910 = vperm.xlu0 %8909, %v793
    %v8911 = vpop.permute.xlu0 %8910
    %8913 = vset.pattern.permute.xlu0 8
    %8914 = vperm.xlu0 %8913, %v794
    %v8915 = vpop.permute.xlu0 %8914
    %8917 = vset.pattern.permute.xlu0 8
    %8918 = vperm.xlu0 %8917, %v795
    %v8919 = vpop.permute.xlu0 %8918
    %8921 = vset.pattern.permute.xlu0 8
    %8922 = vperm.xlu0 %8921, %v796
    %v8923 = vpop.permute.xlu0 %8922
    %8925 = vset.pattern.permute.xlu0 8
    %8926 = vperm.xlu0 %8925, %v797
    %v8927 = vpop.permute.xlu0 %8926
    %8929 = vset.pattern.permute.xlu0 8
    %8930 = vperm.xlu0 %8929, %v798
    %v8931 = vpop.permute.xlu0 %8930
    %8933 = vset.pattern.permute.xlu0 8
    %8934 = vperm.xlu0 %8933, %v799
    %v8935 = vpop.permute.xlu0 %8934
    %8937 = vset.pattern.permute.xlu0 8
    %8938 = vperm.xlu0 %8937, %v800
    %v8939 = vpop.permute.xlu0 %8938
    %8941 = vset.pattern.permute.xlu0 8
    %8942 = vperm.xlu0 %8941, %v801
    %v8943 = vpop.permute.xlu0 %8942
    %8945 = vset.pattern.permute.xlu0 8
    %8946 = vperm.xlu0 %8945, %v802
    %v8947 = vpop.permute.xlu0 %8946
    %8949 = vset.pattern.permute.xlu0 8
    %8950 = vperm.xlu0 %8949, %v803
    %v8951 = vpop.permute.xlu0 %8950
    %8953 = vset.pattern.permute.xlu0 8
    %8954 = vperm.xlu0 %8953, %v804
    %v8955 = vpop.permute.xlu0 %8954
    %8957 = vset.pattern.permute.xlu0 8
    %8958 = vperm.xlu0 %8957, %v805
    %v8959 = vpop.permute.xlu0 %8958
    %8961 = vset.pattern.permute.xlu0 8
    %8962 = vperm.xlu0 %8961, %v806
    %v8963 = vpop.permute.xlu0 %8962
    %8965 = vset.pattern.permute.xlu0 8
    %8966 = vperm.xlu0 %8965, %v807
    %v8967 = vpop.permute.xlu0 %8966
    %8969 = vset.pattern.permute.xlu0 8
    %8970 = vperm.xlu0 %8969, %v808
    %v8971 = vpop.permute.xlu0 %8970
    %8973 = vset.pattern.permute.xlu0 8
    %8974 = vperm.xlu0 %8973, %v809
    %v8975 = vpop.permute.xlu0 %8974
    %8977 = vset.pattern.permute.xlu0 8
    %8978 = vperm.xlu0 %8977, %v810
    %v8979 = vpop.permute.xlu0 %8978
    %8981 = vset.pattern.permute.xlu0 8
    %8982 = vperm.xlu0 %8981, %v811
    %v8983 = vpop.permute.xlu0 %8982
    %8985 = vset.pattern.permute.xlu0 8
    %8986 = vperm.xlu0 %8985, %v812
    %v8987 = vpop.permute.xlu0 %8986
    %8989 = vset.pattern.permute.xlu0 8
    %8990 = vperm.xlu0 %8989, %v813
    %v8991 = vpop.permute.xlu0 %8990
    %8993 = vset.pattern.permute.xlu0 8
    %8994 = vperm.xlu0 %8993, %v814
    %v8995 = vpop.permute.xlu0 %8994
    %8997 = vset.pattern.permute.xlu0 8
    %8998 = vperm.xlu0 %8997, %v815
    %v8999 = vpop.permute.xlu0 %8998
    %9001 = vset.pattern.permute.xlu0 8
    %9002 = vperm.xlu0 %9001, %v816
    %v9003 = vpop.permute.xlu0 %9002
    %9005 = vset.pattern.permute.xlu0 8
    %9006 = vperm.xlu0 %9005, %v817
    %v9007 = vpop.permute.xlu0 %9006
    %9009 = vset.pattern.permute.xlu0 8
    %9010 = vperm.xlu0 %9009, %v818
    %v9011 = vpop.permute.xlu0 %9010
    %9013 = vset.pattern.permute.xlu0 8
    %9014 = vperm.xlu0 %9013, %v819
    %v9015 = vpop.permute.xlu0 %9014
    %9017 = vset.pattern.permute.xlu0 8
    %9018 = vperm.xlu0 %9017, %v820
    %v9019 = vpop.permute.xlu0 %9018
    %9021 = vset.pattern.permute.xlu0 8
    %9022 = vperm.xlu0 %9021, %v821
    %v9023 = vpop.permute.xlu0 %9022
    %9025 = vset.pattern.permute.xlu0 8
    %9026 = vperm.xlu0 %9025, %v822
    %v9027 = vpop.permute.xlu0 %9026
    %9029 = vset.pattern.permute.xlu0 8
    %9030 = vperm.xlu0 %9029, %v823
    %v9031 = vpop.permute.xlu0 %9030
    %9033 = vset.pattern.permute.xlu0 8
    %9034 = vperm.xlu0 %9033, %v824
    %v9035 = vpop.permute.xlu0 %9034
    %9037 = vset.pattern.permute.xlu0 8
    %9038 = vperm.xlu0 %9037, %v825
    %v9039 = vpop.permute.xlu0 %9038
    %9041 = vset.pattern.permute.xlu0 8
    %9042 = vperm.xlu0 %9041, %v826
    %v9043 = vpop.permute.xlu0 %9042
    %9045 = vset.pattern.permute.xlu0 8
    %9046 = vperm.xlu0 %9045, %v827
    %v9047 = vpop.permute.xlu0 %9046
    %9049 = vset.pattern.permute.xlu0 8
    %9050 = vperm.xlu0 %9049, %v828
    %v9051 = vpop.permute.xlu0 %9050
    %9053 = vset.pattern.permute.xlu0 8
    %9054 = vperm.xlu0 %9053, %v829
    %v9055 = vpop.permute.xlu0 %9054
    %9057 = vset.pattern.permute.xlu0 8
    %9058 = vperm.xlu0 %9057, %v830
    %v9059 = vpop.permute.xlu0 %9058
    %9061 = vset.pattern.permute.xlu0 8
    %9062 = vperm.xlu0 %9061, %v831
    %v9063 = vpop.permute.xlu0 %9062
    %9065 = vset.pattern.permute.xlu0 8
    %9066 = vperm.xlu0 %9065, %v832
    %v9067 = vpop.permute.xlu0 %9066
    %v9069 = vmul.f32 %v8626, %v8815
    %v9070 = vmul.f32 %v8628, %v8819
    %v9071 = vmul.f32 %v8630, %v8823
    %v9072 = vmul.f32 %v8632, %v8827
    %v9073 = vmul.f32 %v8634, %v8831
    %v9074 = vmul.f32 %v8636, %v8835
    %v9075 = vmul.f32 %v8638, %v8839
    %v9076 = vmul.f32 %v8640, %v8843
    %v9077 = vmul.f32 %v8642, %v8847
    %v9078 = vmul.f32 %v8644, %v8851
    %v9079 = vmul.f32 %v8646, %v8855
    %v9080 = vmul.f32 %v8648, %v8859
    %v9081 = vmul.f32 %v8650, %v8863
    %v9082 = vmul.f32 %v8652, %v8867
    %v9083 = vmul.f32 %v8654, %v8871
    %v9084 = vmul.f32 %v8656, %v8875
    %v9085 = vmul.f32 %v8658, %v8879
    %v9086 = vmul.f32 %v8660, %v8883
    %v9087 = vmul.f32 %v8662, %v8887
    %v9088 = vmul.f32 %v8664, %v8891
    %v9089 = vmul.f32 %v8666, %v8895
    %v9090 = vmul.f32 %v8668, %v8899
    %v9091 = vmul.f32 %v8670, %v8903
    %v9092 = vmul.f32 %v8672, %v8907
    %v9093 = vmul.f32 %v8674, %v8911
    %v9094 = vmul.f32 %v8676, %v8915
    %v9095 = vmul.f32 %v8678, %v8919
    %v9096 = vmul.f32 %v8680, %v8923
    %v9097 = vmul.f32 %v8682, %v8927
    %v9098 = vmul.f32 %v8684, %v8931
    %v9099 = vmul.f32 %v8686, %v8935
    %v9100 = vmul.f32 %v8688, %v8939
    %v9101 = vmul.f32 %v8690, %v8943
    %v9102 = vmul.f32 %v8692, %v8947
    %v9103 = vmul.f32 %v8694, %v8951
    %v9104 = vmul.f32 %v8696, %v8955
    %v9105 = vmul.f32 %v8698, %v8959
    %v9106 = vmul.f32 %v8700, %v8963
    %v9107 = vmul.f32 %v8702, %v8967
    %v9108 = vmul.f32 %v8704, %v8971
    %v9109 = vmul.f32 %v8706, %v8975
    %v9110 = vmul.f32 %v8708, %v8979
    %v9111 = vmul.f32 %v8710, %v8983
    %v9112 = vmul.f32 %v8712, %v8987
    %v9113 = vmul.f32 %v8714, %v8991
    %v9114 = vmul.f32 %v8716, %v8995
    %v9115 = vmul.f32 %v8718, %v8999
    %v9116 = vmul.f32 %v8720, %v9003
    %v9117 = vmul.f32 %v8722, %v9007
    %v9118 = vmul.f32 %v8724, %v9011
    %v9119 = vmul.f32 %v8726, %v9015
    %v9120 = vmul.f32 %v8728, %v9019
    %v9121 = vmul.f32 %v8730, %v9023
    %v9122 = vmul.f32 %v8732, %v9027
    %v9123 = vmul.f32 %v8734, %v9031
    %v9124 = vmul.f32 %v8736, %v9035
    %v9125 = vmul.f32 %v8738, %v9039
    %v9126 = vmul.f32 %v8740, %v9043
    %v9127 = vmul.f32 %v8742, %v9047
    %v9128 = vmul.f32 %v8744, %v9051
    %v9129 = vmul.f32 %v8746, %v9055
    %v9130 = vmul.f32 %v8748, %v9059
    %v9131 = vmul.f32 %v8812, %v9063
    %v9132 = vmul.f32 %v9067, 0.0
    %v9133 = vadd.f32 %v8108, %v9069
    %v9134 = vadd.f32 %v8109, %v9070
    %v9135 = vadd.f32 %v8110, %v9071
    %v9136 = vadd.f32 %v8111, %v9072
    %v9137 = vadd.f32 %v8112, %v9073
    %v9138 = vadd.f32 %v8113, %v9074
    %v9139 = vadd.f32 %v8114, %v9075
    %v9140 = vadd.f32 %v8115, %v9076
    %v9141 = vadd.f32 %v8116, %v9077
    %v9142 = vadd.f32 %v8117, %v9078
    %v9143 = vadd.f32 %v8118, %v9079
    %v9144 = vadd.f32 %v8119, %v9080
    %v9145 = vadd.f32 %v8120, %v9081
    %v9146 = vadd.f32 %v8121, %v9082
    %v9147 = vadd.f32 %v8122, %v9083
    %v9148 = vadd.f32 %v8123, %v9084
    %v9149 = vadd.f32 %v8124, %v9085
    %v9150 = vadd.f32 %v8125, %v9086
    %v9151 = vadd.f32 %v8126, %v9087
    %v9152 = vadd.f32 %v8127, %v9088
    %v9153 = vadd.f32 %v8128, %v9089
    %v9154 = vadd.f32 %v8129, %v9090
    %v9155 = vadd.f32 %v8130, %v9091
    %v9156 = vadd.f32 %v8131, %v9092
    %v9157 = vadd.f32 %v8132, %v9093
    %v9158 = vadd.f32 %v8133, %v9094
    %v9159 = vadd.f32 %v8134, %v9095
    %v9160 = vadd.f32 %v8135, %v9096
    %v9161 = vadd.f32 %v8136, %v9097
    %v9162 = vadd.f32 %v8137, %v9098
    %v9163 = vadd.f32 %v8138, %v9099
    %v9164 = vadd.f32 %v8139, %v9100
    %v9165 = vadd.f32 %v8140, %v9101
    %v9166 = vadd.f32 %v8141, %v9102
    %v9167 = vadd.f32 %v8142, %v9103
    %v9168 = vadd.f32 %v8143, %v9104
    %v9169 = vadd.f32 %v8144, %v9105
    %v9170 = vadd.f32 %v8145, %v9106
    %v9171 = vadd.f32 %v8146, %v9107
    %v9172 = vadd.f32 %v8147, %v9108
    %v9173 = vadd.f32 %v8148, %v9109
    %v9174 = vadd.f32 %v8149, %v9110
    %v9175 = vadd.f32 %v8150, %v9111
    %v9176 = vadd.f32 %v8151, %v9112
    %v9177 = vadd.f32 %v8152, %v9113
    %v9178 = vadd.f32 %v8153, %v9114
    %v9179 = vadd.f32 %v8154, %v9115
    %v9180 = vadd.f32 %v8155, %v9116
    %v9181 = vadd.f32 %v8156, %v9117
    %v9182 = vadd.f32 %v8157, %v9118
    %v9183 = vadd.f32 %v8158, %v9119
    %v9184 = vadd.f32 %v8159, %v9120
    %v9185 = vadd.f32 %v8160, %v9121
    %v9186 = vadd.f32 %v8161, %v9122
    %v9187 = vadd.f32 %v8162, %v9123
    %v9188 = vadd.f32 %v8163, %v9124
    %v9189 = vadd.f32 %v8164, %v9125
    %v9190 = vadd.f32 %v8165, %v9126
    %v9191 = vadd.f32 %v8166, %v9127
    %v9192 = vadd.f32 %v8167, %v9128
    %v9193 = vadd.f32 %v8168, %v9129
    %v9194 = vadd.f32 %v8169, %v9130
    %v9195 = vadd.f32 %v8170, %v9131
    %v9196 = vadd.f32 %v8171, %v9132
    %v9197 = vld [vmem:[%s4] sm:$0x1]
    %v9199 = vlaneseq
    %v9200 = vshrl.u32 %v9199, 7
    %v9201 = vsub.s32 0, %v9200
    %v9202 = vrot.slane %v9197, %v9201
    %v9204 = vadd.f32 %v9133, %v9202
    %v9205 = vadd.f32 %v9134, %v9202
    %v9206 = vadd.f32 %v9135, %v9202
    %v9207 = vadd.f32 %v9136, %v9202
    %v9208 = vadd.f32 %v9137, %v9202
    %v9209 = vadd.f32 %v9138, %v9202
    %v9210 = vadd.f32 %v9139, %v9202
    %v9211 = vadd.f32 %v9140, %v9202
    %v9212 = vadd.f32 %v9141, %v9202
    %v9213 = vadd.f32 %v9142, %v9202
    %v9214 = vadd.f32 %v9143, %v9202
    %v9215 = vadd.f32 %v9144, %v9202
    %v9216 = vadd.f32 %v9145, %v9202
    %v9217 = vadd.f32 %v9146, %v9202
    %v9218 = vadd.f32 %v9147, %v9202
    %v9219 = vadd.f32 %v9148, %v9202
    %v9220 = vadd.f32 %v9149, %v9202
    %v9221 = vadd.f32 %v9150, %v9202
    %v9222 = vadd.f32 %v9151, %v9202
    %v9223 = vadd.f32 %v9152, %v9202
    %v9224 = vadd.f32 %v9153, %v9202
    %v9225 = vadd.f32 %v9154, %v9202
    %v9226 = vadd.f32 %v9155, %v9202
    %v9227 = vadd.f32 %v9156, %v9202
    %v9228 = vadd.f32 %v9157, %v9202
    %v9229 = vadd.f32 %v9158, %v9202
    %v9230 = vadd.f32 %v9159, %v9202
    %v9231 = vadd.f32 %v9160, %v9202
    %v9232 = vadd.f32 %v9161, %v9202
    %v9233 = vadd.f32 %v9162, %v9202
    %v9234 = vadd.f32 %v9163, %v9202
    %v9235 = vadd.f32 %v9164, %v9202
    %v9236 = vadd.f32 %v9165, %v9202
    %v9237 = vadd.f32 %v9166, %v9202
    %v9238 = vadd.f32 %v9167, %v9202
    %v9239 = vadd.f32 %v9168, %v9202
    %v9240 = vadd.f32 %v9169, %v9202
    %v9241 = vadd.f32 %v9170, %v9202
    %v9242 = vadd.f32 %v9171, %v9202
    %v9243 = vadd.f32 %v9172, %v9202
    %v9244 = vadd.f32 %v9173, %v9202
    %v9245 = vadd.f32 %v9174, %v9202
    %v9246 = vadd.f32 %v9175, %v9202
    %v9247 = vadd.f32 %v9176, %v9202
    %v9248 = vadd.f32 %v9177, %v9202
    %v9249 = vadd.f32 %v9178, %v9202
    %v9250 = vadd.f32 %v9179, %v9202
    %v9251 = vadd.f32 %v9180, %v9202
    %v9252 = vadd.f32 %v9181, %v9202
    %v9253 = vadd.f32 %v9182, %v9202
    %v9254 = vadd.f32 %v9183, %v9202
    %v9255 = vadd.f32 %v9184, %v9202
    %v9256 = vadd.f32 %v9185, %v9202
    %v9257 = vadd.f32 %v9186, %v9202
    %v9258 = vadd.f32 %v9187, %v9202
    %v9259 = vadd.f32 %v9188, %v9202
    %v9260 = vadd.f32 %v9189, %v9202
    %v9261 = vadd.f32 %v9190, %v9202
    %v9262 = vadd.f32 %v9191, %v9202
    %v9263 = vadd.f32 %v9192, %v9202
    %v9264 = vadd.f32 %v9193, %v9202
    %v9265 = vadd.f32 %v9194, %v9202
    %v9266 = vadd.f32 %v9195, %v9202
    %v9267 = vadd.f32 %v9196, %v9202
    %v9268 = vmax.f32 %v9204, 0.0
    %v9269 = vmax.f32 %v9205, 0.0
    %v9270 = vmax.f32 %v9206, 0.0
    %v9271 = vmax.f32 %v9207, 0.0
    %v9272 = vmax.f32 %v9208, 0.0
    %v9273 = vmax.f32 %v9209, 0.0
    %v9274 = vmax.f32 %v9210, 0.0
    %v9275 = vmax.f32 %v9211, 0.0
    %v9276 = vmax.f32 %v9212, 0.0
    %v9277 = vmax.f32 %v9213, 0.0
    %v9278 = vmax.f32 %v9214, 0.0
    %v9279 = vmax.f32 %v9215, 0.0
    %v9280 = vmax.f32 %v9216, 0.0
    %v9281 = vmax.f32 %v9217, 0.0
    %v9282 = vmax.f32 %v9218, 0.0
    %v9283 = vmax.f32 %v9219, 0.0
    %v9284 = vmax.f32 %v9220, 0.0
    %v9285 = vmax.f32 %v9221, 0.0
    %v9286 = vmax.f32 %v9222, 0.0
    %v9287 = vmax.f32 %v9223, 0.0
    %v9288 = vmax.f32 %v9224, 0.0
    %v9289 = vmax.f32 %v9225, 0.0
    %v9290 = vmax.f32 %v9226, 0.0
    %v9291 = vmax.f32 %v9227, 0.0
    %v9292 = vmax.f32 %v9228, 0.0
    %v9293 = vmax.f32 %v9229, 0.0
    %v9294 = vmax.f32 %v9230, 0.0
    %v9295 = vmax.f32 %v9231, 0.0
    %v9296 = vmax.f32 %v9232, 0.0
    %v9297 = vmax.f32 %v9233, 0.0
    %v9298 = vmax.f32 %v9234, 0.0
    %v9299 = vmax.f32 %v9235, 0.0
    %v9300 = vmax.f32 %v9236, 0.0
    %v9301 = vmax.f32 %v9237, 0.0
    %v9302 = vmax.f32 %v9238, 0.0
    %v9303 = vmax.f32 %v9239, 0.0
    %v9304 = vmax.f32 %v9240, 0.0
    %v9305 = vmax.f32 %v9241, 0.0
    %v9306 = vmax.f32 %v9242, 0.0
    %v9307 = vmax.f32 %v9243, 0.0
    %v9308 = vmax.f32 %v9244, 0.0
    %v9309 = vmax.f32 %v9245, 0.0
    %v9310 = vmax.f32 %v9246, 0.0
    %v9311 = vmax.f32 %v9247, 0.0
    %v9312 = vmax.f32 %v9248, 0.0
    %v9313 = vmax.f32 %v9249, 0.0
    %v9314 = vmax.f32 %v9250, 0.0
    %v9315 = vmax.f32 %v9251, 0.0
    %v9316 = vmax.f32 %v9252, 0.0
    %v9317 = vmax.f32 %v9253, 0.0
    %v9318 = vmax.f32 %v9254, 0.0
    %v9319 = vmax.f32 %v9255, 0.0
    %v9320 = vmax.f32 %v9256, 0.0
    %v9321 = vmax.f32 %v9257, 0.0
    %v9322 = vmax.f32 %v9258, 0.0
    %v9323 = vmax.f32 %v9259, 0.0
    %v9324 = vmax.f32 %v9260, 0.0
    %v9325 = vmax.f32 %v9261, 0.0
    %v9326 = vmax.f32 %v9262, 0.0
    %v9327 = vmax.f32 %v9263, 0.0
    %v9328 = vmax.f32 %v9264, 0.0
    %v9329 = vmax.f32 %v9265, 0.0
    %v9330 = vmax.f32 %v9266, 0.0
    %v9331 = vmax.f32 %v9267, 0.0
    %v9396 = vrot.slane %v9268, 1
    %v9397 = vrot.slane %v9269, 1
    %v9398 = vsel %vm3278, %v9396, %v9397
    %v9399 = vrot.slane %v9270, 1
    %v9400 = vsel %vm3278, %v9397, %v9399
    %v9401 = vrot.slane %v9271, 1
    %v9402 = vsel %vm3278, %v9399, %v9401
    %v9403 = vrot.slane %v9272, 1
    %v9404 = vsel %vm3278, %v9401, %v9403
    %v9405 = vrot.slane %v9273, 1
    %v9406 = vsel %vm3278, %v9403, %v9405
    %v9407 = vrot.slane %v9274, 1
    %v9408 = vsel %vm3278, %v9405, %v9407
    %v9409 = vrot.slane %v9275, 1
    %v9410 = vsel %vm3278, %v9407, %v9409
    %v9411 = vrot.slane %v9276, 1
    %v9412 = vsel %vm3278, %v9409, %v9411
    %v9413 = vrot.slane %v9277, 1
    %v9414 = vsel %vm3278, %v9411, %v9413
    %v9415 = vrot.slane %v9278, 1
    %v9416 = vsel %vm3278, %v9413, %v9415
    %v9417 = vrot.slane %v9279, 1
    %v9418 = vsel %vm3278, %v9415, %v9417
    %v9419 = vrot.slane %v9280, 1
    %v9420 = vsel %vm3278, %v9417, %v9419
    %v9421 = vrot.slane %v9281, 1
    %v9422 = vsel %vm3278, %v9419, %v9421
    %v9423 = vrot.slane %v9282, 1
    %v9424 = vsel %vm3278, %v9421, %v9423
    %v9425 = vrot.slane %v9283, 1
    %v9426 = vsel %vm3278, %v9423, %v9425
    %v9427 = vrot.slane %v9284, 1
    %v9428 = vsel %vm3278, %v9425, %v9427
    %v9429 = vrot.slane %v9285, 1
    %v9430 = vsel %vm3278, %v9427, %v9429
    %v9431 = vrot.slane %v9286, 1
    %v9432 = vsel %vm3278, %v9429, %v9431
    %v9433 = vrot.slane %v9287, 1
    %v9434 = vsel %vm3278, %v9431, %v9433
    %v9435 = vrot.slane %v9288, 1
    %v9436 = vsel %vm3278, %v9433, %v9435
    %v9437 = vrot.slane %v9289, 1
    %v9438 = vsel %vm3278, %v9435, %v9437
    %v9439 = vrot.slane %v9290, 1
    %v9440 = vsel %vm3278, %v9437, %v9439
    %v9441 = vrot.slane %v9291, 1
    %v9442 = vsel %vm3278, %v9439, %v9441
    %v9443 = vrot.slane %v9292, 1
    %v9444 = vsel %vm3278, %v9441, %v9443
    %v9445 = vrot.slane %v9293, 1
    %v9446 = vsel %vm3278, %v9443, %v9445
    %v9447 = vrot.slane %v9294, 1
    %v9448 = vsel %vm3278, %v9445, %v9447
    %v9449 = vrot.slane %v9295, 1
    %v9450 = vsel %vm3278, %v9447, %v9449
    %v9451 = vrot.slane %v9296, 1
    %v9452 = vsel %vm3278, %v9449, %v9451
    %v9453 = vrot.slane %v9297, 1
    %v9454 = vsel %vm3278, %v9451, %v9453
    %v9455 = vrot.slane %v9298, 1
    %v9456 = vsel %vm3278, %v9453, %v9455
    %v9457 = vrot.slane %v9299, 1
    %v9458 = vsel %vm3278, %v9455, %v9457
    %v9459 = vrot.slane %v9300, 1
    %v9460 = vsel %vm3278, %v9457, %v9459
    %v9461 = vrot.slane %v9301, 1
    %v9462 = vsel %vm3278, %v9459, %v9461
    %v9463 = vrot.slane %v9302, 1
    %v9464 = vsel %vm3278, %v9461, %v9463
    %v9465 = vrot.slane %v9303, 1
    %v9466 = vsel %vm3278, %v9463, %v9465
    %v9467 = vrot.slane %v9304, 1
    %v9468 = vsel %vm3278, %v9465, %v9467
    %v9469 = vrot.slane %v9305, 1
    %v9470 = vsel %vm3278, %v9467, %v9469
    %v9471 = vrot.slane %v9306, 1
    %v9472 = vsel %vm3278, %v9469, %v9471
    %v9473 = vrot.slane %v9307, 1
    %v9474 = vsel %vm3278, %v9471, %v9473
    %v9475 = vrot.slane %v9308, 1
    %v9476 = vsel %vm3278, %v9473, %v9475
    %v9477 = vrot.slane %v9309, 1
    %v9478 = vsel %vm3278, %v9475, %v9477
    %v9479 = vrot.slane %v9310, 1
    %v9480 = vsel %vm3278, %v9477, %v9479
    %v9481 = vrot.slane %v9311, 1
    %v9482 = vsel %vm3278, %v9479, %v9481
    %v9483 = vrot.slane %v9312, 1
    %v9484 = vsel %vm3278, %v9481, %v9483
    %v9485 = vrot.slane %v9313, 1
    %v9486 = vsel %vm3278, %v9483, %v9485
    %v9487 = vrot.slane %v9314, 1
    %v9488 = vsel %vm3278, %v9485, %v9487
    %v9489 = vrot.slane %v9315, 1
    %v9490 = vsel %vm3278, %v9487, %v9489
    %v9491 = vrot.slane %v9316, 1
    %v9492 = vsel %vm3278, %v9489, %v9491
    %v9493 = vrot.slane %v9317, 1
    %v9494 = vsel %vm3278, %v9491, %v9493
    %v9495 = vrot.slane %v9318, 1
    %v9496 = vsel %vm3278, %v9493, %v9495
    %v9497 = vrot.slane %v9319, 1
    %v9498 = vsel %vm3278, %v9495, %v9497
    %v9499 = vrot.slane %v9320, 1
    %v9500 = vsel %vm3278, %v9497, %v9499
    %v9501 = vrot.slane %v9321, 1
    %v9502 = vsel %vm3278, %v9499, %v9501
    %v9503 = vrot.slane %v9322, 1
    %v9504 = vsel %vm3278, %v9501, %v9503
    %v9505 = vrot.slane %v9323, 1
    %v9506 = vsel %vm3278, %v9503, %v9505
    %v9507 = vrot.slane %v9324, 1
    %v9508 = vsel %vm3278, %v9505, %v9507
    %v9509 = vrot.slane %v9325, 1
    %v9510 = vsel %vm3278, %v9507, %v9509
    %v9511 = vrot.slane %v9326, 1
    %v9512 = vsel %vm3278, %v9509, %v9511
    %v9513 = vrot.slane %v9327, 1
    %v9514 = vsel %vm3278, %v9511, %v9513
    %v9515 = vrot.slane %v9328, 1
    %v9516 = vsel %vm3278, %v9513, %v9515
    %v9517 = vrot.slane %v9329, 1
    %v9518 = vsel %vm3278, %v9515, %v9517
    %v9519 = vrot.slane %v9330, 1
    %v9520 = vsel %vm3278, %v9517, %v9519
    %v9521 = vrot.slane %v9331, 1
    %v9522 = vsel %vm3278, %v9519, %v9521
    %v9587 = vsel %vm3278, %v9521, 0.0
    %v9588 = vmax.f32 %v9268, %v9398
    %v9589 = vmax.f32 %v9269, %v9400
    %v9590 = vmax.f32 %v9270, %v9402
    %v9591 = vmax.f32 %v9271, %v9404
    %v9592 = vmax.f32 %v9272, %v9406
    %v9593 = vmax.f32 %v9273, %v9408
    %v9594 = vmax.f32 %v9274, %v9410
    %v9595 = vmax.f32 %v9275, %v9412
    %v9596 = vmax.f32 %v9276, %v9414
    %v9597 = vmax.f32 %v9277, %v9416
    %v9598 = vmax.f32 %v9278, %v9418
    %v9599 = vmax.f32 %v9279, %v9420
    %v9600 = vmax.f32 %v9280, %v9422
    %v9601 = vmax.f32 %v9281, %v9424
    %v9602 = vmax.f32 %v9282, %v9426
    %v9603 = vmax.f32 %v9283, %v9428
    %v9604 = vmax.f32 %v9284, %v9430
    %v9605 = vmax.f32 %v9285, %v9432
    %v9606 = vmax.f32 %v9286, %v9434
    %v9607 = vmax.f32 %v9287, %v9436
    %v9608 = vmax.f32 %v9288, %v9438
    %v9609 = vmax.f32 %v9289, %v9440
    %v9610 = vmax.f32 %v9290, %v9442
    %v9611 = vmax.f32 %v9291, %v9444
    %v9612 = vmax.f32 %v9292, %v9446
    %v9613 = vmax.f32 %v9293, %v9448
    %v9614 = vmax.f32 %v9294, %v9450
    %v9615 = vmax.f32 %v9295, %v9452
    %v9616 = vmax.f32 %v9296, %v9454
    %v9617 = vmax.f32 %v9297, %v9456
    %v9618 = vmax.f32 %v9298, %v9458
    %v9619 = vmax.f32 %v9299, %v9460
    %v9620 = vmax.f32 %v9300, %v9462
    %v9621 = vmax.f32 %v9301, %v9464
    %v9622 = vmax.f32 %v9302, %v9466
    %v9623 = vmax.f32 %v9303, %v9468
    %v9624 = vmax.f32 %v9304, %v9470
    %v9625 = vmax.f32 %v9305, %v9472
    %v9626 = vmax.f32 %v9306, %v9474
    %v9627 = vmax.f32 %v9307, %v9476
    %v9628 = vmax.f32 %v9308, %v9478
    %v9629 = vmax.f32 %v9309, %v9480
    %v9630 = vmax.f32 %v9310, %v9482
    %v9631 = vmax.f32 %v9311, %v9484
    %v9632 = vmax.f32 %v9312, %v9486
    %v9633 = vmax.f32 %v9313, %v9488
    %v9634 = vmax.f32 %v9314, %v9490
    %v9635 = vmax.f32 %v9315, %v9492
    %v9636 = vmax.f32 %v9316, %v9494
    %v9637 = vmax.f32 %v9317, %v9496
    %v9638 = vmax.f32 %v9318, %v9498
    %v9639 = vmax.f32 %v9319, %v9500
    %v9640 = vmax.f32 %v9320, %v9502
    %v9641 = vmax.f32 %v9321, %v9504
    %v9642 = vmax.f32 %v9322, %v9506
    %v9643 = vmax.f32 %v9323, %v9508
    %v9644 = vmax.f32 %v9324, %v9510
    %v9645 = vmax.f32 %v9325, %v9512
    %v9646 = vmax.f32 %v9326, %v9514
    %v9647 = vmax.f32 %v9327, %v9516
    %v9648 = vmax.f32 %v9328, %v9518
    %v9649 = vmax.f32 %v9329, %v9520
    %v9650 = vmax.f32 %v9330, %v9522
    %v9651 = vmax.f32 %v9331, %v9587
    %v9652 = vmax.f32 %v9588, %v9589
    %v9653 = vmax.f32 %v9589, %v9590
    %v9654 = vmax.f32 %v9590, %v9591
    %v9655 = vmax.f32 %v9591, %v9592
    %v9656 = vmax.f32 %v9592, %v9593
    %v9657 = vmax.f32 %v9593, %v9594
    %v9658 = vmax.f32 %v9594, %v9595
    %v9659 = vmax.f32 %v9595, %v9596
    %v9660 = vmax.f32 %v9596, %v9597
    %v9661 = vmax.f32 %v9597, %v9598
    %v9662 = vmax.f32 %v9598, %v9599
    %v9663 = vmax.f32 %v9599, %v9600
    %v9664 = vmax.f32 %v9600, %v9601
    %v9665 = vmax.f32 %v9601, %v9602
    %v9666 = vmax.f32 %v9602, %v9603
    %v9667 = vmax.f32 %v9603, %v9604
    %v9668 = vmax.f32 %v9604, %v9605
    %v9669 = vmax.f32 %v9605, %v9606
    %v9670 = vmax.f32 %v9606, %v9607
    %v9671 = vmax.f32 %v9607, %v9608
    %v9672 = vmax.f32 %v9608, %v9609
    %v9673 = vmax.f32 %v9609, %v9610
    %v9674 = vmax.f32 %v9610, %v9611
    %v9675 = vmax.f32 %v9611, %v9612
    %v9676 = vmax.f32 %v9612, %v9613
    %v9677 = vmax.f32 %v9613, %v9614
    %v9678 = vmax.f32 %v9614, %v9615
    %v9679 = vmax.f32 %v9615, %v9616
    %v9680 = vmax.f32 %v9616, %v9617
    %v9681 = vmax.f32 %v9617, %v9618
    %v9682 = vmax.f32 %v9618, %v9619
    %v9683 = vmax.f32 %v9619, %v9620
    %v9684 = vmax.f32 %v9620, %v9621
    %v9685 = vmax.f32 %v9621, %v9622
    %v9686 = vmax.f32 %v9622, %v9623
    %v9687 = vmax.f32 %v9623, %v9624
    %v9688 = vmax.f32 %v9624, %v9625
    %v9689 = vmax.f32 %v9625, %v9626
    %v9690 = vmax.f32 %v9626, %v9627
    %v9691 = vmax.f32 %v9627, %v9628
    %v9692 = vmax.f32 %v9628, %v9629
    %v9693 = vmax.f32 %v9629, %v9630
    %v9694 = vmax.f32 %v9630, %v9631
    %v9695 = vmax.f32 %v9631, %v9632
    %v9696 = vmax.f32 %v9632, %v9633
    %v9697 = vmax.f32 %v9633, %v9634
    %v9698 = vmax.f32 %v9634, %v9635
    %v9699 = vmax.f32 %v9635, %v9636
    %v9700 = vmax.f32 %v9636, %v9637
    %v9701 = vmax.f32 %v9637, %v9638
    %v9702 = vmax.f32 %v9638, %v9639
    %v9703 = vmax.f32 %v9639, %v9640
    %v9704 = vmax.f32 %v9640, %v9641
    %v9705 = vmax.f32 %v9641, %v9642
    %v9706 = vmax.f32 %v9642, %v9643
    %v9707 = vmax.f32 %v9643, %v9644
    %v9708 = vmax.f32 %v9644, %v9645
    %v9709 = vmax.f32 %v9645, %v9646
    %v9710 = vmax.f32 %v9646, %v9647
    %v9711 = vmax.f32 %v9647, %v9648
    %v9712 = vmax.f32 %v9648, %v9649
    %v9713 = vmax.f32 %v9649, %v9650
    %v9714 = vmax.f32 %v9650, %v9651
    %v9715 = vmax.f32 %v9651, 0.0
    %v9716 = vld [vmem:[%s6] sm:$0xff]
    %v9717 = vld [vmem:[%s6 + $0x8] sm:$0xff]
    %v9718 = vld [vmem:[%s6 + $0x10] sm:$0xff]
    %v9719 = vld [vmem:[%s6 + $0x18] sm:$0xff]
    %9720 = vmatprep.subr.mxu0 0.0
    %9721 = vmatpush1.msra.mxu0 %v9652
    %9722 = vmatprep.subr.mxu0 0.0
    %9723 = vmatpush1.msra.mxu0 %v9653
    %9724 = vmatprep.subr.mxu0 0.0
    %9725 = vmatpush1.msra.mxu0 %v9654
    %9726 = vmatprep.subr.mxu0 0.0
    %9727 = vmatpush1.msra.mxu0 %v9655
    %9728 = vmatprep.subr.mxu0 0.0
    %9729 = vmatpush1.msra.mxu0 %v9656
    %9730 = vmatprep.subr.mxu0 0.0
    %9731 = vmatpush1.msra.mxu0 %v9657
    %9732 = vmatprep.subr.mxu0 0.0
    %9733 = vmatpush1.msra.mxu0 %v9658
    %9734 = vmatprep.subr.mxu0 0.0
    %9735 = vmatpush1.msra.mxu0 %v9659
    %9736 = vmatprep.subr.mxu0 0.0
    %9737 = vmatpush1.msra.mxu0 %v9660
    %9738 = vmatprep.subr.mxu0 0.0
    %9739 = vmatpush1.msra.mxu0 %v9661
    %9740 = vmatprep.subr.mxu0 0.0
    %9741 = vmatpush1.msra.mxu0 %v9662
    %9742 = vmatprep.subr.mxu0 0.0
    %9743 = vmatpush1.msra.mxu0 %v9663
    %9744 = vmatprep.subr.mxu0 0.0
    %9745 = vmatpush1.msra.mxu0 %v9664
    %9746 = vmatprep.subr.mxu0 0.0
    %9747 = vmatpush1.msra.mxu0 %v9665
    %9748 = vmatprep.subr.mxu0 0.0
    %9749 = vmatpush1.msra.mxu0 %v9666
    %9750 = vmatprep.subr.mxu0 0.0
    %9751 = vmatpush1.msra.mxu0 %v9667
    %9752 = vmatprep.subr.mxu0 0.0
    %9753 = vmatpush1.msra.mxu0 %v9668
    %9754 = vmatprep.subr.mxu0 0.0
    %9755 = vmatpush1.msra.mxu0 %v9669
    %9756 = vmatprep.subr.mxu0 0.0
    %9757 = vmatpush1.msra.mxu0 %v9670
    %9758 = vmatprep.subr.mxu0 0.0
    %9759 = vmatpush1.msra.mxu0 %v9671
    %9760 = vmatprep.subr.mxu0 0.0
    %9761 = vmatpush1.msra.mxu0 %v9672
    %9762 = vmatprep.subr.mxu0 0.0
    %9763 = vmatpush1.msra.mxu0 %v9673
    %9764 = vmatprep.subr.mxu0 0.0
    %9765 = vmatpush1.msra.mxu0 %v9674
    %9766 = vmatprep.subr.mxu0 0.0
    %9767 = vmatpush1.msra.mxu0 %v9675
    %9768 = vmatprep.subr.mxu0 0.0
    %9769 = vmatpush1.msra.mxu0 %v9676
    %9770 = vmatprep.subr.mxu0 0.0
    %9771 = vmatpush1.msra.mxu0 %v9677
    %9772 = vmatprep.subr.mxu0 0.0
    %9773 = vmatpush1.msra.mxu0 %v9678
    %9774 = vmatprep.subr.mxu0 0.0
    %9775 = vmatpush1.msra.mxu0 %v9679
    %9776 = vmatprep.subr.mxu0 0.0
    %9777 = vmatpush1.msra.mxu0 %v9680
    %9778 = vmatprep.subr.mxu0 0.0
    %9779 = vmatpush1.msra.mxu0 %v9681
    %9780 = vmatprep.subr.mxu0 0.0
    %9781 = vmatpush1.msra.mxu0 %v9682
    %9782 = vmatprep.subr.mxu0 0.0
    %9783 = vmatpush1.msra.mxu0 %v9683
    %9784 = vmatprep.mubr.f32.mxu0 %v9717
    %9785 = vmatmul.mubr.f32.gmra.mrb[0].mxu0 %v9716
    %v9786 = vpop.f32.mrb[0].mxu0
    %v9787 = vadd.f32 0.0, %v9786
    %v9788 = vpop.f32.mrb[0].mxu0
    %9789 = vdwg.mxu0
    %9790 = vmatprep.subr.mxu0 0.0
    %9791 = vmatpush1.msra.mxu0 %v9684
    %9792 = vmatprep.subr.mxu0 0.0
    %9793 = vmatpush1.msra.mxu0 %v9685
    %9794 = vmatprep.subr.mxu0 0.0
    %9795 = vmatpush1.msra.mxu0 %v9686
    %9796 = vmatprep.subr.mxu0 0.0
    %9797 = vmatpush1.msra.mxu0 %v9687
    %9798 = vmatprep.subr.mxu0 0.0
    %9799 = vmatpush1.msra.mxu0 %v9688
    %9800 = vmatprep.subr.mxu0 0.0
    %9801 = vmatpush1.msra.mxu0 %v9689
    %9802 = vmatprep.subr.mxu0 0.0
    %9803 = vmatpush1.msra.mxu0 %v9690
    %9804 = vmatprep.subr.mxu0 0.0
    %9805 = vmatpush1.msra.mxu0 %v9691
    %9806 = vmatprep.subr.mxu0 0.0
    %9807 = vmatpush1.msra.mxu0 %v9692
    %9808 = vmatprep.subr.mxu0 0.0
    %9809 = vmatpush1.msra.mxu0 %v9693
    %9810 = vmatprep.subr.mxu0 0.0
    %9811 = vmatpush1.msra.mxu0 %v9694
    %9812 = vmatprep.subr.mxu0 0.0
    %9813 = vmatpush1.msra.mxu0 %v9695
    %9814 = vmatprep.subr.mxu0 0.0
    %9815 = vmatpush1.msra.mxu0 %v9696
    %9816 = vmatprep.subr.mxu0 0.0
    %9817 = vmatpush1.msra.mxu0 %v9697
    %9818 = vmatprep.subr.mxu0 0.0
    %9819 = vmatpush1.msra.mxu0 %v9698
    %9820 = vmatprep.subr.mxu0 0.0
    %9821 = vmatpush1.msra.mxu0 %v9699
    %9822 = vmatprep.subr.mxu0 0.0
    %9823 = vmatpush1.msra.mxu0 %v9700
    %9824 = vmatprep.subr.mxu0 0.0
    %9825 = vmatpush1.msra.mxu0 %v9701
    %9826 = vmatprep.subr.mxu0 0.0
    %9827 = vmatpush1.msra.mxu0 %v9702
    %9828 = vmatprep.subr.mxu0 0.0
    %9829 = vmatpush1.msra.mxu0 %v9703
    %9830 = vmatprep.subr.mxu0 0.0
    %9831 = vmatpush1.msra.mxu0 %v9704
    %9832 = vmatprep.subr.mxu0 0.0
    %9833 = vmatpush1.msra.mxu0 %v9705
    %9834 = vmatprep.subr.mxu0 0.0
    %9835 = vmatpush1.msra.mxu0 %v9706
    %9836 = vmatprep.subr.mxu0 0.0
    %9837 = vmatpush1.msra.mxu0 %v9707
    %9838 = vmatprep.subr.mxu0 0.0
    %9839 = vmatpush1.msra.mxu0 %v9708
    %9840 = vmatprep.subr.mxu0 0.0
    %9841 = vmatpush1.msra.mxu0 %v9709
    %9842 = vmatprep.subr.mxu0 0.0
    %9843 = vmatpush1.msra.mxu0 %v9710
    %9844 = vmatprep.subr.mxu0 0.0
    %9845 = vmatpush1.msra.mxu0 %v9711
    %9846 = vmatprep.subr.mxu0 0.0
    %9847 = vmatpush1.msra.mxu0 %v9712
    %9848 = vmatprep.subr.mxu0 0.0
    %9849 = vmatpush1.msra.mxu0 %v9713
    %9850 = vmatprep.subr.mxu0 0.0
    %9851 = vmatpush1.msra.mxu0 %v9714
    %9852 = vmatprep.subr.mxu0 0.0
    %9853 = vmatpush1.msra.mxu0 %v9715
    %9854 = vmatprep.mubr.f32.mxu0 %v9719
    %9855 = vmatmul.mubr.f32.gmra.mrb[0].mxu0 %v9718
    %v9856 = vpop.f32.mrb[0].mxu0
    %v9857 = vadd.f32 %v9787, %v9856
    %v9858 = vpop.f32.mrb[0].mxu0
    %9859 = vdwg.mxu0
    %v9860 = vld [vmem:[%s7] sm:$0xff]
    %v9861 = vld [vmem:[%s8] sm:$0x1]
    %v9863 = vlaneseq
    %v9864 = vshrl.u32 %v9863, 7
    %v9865 = vsub.s32 0, %v9864
    %v9866 = vrot.slane %v9861, %v9865
    %vm9868 = vcmask 64512
    %v9870 = vsel %vm9868, %v9857, 0
    %9872 = vmatprep.subr.mxu0 0.0
    %9873 = vmatpush1.msra.mxu0 %v9860
    %9874 = vmatprep.subr.mxu0 0.0
    %9875 = vmatpush1.msra.mxu0 0.0
    %9876 = vmatprep.subr.mxu0 0.0
    %9877 = vmatpush1.msra.mxu0 0.0
    %9878 = vmatprep.subr.mxu0 0.0
    %9879 = vmatpush1.msra.mxu0 0.0
    %9880 = vmatprep.subr.mxu0 0.0
    %9881 = vmatpush1.msra.mxu0 0.0
    %9882 = vmatprep.subr.mxu0 0.0
    %9883 = vmatpush1.msra.mxu0 0.0
    %9884 = vmatprep.subr.mxu0 0.0
    %9885 = vmatpush1.msra.mxu0 0.0
    %9886 = vmatprep.subr.mxu0 0.0
    %9887 = vmatpush1.msra.mxu0 0.0
    %9888 = vmatprep.subr.mxu0 0.0
    %9889 = vmatpush1.msra.mxu0 0.0
    %9890 = vmatprep.subr.mxu0 0.0
    %9891 = vmatpush1.msra.mxu0 0.0
    %9892 = vmatprep.subr.mxu0 0.0
    %9893 = vmatpush1.msra.mxu0 0.0
    %9894 = vmatprep.subr.mxu0 0.0
    %9895 = vmatpush1.msra.mxu0 0.0
    %9896 = vmatprep.subr.mxu0 0.0
    %9897 = vmatpush1.msra.mxu0 0.0
    %9898 = vmatprep.subr.mxu0 0.0
    %9899 = vmatpush1.msra.mxu0 0.0
    %9900 = vmatprep.subr.mxu0 0.0
    %9901 = vmatpush1.msra.mxu0 0.0
    %9902 = vmatprep.subr.mxu0 0.0
    %9903 = vmatpush1.msra.mxu0 0.0
    %9904 = vmatprep.subr.mxu0 0.0
    %9905 = vmatpush1.msra.mxu0 0.0
    %9906 = vmatprep.subr.mxu0 0.0
    %9907 = vmatpush1.msra.mxu0 0.0
    %9908 = vmatprep.subr.mxu0 0.0
    %9909 = vmatpush1.msra.mxu0 0.0
    %9910 = vmatprep.subr.mxu0 0.0
    %9911 = vmatpush1.msra.mxu0 0.0
    %9912 = vmatprep.subr.mxu0 0.0
    %9913 = vmatpush1.msra.mxu0 0.0
    %9914 = vmatprep.subr.mxu0 0.0
    %9915 = vmatpush1.msra.mxu0 0.0
    %9916 = vmatprep.subr.mxu0 0.0
    %9917 = vmatpush1.msra.mxu0 0.0
    %9918 = vmatprep.subr.mxu0 0.0
    %9919 = vmatpush1.msra.mxu0 0.0
    %9920 = vmatprep.subr.mxu0 0.0
    %9921 = vmatpush1.msra.mxu0 0.0
    %9922 = vmatprep.subr.mxu0 0.0
    %9923 = vmatpush1.msra.mxu0 0.0
    %9924 = vmatprep.subr.mxu0 0.0
    %9925 = vmatpush1.msra.mxu0 0.0
    %9926 = vmatprep.subr.mxu0 0.0
    %9927 = vmatpush1.msra.mxu0 0.0
    %9928 = vmatprep.subr.mxu0 0.0
    %9929 = vmatpush1.msra.mxu0 0.0
    %9930 = vmatprep.subr.mxu0 0.0
    %9931 = vmatpush1.msra.mxu0 0.0
    %9932 = vmatprep.subr.mxu0 0.0
    %9933 = vmatpush1.msra.mxu0 0.0
    %9934 = vmatprep.subr.mxu0 0.0
    %9935 = vmatpush1.msra.mxu0 0.0
    %9936 = vmatprep.mubr.f32.mxu0 0.0
    %9937 = vmatmul.mubr.f32.gmra.mrb[0].mxu0 %v9870
    %v9938 = vpop.f32.mrb[0].mxu0
    %v9939 = vadd.f32 %v9866, %v9938
    %v9940 = vpop.f32.mrb[0].mxu0
    %9941 = vdwg.mxu0
    %s9942 = scalar_lea.vmem %s7, 8
    %v9943 = vld [vmem:[%s9942] sm:$0xff]
    %s9944 = scalar_lea.vmem %s8, 1
    %v9945 = vld [vmem:[%s9944] sm:$0x1]
    %v9947 = vlaneseq
    %v9948 = vshrl.u32 %v9947, 7
    %v9949 = vsub.s32 0, %v9948
    %v9950 = vrot.slane %v9945, %v9949
    %9952 = vmatprep.subr.mxu0 0.0
    %9953 = vmatpush1.msra.mxu0 %v9943
    %9954 = vmatprep.subr.mxu0 0.0
    %9955 = vmatpush1.msra.mxu0 0.0
    %9956 = vmatprep.subr.mxu0 0.0
    %9957 = vmatpush1.msra.mxu0 0.0
    %9958 = vmatprep.subr.mxu0 0.0
    %9959 = vmatpush1.msra.mxu0 0.0
    %9960 = vmatprep.subr.mxu0 0.0
    %9961 = vmatpush1.msra.mxu0 0.0
    %9962 = vmatprep.subr.mxu0 0.0
    %9963 = vmatpush1.msra.mxu0 0.0
    %9964 = vmatprep.subr.mxu0 0.0
    %9965 = vmatpush1.msra.mxu0 0.0
    %9966 = vmatprep.subr.mxu0 0.0
    %9967 = vmatpush1.msra.mxu0 0.0
    %9968 = vmatprep.subr.mxu0 0.0
    %9969 = vmatpush1.msra.mxu0 0.0
    %9970 = vmatprep.subr.mxu0 0.0
    %9971 = vmatpush1.msra.mxu0 0.0
    %9972 = vmatprep.subr.mxu0 0.0
    %9973 = vmatpush1.msra.mxu0 0.0
    %9974 = vmatprep.subr.mxu0 0.0
    %9975 = vmatpush1.msra.mxu0 0.0
    %9976 = vmatprep.subr.mxu0 0.0
    %9977 = vmatpush1.msra.mxu0 0.0
    %9978 = vmatprep.subr.mxu0 0.0
    %9979 = vmatpush1.msra.mxu0 0.0
    %9980 = vmatprep.subr.mxu0 0.0
    %9981 = vmatpush1.msra.mxu0 0.0
    %9982 = vmatprep.subr.mxu0 0.0
    %9983 = vmatpush1.msra.mxu0 0.0
    %9984 = vmatprep.subr.mxu0 0.0
    %9985 = vmatpush1.msra.mxu0 0.0
    %9986 = vmatprep.subr.mxu0 0.0
    %9987 = vmatpush1.msra.mxu0 0.0
    %9988 = vmatprep.subr.mxu0 0.0
    %9989 = vmatpush1.msra.mxu0 0.0
    %9990 = vmatprep.subr.mxu0 0.0
    %9991 = vmatpush1.msra.mxu0 0.0
    %9992 = vmatprep.subr.mxu0 0.0
    %9993 = vmatpush1.msra.mxu0 0.0
    %9994 = vmatprep.subr.mxu0 0.0
    %9995 = vmatpush1.msra.mxu0 0.0
    %9996 = vmatprep.subr.mxu0 0.0
    %9997 = vmatpush1.msra.mxu0 0.0
    %9998 = vmatprep.subr.mxu0 0.0
    %9999 = vmatpush1.msra.mxu0 0.0
    %10000 = vmatprep.subr.mxu0 0.0
    %10001 = vmatpush1.msra.mxu0 0.0
    %10002 = vmatprep.subr.mxu0 0.0
    %10003 = vmatpush1.msra.mxu0 0.0
    %10004 = vmatprep.subr.mxu0 0.0
    %10005 = vmatpush1.msra.mxu0 0.0
    %10006 = vmatprep.subr.mxu0 0.0
    %10007 = vmatpush1.msra.mxu0 0.0
    %10008 = vmatprep.subr.mxu0 0.0
    %10009 = vmatpush1.msra.mxu0 0.0
    %10010 = vmatprep.subr.mxu0 0.0
    %10011 = vmatpush1.msra.mxu0 0.0
    %10012 = vmatprep.subr.mxu0 0.0
    %10013 = vmatpush1.msra.mxu0 0.0
    %10014 = vmatprep.subr.mxu0 0.0
    %10015 = vmatpush1.msra.mxu0 0.0
    %10016 = vmatprep.mubr.f32.mxu0 0.0
    %10017 = vmatmul.mubr.f32.gmra.mrb[0].mxu0 %v9870
    %v10018 = vpop.f32.mrb[0].mxu0
    %v10019 = vadd.f32 %v9950, %v10018
    %v10020 = vpop.f32.mrb[0].mxu0
    %10021 = vdwg.mxu0
    %s10022 = scalar_lea.vmem %s7, 16
    %v10023 = vld [vmem:[%s10022] sm:$0xff]
    %s10024 = scalar_lea.vmem %s8, 2
    %v10025 = vld [vmem:[%s10024] sm:$0x1]
    %v10027 = vlaneseq
    %v10028 = vshrl.u32 %v10027, 7
    %v10029 = vsub.s32 0, %v10028
    %v10030 = vrot.slane %v10025, %v10029
    %10032 = vmatprep.subr.mxu0 0.0
    %10033 = vmatpush1.msra.mxu0 %v10023
    %10034 = vmatprep.subr.mxu0 0.0
    %10035 = vmatpush1.msra.mxu0 0.0
    %10036 = vmatprep.subr.mxu0 0.0
    %10037 = vmatpush1.msra.mxu0 0.0
    %10038 = vmatprep.subr.mxu0 0.0
    %10039 = vmatpush1.msra.mxu0 0.0
    %10040 = vmatprep.subr.mxu0 0.0
    %10041 = vmatpush1.msra.mxu0 0.0
    %10042 = vmatprep.subr.mxu0 0.0
    %10043 = vmatpush1.msra.mxu0 0.0
    %10044 = vmatprep.subr.mxu0 0.0
    %10045 = vmatpush1.msra.mxu0 0.0
    %10046 = vmatprep.subr.mxu0 0.0
    %10047 = vmatpush1.msra.mxu0 0.0
    %10048 = vmatprep.subr.mxu0 0.0
    %10049 = vmatpush1.msra.mxu0 0.0
    %10050 = vmatprep.subr.mxu0 0.0
    %10051 = vmatpush1.msra.mxu0 0.0
    %10052 = vmatprep.subr.mxu0 0.0
    %10053 = vmatpush1.msra.mxu0 0.0
    %10054 = vmatprep.subr.mxu0 0.0
    %10055 = vmatpush1.msra.mxu0 0.0
    %10056 = vmatprep.subr.mxu0 0.0
    %10057 = vmatpush1.msra.mxu0 0.0
    %10058 = vmatprep.subr.mxu0 0.0
    %10059 = vmatpush1.msra.mxu0 0.0
    %10060 = vmatprep.subr.mxu0 0.0
    %10061 = vmatpush1.msra.mxu0 0.0
    %10062 = vmatprep.subr.mxu0 0.0
    %10063 = vmatpush1.msra.mxu0 0.0
    %10064 = vmatprep.subr.mxu0 0.0
    %10065 = vmatpush1.msra.mxu0 0.0
    %10066 = vmatprep.subr.mxu0 0.0
    %10067 = vmatpush1.msra.mxu0 0.0
    %10068 = vmatprep.subr.mxu0 0.0
    %10069 = vmatpush1.msra.mxu0 0.0
    %10070 = vmatprep.subr.mxu0 0.0
    %10071 = vmatpush1.msra.mxu0 0.0
    %10072 = vmatprep.subr.mxu0 0.0
    %10073 = vmatpush1.msra.mxu0 0.0
    %10074 = vmatprep.subr.mxu0 0.0
    %10075 = vmatpush1.msra.mxu0 0.0
    %10076 = vmatprep.subr.mxu0 0.0
    %10077 = vmatpush1.msra.mxu0 0.0
    %10078 = vmatprep.subr.mxu0 0.0
    %10079 = vmatpush1.msra.mxu0 0.0
    %10080 = vmatprep.subr.mxu0 0.0
    %10081 = vmatpush1.msra.mxu0 0.0
    %10082 = vmatprep.subr.mxu0 0.0
    %10083 = vmatpush1.msra.mxu0 0.0
    %10084 = vmatprep.subr.mxu0 0.0
    %10085 = vmatpush1.msra.mxu0 0.0
    %10086 = vmatprep.subr.mxu0 0.0
    %10087 = vmatpush1.msra.mxu0 0.0
    %10088 = vmatprep.subr.mxu0 0.0
    %10089 = vmatpush1.msra.mxu0 0.0
    %10090 = vmatprep.subr.mxu0 0.0
    %10091 = vmatpush1.msra.mxu0 0.0
    %10092 = vmatprep.subr.mxu0 0.0
    %10093 = vmatpush1.msra.mxu0 0.0
    %10094 = vmatprep.subr.mxu0 0.0
    %10095 = vmatpush1.msra.mxu0 0.0
    %10096 = vmatprep.mubr.f32.mxu0 0.0
    %10097 = vmatmul.mubr.f32.gmra.mrb[0].mxu0 %v9870
    %v10098 = vpop.f32.mrb[0].mxu0
    %v10099 = vadd.f32 %v10030, %v10098
    %v10100 = vpop.f32.mrb[0].mxu0
    %10101 = vdwg.mxu0
    %v10102 = vld [vmem:[%s9] sm:$0xff]
    %v10103 = vld [vmem:[%s9 + $0x8] sm:$0xff]
    %v10104 = vld [vmem:[%s10] sm:$0x1]
    %v10106 = vlaneseq
    %v10107 = vshrl.u32 %v10106, 7
    %v10108 = vsub.s32 0, %v10107
    %v10109 = vrot.slane %v10104, %v10108
    %vm10111 = vcmask 130048
    %v10113 = vsel %vm10111, 0.0, 0
    %10115 = vmatprep.subr.mxu0 0.0
    %10116 = vmatpush1.msra.mxu0 %v10102
    %10117 = vmatprep.subr.mxu0 0.0
    %10118 = vmatpush1.msra.mxu0 %v10103
    %10119 = vmatprep.subr.mxu0 0.0
    %10120 = vmatpush1.msra.mxu0 0.0
    %10121 = vmatprep.subr.mxu0 0.0
    %10122 = vmatpush1.msra.mxu0 0.0
    %10123 = vmatprep.subr.mxu0 0.0
    %10124 = vmatpush1.msra.mxu0 0.0
    %10125 = vmatprep.subr.mxu0 0.0
    %10126 = vmatpush1.msra.mxu0 0.0
    %10127 = vmatprep.subr.mxu0 0.0
    %10128 = vmatpush1.msra.mxu0 0.0
    %10129 = vmatprep.subr.mxu0 0.0
    %10130 = vmatpush1.msra.mxu0 0.0
    %10131 = vmatprep.subr.mxu0 0.0
    %10132 = vmatpush1.msra.mxu0 0.0
    %10133 = vmatprep.subr.mxu0 0.0
    %10134 = vmatpush1.msra.mxu0 0.0
    %10135 = vmatprep.subr.mxu0 0.0
    %10136 = vmatpush1.msra.mxu0 0.0
    %10137 = vmatprep.subr.mxu0 0.0
    %10138 = vmatpush1.msra.mxu0 0.0
    %10139 = vmatprep.subr.mxu0 0.0
    %10140 = vmatpush1.msra.mxu0 0.0
    %10141 = vmatprep.subr.mxu0 0.0
    %10142 = vmatpush1.msra.mxu0 0.0
    %10143 = vmatprep.subr.mxu0 0.0
    %10144 = vmatpush1.msra.mxu0 0.0
    %10145 = vmatprep.subr.mxu0 0.0
    %10146 = vmatpush1.msra.mxu0 0.0
    %10147 = vmatprep.subr.mxu0 0.0
    %10148 = vmatpush1.msra.mxu0 0.0
    %10149 = vmatprep.subr.mxu0 0.0
    %10150 = vmatpush1.msra.mxu0 0.0
    %10151 = vmatprep.subr.mxu0 0.0
    %10152 = vmatpush1.msra.mxu0 0.0
    %10153 = vmatprep.subr.mxu0 0.0
    %10154 = vmatpush1.msra.mxu0 0.0
    %10155 = vmatprep.subr.mxu0 0.0
    %10156 = vmatpush1.msra.mxu0 0.0
    %10157 = vmatprep.subr.mxu0 0.0
    %10158 = vmatpush1.msra.mxu0 0.0
    %10159 = vmatprep.subr.mxu0 0.0
    %10160 = vmatpush1.msra.mxu0 0.0
    %10161 = vmatprep.subr.mxu0 0.0
    %10162 = vmatpush1.msra.mxu0 0.0
    %10163 = vmatprep.subr.mxu0 0.0
    %10164 = vmatpush1.msra.mxu0 0.0
    %10165 = vmatprep.subr.mxu0 0.0
    %10166 = vmatpush1.msra.mxu0 0.0
    %10167 = vmatprep.subr.mxu0 0.0
    %10168 = vmatpush1.msra.mxu0 0.0
    %10169 = vmatprep.subr.mxu0 0.0
    %10170 = vmatpush1.msra.mxu0 0.0
    %10171 = vmatprep.subr.mxu0 0.0
    %10172 = vmatpush1.msra.mxu0 0.0
    %10173 = vmatprep.subr.mxu0 0.0
    %10174 = vmatpush1.msra.mxu0 0.0
    %10175 = vmatprep.subr.mxu0 0.0
    %10176 = vmatpush1.msra.mxu0 0.0
    %10177 = vmatprep.subr.mxu0 0.0
    %10178 = vmatpush1.msra.mxu0 0.0
    %10179 = vmatprep.mubr.f32.mxu0 0.0
    %10180 = vmatmul.mubr.f32.gmra.mrb[0].mxu0 %v10113
    %v10181 = vpop.f32.mrb[0].mxu0
    %v10182 = vadd.f32 %v10109, %v10181
    %v10183 = vpop.f32.mrb[0].mxu0
    %10184 = vdwg.mxu0
    %s10185 = scalar_lea.vmem %s9, 16
    %v10186 = vld [vmem:[%s10185] sm:$0xff]
    %v10187 = vld [vmem:[%s10185 + $0x8] sm:$0xff]
    %s10188 = scalar_lea.vmem %s10, 1
    %v10189 = vld [vmem:[%s10188] sm:$0x1]
    %v10191 = vlaneseq
    %v10192 = vshrl.u32 %v10191, 7
    %v10193 = vsub.s32 0, %v10192
    %v10194 = vrot.slane %v10189, %v10193
    %10196 = vmatprep.subr.mxu0 0.0
    %10197 = vmatpush1.msra.mxu0 %v10186
    %10198 = vmatprep.subr.mxu0 0.0
    %10199 = vmatpush1.msra.mxu0 %v10187
    %10200 = vmatprep.subr.mxu0 0.0
    %10201 = vmatpush1.msra.mxu0 0.0
    %10202 = vmatprep.subr.mxu0 0.0
    %10203 = vmatpush1.msra.mxu0 0.0
    %10204 = vmatprep.subr.mxu0 0.0
    %10205 = vmatpush1.msra.mxu0 0.0
    %10206 = vmatprep.subr.mxu0 0.0
    %10207 = vmatpush1.msra.mxu0 0.0
    %10208 = vmatprep.subr.mxu0 0.0
    %10209 = vmatpush1.msra.mxu0 0.0
    %10210 = vmatprep.subr.mxu0 0.0
    %10211 = vmatpush1.msra.mxu0 0.0
    %10212 = vmatprep.subr.mxu0 0.0
    %10213 = vmatpush1.msra.mxu0 0.0
    %10214 = vmatprep.subr.mxu0 0.0
    %10215 = vmatpush1.msra.mxu0 0.0
    %10216 = vmatprep.subr.mxu0 0.0
    %10217 = vmatpush1.msra.mxu0 0.0
    %10218 = vmatprep.subr.mxu0 0.0
    %10219 = vmatpush1.msra.mxu0 0.0
    %10220 = vmatprep.subr.mxu0 0.0
    %10221 = vmatpush1.msra.mxu0 0.0
    %10222 = vmatprep.subr.mxu0 0.0
    %10223 = vmatpush1.msra.mxu0 0.0
    %10224 = vmatprep.subr.mxu0 0.0
    %10225 = vmatpush1.msra.mxu0 0.0
    %10226 = vmatprep.subr.mxu0 0.0
    %10227 = vmatpush1.msra.mxu0 0.0
    %10228 = vmatprep.subr.mxu0 0.0
    %10229 = vmatpush1.msra.mxu0 0.0
    %10230 = vmatprep.subr.mxu0 0.0
    %10231 = vmatpush1.msra.mxu0 0.0
    %10232 = vmatprep.subr.mxu0 0.0
    %10233 = vmatpush1.msra.mxu0 0.0
    %10234 = vmatprep.subr.mxu0 0.0
    %10235 = vmatpush1.msra.mxu0 0.0
    %10236 = vmatprep.subr.mxu0 0.0
    %10237 = vmatpush1.msra.mxu0 0.0
    %10238 = vmatprep.subr.mxu0 0.0
    %10239 = vmatpush1.msra.mxu0 0.0
    %10240 = vmatprep.subr.mxu0 0.0
    %10241 = vmatpush1.msra.mxu0 0.0
    %10242 = vmatprep.subr.mxu0 0.0
    %10243 = vmatpush1.msra.mxu0 0.0
    %10244 = vmatprep.subr.mxu0 0.0
    %10245 = vmatpush1.msra.mxu0 0.0
    %10246 = vmatprep.subr.mxu0 0.0
    %10247 = vmatpush1.msra.mxu0 0.0
    %10248 = vmatprep.subr.mxu0 0.0
    %10249 = vmatpush1.msra.mxu0 0.0
    %10250 = vmatprep.subr.mxu0 0.0
    %10251 = vmatpush1.msra.mxu0 0.0
    %10252 = vmatprep.subr.mxu0 0.0
    %10253 = vmatpush1.msra.mxu0 0.0
    %10254 = vmatprep.subr.mxu0 0.0
    %10255 = vmatpush1.msra.mxu0 0.0
    %10256 = vmatprep.subr.mxu0 0.0
    %10257 = vmatpush1.msra.mxu0 0.0
    %10258 = vmatprep.subr.mxu0 0.0
    %10259 = vmatpush1.msra.mxu0 0.0
    %10260 = vmatprep.mubr.f32.mxu0 0.0
    %10261 = vmatmul.mubr.f32.gmra.mrb[0].mxu0 %v10113
    %v10262 = vpop.f32.mrb[0].mxu0
    %v10263 = vadd.f32 %v10194, %v10262
    %v10264 = vpop.f32.mrb[0].mxu0
    %10265 = vdwg.mxu0
    %s10266 = scalar_lea.vmem %s9, 32
    %v10267 = vld [vmem:[%s10266] sm:$0xff]
    %v10268 = vld [vmem:[%s10266 + $0x8] sm:$0xff]
    %s10269 = scalar_lea.vmem %s10, 2
    %v10270 = vld [vmem:[%s10269] sm:$0x1]
    %v10272 = vlaneseq
    %v10273 = vshrl.u32 %v10272, 7
    %v10274 = vsub.s32 0, %v10273
    %v10275 = vrot.slane %v10270, %v10274
    %10277 = vmatprep.subr.mxu0 0.0
    %10278 = vmatpush1.msra.mxu0 %v10267
    %10279 = vmatprep.subr.mxu0 0.0
    %10280 = vmatpush1.msra.mxu0 %v10268
    %10281 = vmatprep.subr.mxu0 0.0
    %10282 = vmatpush1.msra.mxu0 0.0
    %10283 = vmatprep.subr.mxu0 0.0
    %10284 = vmatpush1.msra.mxu0 0.0
    %10285 = vmatprep.subr.mxu0 0.0
    %10286 = vmatpush1.msra.mxu0 0.0
    %10287 = vmatprep.subr.mxu0 0.0
    %10288 = vmatpush1.msra.mxu0 0.0
    %10289 = vmatprep.subr.mxu0 0.0
    %10290 = vmatpush1.msra.mxu0 0.0
    %10291 = vmatprep.subr.mxu0 0.0
    %10292 = vmatpush1.msra.mxu0 0.0
    %10293 = vmatprep.subr.mxu0 0.0
    %10294 = vmatpush1.msra.mxu0 0.0
    %10295 = vmatprep.subr.mxu0 0.0
    %10296 = vmatpush1.msra.mxu0 0.0
    %10297 = vmatprep.subr.mxu0 0.0
    %10298 = vmatpush1.msra.mxu0 0.0
    %10299 = vmatprep.subr.mxu0 0.0
    %10300 = vmatpush1.msra.mxu0 0.0
    %10301 = vmatprep.subr.mxu0 0.0
    %10302 = vmatpush1.msra.mxu0 0.0
    %10303 = vmatprep.subr.mxu0 0.0
    %10304 = vmatpush1.msra.mxu0 0.0
    %10305 = vmatprep.subr.mxu0 0.0
    %10306 = vmatpush1.msra.mxu0 0.0
    %10307 = vmatprep.subr.mxu0 0.0
    %10308 = vmatpush1.msra.mxu0 0.0
    %10309 = vmatprep.subr.mxu0 0.0
    %10310 = vmatpush1.msra.mxu0 0.0
    %10311 = vmatprep.subr.mxu0 0.0
    %10312 = vmatpush1.msra.mxu0 0.0
    %10313 = vmatprep.subr.mxu0 0.0
    %10314 = vmatpush1.msra.mxu0 0.0
    %10315 = vmatprep.subr.mxu0 0.0
    %10316 = vmatpush1.msra.mxu0 0.0
    %10317 = vmatprep.subr.mxu0 0.0
    %10318 = vmatpush1.msra.mxu0 0.0
    %10319 = vmatprep.subr.mxu0 0.0
    %10320 = vmatpush1.msra.mxu0 0.0
    %10321 = vmatprep.subr.mxu0 0.0
    %10322 = vmatpush1.msra.mxu0 0.0
    %10323 = vmatprep.subr.mxu0 0.0
    %10324 = vmatpush1.msra.mxu0 0.0
    %10325 = vmatprep.subr.mxu0 0.0
    %10326 = vmatpush1.msra.mxu0 0.0
    %10327 = vmatprep.subr.mxu0 0.0
    %10328 = vmatpush1.msra.mxu0 0.0
    %10329 = vmatprep.subr.mxu0 0.0
    %10330 = vmatpush1.msra.mxu0 0.0
    %10331 = vmatprep.subr.mxu0 0.0
    %10332 = vmatpush1.msra.mxu0 0.0
    %10333 = vmatprep.subr.mxu0 0.0
    %10334 = vmatpush1.msra.mxu0 0.0
    %10335 = vmatprep.subr.mxu0 0.0
    %10336 = vmatpush1.msra.mxu0 0.0
    %10337 = vmatprep.subr.mxu0 0.0
    %10338 = vmatpush1.msra.mxu0 0.0
    %10339 = vmatprep.subr.mxu0 0.0
    %10340 = vmatpush1.msra.mxu0 0.0
    %10341 = vmatprep.mubr.f32.mxu0 0.0
    %10342 = vmatmul.mubr.f32.gmra.mrb[0].mxu0 %v10113
    %v10343 = vpop.f32.mrb[0].mxu0
    %v10344 = vadd.f32 %v10275, %v10343
    %v10345 = vpop.f32.mrb[0].mxu0
    %10346 = vdwg.mxu0
    %v10347 = vadd.f32 %v9939, %v10182
    %v10348 = vxor.u32 %v10347, 2147483648
    %v10349 = vmul.f32 %v10348, 1.442695
    %v10350 = vpow.pop %v10349
    %v10351 = vadd.f32 %v10350, 1.0
    %v10352 = vrcp.pop %v10351
    %v10353 = vmul.f32 1.0, %v10352
    %v10354 = vadd.f32 %v10019, %v10263
    %v10355 = vxor.u32 %v10354, 2147483648
    %v10356 = vmul.f32 %v10355, 1.442695
    %v10357 = vpow.pop %v10356
    %v10358 = vadd.f32 %v10357, 1.0
    %v10359 = vrcp.pop %v10358
    %v10360 = vmul.f32 1.0, %v10359
    %v10361 = vmul.f32 %v10353, %v10344
    %v10362 = vadd.f32 %v10099, %v10361
    %v10363 = vtanh.pop %v10362
    %v10364 = vsub.f32 1.0, %v10360
    %v10365 = vmul.f32 %v10364, %v10363
    %v10366 = vmul.f32 %v10360, 0.0
    %v10367 = vadd.f32 %v10365, %v10366
    %v10368 = vld [vmem:[%s13] sm:$0x3]
    %vm10369 = vcmp.gt.f32.partialorder %v10368, 0.5
    %v10370 = vsel %vm10369, 1, 0
    %10371 = vset.pattern.permute.xlu0 0
    %10372 = vperm.xlu0 %10371, %v10370
    %v10373 = vpop.permute.xlu0 %10372
    %vm10374 = vcmp.eq.s32.totalorder %v10373, 1
    %v10375 = vsel %vm10374, %v10367, 0.0
    %v10377 = vsel %vm10111, %v10375, 0
    %10379 = vmatprep.subr.mxu0 0.0
    %10380 = vmatpush1.msra.mxu0 %v10102
    %10381 = vmatprep.subr.mxu0 0.0
    %10382 = vmatpush1.msra.mxu0 %v10103
    %10383 = vmatprep.subr.mxu0 0.0
    %10384 = vmatpush1.msra.mxu0 0.0
    %10385 = vmatprep.subr.mxu0 0.0
    %10386 = vmatpush1.msra.mxu0 0.0
    %10387 = vmatprep.subr.mxu0 0.0
    %10388 = vmatpush1.msra.mxu0 0.0
    %10389 = vmatprep.subr.mxu0 0.0
    %10390 = vmatpush1.msra.mxu0 0.0
    %10391 = vmatprep.subr.mxu0 0.0
    %10392 = vmatpush1.msra.mxu0 0.0
    %10393 = vmatprep.subr.mxu0 0.0
    %10394 = vmatpush1.msra.mxu0 0.0
    %10395 = vmatprep.subr.mxu0 0.0
    %10396 = vmatpush1.msra.mxu0 0.0
    %10397 = vmatprep.subr.mxu0 0.0
    %10398 = vmatpush1.msra.mxu0 0.0
    %10399 = vmatprep.subr.mxu0 0.0
    %10400 = vmatpush1.msra.mxu0 0.0
    %10401 = vmatprep.subr.mxu0 0.0
    %10402 = vmatpush1.msra.mxu0 0.0
    %10403 = vmatprep.subr.mxu0 0.0
    %10404 = vmatpush1.msra.mxu0 0.0
    %10405 = vmatprep.subr.mxu0 0.0
    %10406 = vmatpush1.msra.mxu0 0.0
    %10407 = vmatprep.subr.mxu0 0.0
    %10408 = vmatpush1.msra.mxu0 0.0
    %10409 = vmatprep.subr.mxu0 0.0
    %10410 = vmatpush1.msra.mxu0 0.0
    %10411 = vmatprep.subr.mxu0 0.0
    %10412 = vmatpush1.msra.mxu0 0.0
    %10413 = vmatprep.subr.mxu0 0.0
    %10414 = vmatpush1.msra.mxu0 0.0
    %10415 = vmatprep.subr.mxu0 0.0
    %10416 = vmatpush1.msra.mxu0 0.0
    %10417 = vmatprep.subr.mxu0 0.0
    %10418 = vmatpush1.msra.mxu0 0.0
    %10419 = vmatprep.subr.mxu0 0.0
    %10420 = vmatpush1.msra.mxu0 0.0
    %10421 = vmatprep.subr.mxu0 0.0
    %10422 = vmatpush1.msra.mxu0 0.0
    %10423 = vmatprep.subr.mxu0 0.0
    %10424 = vmatpush1.msra.mxu0 0.0
    %10425 = vmatprep.subr.mxu0 0.0
    %10426 = vmatpush1.msra.mxu0 0.0
    %10427 = vmatprep.subr.mxu0 0.0
    %10428 = vmatpush1.msra.mxu0 0.0
    %10429 = vmatprep.subr.mxu0 0.0
    %10430 = vmatpush1.msra.mxu0 0.0
    %10431 = vmatprep.subr.mxu0 0.0
    %10432 = vmatpush1.msra.mxu0 0.0
    %10433 = vmatprep.subr.mxu0 0.0
    %10434 = vmatpush1.msra.mxu0 0.0
    %10435 = vmatprep.subr.mxu0 0.0
    %10436 = vmatpush1.msra.mxu0 0.0
    %10437 = vmatprep.subr.mxu0 0.0
    %10438 = vmatpush1.msra.mxu0 0.0
    %10439 = vmatprep.subr.mxu0 0.0
    %10440 = vmatpush1.msra.mxu0 0.0
    %10441 = vmatprep.subr.mxu0 0.0
    %10442 = vmatpush1.msra.mxu0 0.0
    %10443 = vmatprep.mubr.f32.mxu0 0.0
    %10444 = vmatmul.mubr.f32.gmra.mrb[0].mxu0 %v10377
    %v10445 = vpop.f32.mrb[0].mxu0
    %v10446 = vadd.f32 %v10109, %v10445
    %v10447 = vpop.f32.mrb[0].mxu0
    %10448 = vdwg.mxu0
    %10449 = vmatprep.subr.mxu0 0.0
    %10450 = vmatpush1.msra.mxu0 %v10186
    %10451 = vmatprep.subr.mxu0 0.0
    %10452 = vmatpush1.msra.mxu0 %v10187
    %10453 = vmatprep.subr.mxu0 0.0
    %10454 = vmatpush1.msra.mxu0 0.0
    %10455 = vmatprep.subr.mxu0 0.0
    %10456 = vmatpush1.msra.mxu0 0.0
    %10457 = vmatprep.subr.mxu0 0.0
    %10458 = vmatpush1.msra.mxu0 0.0
    %10459 = vmatprep.subr.mxu0 0.0
    %10460 = vmatpush1.msra.mxu0 0.0
    %10461 = vmatprep.subr.mxu0 0.0
    %10462 = vmatpush1.msra.mxu0 0.0
    %10463 = vmatprep.subr.mxu0 0.0
    %10464 = vmatpush1.msra.mxu0 0.0
    %10465 = vmatprep.subr.mxu0 0.0
    %10466 = vmatpush1.msra.mxu0 0.0
    %10467 = vmatprep.subr.mxu0 0.0
    %10468 = vmatpush1.msra.mxu0 0.0
    %10469 = vmatprep.subr.mxu0 0.0
    %10470 = vmatpush1.msra.mxu0 0.0
    %10471 = vmatprep.subr.mxu0 0.0
    %10472 = vmatpush1.msra.mxu0 0.0
    %10473 = vmatprep.subr.mxu0 0.0
    %10474 = vmatpush1.msra.mxu0 0.0
    %10475 = vmatprep.subr.mxu0 0.0
    %10476 = vmatpush1.msra.mxu0 0.0
    %10477 = vmatprep.subr.mxu0 0.0
    %10478 = vmatpush1.msra.mxu0 0.0
    %10479 = vmatprep.subr.mxu0 0.0
    %10480 = vmatpush1.msra.mxu0 0.0
    %10481 = vmatprep.subr.mxu0 0.0
    %10482 = vmatpush1.msra.mxu0 0.0
    %10483 = vmatprep.subr.mxu0 0.0
    %10484 = vmatpush1.msra.mxu0 0.0
    %10485 = vmatprep.subr.mxu0 0.0
    %10486 = vmatpush1.msra.mxu0 0.0
    %10487 = vmatprep.subr.mxu0 0.0
    %10488 = vmatpush1.msra.mxu0 0.0
    %10489 = vmatprep.subr.mxu0 0.0
    %10490 = vmatpush1.msra.mxu0 0.0
    %10491 = vmatprep.subr.mxu0 0.0
    %10492 = vmatpush1.msra.mxu0 0.0
    %10493 = vmatprep.subr.mxu0 0.0
    %10494 = vmatpush1.msra.mxu0 0.0
    %10495 = vmatprep.subr.mxu0 0.0
    %10496 = vmatpush1.msra.mxu0 0.0
    %10497 = vmatprep.subr.mxu0 0.0
    %10498 = vmatpush1.msra.mxu0 0.0
    %10499 = vmatprep.subr.mxu0 0.0
    %10500 = vmatpush1.msra.mxu0 0.0
    %10501 = vmatprep.subr.mxu0 0.0
    %10502 = vmatpush1.msra.mxu0 0.0
    %10503 = vmatprep.subr.mxu0 0.0
    %10504 = vmatpush1.msra.mxu0 0.0
    %10505 = vmatprep.subr.mxu0 0.0
    %10506 = vmatpush1.msra.mxu0 0.0
    %10507 = vmatprep.subr.mxu0 0.0
    %10508 = vmatpush1.msra.mxu0 0.0
    %10509 = vmatprep.subr.mxu0 0.0
    %10510 = vmatpush1.msra.mxu0 0.0
    %10511 = vmatprep.subr.mxu0 0.0
    %10512 = vmatpush1.msra.mxu0 0.0
    %10513 = vmatprep.mubr.f32.mxu0 0.0
    %10514 = vmatmul.mubr.f32.gmra.mrb[0].mxu0 %v10377
    %v10515 = vpop.f32.mrb[0].mxu0
    %v10516 = vadd.f32 %v10194, %v10515
    %v10517 = vpop.f32.mrb[0].mxu0
    %10518 = vdwg.mxu0
    %10519 = vmatprep.subr.mxu0 0.0
    %10520 = vmatpush1.msra.mxu0 %v10267
    %10521 = vmatprep.subr.mxu0 0.0
    %10522 = vmatpush1.msra.mxu0 %v10268
    %10523 = vmatprep.subr.mxu0 0.0
    %10524 = vmatpush1.msra.mxu0 0.0
    %10525 = vmatprep.subr.mxu0 0.0
    %10526 = vmatpush1.msra.mxu0 0.0
    %10527 = vmatprep.subr.mxu0 0.0
    %10528 = vmatpush1.msra.mxu0 0.0
    %10529 = vmatprep.subr.mxu0 0.0
    %10530 = vmatpush1.msra.mxu0 0.0
    %10531 = vmatprep.subr.mxu0 0.0
    %10532 = vmatpush1.msra.mxu0 0.0
    %10533 = vmatprep.subr.mxu0 0.0
    %10534 = vmatpush1.msra.mxu0 0.0
    %10535 = vmatprep.subr.mxu0 0.0
    %10536 = vmatpush1.msra.mxu0 0.0
    %10537 = vmatprep.subr.mxu0 0.0
    %10538 = vmatpush1.msra.mxu0 0.0
    %10539 = vmatprep.subr.mxu0 0.0
    %10540 = vmatpush1.msra.mxu0 0.0
    %10541 = vmatprep.subr.mxu0 0.0
    %10542 = vmatpush1.msra.mxu0 0.0
    %10543 = vmatprep.subr.mxu0 0.0
    %10544 = vmatpush1.msra.mxu0 0.0
    %10545 = vmatprep.subr.mxu0 0.0
    %10546 = vmatpush1.msra.mxu0 0.0
    %10547 = vmatprep.subr.mxu0 0.0
    %10548 = vmatpush1.msra.mxu0 0.0
    %10549 = vmatprep.subr.mxu0 0.0
    %10550 = vmatpush1.msra.mxu0 0.0
    %10551 = vmatprep.subr.mxu0 0.0
    %10552 = vmatpush1.msra.mxu0 0.0
    %10553 = vmatprep.subr.mxu0 0.0
    %10554 = vmatpush1.msra.mxu0 0.0
    %10555 = vmatprep.subr.mxu0 0.0
    %10556 = vmatpush1.msra.mxu0 0.0
    %10557 = vmatprep.subr.mxu0 0.0
    %10558 = vmatpush1.msra.mxu0 0.0
    %10559 = vmatprep.subr.mxu0 0.0
    %10560 = vmatpush1.msra.mxu0 0.0
    %10561 = vmatprep.subr.mxu0 0.0
    %10562 = vmatpush1.msra.mxu0 0.0
    %10563 = vmatprep.subr.mxu0 0.0
    %10564 = vmatpush1.msra.mxu0 0.0
    %10565 = vmatprep.subr.mxu0 0.0
    %10566 = vmatpush1.msra.mxu0 0.0
    %10567 = vmatprep.subr.mxu0 0.0
    %10568 = vmatpush1.msra.mxu0 0.0
    %10569 = vmatprep.subr.mxu0 0.0
    %10570 = vmatpush1.msra.mxu0 0.0
    %10571 = vmatprep.subr.mxu0 0.0
    %10572 = vmatpush1.msra.mxu0 0.0
    %10573 = vmatprep.subr.mxu0 0.0
    %10574 = vmatpush1.msra.mxu0 0.0
    %10575 = vmatprep.subr.mxu0 0.0
    %10576 = vmatpush1.msra.mxu0 0.0
    %10577 = vmatprep.subr.mxu0 0.0
    %10578 = vmatpush1.msra.mxu0 0.0
    %10579 = vmatprep.subr.mxu0 0.0
    %10580 = vmatpush1.msra.mxu0 0.0
    %10581 = vmatprep.subr.mxu0 0.0
    %10582 = vmatpush1.msra.mxu0 0.0
    %10583 = vmatprep.mubr.f32.mxu0 0.0
    %10584 = vmatmul.mubr.f32.gmra.mrb[0].mxu0 %v10377
    %v10585 = vpop.f32.mrb[0].mxu0
    %v10586 = vadd.f32 %v10275, %v10585
    %v10587 = vpop.f32.mrb[0].mxu0
    %10588 = vdwg.mxu0
    %v10590 = vrot.slane %v10446, 6
    %v10592 = vadd.f32 %v9939, %v10590
    %v10593 = vxor.u32 %v10592, 2147483648
    %v10594 = vmul.f32 %v10593, 1.442695
    %v10595 = vpow.pop %v10594
    %v10596 = vadd.f32 %v10595, 1.0
    %v10597 = vrcp.pop %v10596
    %v10598 = vmul.f32 1.0, %v10597
    %v10600 = vrot.slane %v10516, 6
    %v10602 = vadd.f32 %v10019, %v10600
    %v10603 = vxor.u32 %v10602, 2147483648
    %v10604 = vmul.f32 %v10603, 1.442695
    %v10605 = vpow.pop %v10604
    %v10606 = vadd.f32 %v10605, 1.0
    %v10607 = vrcp.pop %v10606
    %v10608 = vmul.f32 1.0, %v10607
    %v10610 = vrot.slane %v10586, 6
    %v10612 = vmul.f32 %v10598, %v10610
    %v10613 = vadd.f32 %v10099, %v10612
    %v10614 = vtanh.pop %v10613
    %v10615 = vsub.f32 1.0, %v10608
    %v10616 = vmul.f32 %v10615, %v10614
    %v10617 = vrot.slane %v10375, 6
    %v10619 = vmul.f32 %v10608, %v10617
    %v10620 = vadd.f32 %v10616, %v10619
    %s10621 = scalar_lea.vmem %s13, 2
    %v10622 = vld [vmem:[%s10621] sm:$0x3]
    %vm10623 = vcmp.gt.f32.partialorder %v10622, 0.5
    %v10624 = vsel %vm10623, 1, 0
    %10625 = vset.pattern.permute.xlu0 0
    %10626 = vperm.xlu0 %10625, %v10624
    %v10627 = vpop.permute.xlu0 %10626
    %vm10628 = vcmp.eq.s32.totalorder %v10627, 1
    %v10630 = vrot.slane %v10620, 2
    %v10632 = vsel %vm10628, %v10630, %v10375
    %v10634 = vsel %vm10111, %v10632, 0
    %10636 = vmatprep.subr.mxu0 0.0
    %10637 = vmatpush1.msra.mxu0 %v10102
    %10638 = vmatprep.subr.mxu0 0.0
    %10639 = vmatpush1.msra.mxu0 %v10103
    %10640 = vmatprep.subr.mxu0 0.0
    %10641 = vmatpush1.msra.mxu0 0.0
    %10642 = vmatprep.subr.mxu0 0.0
    %10643 = vmatpush1.msra.mxu0 0.0
    %10644 = vmatprep.subr.mxu0 0.0
    %10645 = vmatpush1.msra.mxu0 0.0
    %10646 = vmatprep.subr.mxu0 0.0
    %10647 = vmatpush1.msra.mxu0 0.0
    %10648 = vmatprep.subr.mxu0 0.0
    %10649 = vmatpush1.msra.mxu0 0.0
    %10650 = vmatprep.subr.mxu0 0.0
    %10651 = vmatpush1.msra.mxu0 0.0
    %10652 = vmatprep.subr.mxu0 0.0
    %10653 = vmatpush1.msra.mxu0 0.0
    %10654 = vmatprep.subr.mxu0 0.0
    %10655 = vmatpush1.msra.mxu0 0.0
    %10656 = vmatprep.subr.mxu0 0.0
    %10657 = vmatpush1.msra.mxu0 0.0
    %10658 = vmatprep.subr.mxu0 0.0
    %10659 = vmatpush1.msra.mxu0 0.0
    %10660 = vmatprep.subr.mxu0 0.0
    %10661 = vmatpush1.msra.mxu0 0.0
    %10662 = vmatprep.subr.mxu0 0.0
    %10663 = vmatpush1.msra.mxu0 0.0
    %10664 = vmatprep.subr.mxu0 0.0
    %10665 = vmatpush1.msra.mxu0 0.0
    %10666 = vmatprep.subr.mxu0 0.0
    %10667 = vmatpush1.msra.mxu0 0.0
    %10668 = vmatprep.subr.mxu0 0.0
    %10669 = vmatpush1.msra.mxu0 0.0
    %10670 = vmatprep.subr.mxu0 0.0
    %10671 = vmatpush1.msra.mxu0 0.0
    %10672 = vmatprep.subr.mxu0 0.0
    %10673 = vmatpush1.msra.mxu0 0.0
    %10674 = vmatprep.subr.mxu0 0.0
    %10675 = vmatpush1.msra.mxu0 0.0
    %10676 = vmatprep.subr.mxu0 0.0
    %10677 = vmatpush1.msra.mxu0 0.0
    %10678 = vmatprep.subr.mxu0 0.0
    %10679 = vmatpush1.msra.mxu0 0.0
    %10680 = vmatprep.subr.mxu0 0.0
    %10681 = vmatpush1.msra.mxu0 0.0
    %10682 = vmatprep.subr.mxu0 0.0
    %10683 = vmatpush1.msra.mxu0 0.0
    %10684 = vmatprep.subr.mxu0 0.0
    %10685 = vmatpush1.msra.mxu0 0.0
    %10686 = vmatprep.subr.mxu0 0.0
    %10687 = vmatpush1.msra.mxu0 0.0
    %10688 = vmatprep.subr.mxu0 0.0
    %10689 = vmatpush1.msra.mxu0 0.0
    %10690 = vmatprep.subr.mxu0 0.0
    %10691 = vmatpush1.msra.mxu0 0.0
    %10692 = vmatprep.subr.mxu0 0.0
    %10693 = vmatpush1.msra.mxu0 0.0
    %10694 = vmatprep.subr.mxu0 0.0
    %10695 = vmatpush1.msra.mxu0 0.0
    %10696 = vmatprep.subr.mxu0 0.0
    %10697 = vmatpush1.msra.mxu0 0.0
    %10698 = vmatprep.subr.mxu0 0.0
    %10699 = vmatpush1.msra.mxu0 0.0
    %10700 = vmatprep.mubr.f32.mxu0 0.0
    %10701 = vmatmul.mubr.f32.gmra.mrb[0].mxu0 %v10634
    %v10702 = vpop.f32.mrb[0].mxu0
    %v10703 = vadd.f32 %v10109, %v10702
    %v10704 = vpop.f32.mrb[0].mxu0
    %10705 = vdwg.mxu0
    %10706 = vmatprep.subr.mxu0 0.0
    %10707 = vmatpush1.msra.mxu0 %v10186
    %10708 = vmatprep.subr.mxu0 0.0
    %10709 = vmatpush1.msra.mxu0 %v10187
    %10710 = vmatprep.subr.mxu0 0.0
    %10711 = vmatpush1.msra.mxu0 0.0
    %10712 = vmatprep.subr.mxu0 0.0
    %10713 = vmatpush1.msra.mxu0 0.0
    %10714 = vmatprep.subr.mxu0 0.0
    %10715 = vmatpush1.msra.mxu0 0.0
    %10716 = vmatprep.subr.mxu0 0.0
    %10717 = vmatpush1.msra.mxu0 0.0
    %10718 = vmatprep.subr.mxu0 0.0
    %10719 = vmatpush1.msra.mxu0 0.0
    %10720 = vmatprep.subr.mxu0 0.0
    %10721 = vmatpush1.msra.mxu0 0.0
    %10722 = vmatprep.subr.mxu0 0.0
    %10723 = vmatpush1.msra.mxu0 0.0
    %10724 = vmatprep.subr.mxu0 0.0
    %10725 = vmatpush1.msra.mxu0 0.0
    %10726 = vmatprep.subr.mxu0 0.0
    %10727 = vmatpush1.msra.mxu0 0.0
    %10728 = vmatprep.subr.mxu0 0.0
    %10729 = vmatpush1.msra.mxu0 0.0
    %10730 = vmatprep.subr.mxu0 0.0
    %10731 = vmatpush1.msra.mxu0 0.0
    %10732 = vmatprep.subr.mxu0 0.0
    %10733 = vmatpush1.msra.mxu0 0.0
    %10734 = vmatprep.subr.mxu0 0.0
    %10735 = vmatpush1.msra.mxu0 0.0
    %10736 = vmatprep.subr.mxu0 0.0
    %10737 = vmatpush1.msra.mxu0 0.0
    %10738 = vmatprep.subr.mxu0 0.0
    %10739 = vmatpush1.msra.mxu0 0.0
    %10740 = vmatprep.subr.mxu0 0.0
    %10741 = vmatpush1.msra.mxu0 0.0
    %10742 = vmatprep.subr.mxu0 0.0
    %10743 = vmatpush1.msra.mxu0 0.0
    %10744 = vmatprep.subr.mxu0 0.0
    %10745 = vmatpush1.msra.mxu0 0.0
    %10746 = vmatprep.subr.mxu0 0.0
    %10747 = vmatpush1.msra.mxu0 0.0
    %10748 = vmatprep.subr.mxu0 0.0
    %10749 = vmatpush1.msra.mxu0 0.0
    %10750 = vmatprep.subr.mxu0 0.0
    %10751 = vmatpush1.msra.mxu0 0.0
    %10752 = vmatprep.subr.mxu0 0.0
    %10753 = vmatpush1.msra.mxu0 0.0
    %10754 = vmatprep.subr.mxu0 0.0
    %10755 = vmatpush1.msra.mxu0 0.0
    %10756 = vmatprep.subr.mxu0 0.0
    %10757 = vmatpush1.msra.mxu0 0.0
    %10758 = vmatprep.subr.mxu0 0.0
    %10759 = vmatpush1.msra.mxu0 0.0
    %10760 = vmatprep.subr.mxu0 0.0
    %10761 = vmatpush1.msra.mxu0 0.0
    %10762 = vmatprep.subr.mxu0 0.0
    %10763 = vmatpush1.msra.mxu0 0.0
    %10764 = vmatprep.subr.mxu0 0.0
    %10765 = vmatpush1.msra.mxu0 0.0
    %10766 = vmatprep.subr.mxu0 0.0
    %10767 = vmatpush1.msra.mxu0 0.0
    %10768 = vmatprep.subr.mxu0 0.0
    %10769 = vmatpush1.msra.mxu0 0.0
    %10770 = vmatprep.mubr.f32.mxu0 0.0
    %10771 = vmatmul.mubr.f32.gmra.mrb[0].mxu0 %v10634
    %v10772 = vpop.f32.mrb[0].mxu0
    %v10773 = vadd.f32 %v10194, %v10772
    %v10774 = vpop.f32.mrb[0].mxu0
    %10775 = vdwg.mxu0
    %10776 = vmatprep.subr.mxu0 0.0
    %10777 = vmatpush1.msra.mxu0 %v10267
    %10778 = vmatprep.subr.mxu0 0.0
    %10779 = vmatpush1.msra.mxu0 %v10268
    %10780 = vmatprep.subr.mxu0 0.0
    %10781 = vmatpush1.msra.mxu0 0.0
    %10782 = vmatprep.subr.mxu0 0.0
    %10783 = vmatpush1.msra.mxu0 0.0
    %10784 = vmatprep.subr.mxu0 0.0
    %10785 = vmatpush1.msra.mxu0 0.0
    %10786 = vmatprep.subr.mxu0 0.0
    %10787 = vmatpush1.msra.mxu0 0.0
    %10788 = vmatprep.subr.mxu0 0.0
    %10789 = vmatpush1.msra.mxu0 0.0
    %10790 = vmatprep.subr.mxu0 0.0
    %10791 = vmatpush1.msra.mxu0 0.0
    %10792 = vmatprep.subr.mxu0 0.0
    %10793 = vmatpush1.msra.mxu0 0.0
    %10794 = vmatprep.subr.mxu0 0.0
    %10795 = vmatpush1.msra.mxu0 0.0
    %10796 = vmatprep.subr.mxu0 0.0
    %10797 = vmatpush1.msra.mxu0 0.0
    %10798 = vmatprep.subr.mxu0 0.0
    %10799 = vmatpush1.msra.mxu0 0.0
    %10800 = vmatprep.subr.mxu0 0.0
    %10801 = vmatpush1.msra.mxu0 0.0
    %10802 = vmatprep.subr.mxu0 0.0
    %10803 = vmatpush1.msra.mxu0 0.0
    %10804 = vmatprep.subr.mxu0 0.0
    %10805 = vmatpush1.msra.mxu0 0.0
    %10806 = vmatprep.subr.mxu0 0.0
    %10807 = vmatpush1.msra.mxu0 0.0
    %10808 = vmatprep.subr.mxu0 0.0
    %10809 = vmatpush1.msra.mxu0 0.0
    %10810 = vmatprep.subr.mxu0 0.0
    %10811 = vmatpush1.msra.mxu0 0.0
    %10812 = vmatprep.subr.mxu0 0.0
    %10813 = vmatpush1.msra.mxu0 0.0
    %10814 = vmatprep.subr.mxu0 0.0
    %10815 = vmatpush1.msra.mxu0 0.0
    %10816 = vmatprep.subr.mxu0 0.0
    %10817 = vmatpush1.msra.mxu0 0.0
    %10818 = vmatprep.subr.mxu0 0.0
    %10819 = vmatpush1.msra.mxu0 0.0
    %10820 = vmatprep.subr.mxu0 0.0
    %10821 = vmatpush1.msra.mxu0 0.0
    %10822 = vmatprep.subr.mxu0 0.0
    %10823 = vmatpush1.msra.mxu0 0.0
    %10824 = vmatprep.subr.mxu0 0.0
    %10825 = vmatpush1.msra.mxu0 0.0
    %10826 = vmatprep.subr.mxu0 0.0
    %10827 = vmatpush1.msra.mxu0 0.0
    %10828 = vmatprep.subr.mxu0 0.0
    %10829 = vmatpush1.msra.mxu0 0.0
    %10830 = vmatprep.subr.mxu0 0.0
    %10831 = vmatpush1.msra.mxu0 0.0
    %10832 = vmatprep.subr.mxu0 0.0
    %10833 = vmatpush1.msra.mxu0 0.0
    %10834 = vmatprep.subr.mxu0 0.0
    %10835 = vmatpush1.msra.mxu0 0.0
    %10836 = vmatprep.subr.mxu0 0.0
    %10837 = vmatpush1.msra.mxu0 0.0
    %10838 = vmatprep.subr.mxu0 0.0
    %10839 = vmatpush1.msra.mxu0 0.0
    %10840 = vmatprep.mubr.f32.mxu0 0.0
    %10841 = vmatmul.mubr.f32.gmra.mrb[0].mxu0 %v10634
    %v10842 = vpop.f32.mrb[0].mxu0
    %v10843 = vadd.f32 %v10275, %v10842
    %v10844 = vpop.f32.mrb[0].mxu0
    %10845 = vdwg.mxu0
    %v10847 = vrot.slane %v10703, 4
    %v10849 = vadd.f32 %v9939, %v10847
    %v10850 = vxor.u32 %v10849, 2147483648
    %v10851 = vmul.f32 %v10850, 1.442695
    %v10852 = vpow.pop %v10851
    %v10853 = vadd.f32 %v10852, 1.0
    %v10854 = vrcp.pop %v10853
    %v10855 = vmul.f32 1.0, %v10854
    %v10857 = vrot.slane %v10773, 4
    %v10859 = vadd.f32 %v10019, %v10857
    %v10860 = vxor.u32 %v10859, 2147483648
    %v10861 = vmul.f32 %v10860, 1.442695
    %v10862 = vpow.pop %v10861
    %v10863 = vadd.f32 %v10862, 1.0
    %v10864 = vrcp.pop %v10863
    %v10865 = vmul.f32 1.0, %v10864
    %v10867 = vrot.slane %v10843, 4
    %v10869 = vmul.f32 %v10855, %v10867
    %v10870 = vadd.f32 %v10099, %v10869
    %v10871 = vtanh.pop %v10870
    %v10872 = vsub.f32 1.0, %v10865
    %v10873 = vmul.f32 %v10872, %v10871
    %v10874 = vrot.slane %v10632, 4
    %v10876 = vmul.f32 %v10865, %v10874
    %v10877 = vadd.f32 %v10873, %v10876
    %s10878 = scalar_lea.vmem %s13, 4
    %v10879 = vld [vmem:[%s10878] sm:$0x3]
    %vm10880 = vcmp.gt.f32.partialorder %v10879, 0.5
    %v10881 = vsel %vm10880, 1, 0
    %10882 = vset.pattern.permute.xlu0 0
    %10883 = vperm.xlu0 %10882, %v10881
    %v10884 = vpop.permute.xlu0 %10883
    %vm10885 = vcmp.eq.s32.totalorder %v10884, 1
    %v10887 = vrot.slane %v10877, 4
    %v10889 = vsel %vm10885, %v10887, %v10632
    %v10891 = vsel %vm10111, %v10889, 0
    %10893 = vmatprep.subr.mxu0 0.0
    %10894 = vmatpush1.msra.mxu0 %v10102
    %10895 = vmatprep.subr.mxu0 0.0
    %10896 = vmatpush1.msra.mxu0 %v10103
    %10897 = vmatprep.subr.mxu0 0.0
    %10898 = vmatpush1.msra.mxu0 0.0
    %10899 = vmatprep.subr.mxu0 0.0
    %10900 = vmatpush1.msra.mxu0 0.0
    %10901 = vmatprep.subr.mxu0 0.0
    %10902 = vmatpush1.msra.mxu0 0.0
    %10903 = vmatprep.subr.mxu0 0.0
    %10904 = vmatpush1.msra.mxu0 0.0
    %10905 = vmatprep.subr.mxu0 0.0
    %10906 = vmatpush1.msra.mxu0 0.0
    %10907 = vmatprep.subr.mxu0 0.0
    %10908 = vmatpush1.msra.mxu0 0.0
    %10909 = vmatprep.subr.mxu0 0.0
    %10910 = vmatpush1.msra.mxu0 0.0
    %10911 = vmatprep.subr.mxu0 0.0
    %10912 = vmatpush1.msra.mxu0 0.0
    %10913 = vmatprep.subr.mxu0 0.0
    %10914 = vmatpush1.msra.mxu0 0.0
    %10915 = vmatprep.subr.mxu0 0.0
    %10916 = vmatpush1.msra.mxu0 0.0
    %10917 = vmatprep.subr.mxu0 0.0
    %10918 = vmatpush1.msra.mxu0 0.0
    %10919 = vmatprep.subr.mxu0 0.0
    %10920 = vmatpush1.msra.mxu0 0.0
    %10921 = vmatprep.subr.mxu0 0.0
    %10922 = vmatpush1.msra.mxu0 0.0
    %10923 = vmatprep.subr.mxu0 0.0
    %10924 = vmatpush1.msra.mxu0 0.0
    %10925 = vmatprep.subr.mxu0 0.0
    %10926 = vmatpush1.msra.mxu0 0.0
    %10927 = vmatprep.subr.mxu0 0.0
    %10928 = vmatpush1.msra.mxu0 0.0
    %10929 = vmatprep.subr.mxu0 0.0
    %10930 = vmatpush1.msra.mxu0 0.0
    %10931 = vmatprep.subr.mxu0 0.0
    %10932 = vmatpush1.msra.mxu0 0.0
    %10933 = vmatprep.subr.mxu0 0.0
    %10934 = vmatpush1.msra.mxu0 0.0
    %10935 = vmatprep.subr.mxu0 0.0
    %10936 = vmatpush1.msra.mxu0 0.0
    %10937 = vmatprep.subr.mxu0 0.0
    %10938 = vmatpush1.msra.mxu0 0.0
    %10939 = vmatprep.subr.mxu0 0.0
    %10940 = vmatpush1.msra.mxu0 0.0
    %10941 = vmatprep.subr.mxu0 0.0
    %10942 = vmatpush1.msra.mxu0 0.0
    %10943 = vmatprep.subr.mxu0 0.0
    %10944 = vmatpush1.msra.mxu0 0.0
    %10945 = vmatprep.subr.mxu0 0.0
    %10946 = vmatpush1.msra.mxu0 0.0
    %10947 = vmatprep.subr.mxu0 0.0
    %10948 = vmatpush1.msra.mxu0 0.0
    %10949 = vmatprep.subr.mxu0 0.0
    %10950 = vmatpush1.msra.mxu0 0.0
    %10951 = vmatprep.subr.mxu0 0.0
    %10952 = vmatpush1.msra.mxu0 0.0
    %10953 = vmatprep.subr.mxu0 0.0
    %10954 = vmatpush1.msra.mxu0 0.0
    %10955 = vmatprep.subr.mxu0 0.0
    %10956 = vmatpush1.msra.mxu0 0.0
    %10957 = vmatprep.mubr.f32.mxu0 0.0
    %10958 = vmatmul.mubr.f32.gmra.mrb[0].mxu0 %v10891
    %v10959 = vpop.f32.mrb[0].mxu0
    %v10960 = vadd.f32 %v10109, %v10959
    %v10961 = vpop.f32.mrb[0].mxu0
    %10962 = vdwg.mxu0
    %10963 = vmatprep.subr.mxu0 0.0
    %10964 = vmatpush1.msra.mxu0 %v10186
    %10965 = vmatprep.subr.mxu0 0.0
    %10966 = vmatpush1.msra.mxu0 %v10187
    %10967 = vmatprep.subr.mxu0 0.0
    %10968 = vmatpush1.msra.mxu0 0.0
    %10969 = vmatprep.subr.mxu0 0.0
    %10970 = vmatpush1.msra.mxu0 0.0
    %10971 = vmatprep.subr.mxu0 0.0
    %10972 = vmatpush1.msra.mxu0 0.0
    %10973 = vmatprep.subr.mxu0 0.0
    %10974 = vmatpush1.msra.mxu0 0.0
    %10975 = vmatprep.subr.mxu0 0.0
    %10976 = vmatpush1.msra.mxu0 0.0
    %10977 = vmatprep.subr.mxu0 0.0
    %10978 = vmatpush1.msra.mxu0 0.0
    %10979 = vmatprep.subr.mxu0 0.0
    %10980 = vmatpush1.msra.mxu0 0.0
    %10981 = vmatprep.subr.mxu0 0.0
    %10982 = vmatpush1.msra.mxu0 0.0
    %10983 = vmatprep.subr.mxu0 0.0
    %10984 = vmatpush1.msra.mxu0 0.0
    %10985 = vmatprep.subr.mxu0 0.0
    %10986 = vmatpush1.msra.mxu0 0.0
    %10987 = vmatprep.subr.mxu0 0.0
    %10988 = vmatpush1.msra.mxu0 0.0
    %10989 = vmatprep.subr.mxu0 0.0
    %10990 = vmatpush1.msra.mxu0 0.0
    %10991 = vmatprep.subr.mxu0 0.0
    %10992 = vmatpush1.msra.mxu0 0.0
    %10993 = vmatprep.subr.mxu0 0.0
    %10994 = vmatpush1.msra.mxu0 0.0
    %10995 = vmatprep.subr.mxu0 0.0
    %10996 = vmatpush1.msra.mxu0 0.0
    %10997 = vmatprep.subr.mxu0 0.0
    %10998 = vmatpush1.msra.mxu0 0.0
    %10999 = vmatprep.subr.mxu0 0.0
    %11000 = vmatpush1.msra.mxu0 0.0
    %11001 = vmatprep.subr.mxu0 0.0
    %11002 = vmatpush1.msra.mxu0 0.0
    %11003 = vmatprep.subr.mxu0 0.0
    %11004 = vmatpush1.msra.mxu0 0.0
    %11005 = vmatprep.subr.mxu0 0.0
    %11006 = vmatpush1.msra.mxu0 0.0
    %11007 = vmatprep.subr.mxu0 0.0
    %11008 = vmatpush1.msra.mxu0 0.0
    %11009 = vmatprep.subr.mxu0 0.0
    %11010 = vmatpush1.msra.mxu0 0.0
    %11011 = vmatprep.subr.mxu0 0.0
    %11012 = vmatpush1.msra.mxu0 0.0
    %11013 = vmatprep.subr.mxu0 0.0
    %11014 = vmatpush1.msra.mxu0 0.0
    %11015 = vmatprep.subr.mxu0 0.0
    %11016 = vmatpush1.msra.mxu0 0.0
    %11017 = vmatprep.subr.mxu0 0.0
    %11018 = vmatpush1.msra.mxu0 0.0
    %11019 = vmatprep.subr.mxu0 0.0
    %11020 = vmatpush1.msra.mxu0 0.0
    %11021 = vmatprep.subr.mxu0 0.0
    %11022 = vmatpush1.msra.mxu0 0.0
    %11023 = vmatprep.subr.mxu0 0.0
    %11024 = vmatpush1.msra.mxu0 0.0
    %11025 = vmatprep.subr.mxu0 0.0
    %11026 = vmatpush1.msra.mxu0 0.0
    %11027 = vmatprep.mubr.f32.mxu0 0.0
    %11028 = vmatmul.mubr.f32.gmra.mrb[0].mxu0 %v10891
    %v11029 = vpop.f32.mrb[0].mxu0
    %v11030 = vadd.f32 %v10194, %v11029
    %v11031 = vpop.f32.mrb[0].mxu0
    %11032 = vdwg.mxu0
    %11033 = vmatprep.subr.mxu0 0.0
    %11034 = vmatpush1.msra.mxu0 %v10267
    %11035 = vmatprep.subr.mxu0 0.0
    %11036 = vmatpush1.msra.mxu0 %v10268
    %11037 = vmatprep.subr.mxu0 0.0
    %11038 = vmatpush1.msra.mxu0 0.0
    %11039 = vmatprep.subr.mxu0 0.0
    %11040 = vmatpush1.msra.mxu0 0.0
    %11041 = vmatprep.subr.mxu0 0.0
    %11042 = vmatpush1.msra.mxu0 0.0
    %11043 = vmatprep.subr.mxu0 0.0
    %11044 = vmatpush1.msra.mxu0 0.0
    %11045 = vmatprep.subr.mxu0 0.0
    %11046 = vmatpush1.msra.mxu0 0.0
    %11047 = vmatprep.subr.mxu0 0.0
    %11048 = vmatpush1.msra.mxu0 0.0
    %11049 = vmatprep.subr.mxu0 0.0
    %11050 = vmatpush1.msra.mxu0 0.0
    %11051 = vmatprep.subr.mxu0 0.0
    %11052 = vmatpush1.msra.mxu0 0.0
    %11053 = vmatprep.subr.mxu0 0.0
    %11054 = vmatpush1.msra.mxu0 0.0
    %11055 = vmatprep.subr.mxu0 0.0
    %11056 = vmatpush1.msra.mxu0 0.0
    %11057 = vmatprep.subr.mxu0 0.0
    %11058 = vmatpush1.msra.mxu0 0.0
    %11059 = vmatprep.subr.mxu0 0.0
    %11060 = vmatpush1.msra.mxu0 0.0
    %11061 = vmatprep.subr.mxu0 0.0
    %11062 = vmatpush1.msra.mxu0 0.0
    %11063 = vmatprep.subr.mxu0 0.0
    %11064 = vmatpush1.msra.mxu0 0.0
    %11065 = vmatprep.subr.mxu0 0.0
    %11066 = vmatpush1.msra.mxu0 0.0
    %11067 = vmatprep.subr.mxu0 0.0
    %11068 = vmatpush1.msra.mxu0 0.0
    %11069 = vmatprep.subr.mxu0 0.0
    %11070 = vmatpush1.msra.mxu0 0.0
    %11071 = vmatprep.subr.mxu0 0.0
    %11072 = vmatpush1.msra.mxu0 0.0
    %11073 = vmatprep.subr.mxu0 0.0
    %11074 = vmatpush1.msra.mxu0 0.0
    %11075 = vmatprep.subr.mxu0 0.0
    %11076 = vmatpush1.msra.mxu0 0.0
    %11077 = vmatprep.subr.mxu0 0.0
    %11078 = vmatpush1.msra.mxu0 0.0
    %11079 = vmatprep.subr.mxu0 0.0
    %11080 = vmatpush1.msra.mxu0 0.0
    %11081 = vmatprep.subr.mxu0 0.0
    %11082 = vmatpush1.msra.mxu0 0.0
    %11083 = vmatprep.subr.mxu0 0.0
    %11084 = vmatpush1.msra.mxu0 0.0
    %11085 = vmatprep.subr.mxu0 0.0
    %11086 = vmatpush1.msra.mxu0 0.0
    %11087 = vmatprep.subr.mxu0 0.0
    %11088 = vmatpush1.msra.mxu0 0.0
    %11089 = vmatprep.subr.mxu0 0.0
    %11090 = vmatpush1.msra.mxu0 0.0
    %11091 = vmatprep.subr.mxu0 0.0
    %11092 = vmatpush1.msra.mxu0 0.0
    %11093 = vmatprep.subr.mxu0 0.0
    %11094 = vmatpush1.msra.mxu0 0.0
    %11095 = vmatprep.subr.mxu0 0.0
    %11096 = vmatpush1.msra.mxu0 0.0
    %11097 = vmatprep.mubr.f32.mxu0 0.0
    %11098 = vmatmul.mubr.f32.gmra.mrb[0].mxu0 %v10891
    %v11099 = vpop.f32.mrb[0].mxu0
    %v11100 = vadd.f32 %v10275, %v11099
    %v11101 = vpop.f32.mrb[0].mxu0
    %11102 = vdwg.mxu0
    %v11104 = vrot.slane %v10960, 2
    %v11106 = vadd.f32 %v9939, %v11104
    %v11107 = vxor.u32 %v11106, 2147483648
    %v11108 = vmul.f32 %v11107, 1.442695
    %v11109 = vpow.pop %v11108
    %v11110 = vadd.f32 %v11109, 1.0
    %v11111 = vrcp.pop %v11110
    %v11112 = vmul.f32 1.0, %v11111
    %v11114 = vrot.slane %v11030, 2
    %v11116 = vadd.f32 %v10019, %v11114
    %v11117 = vxor.u32 %v11116, 2147483648
    %v11118 = vmul.f32 %v11117, 1.442695
    %v11119 = vpow.pop %v11118
    %v11120 = vadd.f32 %v11119, 1.0
    %v11121 = vrcp.pop %v11120
    %v11122 = vmul.f32 1.0, %v11121
    %v11124 = vrot.slane %v11100, 2
    %v11126 = vmul.f32 %v11112, %v11124
    %v11127 = vadd.f32 %v10099, %v11126
    %v11128 = vtanh.pop %v11127
    %v11129 = vsub.f32 1.0, %v11122
    %v11130 = vmul.f32 %v11129, %v11128
    %v11131 = vrot.slane %v10889, 2
    %v11133 = vmul.f32 %v11122, %v11131
    %v11134 = vadd.f32 %v11130, %v11133
    %s11135 = scalar_lea.vmem %s13, 6
    %v11136 = vld [vmem:[%s11135] sm:$0x3]
    %vm11137 = vcmp.gt.f32.partialorder %v11136, 0.5
    %v11138 = vsel %vm11137, 1, 0
    %11139 = vset.pattern.permute.xlu0 0
    %11140 = vperm.xlu0 %11139, %v11138
    %v11141 = vpop.permute.xlu0 %11140
    %vm11142 = vcmp.eq.s32.totalorder %v11141, 1
    %v11144 = vrot.slane %v11134, 6
    %v11146 = vsel %vm11142, %v11144, %v10889
    %v11147 = vld [vmem:[%s11] sm:$0xff]
    %v11148 = vld [vmem:[%s11 + $0x8] sm:$0xff]
    %v11149 = vld [vmem:[%s12] sm:$0x1]
    %v11151 = vlaneseq
    %v11152 = vshrl.u32 %v11151, 7
    %v11153 = vsub.s32 0, %v11152
    %v11154 = vrot.slane %v11149, %v11153
    %v11157 = vsel %vm10111, %v11146, 0
    %11159 = vmatprep.subr.mxu0 0.0
    %11160 = vmatpush1.msra.mxu0 %v11147
    %11161 = vmatprep.subr.mxu0 0.0
    %11162 = vmatpush1.msra.mxu0 %v11148
    %11163 = vmatprep.subr.mxu0 0.0
    %11164 = vmatpush1.msra.mxu0 0.0
    %11165 = vmatprep.subr.mxu0 0.0
    %11166 = vmatpush1.msra.mxu0 0.0
    %11167 = vmatprep.subr.mxu0 0.0
    %11168 = vmatpush1.msra.mxu0 0.0
    %11169 = vmatprep.subr.mxu0 0.0
    %11170 = vmatpush1.msra.mxu0 0.0
    %11171 = vmatprep.subr.mxu0 0.0
    %11172 = vmatpush1.msra.mxu0 0.0
    %11173 = vmatprep.subr.mxu0 0.0
    %11174 = vmatpush1.msra.mxu0 0.0
    %11175 = vmatprep.subr.mxu0 0.0
    %11176 = vmatpush1.msra.mxu0 0.0
    %11177 = vmatprep.subr.mxu0 0.0
    %11178 = vmatpush1.msra.mxu0 0.0
    %11179 = vmatprep.subr.mxu0 0.0
    %11180 = vmatpush1.msra.mxu0 0.0
    %11181 = vmatprep.subr.mxu0 0.0
    %11182 = vmatpush1.msra.mxu0 0.0
    %11183 = vmatprep.subr.mxu0 0.0
    %11184 = vmatpush1.msra.mxu0 0.0
    %11185 = vmatprep.subr.mxu0 0.0
    %11186 = vmatpush1.msra.mxu0 0.0
    %11187 = vmatprep.subr.mxu0 0.0
    %11188 = vmatpush1.msra.mxu0 0.0
    %11189 = vmatprep.subr.mxu0 0.0
    %11190 = vmatpush1.msra.mxu0 0.0
    %11191 = vmatprep.subr.mxu0 0.0
    %11192 = vmatpush1.msra.mxu0 0.0
    %11193 = vmatprep.subr.mxu0 0.0
    %11194 = vmatpush1.msra.mxu0 0.0
    %11195 = vmatprep.subr.mxu0 0.0
    %11196 = vmatpush1.msra.mxu0 0.0
    %11197 = vmatprep.subr.mxu0 0.0
    %11198 = vmatpush1.msra.mxu0 0.0
    %11199 = vmatprep.subr.mxu0 0.0
    %11200 = vmatpush1.msra.mxu0 0.0
    %11201 = vmatprep.subr.mxu0 0.0
    %11202 = vmatpush1.msra.mxu0 0.0
    %11203 = vmatprep.subr.mxu0 0.0
    %11204 = vmatpush1.msra.mxu0 0.0
    %11205 = vmatprep.subr.mxu0 0.0
    %11206 = vmatpush1.msra.mxu0 0.0
    %11207 = vmatprep.subr.mxu0 0.0
    %11208 = vmatpush1.msra.mxu0 0.0
    %11209 = vmatprep.subr.mxu0 0.0
    %11210 = vmatpush1.msra.mxu0 0.0
    %11211 = vmatprep.subr.mxu0 0.0
    %11212 = vmatpush1.msra.mxu0 0.0
    %11213 = vmatprep.subr.mxu0 0.0
    %11214 = vmatpush1.msra.mxu0 0.0
    %11215 = vmatprep.subr.mxu0 0.0
    %11216 = vmatpush1.msra.mxu0 0.0
    %11217 = vmatprep.subr.mxu0 0.0
    %11218 = vmatpush1.msra.mxu0 0.0
    %11219 = vmatprep.subr.mxu0 0.0
    %11220 = vmatpush1.msra.mxu0 0.0
    %11221 = vmatprep.subr.mxu0 0.0
    %11222 = vmatpush1.msra.mxu0 0.0
    %11223 = vmatprep.mubr.f32.mxu0 0.0
    %11224 = vmatmul.mubr.f32.gmra.mrb[0].mxu0 %v11157
    %v11225 = vpop.f32.mrb[0].mxu0
    %v11226 = vadd.f32 %v11154, %v11225
    %v11227 = vpop.f32.mrb[0].mxu0
    %11228 = vdwg.mxu0
    %vm11229 = vcmask 33792
    %v11230 = vsel %vm11229, %v11226, -inf
    %11231 = vmax.xlane.f32.xlu0 %v11230
    %v11232 = vpop.xlane.xlu0 %11231
    %v11233 = vsub.f32 %v11226, %v11232
    %v11234 = vmul.f32 %v11233, 1.442695
    %v11235 = vpow.pop %v11234
    %v11236 = vsel %vm11229, %v11235, 0.0
    %11237 = vadd.xlane.f32.xlu0 %v11236
    %v11238 = vpop.xlane.xlu0 %11237
    %v11239 = vlog2.pop %v11238
    %v11240 = vmul.f32 %v11239, 0.6931472
    %v11241 = vadd.f32 %v11240, %v11232
    %v11242 = vsub.f32 %v11226, %v11241
    %11243 = vst.msk [vmem:[#allocation2] sm:$0x3] %vm11229, %v11242
    // Predicated region
    $region58: #{net_forward.1} parent=1 // pred_check
      _
    $region59: #{net_forward.1} parent=1 // pred_check_branch
      %11245 = sbr.rel (0) target = $region61
    $region60: #{net_forward.1} parent=1 // pred_region
      %s11247 = ssub.s32 32, 32
      %11248 = vsyncadd [#allocation3], %s11247
      %s11250 = sshll.u32 [#allocation2], 4
      %s11251 = int_to_ptr.vmem [resolvable:$true] %s11250
      %11253 = dma.vmem_to_hbm [thread:$0]  %s11251, 32, %s14, [#allocation3]
    $region61: #{net_forward.1} parent=1 // pred_fallthru
      _
    // Predicated region
    $region62: #{net_forward.1} parent=1 // pred_check
      _
    $region63: #{net_forward.1} parent=1 // pred_check_branch
      %11255 = sbr.rel (0) target = $region65
    $region64: #{net_forward.1} parent=1 // pred_region
      %11256 = dma.done [#allocation3], 32
    $region65: #{net_forward.1} parent=1 // pred_fallthru
      _
    %11257 = vsyncpa [#allocation3], 1

</llo_original>
